<compile_context>
chip_gen: v7x
topology: tpu7x:2x2x1
jax: 0.10.0
libtpu: 0.0.40
codegen_flags: <defaults>
</compile_context>

<pallas_src>
import functools

import jax
import jax.numpy as jnp
from jax import lax
from jax.experimental import pallas as pl
from jax.experimental.pallas import tpu as pltpu


def _mha_flash_kernel(x_q_ref, x_kv_ref, wqkv_ref, wproj_ref, bias_ref, o_ref,
                      y_acc, q_scr, m_scr, l_scr, o_acc,
                      *, group: int, head_dim: int, scale: float, exp_dtype):
    """One grid step = (batch b, q-tile qi, head-group hg, kv-tile kv).

    VMEM blocks:
      x_q_ref   (1, tq,  C)      q-tile rows of x (single-buffered)
      x_kv_ref  (1, tkv, C)      kv-tile rows of x (double-buffered stream)
      wqkv_ref  (3, 1, G*hd, C)  q/k/v weight rows for head group hg (torch (out,in))
      wproj_ref (1, G*hd, C)     out-proj rows (of Wproj^T) for head group hg
      bias_ref  (1, C)           out-proj bias (f32)
      o_ref     (1, tq, C)       output q-tile (written on the last hg/kv step)
    Scratch (persists across grid steps):
      y_acc (tq, C)       f32  running sum over head groups of out_hg @ Wproj_hg
      q_scr (G, tq, hd)   cdt  scaled q for the current (b, qi, hg)
      m_scr (G, tq, 1)    f32  online-softmax running max (per head)
      l_scr (G, tq, 1)    f32  online-softmax running denominator (per head)
      o_acc (G, tq, hd)   f32  online-softmax running numerator (P @ V)
    """
    hg = pl.program_id(2)
    kv = pl.program_id(3)
    last_hg = pl.num_programs(2) - 1
    last_kv = pl.num_programs(3) - 1
    G, hd = group, head_dim
    cdt = x_q_ref.dtype                     # dtype fed to the MXU (f32 or bf16)

    # Contract the trailing axis of both operands (x @ W^T in torch terms).
    def matmul_ct(a, b):                    # (M, K) x (D, K) -> (M, D), f32 acc
        return lax.dot_general(a, b, (((1,), (1,)), ((), ())),
                               preferred_element_type=jnp.float32)

    # ---- per-(b, q-tile) init: zero the output-projection accumulator ----
    @pl.when((hg == 0) & (kv == 0))
    def _init_tile():
        y_acc[...] = jnp.zeros_like(y_acc)

    # ---- per-(b, q-tile, head-group) init on the first kv tile ----
    @pl.when(kv == 0)
    def _init_group():
        xq = x_q_ref[0]                                          # (tq, C)
        # Full-MXU-width projection: free dim is G*hd, not hd.
        q_all = matmul_ct(xq, wqkv_ref[0, 0]) * scale            # (tq, G*hd) f32
        for g in range(G):                                       # static unroll
            q_scr[g] = q_all[:, g * hd:(g + 1) * hd].astype(q_scr.dtype)
        m_scr[...] = jnp.full_like(m_scr, -jnp.inf)
        l_scr[...] = jnp.zeros_like(l_scr)
        o_acc[...] = jnp.zeros_like(o_acc)

    # ---- current kv tile: group-wide K/V projection + per-head online softmax ----
    # Weight-first projections produce K^T / V^T directly as (G*hd, tkv): the MXU
    # free dim is G*hd (full width) and each head is a contiguous sublane block,
    # so no relayout is needed on the hot path.
    xkv = x_kv_ref[0]                                            # (tkv, C)
    kt = matmul_ct(wqkv_ref[1, 0], xkv).astype(cdt)              # (G*hd, tkv) = K^T
    vt = matmul_ct(wqkv_ref[2, 0], xkv).astype(cdt)              # (G*hd, tkv) = V^T

    for g in range(G):                                           # static unroll
        k_g = kt[g * hd:(g + 1) * hd, :]                         # (hd, tkv)
        v_g = vt[g * hd:(g + 1) * hd, :]                         # (hd, tkv)
        s = jnp.dot(q_scr[g], k_g,
                    preferred_element_type=jnp.float32)          # (tq, tkv) f32
        m_prev = m_scr[g]
        m_new = jnp.maximum(m_prev, jnp.max(s, axis=-1, keepdims=True))
        alpha = jnp.exp(m_prev - m_new)
        # EUP-bound step: optionally exponentiate in bf16 (v6e/v7x), sum in f32.
        p = jnp.exp((s - m_new).astype(exp_dtype))
        l_scr[g] = alpha * l_scr[g] + jnp.sum(p, axis=-1, keepdims=True,
                                              dtype=jnp.float32)
        o_acc[g] = alpha * o_acc[g] + matmul_ct(p.astype(cdt), v_g)   # (tq, hd) f32
        m_scr[g] = m_new

    # ---- last kv tile: finish this head group, fold into the out-projection ----
    @pl.when(kv == last_kv)
    def _finish_group():
        # Exact divide: once per head group on (tq, hd) vectors, off the hot path.
        outs = [o_acc[g] * (1.0 / l_scr[g]) for g in range(G)]   # f32
        out2d = jnp.concatenate(outs, axis=-1) if G > 1 else outs[0]  # (tq, G*hd)
        # TODO(synk): keeping the out-proj LHS in f32 (instead of cdt) would remove
        # one bf16 rounding point at the cost of an f32 MXU pass.
        y_acc[...] += jnp.dot(out2d.astype(cdt), wproj_ref[0],
                              preferred_element_type=jnp.float32)     # (tq, C)

        @pl.when(hg == last_hg)
        def _write_out():
            o_ref[0] = (y_acc[...] + bias_ref[...]).astype(o_ref.dtype)


def _tpu_generation():
    try:
        kind = jax.devices()[0].device_kind.lower()
    except Exception:
        return None
    for tag, gen in (("v7", 7), ("tpu7", 7), ("v6", 6), ("v5", 5),
                     ("v4", 4), ("v3", 3)):
        if tag in kind:
            return gen
    return None


def _mxu_lane_width():
    gen = _tpu_generation()
    return 128 if (gen is not None and gen <= 5) else 256


def _vmem_capacity_bytes():
    try:
        return pltpu.get_tpu_info().vmem_capacity_bytes
    except Exception:
        gen = _tpu_generation()
        return (64 if gen == 7 else 128) * 1024 * 1024


def _default_vmem_limit():
    """Raise the scoped-VMEM ceiling above the 16/32 MiB default, leaving
    headroom below the chip's physical VMEM (64 MiB v7x, 128 MiB v5e/v6e)."""
    cap = _vmem_capacity_bytes()
    limit = min(cap - 16 * 1024 * 1024, 100 * 1024 * 1024)
    return limit if limit > 0 else None


def _largest_divisor_leq(n, cap):
    cap = max(1, min(n, cap))
    for d in range(cap, 0, -1):
        if n % d == 0:
            return d
    return 1


def lab_attention(x, wqkv, wproj, bproj, *, num_heads,
                  q_tile=None, kv_tile=None, head_group=None,
                  compute_dtype=None, exp_dtype=None, vmem_limit_bytes="auto"):
    """x: (B, N, C); wqkv: (3C, C) torch (out, in); wproj: (C, C) torch (out, in);
    bproj: (C,).

    compute_dtype: optional MXU operand dtype (e.g. jnp.bfloat16); accumulators and
      softmax statistics always stay f32, output keeps x.dtype.
    exp_dtype: softmax-exponential dtype; defaults to bf16 when compute_dtype is
      bf16 on v6e/v7x (bf16 EUP), f32 otherwise / on v5e.
    head_group: heads per grid step (default fills the MXU lane width).
    """
    B, N, C = x.shape
    assert C % num_heads == 0, "dim must be divisible by num_heads"
    head_dim = C // num_heads
    scale = head_dim ** (-0.5)
    out_dtype = x.dtype
    cdt = jnp.dtype(compute_dtype) if compute_dtype is not None else jnp.dtype(x.dtype)
    gen = _tpu_generation()

    # ---- head grouping: restore full MXU width on projection GEMMs ----
    if head_group is None:
        head_group = _largest_divisor_leq(num_heads,
                                          max(1, _mxu_lane_width() // head_dim))
    assert num_heads % head_group == 0, "num_heads must be divisible by head_group"
    G = head_group
    n_hg = num_heads // G

    # ---- q tiling: bound per-step residency (matters on v7x's 64 MiB VMEM).
    # Keep the whole sequence in one q tile when it fits, since K/V projections
    # are recomputed once per q tile. ----
    if q_tile is None:
        q_tile = N
        per_row = C * (cdt.itemsize + jnp.dtype(out_dtype).itemsize + 4)  # x_q+out+y_acc
        if N * per_row > _vmem_capacity_bytes() // 4:
            for cand in (2048, 1024, 512, 256):
                if N % cand == 0:
                    q_tile = cand
                    break
    assert N % q_tile == 0, "seq len must be divisible by q_tile"
    n_q = N // q_tile

    # ---- kv tiling: generation-aware (512/256 on v6e/v7x, 256 on v5e) ----
    if kv_tile is None:
        kv_tile = N
        candidates = (512, 256, 128) if (gen is None or gen >= 6) else (256, 128)
        if gen == 7 and G * q_tile >= 4096:
            candidates = (256, 512, 128)   # keep (tq, tkv) f32 temps modest on 64 MiB
        for cand in candidates:
            if N % cand == 0:
                kv_tile = cand
                break
    assert N % kv_tile == 0, "seq len must be divisible by kv_tile"
    n_kv = N // kv_tile

    if exp_dtype is None:
        exp_dtype = (jnp.bfloat16 if (cdt == jnp.bfloat16 and (gen is None or gen >= 6))
                     else jnp.float32)
    exp_dtype = jnp.dtype(exp_dtype)

    if vmem_limit_bytes == "auto":
        vmem_limit_bytes = _default_vmem_limit()

    # Layout-only weight prep (folds away under jit; weights are call constants):
    #   Wqkv: pure reshape of the torch (3C, C) layout, grouped by head group.
    #   Wproj: one C x C transpose so each head-group block is a lane-dense
    #   (G*hd, C) tile of Wproj^T.
    wqkv_r = wqkv.reshape(3, n_hg, G * head_dim, C).astype(cdt)
    wproj_r = wproj.T.reshape(n_hg, G * head_dim, C).astype(cdt)
    bias_r = bproj.reshape(1, C).astype(jnp.float32)
    x_c = x.astype(cdt)

    kernel = functools.partial(_mha_flash_kernel, group=G, head_dim=head_dim,
                               scale=scale, exp_dtype=exp_dtype)

    def _spec(shape, index_map, buffers=None):
        if buffers is not None:
            try:
                return pl.BlockSpec(shape, index_map,
                                    pipeline_mode=pl.Buffered(buffers))
            except Exception:           # pipeline_mode / Buffered unavailable
                pass
        return pl.BlockSpec(shape, index_map)

    def _run(single_buffer_resident):
        res_buf = 1 if single_buffer_resident else None
        return pl.pallas_call(
            kernel,
            out_shape=jax.ShapeDtypeStruct((B, N, C), out_dtype),
            grid_spec=pltpu.PrefetchScalarGridSpec(
                num_scalar_prefetch=0,
                grid=(B, n_q, n_hg, n_kv),
                in_specs=[
                    # x q-tile: block index changes only on (b, qi) -> single
                    # buffer (halves the largest resident input).
                    _spec((1, q_tile, C), lambda b, qi, hg, kv: (b, qi, 0),
                          buffers=res_buf),
                    # x kv-tile: streams every step -> default double buffer.
                    _spec((1, kv_tile, C), lambda b, qi, hg, kv: (b, kv, 0)),
                    # per-head-group q/k/v weight rows.
                    _spec((3, 1, G * head_dim, C),
                          lambda b, qi, hg, kv: (0, hg, 0, 0)),
                    # per-head-group out-projection rows (of Wproj^T).
                    _spec((1, G * head_dim, C), lambda b, qi, hg, kv: (hg, 0, 0)),
                    # out-projection bias.
                    _spec((1, C), lambda b, qi, hg, kv: (0, 0)),
                ],
                out_specs=_spec((1, q_tile, C), lambda b, qi, hg, kv: (b, qi, 0),
                                buffers=res_buf),
                scratch_shapes=[
                    pltpu.VMEM((q_tile, C), jnp.float32),             # y_acc
                    pltpu.VMEM((G, q_tile, head_dim), cdt),           # q_scr
                    # TODO(synk): (G, tq, 1) f32 stats pad to 128 lanes; pack m/l
                    # into a single buffer if v7x VMEM ever gets tight.
                    pltpu.VMEM((G, q_tile, 1), jnp.float32),          # m_scr
                    pltpu.VMEM((G, q_tile, 1), jnp.float32),          # l_scr
                    pltpu.VMEM((G, q_tile, head_dim), jnp.float32),   # o_acc
                ],
            ),
            compiler_params=pltpu.CompilerParams(
                # b / q-tile are independent -> "parallel" (megacore / v7x 2-TC,
                # even at B==1); head-group and kv carry scratch reductions ->
                # must stay "arbitrary" and innermost.
                dimension_semantics=("parallel", "parallel",
                                     "arbitrary", "arbitrary"),
                vmem_limit_bytes=vmem_limit_bytes,
            ),
        )(x_c, x_c, wqkv_r, wproj_r, bias_r)

    try:
        return _run(True)
    except Exception:
        # TODO(synk): drop this fallback once pl.Buffered(1) single-buffering is
        # confirmed on all deployed jaxlib versions.
        return _run(False)


def lab_attention_ref(x, wqkv, wproj, bproj, *, num_heads):
    """Pure-JAX reference mirroring the PyTorch forward (eval mode)."""
    B, N, C = x.shape
    head_dim = C // num_heads
    scale = head_dim ** (-0.5)
    qkv = jnp.einsum('bnc,oc->bno', x, wqkv)                       # (B, N, 3C)
    qkv = qkv.reshape(B, N, 3, num_heads, head_dim).transpose(2, 0, 3, 1, 4)
    q, k, v = qkv[0], qkv[1], qkv[2]                               # (B, H, N, hd)
    q = q * scale
    attn = jax.nn.softmax(jnp.einsum('bhnd,bhmd->bhnm', q, k), axis=-1)
    out = jnp.einsum('bhnm,bhmd->bhnd', attn, v)                   # (B, H, N, hd)
    out = out.transpose(0, 2, 1, 3).reshape(B, N, C)
    return jnp.einsum('bnc,oc->bno', out, wproj) + bproj


if __name__ == "__main__":
    # ---- small shapes consistent with the module: B=2, N=8, C=32, 8 heads ----
    B, N, C, H = 2, 8, 32, 8
    key = jax.random.PRNGKey(0)
    kx, kqkv, kproj, kb = jax.random.split(key, 4)
    x = jax.random.normal(kx, (B, N, C), dtype=jnp.float32)
    wqkv = jax.random.normal(kqkv, (3 * C, C), dtype=jnp.float32) * 0.05  # torch (out, in)
    wproj = jax.random.normal(kproj, (C, C), dtype=jnp.float32) * 0.05
    bproj = jax.random.normal(kb, (C,), dtype=jnp.float32) * 0.05

    y = jax.block_until_ready(lab_attention(x, wqkv, wproj, bproj, num_heads=H))
    y_ref = lab_attention_ref(x, wqkv, wproj, bproj, num_heads=H)
    assert y.shape == (B, N, C)
    assert jnp.allclose(y, y_ref, rtol=1e-4, atol=1e-5), "f32 mismatch vs reference"

    # ---- exercise every grid axis: q-tiling, head groups, multi-kv online softmax ----
    B2, N2, C2, H2 = 2, 256, 128, 8
    kx2, kqkv2, kproj2, kb2 = jax.random.split(jax.random.PRNGKey(1), 4)
    x2 = jax.random.normal(kx2, (B2, N2, C2), dtype=jnp.float32)
    wqkv2 = jax.random.normal(kqkv2, (3 * C2, C2), dtype=jnp.float32) * 0.05
    wproj2 = jax.random.normal(kproj2, (C2, C2), dtype=jnp.float32) * 0.05
    bproj2 = jax.random.normal(kb2, (C2,), dtype=jnp.float32) * 0.05
    y2_ref = lab_attention_ref(x2, wqkv2, wproj2, bproj2, num_heads=H2)

    y2a = jax.block_until_ready(                       # auto tiling / grouping
        lab_attention(x2, wqkv2, wproj2, bproj2, num_heads=H2))
    assert jnp.allclose(y2a, y2_ref, rtol=2e-2, atol=2e-3), "auto-tiled mismatch"

    y2b = jax.block_until_ready(                       # grid (2, 2, 4, 2)
        lab_attention(x2, wqkv2, wproj2, bproj2, num_heads=H2,
                      q_tile=128, kv_tile=128, head_group=2))
    assert jnp.allclose(y2b, y2_ref, rtol=2e-2, atol=2e-3), "tiled-grid mismatch"

    # ---- bf16 MXU operands (and bf16 exp on v6e/v7x), f32 accumulation / output ----
    y_bf16 = jax.block_until_ready(
        lab_attention(x, wqkv, wproj, bproj, num_heads=H,
                      compute_dtype=jnp.bfloat16))
    assert y_bf16.dtype == x.dtype
    assert jnp.allclose(y_bf16, y_ref, rtol=5e-2, atol=5e-2), "bf16 mismatch vs reference"

    print("KERNEL_OK")
</pallas_src>

<mosaic_0001>
module attributes {stable_mosaic.version = 11 : i64} {
  func.func @_mha_flash_kernel(%arg0: i32, %arg1: i32, %arg2: i32, %arg3: i32, %arg4: memref<1x8x32xf32, #tpu.memory_space<vmem>>, %arg5: memref<1x8x32xf32, #tpu.memory_space<vmem>>, %arg6: memref<3x1x32x32xf32, #tpu.memory_space<vmem>>, %arg7: memref<1x32x32xf32, #tpu.memory_space<vmem>>, %arg8: memref<1x32xf32, #tpu.memory_space<vmem>>, %arg9: memref<1x8x32xf32, #tpu.memory_space<vmem>>, %arg10: memref<8x32xf32, #tpu.memory_space<vmem>>, %arg11: memref<8x8x4xf32, #tpu.memory_space<vmem>>, %arg12: memref<8x8x1xf32, #tpu.memory_space<vmem>>, %arg13: memref<8x8x1xf32, #tpu.memory_space<vmem>>, %arg14: memref<8x8x4xf32, #tpu.memory_space<vmem>>) attributes {dimension_semantics = [#tpu.dimension_semantics<parallel>, #tpu.dimension_semantics<parallel>, #tpu.dimension_semantics<arbitrary>, #tpu.dimension_semantics<arbitrary>], iteration_bounds = array<i64: 2, 1, 1, 1>, scalar_prefetch = 0 : i64, scratch_operands = 5 : i64, tpu.core_type = #tpu.core_type<tc>, window_params = [{pipeline_mode = #tpu.pipeline_mode<synchronous>, transform_indices = @transform_0, window_bounds = array<i64: 1, 8, 32>}, {transform_indices = @transform_1, window_bounds = array<i64: 1, 8, 32>}, {transform_indices = @transform_2, window_bounds = array<i64: 3, 1, 32, 32>}, {transform_indices = @transform_3, window_bounds = array<i64: 1, 32, 32>}, {pipeline_mode = #tpu.pipeline_mode<synchronous>, transform_indices = @transform_4, window_bounds = array<i64: 1, 32>}, {pipeline_mode = #tpu.pipeline_mode<synchronous>, transform_indices = @transform_5, window_bounds = array<i64: 1, 8, 32>}]} {
    %c0_i32 = arith.constant 0 : i32
    %0 = arith.cmpi eq, %arg2, %c0_i32 : i32
    %c0_i32_0 = arith.constant 0 : i32
    %1 = arith.cmpi eq, %arg3, %c0_i32_0 : i32
    %2 = arith.andi %0, %1 : i1
    %3 = arith.extui %2 : i1 to i32
    %c0_i32_1 = arith.constant 0 : i32
    %4 = arith.cmpi ne, %3, %c0_i32_1 : i32
    scf.if %4 {
      %cst_210 = arith.constant 0.000000e+00 : f32
      %307 = vector.broadcast %cst_210 : f32 to vector<8x32xf32>
      %c0_211 = arith.constant 0 : index
      %c0_212 = arith.constant 0 : index
      %308 = vector.load %arg10[%c0_211, %c0_212] : memref<8x32xf32, #tpu.memory_space<vmem>>, vector<8x32xf32>
      tpu.vector_store %arg10[%c0_211, %c0_212], %307 {strides = array<i32>} : memref<8x32xf32, #tpu.memory_space<vmem>>, vector<8x32xf32>,
    } else {
    }
    %c0_i32_2 = arith.constant 0 : i32
    %5 = arith.cmpi eq, %arg3, %c0_i32_2 : i32
    %6 = arith.extui %5 : i1 to i32
    %c0_i32_3 = arith.constant 0 : i32
    %7 = arith.cmpi ne, %6, %c0_i32_3 : i32
    scf.if %7 {
      %c0_210 = arith.constant 0 : index
      %c0_211 = arith.constant 0 : index
      %c0_212 = arith.constant 0 : index
      %307 = vector.load %arg4[%c0_210, %c0_211, %c0_212] : memref<1x8x32xf32, #tpu.memory_space<vmem>>, vector<1x8x32xf32>
      %308 = vector.shape_cast %307 : vector<1x8x32xf32> to vector<8x32xf32>
      %c0_213 = arith.constant 0 : index
      %c0_214 = arith.constant 0 : index
      %c0_215 = arith.constant 0 : index
      %c0_216 = arith.constant 0 : index
      %309 = vector.load %arg6[%c0_213, %c0_214, %c0_215, %c0_216] : memref<3x1x32x32xf32, #tpu.memory_space<vmem>>, vector<1x1x32x32xf32>
      %310 = vector.shape_cast %309 : vector<1x1x32x32xf32> to vector<32x32xf32>
      %cst_217 = arith.constant dense<0.000000e+00> : vector<8x32xf32>
      %311 = tpu.matmul %308, %310, %cst_217 {dimension_numbers = #tpu.dot_dimension_numbers<[1], [1], [0], [0], [0, 0, 1, 0], [], []>} : vector<8x32xf32>, vector<32x32xf32>, vector<8x32xf32> -> vector<8x32xf32>
      %cst_218 = arith.constant 5.000000e-01 : f32
      %312 = vector.broadcast %cst_218 : f32 to vector<8x32xf32>
      %313 = arith.mulf %311, %312 : vector<8x32xf32>
      %314 = vector.extract_strided_slice %313 {offsets = [0, 0], sizes = [8, 4], strides = [1, 1]} : vector<8x32xf32> to vector<8x4xf32>
      %c0_219 = arith.constant 0 : index
      %c0_220 = arith.constant 0 : index
      %c0_221 = arith.constant 0 : index
      %315 = vector.load %arg11[%c0_219, %c0_220, %c0_221] : memref<8x8x4xf32, #tpu.memory_space<vmem>>, vector<1x8x4xf32>
      %316 = vector.shape_cast %315 : vector<1x8x4xf32> to vector<8x4xf32>
      %317 = vector.shape_cast %314 : vector<8x4xf32> to vector<1x8x4xf32>
      tpu.vector_store %arg11[%c0_219, %c0_220, %c0_221], %317 {strides = array<i32>} : memref<8x8x4xf32, #tpu.memory_space<vmem>>, vector<1x8x4xf32>,
      %318 = vector.extract_strided_slice %313 {offsets = [0, 4], sizes = [8, 4], strides = [1, 1]} : vector<8x32xf32> to vector<8x4xf32>
      %c1_222 = arith.constant 1 : index
      %c0_223 = arith.constant 0 : index
      %c0_224 = arith.constant 0 : index
      %319 = vector.load %arg11[%c1_222, %c0_223, %c0_224] : memref<8x8x4xf32, #tpu.memory_space<vmem>>, vector<1x8x4xf32>
      %320 = vector.shape_cast %319 : vector<1x8x4xf32> to vector<8x4xf32>
      %321 = vector.shape_cast %318 : vector<8x4xf32> to vector<1x8x4xf32>
      tpu.vector_store %arg11[%c1_222, %c0_223, %c0_224], %321 {strides = array<i32>} : memref<8x8x4xf32, #tpu.memory_space<vmem>>, vector<1x8x4xf32>,
      %322 = vector.extract_strided_slice %313 {offsets = [0, 8], sizes = [8, 4], strides = [1, 1]} : vector<8x32xf32> to vector<8x4xf32>
      %c2_225 = arith.constant 2 : index
      %c0_226 = arith.constant 0 : index
      %c0_227 = arith.constant 0 : index
      %323 = vector.load %arg11[%c2_225, %c0_226, %c0_227] : memref<8x8x4xf32, #tpu.memory_space<vmem>>, vector<1x8x4xf32>
      %324 = vector.shape_cast %323 : vector<1x8x4xf32> to vector<8x4xf32>
      %325 = vector.shape_cast %322 : vector<8x4xf32> to vector<1x8x4xf32>
      tpu.vector_store %arg11[%c2_225, %c0_226, %c0_227], %325 {strides = array<i32>} : memref<8x8x4xf32, #tpu.memory_space<vmem>>, vector<1x8x4xf32>,
      %326 = vector.extract_strided_slice %313 {offsets = [0, 12], sizes = [8, 4], strides = [1, 1]} : vector<8x32xf32> to vector<8x4xf32>
      %c3_228 = arith.constant 3 : index
      %c0_229 = arith.constant 0 : index
      %c0_230 = arith.constant 0 : index
      %327 = vector.load %arg11[%c3_228, %c0_229, %c0_230] : memref<8x8x4xf32, #tpu.memory_space<vmem>>, vector<1x8x4xf32>
      %328 = vector.shape_cast %327 : vector<1x8x4xf32> to vector<8x4xf32>
      %329 = vector.shape_cast %326 : vector<8x4xf32> to vector<1x8x4xf32>
      tpu.vector_store %arg11[%c3_228, %c0_229, %c0_230], %329 {strides = array<i32>} : memref<8x8x4xf32, #tpu.memory_space<vmem>>, vector<1x8x4xf32>,
      %330 = vector.extract_strided_slice %313 {offsets = [0, 16], sizes = [8, 4], strides = [1, 1]} : vector<8x32xf32> to vector<8x4xf32>
      %c4_231 = arith.constant 4 : index
      %c0_232 = arith.constant 0 : index
      %c0_233 = arith.constant 0 : index
      %331 = vector.load %arg11[%c4_231, %c0_232, %c0_233] : memref<8x8x4xf32, #tpu.memory_space<vmem>>, vector<1x8x4xf32>
      %332 = vector.shape_cast %331 : vector<1x8x4xf32> to vector<8x4xf32>
      %333 = vector.shape_cast %330 : vector<8x4xf32> to vector<1x8x4xf32>
      tpu.vector_store %arg11[%c4_231, %c0_232, %c0_233], %333 {strides = array<i32>} : memref<8x8x4xf32, #tpu.memory_space<vmem>>, vector<1x8x4xf32>,
      %334 = vector.extract_strided_slice %313 {offsets = [0, 20], sizes = [8, 4], strides = [1, 1]} : vector<8x32xf32> to vector<8x4xf32>
      %c5_234 = arith.constant 5 : index
      %c0_235 = arith.constant 0 : index
      %c0_236 = arith.constant 0 : index
      %335 = vector.load %arg11[%c5_234, %c0_235, %c0_236] : memref<8x8x4xf32, #tpu.memory_space<vmem>>, vector<1x8x4xf32>
      %336 = vector.shape_cast %335 : vector<1x8x4xf32> to vector<8x4xf32>
      %337 = vector.shape_cast %334 : vector<8x4xf32> to vector<1x8x4xf32>
      tpu.vector_store %arg11[%c5_234, %c0_235, %c0_236], %337 {strides = array<i32>} : memref<8x8x4xf32, #tpu.memory_space<vmem>>, vector<1x8x4xf32>,
      %338 = vector.extract_strided_slice %313 {offsets = [0, 24], sizes = [8, 4], strides = [1, 1]} : vector<8x32xf32> to vector<8x4xf32>
      %c6_237 = arith.constant 6 : index
      %c0_238 = arith.constant 0 : index
      %c0_239 = arith.constant 0 : index
      %339 = vector.load %arg11[%c6_237, %c0_238, %c0_239] : memref<8x8x4xf32, #tpu.memory_space<vmem>>, vector<1x8x4xf32>
      %340 = vector.shape_cast %339 : vector<1x8x4xf32> to vector<8x4xf32>
      %341 = vector.shape_cast %338 : vector<8x4xf32> to vector<1x8x4xf32>
      tpu.vector_store %arg11[%c6_237, %c0_238, %c0_239], %341 {strides = array<i32>} : memref<8x8x4xf32, #tpu.memory_space<vmem>>, vector<1x8x4xf32>,
      %342 = vector.extract_strided_slice %313 {offsets = [0, 28], sizes = [8, 4], strides = [1, 1]} : vector<8x32xf32> to vector<8x4xf32>
      %c7_240 = arith.constant 7 : index
      %c0_241 = arith.constant 0 : index
      %c0_242 = arith.constant 0 : index
      %343 = vector.load %arg11[%c7_240, %c0_241, %c0_242] : memref<8x8x4xf32, #tpu.memory_space<vmem>>, vector<1x8x4xf32>
      %344 = vector.shape_cast %343 : vector<1x8x4xf32> to vector<8x4xf32>
      %345 = vector.shape_cast %342 : vector<8x4xf32> to vector<1x8x4xf32>
      tpu.vector_store %arg11[%c7_240, %c0_241, %c0_242], %345 {strides = array<i32>} : memref<8x8x4xf32, #tpu.memory_space<vmem>>, vector<1x8x4xf32>,
      %cst_243 = arith.constant 0xFF800000 : f32
      %346 = vector.broadcast %cst_243 : f32 to vector<8x8x1xf32>
      %c0_244 = arith.constant 0 : index
      %c0_245 = arith.constant 0 : index
      %c0_246 = arith.constant 0 : index
      %347 = vector.load %arg12[%c0_244, %c0_245, %c0_246] : memref<8x8x1xf32, #tpu.memory_space<vmem>>, vector<8x8x1xf32>
      tpu.vector_store %arg12[%c0_244, %c0_245, %c0_246], %346 {strides = array<i32>} : memref<8x8x1xf32, #tpu.memory_space<vmem>>, vector<8x8x1xf32>,
      %cst_247 = arith.constant 0.000000e+00 : f32
      %348 = vector.broadcast %cst_247 : f32 to vector<8x8x1xf32>
      %c0_248 = arith.constant 0 : index
      %c0_249 = arith.constant 0 : index
      %c0_250 = arith.constant 0 : index
      %349 = vector.load %arg13[%c0_248, %c0_249, %c0_250] : memref<8x8x1xf32, #tpu.memory_space<vmem>>, vector<8x8x1xf32>
      tpu.vector_store %arg13[%c0_248, %c0_249, %c0_250], %348 {strides = array<i32>} : memref<8x8x1xf32, #tpu.memory_space<vmem>>, vector<8x8x1xf32>,
      %cst_251 = arith.constant 0.000000e+00 : f32
      %350 = vector.broadcast %cst_251 : f32 to vector<8x8x4xf32>
      %c0_252 = arith.constant 0 : index
      %c0_253 = arith.constant 0 : index
      %c0_254 = arith.constant 0 : index
      %351 = vector.load %arg14[%c0_252, %c0_253, %c0_254] : memref<8x8x4xf32, #tpu.memory_space<vmem>>, vector<8x8x4xf32>
      tpu.vector_store %arg14[%c0_252, %c0_253, %c0_254], %350 {strides = array<i32>} : memref<8x8x4xf32, #tpu.memory_space<vmem>>, vector<8x8x4xf32>,
    } else {
    }
    %c0 = arith.constant 0 : index
    %c0_4 = arith.constant 0 : index
    %c0_5 = arith.constant 0 : index
    %8 = vector.load %arg5[%c0, %c0_4, %c0_5] : memref<1x8x32xf32, #tpu.memory_space<vmem>>, vector<1x8x32xf32>
    %9 = vector.shape_cast %8 : vector<1x8x32xf32> to vector<8x32xf32>
    %c1 = arith.constant 1 : index
    %c0_6 = arith.constant 0 : index
    %c0_7 = arith.constant 0 : index
    %c0_8 = arith.constant 0 : index
    %10 = vector.load %arg6[%c1, %c0_6, %c0_7, %c0_8] : memref<3x1x32x32xf32, #tpu.memory_space<vmem>>, vector<1x1x32x32xf32>
    %11 = vector.shape_cast %10 : vector<1x1x32x32xf32> to vector<32x32xf32>
    %cst = arith.constant dense<0.000000e+00> : vector<32x8xf32>
    %12 = tpu.matmul %11, %9, %cst {dimension_numbers = #tpu.dot_dimension_numbers<[1], [1], [0], [0], [0, 0, 1, 0], [], []>} : vector<32x32xf32>, vector<8x32xf32>, vector<32x8xf32> -> vector<32x8xf32>
    %c2 = arith.constant 2 : index
    %c0_9 = arith.constant 0 : index
    %c0_10 = arith.constant 0 : index
    %c0_11 = arith.constant 0 : index
    %13 = vector.load %arg6[%c2, %c0_9, %c0_10, %c0_11] : memref<3x1x32x32xf32, #tpu.memory_space<vmem>>, vector<1x1x32x32xf32>
    %14 = vector.shape_cast %13 : vector<1x1x32x32xf32> to vector<32x32xf32>
    %cst_12 = arith.constant dense<0.000000e+00> : vector<32x8xf32>
    %15 = tpu.matmul %14, %9, %cst_12 {dimension_numbers = #tpu.dot_dimension_numbers<[1], [1], [0], [0], [0, 0, 1, 0], [], []>} : vector<32x32xf32>, vector<8x32xf32>, vector<32x8xf32> -> vector<32x8xf32>
    %16 = vector.extract_strided_slice %12 {offsets = [0, 0], sizes = [4, 8], strides = [1, 1]} : vector<32x8xf32> to vector<4x8xf32>
    %17 = vector.extract_strided_slice %15 {offsets = [0, 0], sizes = [4, 8], strides = [1, 1]} : vector<32x8xf32> to vector<4x8xf32>
    %c0_13 = arith.constant 0 : index
    %c0_14 = arith.constant 0 : index
    %c0_15 = arith.constant 0 : index
    %18 = vector.load %arg11[%c0_13, %c0_14, %c0_15] : memref<8x8x4xf32, #tpu.memory_space<vmem>>, vector<1x8x4xf32>
    %19 = vector.shape_cast %18 : vector<1x8x4xf32> to vector<8x4xf32>
    %cst_16 = arith.constant dense<0.000000e+00> : vector<8x8xf32>
    %20 = tpu.matmul %19, %16, %cst_16 {dimension_numbers = #tpu.dot_dimension_numbers<[1], [0], [0], [1], [0, 0, 1, 1], [], []>} : vector<8x4xf32>, vector<4x8xf32>, vector<8x8xf32> -> vector<8x8xf32>
    %c0_17 = arith.constant 0 : index
    %c0_18 = arith.constant 0 : index
    %c0_19 = arith.constant 0 : index
    %21 = vector.load %arg12[%c0_17, %c0_18, %c0_19] : memref<8x8x1xf32, #tpu.memory_space<vmem>>, vector<1x8x1xf32>
    %22 = vector.shape_cast %21 : vector<1x8x1xf32> to vector<8x1xf32>
    %cst_20 = arith.constant dense<0xFF800000> : vector<8xf32>
    %23 = vector.multi_reduction <maximumf>, %20, %cst_20 [1] : vector<8x8xf32> to vector<8xf32>
    %24 = vector.shape_cast %23 : vector<8xf32> to vector<8x1xf32>
    %25 = arith.maximumf %22, %24 : vector<8x1xf32>
    %26 = arith.subf %22, %25 : vector<8x1xf32>
    %27 = math.exp %26 : vector<8x1xf32>
    %28 = vector.broadcast %25 : vector<8x1xf32> to vector<8x8xf32>
    %29 = arith.subf %20, %28 : vector<8x8xf32>
    %30 = math.exp %29 : vector<8x8xf32>
    %c0_21 = arith.constant 0 : index
    %c0_22 = arith.constant 0 : index
    %c0_23 = arith.constant 0 : index
    %31 = vector.load %arg13[%c0_21, %c0_22, %c0_23] : memref<8x8x1xf32, #tpu.memory_space<vmem>>, vector<1x8x1xf32>
    %32 = vector.shape_cast %31 : vector<1x8x1xf32> to vector<8x1xf32>
    %33 = arith.mulf %27, %32 : vector<8x1xf32>
    %cst_24 = arith.constant dense<0.000000e+00> : vector<8xf32>
    %34 = vector.multi_reduction <add>, %30, %cst_24 [1] : vector<8x8xf32> to vector<8xf32>
    %35 = vector.shape_cast %34 : vector<8xf32> to vector<8x1xf32>
    %36 = arith.addf %33, %35 : vector<8x1xf32>
    %c0_25 = arith.constant 0 : index
    %c0_26 = arith.constant 0 : index
    %c0_27 = arith.constant 0 : index
    %37 = vector.load %arg13[%c0_25, %c0_26, %c0_27] : memref<8x8x1xf32, #tpu.memory_space<vmem>>, vector<1x8x1xf32>
    %38 = vector.shape_cast %37 : vector<1x8x1xf32> to vector<8x1xf32>
    %39 = vector.shape_cast %36 : vector<8x1xf32> to vector<1x8x1xf32>
    tpu.vector_store %arg13[%c0_25, %c0_26, %c0_27], %39 {strides = array<i32>} : memref<8x8x1xf32, #tpu.memory_space<vmem>>, vector<1x8x1xf32>,
    %c0_28 = arith.constant 0 : index
    %c0_29 = arith.constant 0 : index
    %c0_30 = arith.constant 0 : index
    %40 = vector.load %arg14[%c0_28, %c0_29, %c0_30] : memref<8x8x4xf32, #tpu.memory_space<vmem>>, vector<1x8x4xf32>
    %41 = vector.shape_cast %40 : vector<1x8x4xf32> to vector<8x4xf32>
    %42 = vector.broadcast %27 : vector<8x1xf32> to vector<8x4xf32>
    %43 = arith.mulf %42, %41 : vector<8x4xf32>
    %cst_31 = arith.constant dense<0.000000e+00> : vector<8x4xf32>
    %44 = tpu.matmul %30, %17, %cst_31 {dimension_numbers = #tpu.dot_dimension_numbers<[1], [1], [0], [0], [0, 0, 1, 0], [], []>} : vector<8x8xf32>, vector<4x8xf32>, vector<8x4xf32> -> vector<8x4xf32>
    %45 = arith.addf %43, %44 : vector<8x4xf32>
    %c0_32 = arith.constant 0 : index
    %c0_33 = arith.constant 0 : index
    %c0_34 = arith.constant 0 : index
    %46 = vector.load %arg14[%c0_32, %c0_33, %c0_34] : memref<8x8x4xf32, #tpu.memory_space<vmem>>, vector<1x8x4xf32>
    %47 = vector.shape_cast %46 : vector<1x8x4xf32> to vector<8x4xf32>
    %48 = vector.shape_cast %45 : vector<8x4xf32> to vector<1x8x4xf32>
    tpu.vector_store %arg14[%c0_32, %c0_33, %c0_34], %48 {strides = array<i32>} : memref<8x8x4xf32, #tpu.memory_space<vmem>>, vector<1x8x4xf32>,
    %c0_35 = arith.constant 0 : index
    %c0_36 = arith.constant 0 : index
    %c0_37 = arith.constant 0 : index
    %49 = vector.load %arg12[%c0_35, %c0_36, %c0_37] : memref<8x8x1xf32, #tpu.memory_space<vmem>>, vector<1x8x1xf32>
    %50 = vector.shape_cast %49 : vector<1x8x1xf32> to vector<8x1xf32>
    %51 = vector.shape_cast %25 : vector<8x1xf32> to vector<1x8x1xf32>
    tpu.vector_store %arg12[%c0_35, %c0_36, %c0_37], %51 {strides = array<i32>} : memref<8x8x1xf32, #tpu.memory_space<vmem>>, vector<1x8x1xf32>,
    %52 = vector.extract_strided_slice %12 {offsets = [4, 0], sizes = [4, 8], strides = [1, 1]} : vector<32x8xf32> to vector<4x8xf32>
    %53 = vector.extract_strided_slice %15 {offsets = [4, 0], sizes = [4, 8], strides = [1, 1]} : vector<32x8xf32> to vector<4x8xf32>
    %c1_38 = arith.constant 1 : index
    %c0_39 = arith.constant 0 : index
    %c0_40 = arith.constant 0 : index
    %54 = vector.load %arg11[%c1_38, %c0_39, %c0_40] : memref<8x8x4xf32, #tpu.memory_space<vmem>>, vector<1x8x4xf32>
    %55 = vector.shape_cast %54 : vector<1x8x4xf32> to vector<8x4xf32>
    %cst_41 = arith.constant dense<0.000000e+00> : vector<8x8xf32>
    %56 = tpu.matmul %55, %52, %cst_41 {dimension_numbers = #tpu.dot_dimension_numbers<[1], [0], [0], [1], [0, 0, 1, 1], [], []>} : vector<8x4xf32>, vector<4x8xf32>, vector<8x8xf32> -> vector<8x8xf32>
    %c1_42 = arith.constant 1 : index
    %c0_43 = arith.constant 0 : index
    %c0_44 = arith.constant 0 : index
    %57 = vector.load %arg12[%c1_42, %c0_43, %c0_44] : memref<8x8x1xf32, #tpu.memory_space<vmem>>, vector<1x8x1xf32>
    %58 = vector.shape_cast %57 : vector<1x8x1xf32> to vector<8x1xf32>
    %cst_45 = arith.constant dense<0xFF800000> : vector<8xf32>
    %59 = vector.multi_reduction <maximumf>, %56, %cst_45 [1] : vector<8x8xf32> to vector<8xf32>
    %60 = vector.shape_cast %59 : vector<8xf32> to vector<8x1xf32>
    %61 = arith.maximumf %58, %60 : vector<8x1xf32>
    %62 = arith.subf %58, %61 : vector<8x1xf32>
    %63 = math.exp %62 : vector<8x1xf32>
    %64 = vector.broadcast %61 : vector<8x1xf32> to vector<8x8xf32>
    %65 = arith.subf %56, %64 : vector<8x8xf32>
    %66 = math.exp %65 : vector<8x8xf32>
    %c1_46 = arith.constant 1 : index
    %c0_47 = arith.constant 0 : index
    %c0_48 = arith.constant 0 : index
    %67 = vector.load %arg13[%c1_46, %c0_47, %c0_48] : memref<8x8x1xf32, #tpu.memory_space<vmem>>, vector<1x8x1xf32>
    %68 = vector.shape_cast %67 : vector<1x8x1xf32> to vector<8x1xf32>
    %69 = arith.mulf %63, %68 : vector<8x1xf32>
    %cst_49 = arith.constant dense<0.000000e+00> : vector<8xf32>
    %70 = vector.multi_reduction <add>, %66, %cst_49 [1] : vector<8x8xf32> to vector<8xf32>
    %71 = vector.shape_cast %70 : vector<8xf32> to vector<8x1xf32>
    %72 = arith.addf %69, %71 : vector<8x1xf32>
    %c1_50 = arith.constant 1 : index
    %c0_51 = arith.constant 0 : index
    %c0_52 = arith.constant 0 : index
    %73 = vector.load %arg13[%c1_50, %c0_51, %c0_52] : memref<8x8x1xf32, #tpu.memory_space<vmem>>, vector<1x8x1xf32>
    %74 = vector.shape_cast %73 : vector<1x8x1xf32> to vector<8x1xf32>
    %75 = vector.shape_cast %72 : vector<8x1xf32> to vector<1x8x1xf32>
    tpu.vector_store %arg13[%c1_50, %c0_51, %c0_52], %75 {strides = array<i32>} : memref<8x8x1xf32, #tpu.memory_space<vmem>>, vector<1x8x1xf32>,
    %c1_53 = arith.constant 1 : index
    %c0_54 = arith.constant 0 : index
    %c0_55 = arith.constant 0 : index
    %76 = vector.load %arg14[%c1_53, %c0_54, %c0_55] : memref<8x8x4xf32, #tpu.memory_space<vmem>>, vector<1x8x4xf32>
    %77 = vector.shape_cast %76 : vector<1x8x4xf32> to vector<8x4xf32>
    %78 = vector.broadcast %63 : vector<8x1xf32> to vector<8x4xf32>
    %79 = arith.mulf %78, %77 : vector<8x4xf32>
    %cst_56 = arith.constant dense<0.000000e+00> : vector<8x4xf32>
    %80 = tpu.matmul %66, %53, %cst_56 {dimension_numbers = #tpu.dot_dimension_numbers<[1], [1], [0], [0], [0, 0, 1, 0], [], []>} : vector<8x8xf32>, vector<4x8xf32>, vector<8x4xf32> -> vector<8x4xf32>
    %81 = arith.addf %79, %80 : vector<8x4xf32>
    %c1_57 = arith.constant 1 : index
    %c0_58 = arith.constant 0 : index
    %c0_59 = arith.constant 0 : index
    %82 = vector.load %arg14[%c1_57, %c0_58, %c0_59] : memref<8x8x4xf32, #tpu.memory_space<vmem>>, vector<1x8x4xf32>
    %83 = vector.shape_cast %82 : vector<1x8x4xf32> to vector<8x4xf32>
    %84 = vector.shape_cast %81 : vector<8x4xf32> to vector<1x8x4xf32>
    tpu.vector_store %arg14[%c1_57, %c0_58, %c0_59], %84 {strides = array<i32>} : memref<8x8x4xf32, #tpu.memory_space<vmem>>, vector<1x8x4xf32>,
    %c1_60 = arith.constant 1 : index
    %c0_61 = arith.constant 0 : index
    %c0_62 = arith.constant 0 : index
    %85 = vector.load %arg12[%c1_60, %c0_61, %c0_62] : memref<8x8x1xf32, #tpu.memory_space<vmem>>, vector<1x8x1xf32>
    %86 = vector.shape_cast %85 : vector<1x8x1xf32> to vector<8x1xf32>
    %87 = vector.shape_cast %61 : vector<8x1xf32> to vector<1x8x1xf32>
    tpu.vector_store %arg12[%c1_60, %c0_61, %c0_62], %87 {strides = array<i32>} : memref<8x8x1xf32, #tpu.memory_space<vmem>>, vector<1x8x1xf32>,
    %88 = vector.extract_strided_slice %12 {offsets = [8, 0], sizes = [4, 8], strides = [1, 1]} : vector<32x8xf32> to vector<4x8xf32>
    %89 = vector.extract_strided_slice %15 {offsets = [8, 0], sizes = [4, 8], strides = [1, 1]} : vector<32x8xf32> to vector<4x8xf32>
    %c2_63 = arith.constant 2 : index
    %c0_64 = arith.constant 0 : index
    %c0_65 = arith.constant 0 : index
    %90 = vector.load %arg11[%c2_63, %c0_64, %c0_65] : memref<8x8x4xf32, #tpu.memory_space<vmem>>, vector<1x8x4xf32>
    %91 = vector.shape_cast %90 : vector<1x8x4xf32> to vector<8x4xf32>
    %cst_66 = arith.constant dense<0.000000e+00> : vector<8x8xf32>
    %92 = tpu.matmul %91, %88, %cst_66 {dimension_numbers = #tpu.dot_dimension_numbers<[1], [0], [0], [1], [0, 0, 1, 1], [], []>} : vector<8x4xf32>, vector<4x8xf32>, vector<8x8xf32> -> vector<8x8xf32>
    %c2_67 = arith.constant 2 : index
    %c0_68 = arith.constant 0 : index
    %c0_69 = arith.constant 0 : index
    %93 = vector.load %arg12[%c2_67, %c0_68, %c0_69] : memref<8x8x1xf32, #tpu.memory_space<vmem>>, vector<1x8x1xf32>
    %94 = vector.shape_cast %93 : vector<1x8x1xf32> to vector<8x1xf32>
    %cst_70 = arith.constant dense<0xFF800000> : vector<8xf32>
    %95 = vector.multi_reduction <maximumf>, %92, %cst_70 [1] : vector<8x8xf32> to vector<8xf32>
    %96 = vector.shape_cast %95 : vector<8xf32> to vector<8x1xf32>
    %97 = arith.maximumf %94, %96 : vector<8x1xf32>
    %98 = arith.subf %94, %97 : vector<8x1xf32>
    %99 = math.exp %98 : vector<8x1xf32>
    %100 = vector.broadcast %97 : vector<8x1xf32> to vector<8x8xf32>
    %101 = arith.subf %92, %100 : vector<8x8xf32>
    %102 = math.exp %101 : vector<8x8xf32>
    %c2_71 = arith.constant 2 : index
    %c0_72 = arith.constant 0 : index
    %c0_73 = arith.constant 0 : index
    %103 = vector.load %arg13[%c2_71, %c0_72, %c0_73] : memref<8x8x1xf32, #tpu.memory_space<vmem>>, vector<1x8x1xf32>
    %104 = vector.shape_cast %103 : vector<1x8x1xf32> to vector<8x1xf32>
    %105 = arith.mulf %99, %104 : vector<8x1xf32>
    %cst_74 = arith.constant dense<0.000000e+00> : vector<8xf32>
    %106 = vector.multi_reduction <add>, %102, %cst_74 [1] : vector<8x8xf32> to vector<8xf32>
    %107 = vector.shape_cast %106 : vector<8xf32> to vector<8x1xf32>
    %108 = arith.addf %105, %107 : vector<8x1xf32>
    %c2_75 = arith.constant 2 : index
    %c0_76 = arith.constant 0 : index
    %c0_77 = arith.constant 0 : index
    %109 = vector.load %arg13[%c2_75, %c0_76, %c0_77] : memref<8x8x1xf32, #tpu.memory_space<vmem>>, vector<1x8x1xf32>
    %110 = vector.shape_cast %109 : vector<1x8x1xf32> to vector<8x1xf32>
    %111 = vector.shape_cast %108 : vector<8x1xf32> to vector<1x8x1xf32>
    tpu.vector_store %arg13[%c2_75, %c0_76, %c0_77], %111 {strides = array<i32>} : memref<8x8x1xf32, #tpu.memory_space<vmem>>, vector<1x8x1xf32>,
    %c2_78 = arith.constant 2 : index
    %c0_79 = arith.constant 0 : index
    %c0_80 = arith.constant 0 : index
    %112 = vector.load %arg14[%c2_78, %c0_79, %c0_80] : memref<8x8x4xf32, #tpu.memory_space<vmem>>, vector<1x8x4xf32>
    %113 = vector.shape_cast %112 : vector<1x8x4xf32> to vector<8x4xf32>
    %114 = vector.broadcast %99 : vector<8x1xf32> to vector<8x4xf32>
    %115 = arith.mulf %114, %113 : vector<8x4xf32>
    %cst_81 = arith.constant dense<0.000000e+00> : vector<8x4xf32>
    %116 = tpu.matmul %102, %89, %cst_81 {dimension_numbers = #tpu.dot_dimension_numbers<[1], [1], [0], [0], [0, 0, 1, 0], [], []>} : vector<8x8xf32>, vector<4x8xf32>, vector<8x4xf32> -> vector<8x4xf32>
    %117 = arith.addf %115, %116 : vector<8x4xf32>
    %c2_82 = arith.constant 2 : index
    %c0_83 = arith.constant 0 : index
    %c0_84 = arith.constant 0 : index
    %118 = vector.load %arg14[%c2_82, %c0_83, %c0_84] : memref<8x8x4xf32, #tpu.memory_space<vmem>>, vector<1x8x4xf32>
    %119 = vector.shape_cast %118 : vector<1x8x4xf32> to vector<8x4xf32>
    %120 = vector.shape_cast %117 : vector<8x4xf32> to vector<1x8x4xf32>
    tpu.vector_store %arg14[%c2_82, %c0_83, %c0_84], %120 {strides = array<i32>} : memref<8x8x4xf32, #tpu.memory_space<vmem>>, vector<1x8x4xf32>,
    %c2_85 = arith.constant 2 : index
    %c0_86 = arith.constant 0 : index
    %c0_87 = arith.constant 0 : index
    %121 = vector.load %arg12[%c2_85, %c0_86, %c0_87] : memref<8x8x1xf32, #tpu.memory_space<vmem>>, vector<1x8x1xf32>
    %122 = vector.shape_cast %121 : vector<1x8x1xf32> to vector<8x1xf32>
    %123 = vector.shape_cast %97 : vector<8x1xf32> to vector<1x8x1xf32>
    tpu.vector_store %arg12[%c2_85, %c0_86, %c0_87], %123 {strides = array<i32>} : memref<8x8x1xf32, #tpu.memory_space<vmem>>, vector<1x8x1xf32>,
    %124 = vector.extract_strided_slice %12 {offsets = [12, 0], sizes = [4, 8], strides = [1, 1]} : vector<32x8xf32> to vector<4x8xf32>
    %125 = vector.extract_strided_slice %15 {offsets = [12, 0], sizes = [4, 8], strides = [1, 1]} : vector<32x8xf32> to vector<4x8xf32>
    %c3 = arith.constant 3 : index
    %c0_88 = arith.constant 0 : index
    %c0_89 = arith.constant 0 : index
    %126 = vector.load %arg11[%c3, %c0_88, %c0_89] : memref<8x8x4xf32, #tpu.memory_space<vmem>>, vector<1x8x4xf32>
    %127 = vector.shape_cast %126 : vector<1x8x4xf32> to vector<8x4xf32>
    %cst_90 = arith.constant dense<0.000000e+00> : vector<8x8xf32>
    %128 = tpu.matmul %127, %124, %cst_90 {dimension_numbers = #tpu.dot_dimension_numbers<[1], [0], [0], [1], [0, 0, 1, 1], [], []>} : vector<8x4xf32>, vector<4x8xf32>, vector<8x8xf32> -> vector<8x8xf32>
    %c3_91 = arith.constant 3 : index
    %c0_92 = arith.constant 0 : index
    %c0_93 = arith.constant 0 : index
    %129 = vector.load %arg12[%c3_91, %c0_92, %c0_93] : memref<8x8x1xf32, #tpu.memory_space<vmem>>, vector<1x8x1xf32>
    %130 = vector.shape_cast %129 : vector<1x8x1xf32> to vector<8x1xf32>
    %cst_94 = arith.constant dense<0xFF800000> : vector<8xf32>
    %131 = vector.multi_reduction <maximumf>, %128, %cst_94 [1] : vector<8x8xf32> to vector<8xf32>
    %132 = vector.shape_cast %131 : vector<8xf32> to vector<8x1xf32>
    %133 = arith.maximumf %130, %132 : vector<8x1xf32>
    %134 = arith.subf %130, %133 : vector<8x1xf32>
    %135 = math.exp %134 : vector<8x1xf32>
    %136 = vector.broadcast %133 : vector<8x1xf32> to vector<8x8xf32>
    %137 = arith.subf %128, %136 : vector<8x8xf32>
    %138 = math.exp %137 : vector<8x8xf32>
    %c3_95 = arith.constant 3 : index
    %c0_96 = arith.constant 0 : index
    %c0_97 = arith.constant 0 : index
    %139 = vector.load %arg13[%c3_95, %c0_96, %c0_97] : memref<8x8x1xf32, #tpu.memory_space<vmem>>, vector<1x8x1xf32>
    %140 = vector.shape_cast %139 : vector<1x8x1xf32> to vector<8x1xf32>
    %141 = arith.mulf %135, %140 : vector<8x1xf32>
    %cst_98 = arith.constant dense<0.000000e+00> : vector<8xf32>
    %142 = vector.multi_reduction <add>, %138, %cst_98 [1] : vector<8x8xf32> to vector<8xf32>
    %143 = vector.shape_cast %142 : vector<8xf32> to vector<8x1xf32>
    %144 = arith.addf %141, %143 : vector<8x1xf32>
    %c3_99 = arith.constant 3 : index
    %c0_100 = arith.constant 0 : index
    %c0_101 = arith.constant 0 : index
    %145 = vector.load %arg13[%c3_99, %c0_100, %c0_101] : memref<8x8x1xf32, #tpu.memory_space<vmem>>, vector<1x8x1xf32>
    %146 = vector.shape_cast %145 : vector<1x8x1xf32> to vector<8x1xf32>
    %147 = vector.shape_cast %144 : vector<8x1xf32> to vector<1x8x1xf32>
    tpu.vector_store %arg13[%c3_99, %c0_100, %c0_101], %147 {strides = array<i32>} : memref<8x8x1xf32, #tpu.memory_space<vmem>>, vector<1x8x1xf32>,
    %c3_102 = arith.constant 3 : index
    %c0_103 = arith.constant 0 : index
    %c0_104 = arith.constant 0 : index
    %148 = vector.load %arg14[%c3_102, %c0_103, %c0_104] : memref<8x8x4xf32, #tpu.memory_space<vmem>>, vector<1x8x4xf32>
    %149 = vector.shape_cast %148 : vector<1x8x4xf32> to vector<8x4xf32>
    %150 = vector.broadcast %135 : vector<8x1xf32> to vector<8x4xf32>
    %151 = arith.mulf %150, %149 : vector<8x4xf32>
    %cst_105 = arith.constant dense<0.000000e+00> : vector<8x4xf32>
    %152 = tpu.matmul %138, %125, %cst_105 {dimension_numbers = #tpu.dot_dimension_numbers<[1], [1], [0], [0], [0, 0, 1, 0], [], []>} : vector<8x8xf32>, vector<4x8xf32>, vector<8x4xf32> -> vector<8x4xf32>
    %153 = arith.addf %151, %152 : vector<8x4xf32>
    %c3_106 = arith.constant 3 : index
    %c0_107 = arith.constant 0 : index
    %c0_108 = arith.constant 0 : index
    %154 = vector.load %arg14[%c3_106, %c0_107, %c0_108] : memref<8x8x4xf32, #tpu.memory_space<vmem>>, vector<1x8x4xf32>
    %155 = vector.shape_cast %154 : vector<1x8x4xf32> to vector<8x4xf32>
    %156 = vector.shape_cast %153 : vector<8x4xf32> to vector<1x8x4xf32>
    tpu.vector_store %arg14[%c3_106, %c0_107, %c0_108], %156 {strides = array<i32>} : memref<8x8x4xf32, #tpu.memory_space<vmem>>, vector<1x8x4xf32>,
    %c3_109 = arith.constant 3 : index
    %c0_110 = arith.constant 0 : index
    %c0_111 = arith.constant 0 : index
    %157 = vector.load %arg12[%c3_109, %c0_110, %c0_111] : memref<8x8x1xf32, #tpu.memory_space<vmem>>, vector<1x8x1xf32>
    %158 = vector.shape_cast %157 : vector<1x8x1xf32> to vector<8x1xf32>
    %159 = vector.shape_cast %133 : vector<8x1xf32> to vector<1x8x1xf32>
    tpu.vector_store %arg12[%c3_109, %c0_110, %c0_111], %159 {strides = array<i32>} : memref<8x8x1xf32, #tpu.memory_space<vmem>>, vector<1x8x1xf32>,
    %160 = vector.extract_strided_slice %12 {offsets = [16, 0], sizes = [4, 8], strides = [1, 1]} : vector<32x8xf32> to vector<4x8xf32>
    %161 = vector.extract_strided_slice %15 {offsets = [16, 0], sizes = [4, 8], strides = [1, 1]} : vector<32x8xf32> to vector<4x8xf32>
    %c4 = arith.constant 4 : index
    %c0_112 = arith.constant 0 : index
    %c0_113 = arith.constant 0 : index
    %162 = vector.load %arg11[%c4, %c0_112, %c0_113] : memref<8x8x4xf32, #tpu.memory_space<vmem>>, vector<1x8x4xf32>
    %163 = vector.shape_cast %162 : vector<1x8x4xf32> to vector<8x4xf32>
    %cst_114 = arith.constant dense<0.000000e+00> : vector<8x8xf32>
    %164 = tpu.matmul %163, %160, %cst_114 {dimension_numbers = #tpu.dot_dimension_numbers<[1], [0], [0], [1], [0, 0, 1, 1], [], []>} : vector<8x4xf32>, vector<4x8xf32>, vector<8x8xf32> -> vector<8x8xf32>
    %c4_115 = arith.constant 4 : index
    %c0_116 = arith.constant 0 : index
    %c0_117 = arith.constant 0 : index
    %165 = vector.load %arg12[%c4_115, %c0_116, %c0_117] : memref<8x8x1xf32, #tpu.memory_space<vmem>>, vector<1x8x1xf32>
    %166 = vector.shape_cast %165 : vector<1x8x1xf32> to vector<8x1xf32>
    %cst_118 = arith.constant dense<0xFF800000> : vector<8xf32>
    %167 = vector.multi_reduction <maximumf>, %164, %cst_118 [1] : vector<8x8xf32> to vector<8xf32>
    %168 = vector.shape_cast %167 : vector<8xf32> to vector<8x1xf32>
    %169 = arith.maximumf %166, %168 : vector<8x1xf32>
    %170 = arith.subf %166, %169 : vector<8x1xf32>
    %171 = math.exp %170 : vector<8x1xf32>
    %172 = vector.broadcast %169 : vector<8x1xf32> to vector<8x8xf32>
    %173 = arith.subf %164, %172 : vector<8x8xf32>
    %174 = math.exp %173 : vector<8x8xf32>
    %c4_119 = arith.constant 4 : index
    %c0_120 = arith.constant 0 : index
    %c0_121 = arith.constant 0 : index
    %175 = vector.load %arg13[%c4_119, %c0_120, %c0_121] : memref<8x8x1xf32, #tpu.memory_space<vmem>>, vector<1x8x1xf32>
    %176 = vector.shape_cast %175 : vector<1x8x1xf32> to vector<8x1xf32>
    %177 = arith.mulf %171, %176 : vector<8x1xf32>
    %cst_122 = arith.constant dense<0.000000e+00> : vector<8xf32>
    %178 = vector.multi_reduction <add>, %174, %cst_122 [1] : vector<8x8xf32> to vector<8xf32>
    %179 = vector.shape_cast %178 : vector<8xf32> to vector<8x1xf32>
    %180 = arith.addf %177, %179 : vector<8x1xf32>
    %c4_123 = arith.constant 4 : index
    %c0_124 = arith.constant 0 : index
    %c0_125 = arith.constant 0 : index
    %181 = vector.load %arg13[%c4_123, %c0_124, %c0_125] : memref<8x8x1xf32, #tpu.memory_space<vmem>>, vector<1x8x1xf32>
    %182 = vector.shape_cast %181 : vector<1x8x1xf32> to vector<8x1xf32>
    %183 = vector.shape_cast %180 : vector<8x1xf32> to vector<1x8x1xf32>
    tpu.vector_store %arg13[%c4_123, %c0_124, %c0_125], %183 {strides = array<i32>} : memref<8x8x1xf32, #tpu.memory_space<vmem>>, vector<1x8x1xf32>,
    %c4_126 = arith.constant 4 : index
    %c0_127 = arith.constant 0 : index
    %c0_128 = arith.constant 0 : index
    %184 = vector.load %arg14[%c4_126, %c0_127, %c0_128] : memref<8x8x4xf32, #tpu.memory_space<vmem>>, vector<1x8x4xf32>
    %185 = vector.shape_cast %184 : vector<1x8x4xf32> to vector<8x4xf32>
    %186 = vector.broadcast %171 : vector<8x1xf32> to vector<8x4xf32>
    %187 = arith.mulf %186, %185 : vector<8x4xf32>
    %cst_129 = arith.constant dense<0.000000e+00> : vector<8x4xf32>
    %188 = tpu.matmul %174, %161, %cst_129 {dimension_numbers = #tpu.dot_dimension_numbers<[1], [1], [0], [0], [0, 0, 1, 0], [], []>} : vector<8x8xf32>, vector<4x8xf32>, vector<8x4xf32> -> vector<8x4xf32>
    %189 = arith.addf %187, %188 : vector<8x4xf32>
    %c4_130 = arith.constant 4 : index
    %c0_131 = arith.constant 0 : index
    %c0_132 = arith.constant 0 : index
    %190 = vector.load %arg14[%c4_130, %c0_131, %c0_132] : memref<8x8x4xf32, #tpu.memory_space<vmem>>, vector<1x8x4xf32>
    %191 = vector.shape_cast %190 : vector<1x8x4xf32> to vector<8x4xf32>
    %192 = vector.shape_cast %189 : vector<8x4xf32> to vector<1x8x4xf32>
    tpu.vector_store %arg14[%c4_130, %c0_131, %c0_132], %192 {strides = array<i32>} : memref<8x8x4xf32, #tpu.memory_space<vmem>>, vector<1x8x4xf32>,
    %c4_133 = arith.constant 4 : index
    %c0_134 = arith.constant 0 : index
    %c0_135 = arith.constant 0 : index
    %193 = vector.load %arg12[%c4_133, %c0_134, %c0_135] : memref<8x8x1xf32, #tpu.memory_space<vmem>>, vector<1x8x1xf32>
    %194 = vector.shape_cast %193 : vector<1x8x1xf32> to vector<8x1xf32>
    %195 = vector.shape_cast %169 : vector<8x1xf32> to vector<1x8x1xf32>
    tpu.vector_store %arg12[%c4_133, %c0_134, %c0_135], %195 {strides = array<i32>} : memref<8x8x1xf32, #tpu.memory_space<vmem>>, vector<1x8x1xf32>,
    %196 = vector.extract_strided_slice %12 {offsets = [20, 0], sizes = [4, 8], strides = [1, 1]} : vector<32x8xf32> to vector<4x8xf32>
    %197 = vector.extract_strided_slice %15 {offsets = [20, 0], sizes = [4, 8], strides = [1, 1]} : vector<32x8xf32> to vector<4x8xf32>
    %c5 = arith.constant 5 : index
    %c0_136 = arith.constant 0 : index
    %c0_137 = arith.constant 0 : index
    %198 = vector.load %arg11[%c5, %c0_136, %c0_137] : memref<8x8x4xf32, #tpu.memory_space<vmem>>, vector<1x8x4xf32>
    %199 = vector.shape_cast %198 : vector<1x8x4xf32> to vector<8x4xf32>
    %cst_138 = arith.constant dense<0.000000e+00> : vector<8x8xf32>
    %200 = tpu.matmul %199, %196, %cst_138 {dimension_numbers = #tpu.dot_dimension_numbers<[1], [0], [0], [1], [0, 0, 1, 1], [], []>} : vector<8x4xf32>, vector<4x8xf32>, vector<8x8xf32> -> vector<8x8xf32>
    %c5_139 = arith.constant 5 : index
    %c0_140 = arith.constant 0 : index
    %c0_141 = arith.constant 0 : index
    %201 = vector.load %arg12[%c5_139, %c0_140, %c0_141] : memref<8x8x1xf32, #tpu.memory_space<vmem>>, vector<1x8x1xf32>
    %202 = vector.shape_cast %201 : vector<1x8x1xf32> to vector<8x1xf32>
    %cst_142 = arith.constant dense<0xFF800000> : vector<8xf32>
    %203 = vector.multi_reduction <maximumf>, %200, %cst_142 [1] : vector<8x8xf32> to vector<8xf32>
    %204 = vector.shape_cast %203 : vector<8xf32> to vector<8x1xf32>
    %205 = arith.maximumf %202, %204 : vector<8x1xf32>
    %206 = arith.subf %202, %205 : vector<8x1xf32>
    %207 = math.exp %206 : vector<8x1xf32>
    %208 = vector.broadcast %205 : vector<8x1xf32> to vector<8x8xf32>
    %209 = arith.subf %200, %208 : vector<8x8xf32>
    %210 = math.exp %209 : vector<8x8xf32>
    %c5_143 = arith.constant 5 : index
    %c0_144 = arith.constant 0 : index
    %c0_145 = arith.constant 0 : index
    %211 = vector.load %arg13[%c5_143, %c0_144, %c0_145] : memref<8x8x1xf32, #tpu.memory_space<vmem>>, vector<1x8x1xf32>
    %212 = vector.shape_cast %211 : vector<1x8x1xf32> to vector<8x1xf32>
    %213 = arith.mulf %207, %212 : vector<8x1xf32>
    %cst_146 = arith.constant dense<0.000000e+00> : vector<8xf32>
    %214 = vector.multi_reduction <add>, %210, %cst_146 [1] : vector<8x8xf32> to vector<8xf32>
    %215 = vector.shape_cast %214 : vector<8xf32> to vector<8x1xf32>
    %216 = arith.addf %213, %215 : vector<8x1xf32>
    %c5_147 = arith.constant 5 : index
    %c0_148 = arith.constant 0 : index
    %c0_149 = arith.constant 0 : index
    %217 = vector.load %arg13[%c5_147, %c0_148, %c0_149] : memref<8x8x1xf32, #tpu.memory_space<vmem>>, vector<1x8x1xf32>
    %218 = vector.shape_cast %217 : vector<1x8x1xf32> to vector<8x1xf32>
    %219 = vector.shape_cast %216 : vector<8x1xf32> to vector<1x8x1xf32>
    tpu.vector_store %arg13[%c5_147, %c0_148, %c0_149], %219 {strides = array<i32>} : memref<8x8x1xf32, #tpu.memory_space<vmem>>, vector<1x8x1xf32>,
    %c5_150 = arith.constant 5 : index
    %c0_151 = arith.constant 0 : index
    %c0_152 = arith.constant 0 : index
    %220 = vector.load %arg14[%c5_150, %c0_151, %c0_152] : memref<8x8x4xf32, #tpu.memory_space<vmem>>, vector<1x8x4xf32>
    %221 = vector.shape_cast %220 : vector<1x8x4xf32> to vector<8x4xf32>
    %222 = vector.broadcast %207 : vector<8x1xf32> to vector<8x4xf32>
    %223 = arith.mulf %222, %221 : vector<8x4xf32>
    %cst_153 = arith.constant dense<0.000000e+00> : vector<8x4xf32>
    %224 = tpu.matmul %210, %197, %cst_153 {dimension_numbers = #tpu.dot_dimension_numbers<[1], [1], [0], [0], [0, 0, 1, 0], [], []>} : vector<8x8xf32>, vector<4x8xf32>, vector<8x4xf32> -> vector<8x4xf32>
    %225 = arith.addf %223, %224 : vector<8x4xf32>
    %c5_154 = arith.constant 5 : index
    %c0_155 = arith.constant 0 : index
    %c0_156 = arith.constant 0 : index
    %226 = vector.load %arg14[%c5_154, %c0_155, %c0_156] : memref<8x8x4xf32, #tpu.memory_space<vmem>>, vector<1x8x4xf32>
    %227 = vector.shape_cast %226 : vector<1x8x4xf32> to vector<8x4xf32>
    %228 = vector.shape_cast %225 : vector<8x4xf32> to vector<1x8x4xf32>
    tpu.vector_store %arg14[%c5_154, %c0_155, %c0_156], %228 {strides = array<i32>} : memref<8x8x4xf32, #tpu.memory_space<vmem>>, vector<1x8x4xf32>,
    %c5_157 = arith.constant 5 : index
    %c0_158 = arith.constant 0 : index
    %c0_159 = arith.constant 0 : index
    %229 = vector.load %arg12[%c5_157, %c0_158, %c0_159] : memref<8x8x1xf32, #tpu.memory_space<vmem>>, vector<1x8x1xf32>
    %230 = vector.shape_cast %229 : vector<1x8x1xf32> to vector<8x1xf32>
    %231 = vector.shape_cast %205 : vector<8x1xf32> to vector<1x8x1xf32>
    tpu.vector_store %arg12[%c5_157, %c0_158, %c0_159], %231 {strides = array<i32>} : memref<8x8x1xf32, #tpu.memory_space<vmem>>, vector<1x8x1xf32>,
    %232 = vector.extract_strided_slice %12 {offsets = [24, 0], sizes = [4, 8], strides = [1, 1]} : vector<32x8xf32> to vector<4x8xf32>
    %233 = vector.extract_strided_slice %15 {offsets = [24, 0], sizes = [4, 8], strides = [1, 1]} : vector<32x8xf32> to vector<4x8xf32>
    %c6 = arith.constant 6 : index
    %c0_160 = arith.constant 0 : index
    %c0_161 = arith.constant 0 : index
    %234 = vector.load %arg11[%c6, %c0_160, %c0_161] : memref<8x8x4xf32, #tpu.memory_space<vmem>>, vector<1x8x4xf32>
    %235 = vector.shape_cast %234 : vector<1x8x4xf32> to vector<8x4xf32>
    %cst_162 = arith.constant dense<0.000000e+00> : vector<8x8xf32>
    %236 = tpu.matmul %235, %232, %cst_162 {dimension_numbers = #tpu.dot_dimension_numbers<[1], [0], [0], [1], [0, 0, 1, 1], [], []>} : vector<8x4xf32>, vector<4x8xf32>, vector<8x8xf32> -> vector<8x8xf32>
    %c6_163 = arith.constant 6 : index
    %c0_164 = arith.constant 0 : index
    %c0_165 = arith.constant 0 : index
    %237 = vector.load %arg12[%c6_163, %c0_164, %c0_165] : memref<8x8x1xf32, #tpu.memory_space<vmem>>, vector<1x8x1xf32>
    %238 = vector.shape_cast %237 : vector<1x8x1xf32> to vector<8x1xf32>
    %cst_166 = arith.constant dense<0xFF800000> : vector<8xf32>
    %239 = vector.multi_reduction <maximumf>, %236, %cst_166 [1] : vector<8x8xf32> to vector<8xf32>
    %240 = vector.shape_cast %239 : vector<8xf32> to vector<8x1xf32>
    %241 = arith.maximumf %238, %240 : vector<8x1xf32>
    %242 = arith.subf %238, %241 : vector<8x1xf32>
    %243 = math.exp %242 : vector<8x1xf32>
    %244 = vector.broadcast %241 : vector<8x1xf32> to vector<8x8xf32>
    %245 = arith.subf %236, %244 : vector<8x8xf32>
    %246 = math.exp %245 : vector<8x8xf32>
    %c6_167 = arith.constant 6 : index
    %c0_168 = arith.constant 0 : index
    %c0_169 = arith.constant 0 : index
    %247 = vector.load %arg13[%c6_167, %c0_168, %c0_169] : memref<8x8x1xf32, #tpu.memory_space<vmem>>, vector<1x8x1xf32>
    %248 = vector.shape_cast %247 : vector<1x8x1xf32> to vector<8x1xf32>
    %249 = arith.mulf %243, %248 : vector<8x1xf32>
    %cst_170 = arith.constant dense<0.000000e+00> : vector<8xf32>
    %250 = vector.multi_reduction <add>, %246, %cst_170 [1] : vector<8x8xf32> to vector<8xf32>
    %251 = vector.shape_cast %250 : vector<8xf32> to vector<8x1xf32>
    %252 = arith.addf %249, %251 : vector<8x1xf32>
    %c6_171 = arith.constant 6 : index
    %c0_172 = arith.constant 0 : index
    %c0_173 = arith.constant 0 : index
    %253 = vector.load %arg13[%c6_171, %c0_172, %c0_173] : memref<8x8x1xf32, #tpu.memory_space<vmem>>, vector<1x8x1xf32>
    %254 = vector.shape_cast %253 : vector<1x8x1xf32> to vector<8x1xf32>
    %255 = vector.shape_cast %252 : vector<8x1xf32> to vector<1x8x1xf32>
    tpu.vector_store %arg13[%c6_171, %c0_172, %c0_173], %255 {strides = array<i32>} : memref<8x8x1xf32, #tpu.memory_space<vmem>>, vector<1x8x1xf32>,
    %c6_174 = arith.constant 6 : index
    %c0_175 = arith.constant 0 : index
    %c0_176 = arith.constant 0 : index
    %256 = vector.load %arg14[%c6_174, %c0_175, %c0_176] : memref<8x8x4xf32, #tpu.memory_space<vmem>>, vector<1x8x4xf32>
    %257 = vector.shape_cast %256 : vector<1x8x4xf32> to vector<8x4xf32>
    %258 = vector.broadcast %243 : vector<8x1xf32> to vector<8x4xf32>
    %259 = arith.mulf %258, %257 : vector<8x4xf32>
    %cst_177 = arith.constant dense<0.000000e+00> : vector<8x4xf32>
    %260 = tpu.matmul %246, %233, %cst_177 {dimension_numbers = #tpu.dot_dimension_numbers<[1], [1], [0], [0], [0, 0, 1, 0], [], []>} : vector<8x8xf32>, vector<4x8xf32>, vector<8x4xf32> -> vector<8x4xf32>
    %261 = arith.addf %259, %260 : vector<8x4xf32>
    %c6_178 = arith.constant 6 : index
    %c0_179 = arith.constant 0 : index
    %c0_180 = arith.constant 0 : index
    %262 = vector.load %arg14[%c6_178, %c0_179, %c0_180] : memref<8x8x4xf32, #tpu.memory_space<vmem>>, vector<1x8x4xf32>
    %263 = vector.shape_cast %262 : vector<1x8x4xf32> to vector<8x4xf32>
    %264 = vector.shape_cast %261 : vector<8x4xf32> to vector<1x8x4xf32>
    tpu.vector_store %arg14[%c6_178, %c0_179, %c0_180], %264 {strides = array<i32>} : memref<8x8x4xf32, #tpu.memory_space<vmem>>, vector<1x8x4xf32>,
    %c6_181 = arith.constant 6 : index
    %c0_182 = arith.constant 0 : index
    %c0_183 = arith.constant 0 : index
    %265 = vector.load %arg12[%c6_181, %c0_182, %c0_183] : memref<8x8x1xf32, #tpu.memory_space<vmem>>, vector<1x8x1xf32>
    %266 = vector.shape_cast %265 : vector<1x8x1xf32> to vector<8x1xf32>
    %267 = vector.shape_cast %241 : vector<8x1xf32> to vector<1x8x1xf32>
    tpu.vector_store %arg12[%c6_181, %c0_182, %c0_183], %267 {strides = array<i32>} : memref<8x8x1xf32, #tpu.memory_space<vmem>>, vector<1x8x1xf32>,
    %268 = vector.extract_strided_slice %12 {offsets = [28, 0], sizes = [4, 8], strides = [1, 1]} : vector<32x8xf32> to vector<4x8xf32>
    %269 = vector.extract_strided_slice %15 {offsets = [28, 0], sizes = [4, 8], strides = [1, 1]} : vector<32x8xf32> to vector<4x8xf32>
    %c7 = arith.constant 7 : index
    %c0_184 = arith.constant 0 : index
    %c0_185 = arith.constant 0 : index
    %270 = vector.load %arg11[%c7, %c0_184, %c0_185] : memref<8x8x4xf32, #tpu.memory_space<vmem>>, vector<1x8x4xf32>
    %271 = vector.shape_cast %270 : vector<1x8x4xf32> to vector<8x4xf32>
    %cst_186 = arith.constant dense<0.000000e+00> : vector<8x8xf32>
    %272 = tpu.matmul %271, %268, %cst_186 {dimension_numbers = #tpu.dot_dimension_numbers<[1], [0], [0], [1], [0, 0, 1, 1], [], []>} : vector<8x4xf32>, vector<4x8xf32>, vector<8x8xf32> -> vector<8x8xf32>
    %c7_187 = arith.constant 7 : index
    %c0_188 = arith.constant 0 : index
    %c0_189 = arith.constant 0 : index
    %273 = vector.load %arg12[%c7_187, %c0_188, %c0_189] : memref<8x8x1xf32, #tpu.memory_space<vmem>>, vector<1x8x1xf32>
    %274 = vector.shape_cast %273 : vector<1x8x1xf32> to vector<8x1xf32>
    %cst_190 = arith.constant dense<0xFF800000> : vector<8xf32>
    %275 = vector.multi_reduction <maximumf>, %272, %cst_190 [1] : vector<8x8xf32> to vector<8xf32>
    %276 = vector.shape_cast %275 : vector<8xf32> to vector<8x1xf32>
    %277 = arith.maximumf %274, %276 : vector<8x1xf32>
    %278 = arith.subf %274, %277 : vector<8x1xf32>
    %279 = math.exp %278 : vector<8x1xf32>
    %280 = vector.broadcast %277 : vector<8x1xf32> to vector<8x8xf32>
    %281 = arith.subf %272, %280 : vector<8x8xf32>
    %282 = math.exp %281 : vector<8x8xf32>
    %c7_191 = arith.constant 7 : index
    %c0_192 = arith.constant 0 : index
    %c0_193 = arith.constant 0 : index
    %283 = vector.load %arg13[%c7_191, %c0_192, %c0_193] : memref<8x8x1xf32, #tpu.memory_space<vmem>>, vector<1x8x1xf32>
    %284 = vector.shape_cast %283 : vector<1x8x1xf32> to vector<8x1xf32>
    %285 = arith.mulf %279, %284 : vector<8x1xf32>
    %cst_194 = arith.constant dense<0.000000e+00> : vector<8xf32>
    %286 = vector.multi_reduction <add>, %282, %cst_194 [1] : vector<8x8xf32> to vector<8xf32>
    %287 = vector.shape_cast %286 : vector<8xf32> to vector<8x1xf32>
    %288 = arith.addf %285, %287 : vector<8x1xf32>
    %c7_195 = arith.constant 7 : index
    %c0_196 = arith.constant 0 : index
    %c0_197 = arith.constant 0 : index
    %289 = vector.load %arg13[%c7_195, %c0_196, %c0_197] : memref<8x8x1xf32, #tpu.memory_space<vmem>>, vector<1x8x1xf32>
    %290 = vector.shape_cast %289 : vector<1x8x1xf32> to vector<8x1xf32>
    %291 = vector.shape_cast %288 : vector<8x1xf32> to vector<1x8x1xf32>
    tpu.vector_store %arg13[%c7_195, %c0_196, %c0_197], %291 {strides = array<i32>} : memref<8x8x1xf32, #tpu.memory_space<vmem>>, vector<1x8x1xf32>,
    %c7_198 = arith.constant 7 : index
    %c0_199 = arith.constant 0 : index
    %c0_200 = arith.constant 0 : index
    %292 = vector.load %arg14[%c7_198, %c0_199, %c0_200] : memref<8x8x4xf32, #tpu.memory_space<vmem>>, vector<1x8x4xf32>
    %293 = vector.shape_cast %292 : vector<1x8x4xf32> to vector<8x4xf32>
    %294 = vector.broadcast %279 : vector<8x1xf32> to vector<8x4xf32>
    %295 = arith.mulf %294, %293 : vector<8x4xf32>
    %cst_201 = arith.constant dense<0.000000e+00> : vector<8x4xf32>
    %296 = tpu.matmul %282, %269, %cst_201 {dimension_numbers = #tpu.dot_dimension_numbers<[1], [1], [0], [0], [0, 0, 1, 0], [], []>} : vector<8x8xf32>, vector<4x8xf32>, vector<8x4xf32> -> vector<8x4xf32>
    %297 = arith.addf %295, %296 : vector<8x4xf32>
    %c7_202 = arith.constant 7 : index
    %c0_203 = arith.constant 0 : index
    %c0_204 = arith.constant 0 : index
    %298 = vector.load %arg14[%c7_202, %c0_203, %c0_204] : memref<8x8x4xf32, #tpu.memory_space<vmem>>, vector<1x8x4xf32>
    %299 = vector.shape_cast %298 : vector<1x8x4xf32> to vector<8x4xf32>
    %300 = vector.shape_cast %297 : vector<8x4xf32> to vector<1x8x4xf32>
    tpu.vector_store %arg14[%c7_202, %c0_203, %c0_204], %300 {strides = array<i32>} : memref<8x8x4xf32, #tpu.memory_space<vmem>>, vector<1x8x4xf32>,
    %c7_205 = arith.constant 7 : index
    %c0_206 = arith.constant 0 : index
    %c0_207 = arith.constant 0 : index
    %301 = vector.load %arg12[%c7_205, %c0_206, %c0_207] : memref<8x8x1xf32, #tpu.memory_space<vmem>>, vector<1x8x1xf32>
    %302 = vector.shape_cast %301 : vector<1x8x1xf32> to vector<8x1xf32>
    %303 = vector.shape_cast %277 : vector<8x1xf32> to vector<1x8x1xf32>
    tpu.vector_store %arg12[%c7_205, %c0_206, %c0_207], %303 {strides = array<i32>} : memref<8x8x1xf32, #tpu.memory_space<vmem>>, vector<1x8x1xf32>,
    %c0_i32_208 = arith.constant 0 : i32
    %304 = arith.cmpi eq, %arg3, %c0_i32_208 : i32
    %305 = arith.extui %304 : i1 to i32
    %c0_i32_209 = arith.constant 0 : i32
    %306 = arith.cmpi ne, %305, %c0_i32_209 : i32
    scf.if %306 {
      %c0_210 = arith.constant 0 : index
      %c0_211 = arith.constant 0 : index
      %c0_212 = arith.constant 0 : index
      %307 = vector.load %arg14[%c0_210, %c0_211, %c0_212] : memref<8x8x4xf32, #tpu.memory_space<vmem>>, vector<1x8x4xf32>
      %308 = vector.shape_cast %307 : vector<1x8x4xf32> to vector<8x4xf32>
      %c0_213 = arith.constant 0 : index
      %c0_214 = arith.constant 0 : index
      %c0_215 = arith.constant 0 : index
      %309 = vector.load %arg13[%c0_213, %c0_214, %c0_215] : memref<8x8x1xf32, #tpu.memory_space<vmem>>, vector<1x8x1xf32>
      %310 = vector.shape_cast %309 : vector<1x8x1xf32> to vector<8x1xf32>
      %cst_216 = arith.constant 1.000000e+00 : f32
      %311 = vector.broadcast %cst_216 : f32 to vector<8x1xf32>
      %312 = arith.divf %311, %310 : vector<8x1xf32>
      %313 = vector.broadcast %312 : vector<8x1xf32> to vector<8x4xf32>
      %314 = arith.mulf %308, %313 : vector<8x4xf32>
      %c1_217 = arith.constant 1 : index
      %c0_218 = arith.constant 0 : index
      %c0_219 = arith.constant 0 : index
      %315 = vector.load %arg14[%c1_217, %c0_218, %c0_219] : memref<8x8x4xf32, #tpu.memory_space<vmem>>, vector<1x8x4xf32>
      %316 = vector.shape_cast %315 : vector<1x8x4xf32> to vector<8x4xf32>
      %c1_220 = arith.constant 1 : index
      %c0_221 = arith.constant 0 : index
      %c0_222 = arith.constant 0 : index
      %317 = vector.load %arg13[%c1_220, %c0_221, %c0_222] : memref<8x8x1xf32, #tpu.memory_space<vmem>>, vector<1x8x1xf32>
      %318 = vector.shape_cast %317 : vector<1x8x1xf32> to vector<8x1xf32>
      %cst_223 = arith.constant 1.000000e+00 : f32
      %319 = vector.broadcast %cst_223 : f32 to vector<8x1xf32>
      %320 = arith.divf %319, %318 : vector<8x1xf32>
      %321 = vector.broadcast %320 : vector<8x1xf32> to vector<8x4xf32>
      %322 = arith.mulf %316, %321 : vector<8x4xf32>
      %c2_224 = arith.constant 2 : index
      %c0_225 = arith.constant 0 : index
      %c0_226 = arith.constant 0 : index
      %323 = vector.load %arg14[%c2_224, %c0_225, %c0_226] : memref<8x8x4xf32, #tpu.memory_space<vmem>>, vector<1x8x4xf32>
      %324 = vector.shape_cast %323 : vector<1x8x4xf32> to vector<8x4xf32>
      %c2_227 = arith.constant 2 : index
      %c0_228 = arith.constant 0 : index
      %c0_229 = arith.constant 0 : index
      %325 = vector.load %arg13[%c2_227, %c0_228, %c0_229] : memref<8x8x1xf32, #tpu.memory_space<vmem>>, vector<1x8x1xf32>
      %326 = vector.shape_cast %325 : vector<1x8x1xf32> to vector<8x1xf32>
      %cst_230 = arith.constant 1.000000e+00 : f32
      %327 = vector.broadcast %cst_230 : f32 to vector<8x1xf32>
      %328 = arith.divf %327, %326 : vector<8x1xf32>
      %329 = vector.broadcast %328 : vector<8x1xf32> to vector<8x4xf32>
      %330 = arith.mulf %324, %329 : vector<8x4xf32>
      %c3_231 = arith.constant 3 : index
      %c0_232 = arith.constant 0 : index
      %c0_233 = arith.constant 0 : index
      %331 = vector.load %arg14[%c3_231, %c0_232, %c0_233] : memref<8x8x4xf32, #tpu.memory_space<vmem>>, vector<1x8x4xf32>
      %332 = vector.shape_cast %331 : vector<1x8x4xf32> to vector<8x4xf32>
      %c3_234 = arith.constant 3 : index
      %c0_235 = arith.constant 0 : index
      %c0_236 = arith.constant 0 : index
      %333 = vector.load %arg13[%c3_234, %c0_235, %c0_236] : memref<8x8x1xf32, #tpu.memory_space<vmem>>, vector<1x8x1xf32>
      %334 = vector.shape_cast %333 : vector<1x8x1xf32> to vector<8x1xf32>
      %cst_237 = arith.constant 1.000000e+00 : f32
      %335 = vector.broadcast %cst_237 : f32 to vector<8x1xf32>
      %336 = arith.divf %335, %334 : vector<8x1xf32>
      %337 = vector.broadcast %336 : vector<8x1xf32> to vector<8x4xf32>
      %338 = arith.mulf %332, %337 : vector<8x4xf32>
      %c4_238 = arith.constant 4 : index
      %c0_239 = arith.constant 0 : index
      %c0_240 = arith.constant 0 : index
      %339 = vector.load %arg14[%c4_238, %c0_239, %c0_240] : memref<8x8x4xf32, #tpu.memory_space<vmem>>, vector<1x8x4xf32>
      %340 = vector.shape_cast %339 : vector<1x8x4xf32> to vector<8x4xf32>
      %c4_241 = arith.constant 4 : index
      %c0_242 = arith.constant 0 : index
      %c0_243 = arith.constant 0 : index
      %341 = vector.load %arg13[%c4_241, %c0_242, %c0_243] : memref<8x8x1xf32, #tpu.memory_space<vmem>>, vector<1x8x1xf32>
      %342 = vector.shape_cast %341 : vector<1x8x1xf32> to vector<8x1xf32>
      %cst_244 = arith.constant 1.000000e+00 : f32
      %343 = vector.broadcast %cst_244 : f32 to vector<8x1xf32>
      %344 = arith.divf %343, %342 : vector<8x1xf32>
      %345 = vector.broadcast %344 : vector<8x1xf32> to vector<8x4xf32>
      %346 = arith.mulf %340, %345 : vector<8x4xf32>
      %c5_245 = arith.constant 5 : index
      %c0_246 = arith.constant 0 : index
      %c0_247 = arith.constant 0 : index
      %347 = vector.load %arg14[%c5_245, %c0_246, %c0_247] : memref<8x8x4xf32, #tpu.memory_space<vmem>>, vector<1x8x4xf32>
      %348 = vector.shape_cast %347 : vector<1x8x4xf32> to vector<8x4xf32>
      %c5_248 = arith.constant 5 : index
      %c0_249 = arith.constant 0 : index
      %c0_250 = arith.constant 0 : index
      %349 = vector.load %arg13[%c5_248, %c0_249, %c0_250] : memref<8x8x1xf32, #tpu.memory_space<vmem>>, vector<1x8x1xf32>
      %350 = vector.shape_cast %349 : vector<1x8x1xf32> to vector<8x1xf32>
      %cst_251 = arith.constant 1.000000e+00 : f32
      %351 = vector.broadcast %cst_251 : f32 to vector<8x1xf32>
      %352 = arith.divf %351, %350 : vector<8x1xf32>
      %353 = vector.broadcast %352 : vector<8x1xf32> to vector<8x4xf32>
      %354 = arith.mulf %348, %353 : vector<8x4xf32>
      %c6_252 = arith.constant 6 : index
      %c0_253 = arith.constant 0 : index
      %c0_254 = arith.constant 0 : index
      %355 = vector.load %arg14[%c6_252, %c0_253, %c0_254] : memref<8x8x4xf32, #tpu.memory_space<vmem>>, vector<1x8x4xf32>
      %356 = vector.shape_cast %355 : vector<1x8x4xf32> to vector<8x4xf32>
      %c6_255 = arith.constant 6 : index
      %c0_256 = arith.constant 0 : index
      %c0_257 = arith.constant 0 : index
      %357 = vector.load %arg13[%c6_255, %c0_256, %c0_257] : memref<8x8x1xf32, #tpu.memory_space<vmem>>, vector<1x8x1xf32>
      %358 = vector.shape_cast %357 : vector<1x8x1xf32> to vector<8x1xf32>
      %cst_258 = arith.constant 1.000000e+00 : f32
      %359 = vector.broadcast %cst_258 : f32 to vector<8x1xf32>
      %360 = arith.divf %359, %358 : vector<8x1xf32>
      %361 = vector.broadcast %360 : vector<8x1xf32> to vector<8x4xf32>
      %362 = arith.mulf %356, %361 : vector<8x4xf32>
      %c7_259 = arith.constant 7 : index
      %c0_260 = arith.constant 0 : index
      %c0_261 = arith.constant 0 : index
      %363 = vector.load %arg14[%c7_259, %c0_260, %c0_261] : memref<8x8x4xf32, #tpu.memory_space<vmem>>, vector<1x8x4xf32>
      %364 = vector.shape_cast %363 : vector<1x8x4xf32> to vector<8x4xf32>
      %c7_262 = arith.constant 7 : index
      %c0_263 = arith.constant 0 : index
      %c0_264 = arith.constant 0 : index
      %365 = vector.load %arg13[%c7_262, %c0_263, %c0_264] : memref<8x8x1xf32, #tpu.memory_space<vmem>>, vector<1x8x1xf32>
      %366 = vector.shape_cast %365 : vector<1x8x1xf32> to vector<8x1xf32>
      %cst_265 = arith.constant 1.000000e+00 : f32
      %367 = vector.broadcast %cst_265 : f32 to vector<8x1xf32>
      %368 = arith.divf %367, %366 : vector<8x1xf32>
      %369 = vector.broadcast %368 : vector<8x1xf32> to vector<8x4xf32>
      %370 = arith.mulf %364, %369 : vector<8x4xf32>
      %371 = tpu.concatenate %314, %322, %330, %338, %346, %354, %362, %370 in 1 : vector<8x4xf32>, vector<8x4xf32>, vector<8x4xf32>, vector<8x4xf32>, vector<8x4xf32>, vector<8x4xf32>, vector<8x4xf32>, vector<8x4xf32> -> vector<8x32xf32>
      %c0_266 = arith.constant 0 : index
      %c0_267 = arith.constant 0 : index
      %372 = vector.load %arg10[%c0_266, %c0_267] : memref<8x32xf32, #tpu.memory_space<vmem>>, vector<8x32xf32>
      %c0_268 = arith.constant 0 : index
      %c0_269 = arith.constant 0 : index
      %c0_270 = arith.constant 0 : index
      %373 = vector.load %arg7[%c0_268, %c0_269, %c0_270] : memref<1x32x32xf32, #tpu.memory_space<vmem>>, vector<1x32x32xf32>
      %374 = vector.shape_cast %373 : vector<1x32x32xf32> to vector<32x32xf32>
      %cst_271 = arith.constant dense<0.000000e+00> : vector<8x32xf32>
      %375 = tpu.matmul %371, %374, %cst_271 {dimension_numbers = #tpu.dot_dimension_numbers<[1], [0], [0], [1], [0, 0, 1, 1], [], []>} : vector<8x32xf32>, vector<32x32xf32>, vector<8x32xf32> -> vector<8x32xf32>
      %376 = arith.addf %372, %375 : vector<8x32xf32>
      %c0_272 = arith.constant 0 : index
      %c0_273 = arith.constant 0 : index
      %377 = vector.load %arg10[%c0_272, %c0_273] : memref<8x32xf32, #tpu.memory_space<vmem>>, vector<8x32xf32>
      tpu.vector_store %arg10[%c0_272, %c0_273], %376 {strides = array<i32>} : memref<8x32xf32, #tpu.memory_space<vmem>>, vector<8x32xf32>,
      %c0_i32_274 = arith.constant 0 : i32
      %378 = arith.cmpi eq, %arg2, %c0_i32_274 : i32
      %379 = arith.extui %378 : i1 to i32
      %c0_i32_275 = arith.constant 0 : i32
      %380 = arith.cmpi ne, %379, %c0_i32_275 : i32
      scf.if %380 {
        %c0_276 = arith.constant 0 : index
        %c0_277 = arith.constant 0 : index
        %381 = vector.load %arg10[%c0_276, %c0_277] : memref<8x32xf32, #tpu.memory_space<vmem>>, vector<8x32xf32>
        %c0_278 = arith.constant 0 : index
        %c0_279 = arith.constant 0 : index
        %382 = vector.load %arg8[%c0_278, %c0_279] : memref<1x32xf32, #tpu.memory_space<vmem>>, vector<1x32xf32>
        %383 = vector.broadcast %382 : vector<1x32xf32> to vector<8x32xf32>
        %384 = arith.addf %381, %383 : vector<8x32xf32>
        %c0_280 = arith.constant 0 : index
        %c0_281 = arith.constant 0 : index
        %c0_282 = arith.constant 0 : index
        %385 = vector.load %arg9[%c0_280, %c0_281, %c0_282] : memref<1x8x32xf32, #tpu.memory_space<vmem>>, vector<1x8x32xf32>
        %386 = vector.shape_cast %385 : vector<1x8x32xf32> to vector<8x32xf32>
        %387 = vector.shape_cast %384 : vector<8x32xf32> to vector<1x8x32xf32>
        tpu.vector_store %arg9[%c0_280, %c0_281, %c0_282], %387 {strides = array<i32>} : memref<1x8x32xf32, #tpu.memory_space<vmem>>, vector<1x8x32xf32>,
      } else {
      }
    } else {
    }
    return
  }
  func.func @transform_0(%arg0: i32, %arg1: i32, %arg2: i32, %arg3: i32) -> (i32, i32, i32) {
    %c0_i32 = arith.constant 0 : i32
    %c0_i32_0 = arith.constant 0 : i32
    return %arg0, %arg1, %c0_i32 : i32, i32, i32
  }
  func.func @transform_1(%arg0: i32, %arg1: i32, %arg2: i32, %arg3: i32) -> (i32, i32, i32) {
    %c0_i32 = arith.constant 0 : i32
    %c0_i32_0 = arith.constant 0 : i32
    return %arg0, %arg3, %c0_i32 : i32, i32, i32
  }
  func.func @transform_2(%arg0: i32, %arg1: i32, %arg2: i32, %arg3: i32) -> (i32, i32, i32, i32) {
    %c0_i32 = arith.constant 0 : i32
    %c0_i32_0 = arith.constant 0 : i32
    %c0_i32_1 = arith.constant 0 : i32
    %c0_i32_2 = arith.constant 0 : i32
    return %c0_i32, %arg2, %c0_i32_0, %c0_i32_1 : i32, i32, i32, i32
  }
  func.func @transform_3(%arg0: i32, %arg1: i32, %arg2: i32, %arg3: i32) -> (i32, i32, i32) {
    %c0_i32 = arith.constant 0 : i32
    %c0_i32_0 = arith.constant 0 : i32
    %c0_i32_1 = arith.constant 0 : i32
    return %arg2, %c0_i32, %c0_i32_0 : i32, i32, i32
  }
  func.func @transform_4(%arg0: i32, %arg1: i32, %arg2: i32, %arg3: i32) -> (i32, i32) {
    %c0_i32 = arith.constant 0 : i32
    %c0_i32_0 = arith.constant 0 : i32
    %c0_i32_1 = arith.constant 0 : i32
    return %c0_i32, %c0_i32_0 : i32, i32
  }
  func.func @transform_5(%arg0: i32, %arg1: i32, %arg2: i32, %arg3: i32) -> (i32, i32, i32) {
    %c0_i32 = arith.constant 0 : i32
    %c0_i32_0 = arith.constant 0 : i32
    return %arg0, %arg1, %c0_i32 : i32, i32, i32
  }
}

module attributes {stable_mosaic.version = 11 : i64} {
  func.func @_mha_flash_kernel(%arg0: i32, %arg1: i32, %arg2: i32, %arg3: i32, %arg4: memref<1x8x32xf32, #tpu.memory_space<vmem>>, %arg5: memref<1x8x32xf32, #tpu.memory_space<vmem>>, %arg6: memref<3x1x32x32xf32, #tpu.memory_space<vmem>>, %arg7: memref<1x32x32xf32, #tpu.memory_space<vmem>>, %arg8: memref<1x32xf32, #tpu.memory_space<vmem>>, %arg9: memref<1x8x32xf32, #tpu.memory_space<vmem>>, %arg10: memref<8x32xf32, #tpu.memory_space<vmem>>, %arg11: memref<8x8x4xf32, #tpu.memory_space<vmem>>, %arg12: memref<8x8x1xf32, #tpu.memory_space<vmem>>, %arg13: memref<8x8x1xf32, #tpu.memory_space<vmem>>, %arg14: memref<8x8x4xf32, #tpu.memory_space<vmem>>) attributes {dimension_semantics = [#tpu.dimension_semantics<parallel>, #tpu.dimension_semantics<parallel>, #tpu.dimension_semantics<arbitrary>, #tpu.dimension_semantics<arbitrary>], iteration_bounds = array<i64: 2, 1, 1, 1>, scalar_prefetch = 0 : i64, scratch_operands = 5 : i64, tpu.core_type = #tpu.core_type<tc>, window_params = [{transform_indices = @transform_0, window_bounds = array<i64: 1, 8, 32>}, {transform_indices = @transform_1, window_bounds = array<i64: 1, 8, 32>}, {transform_indices = @transform_2, window_bounds = array<i64: 3, 1, 32, 32>}, {transform_indices = @transform_3, window_bounds = array<i64: 1, 32, 32>}, {pipeline_mode = #tpu.pipeline_mode<synchronous>, transform_indices = @transform_4, window_bounds = array<i64: 1, 32>}, {transform_indices = @transform_5, window_bounds = array<i64: 1, 8, 32>}]} {
    %c0_i32 = arith.constant 0 : i32
    %0 = arith.cmpi eq, %arg2, %c0_i32 : i32
    %c0_i32_0 = arith.constant 0 : i32
    %1 = arith.cmpi eq, %arg3, %c0_i32_0 : i32
    %2 = arith.andi %0, %1 : i1
    %3 = arith.extui %2 : i1 to i32
    %c0_i32_1 = arith.constant 0 : i32
    %4 = arith.cmpi ne, %3, %c0_i32_1 : i32
    scf.if %4 {
      %cst_210 = arith.constant 0.000000e+00 : f32
      %307 = vector.broadcast %cst_210 : f32 to vector<8x32xf32>
      %c0_211 = arith.constant 0 : index
      %c0_212 = arith.constant 0 : index
      %308 = vector.load %arg10[%c0_211, %c0_212] : memref<8x32xf32, #tpu.memory_space<vmem>>, vector<8x32xf32>
      tpu.vector_store %arg10[%c0_211, %c0_212], %307 {strides = array<i32>} : memref<8x32xf32, #tpu.memory_space<vmem>>, vector<8x32xf32>,
    } else {
    }
    %c0_i32_2 = arith.constant 0 : i32
    %5 = arith.cmpi eq, %arg3, %c0_i32_2 : i32
    %6 = arith.extui %5 : i1 to i32
    %c0_i32_3 = arith.constant 0 : i32
    %7 = arith.cmpi ne, %6, %c0_i32_3 : i32
    scf.if %7 {
      %c0_210 = arith.constant 0 : index
      %c0_211 = arith.constant 0 : index
      %c0_212 = arith.constant 0 : index
      %307 = vector.load %arg4[%c0_210, %c0_211, %c0_212] : memref<1x8x32xf32, #tpu.memory_space<vmem>>, vector<1x8x32xf32>
      %308 = vector.shape_cast %307 : vector<1x8x32xf32> to vector<8x32xf32>
      %c0_213 = arith.constant 0 : index
      %c0_214 = arith.constant 0 : index
      %c0_215 = arith.constant 0 : index
      %c0_216 = arith.constant 0 : index
      %309 = vector.load %arg6[%c0_213, %c0_214, %c0_215, %c0_216] : memref<3x1x32x32xf32, #tpu.memory_space<vmem>>, vector<1x1x32x32xf32>
      %310 = vector.shape_cast %309 : vector<1x1x32x32xf32> to vector<32x32xf32>
      %cst_217 = arith.constant dense<0.000000e+00> : vector<8x32xf32>
      %311 = tpu.matmul %308, %310, %cst_217 {dimension_numbers = #tpu.dot_dimension_numbers<[1], [1], [0], [0], [0, 0, 1, 0], [], []>} : vector<8x32xf32>, vector<32x32xf32>, vector<8x32xf32> -> vector<8x32xf32>
      %cst_218 = arith.constant 5.000000e-01 : f32
      %312 = vector.broadcast %cst_218 : f32 to vector<8x32xf32>
      %313 = arith.mulf %311, %312 : vector<8x32xf32>
      %314 = vector.extract_strided_slice %313 {offsets = [0, 0], sizes = [8, 4], strides = [1, 1]} : vector<8x32xf32> to vector<8x4xf32>
      %c0_219 = arith.constant 0 : index
      %c0_220 = arith.constant 0 : index
      %c0_221 = arith.constant 0 : index
      %315 = vector.load %arg11[%c0_219, %c0_220, %c0_221] : memref<8x8x4xf32, #tpu.memory_space<vmem>>, vector<1x8x4xf32>
      %316 = vector.shape_cast %315 : vector<1x8x4xf32> to vector<8x4xf32>
      %317 = vector.shape_cast %314 : vector<8x4xf32> to vector<1x8x4xf32>
      tpu.vector_store %arg11[%c0_219, %c0_220, %c0_221], %317 {strides = array<i32>} : memref<8x8x4xf32, #tpu.memory_space<vmem>>, vector<1x8x4xf32>,
      %318 = vector.extract_strided_slice %313 {offsets = [0, 4], sizes = [8, 4], strides = [1, 1]} : vector<8x32xf32> to vector<8x4xf32>
      %c1_222 = arith.constant 1 : index
      %c0_223 = arith.constant 0 : index
      %c0_224 = arith.constant 0 : index
      %319 = vector.load %arg11[%c1_222, %c0_223, %c0_224] : memref<8x8x4xf32, #tpu.memory_space<vmem>>, vector<1x8x4xf32>
      %320 = vector.shape_cast %319 : vector<1x8x4xf32> to vector<8x4xf32>
      %321 = vector.shape_cast %318 : vector<8x4xf32> to vector<1x8x4xf32>
      tpu.vector_store %arg11[%c1_222, %c0_223, %c0_224], %321 {strides = array<i32>} : memref<8x8x4xf32, #tpu.memory_space<vmem>>, vector<1x8x4xf32>,
      %322 = vector.extract_strided_slice %313 {offsets = [0, 8], sizes = [8, 4], strides = [1, 1]} : vector<8x32xf32> to vector<8x4xf32>
      %c2_225 = arith.constant 2 : index
      %c0_226 = arith.constant 0 : index
      %c0_227 = arith.constant 0 : index
      %323 = vector.load %arg11[%c2_225, %c0_226, %c0_227] : memref<8x8x4xf32, #tpu.memory_space<vmem>>, vector<1x8x4xf32>
      %324 = vector.shape_cast %323 : vector<1x8x4xf32> to vector<8x4xf32>
      %325 = vector.shape_cast %322 : vector<8x4xf32> to vector<1x8x4xf32>
      tpu.vector_store %arg11[%c2_225, %c0_226, %c0_227], %325 {strides = array<i32>} : memref<8x8x4xf32, #tpu.memory_space<vmem>>, vector<1x8x4xf32>,
      %326 = vector.extract_strided_slice %313 {offsets = [0, 12], sizes = [8, 4], strides = [1, 1]} : vector<8x32xf32> to vector<8x4xf32>
      %c3_228 = arith.constant 3 : index
      %c0_229 = arith.constant 0 : index
      %c0_230 = arith.constant 0 : index
      %327 = vector.load %arg11[%c3_228, %c0_229, %c0_230] : memref<8x8x4xf32, #tpu.memory_space<vmem>>, vector<1x8x4xf32>
      %328 = vector.shape_cast %327 : vector<1x8x4xf32> to vector<8x4xf32>
      %329 = vector.shape_cast %326 : vector<8x4xf32> to vector<1x8x4xf32>
      tpu.vector_store %arg11[%c3_228, %c0_229, %c0_230], %329 {strides = array<i32>} : memref<8x8x4xf32, #tpu.memory_space<vmem>>, vector<1x8x4xf32>,
      %330 = vector.extract_strided_slice %313 {offsets = [0, 16], sizes = [8, 4], strides = [1, 1]} : vector<8x32xf32> to vector<8x4xf32>
      %c4_231 = arith.constant 4 : index
      %c0_232 = arith.constant 0 : index
      %c0_233 = arith.constant 0 : index
      %331 = vector.load %arg11[%c4_231, %c0_232, %c0_233] : memref<8x8x4xf32, #tpu.memory_space<vmem>>, vector<1x8x4xf32>
      %332 = vector.shape_cast %331 : vector<1x8x4xf32> to vector<8x4xf32>
      %333 = vector.shape_cast %330 : vector<8x4xf32> to vector<1x8x4xf32>
      tpu.vector_store %arg11[%c4_231, %c0_232, %c0_233], %333 {strides = array<i32>} : memref<8x8x4xf32, #tpu.memory_space<vmem>>, vector<1x8x4xf32>,
      %334 = vector.extract_strided_slice %313 {offsets = [0, 20], sizes = [8, 4], strides = [1, 1]} : vector<8x32xf32> to vector<8x4xf32>
      %c5_234 = arith.constant 5 : index
      %c0_235 = arith.constant 0 : index
      %c0_236 = arith.constant 0 : index
      %335 = vector.load %arg11[%c5_234, %c0_235, %c0_236] : memref<8x8x4xf32, #tpu.memory_space<vmem>>, vector<1x8x4xf32>
      %336 = vector.shape_cast %335 : vector<1x8x4xf32> to vector<8x4xf32>
      %337 = vector.shape_cast %334 : vector<8x4xf32> to vector<1x8x4xf32>
      tpu.vector_store %arg11[%c5_234, %c0_235, %c0_236], %337 {strides = array<i32>} : memref<8x8x4xf32, #tpu.memory_space<vmem>>, vector<1x8x4xf32>,
      %338 = vector.extract_strided_slice %313 {offsets = [0, 24], sizes = [8, 4], strides = [1, 1]} : vector<8x32xf32> to vector<8x4xf32>
      %c6_237 = arith.constant 6 : index
      %c0_238 = arith.constant 0 : index
      %c0_239 = arith.constant 0 : index
      %339 = vector.load %arg11[%c6_237, %c0_238, %c0_239] : memref<8x8x4xf32, #tpu.memory_space<vmem>>, vector<1x8x4xf32>
      %340 = vector.shape_cast %339 : vector<1x8x4xf32> to vector<8x4xf32>
      %341 = vector.shape_cast %338 : vector<8x4xf32> to vector<1x8x4xf32>
      tpu.vector_store %arg11[%c6_237, %c0_238, %c0_239], %341 {strides = array<i32>} : memref<8x8x4xf32, #tpu.memory_space<vmem>>, vector<1x8x4xf32>,
      %342 = vector.extract_strided_slice %313 {offsets = [0, 28], sizes = [8, 4], strides = [1, 1]} : vector<8x32xf32> to vector<8x4xf32>
      %c7_240 = arith.constant 7 : index
      %c0_241 = arith.constant 0 : index
      %c0_242 = arith.constant 0 : index
      %343 = vector.load %arg11[%c7_240, %c0_241, %c0_242] : memref<8x8x4xf32, #tpu.memory_space<vmem>>, vector<1x8x4xf32>
      %344 = vector.shape_cast %343 : vector<1x8x4xf32> to vector<8x4xf32>
      %345 = vector.shape_cast %342 : vector<8x4xf32> to vector<1x8x4xf32>
      tpu.vector_store %arg11[%c7_240, %c0_241, %c0_242], %345 {strides = array<i32>} : memref<8x8x4xf32, #tpu.memory_space<vmem>>, vector<1x8x4xf32>,
      %cst_243 = arith.constant 0xFF800000 : f32
      %346 = vector.broadcast %cst_243 : f32 to vector<8x8x1xf32>
      %c0_244 = arith.constant 0 : index
      %c0_245 = arith.constant 0 : index
      %c0_246 = arith.constant 0 : index
      %347 = vector.load %arg12[%c0_244, %c0_245, %c0_246] : memref<8x8x1xf32, #tpu.memory_space<vmem>>, vector<8x8x1xf32>
      tpu.vector_store %arg12[%c0_244, %c0_245, %c0_246], %346 {strides = array<i32>} : memref<8x8x1xf32, #tpu.memory_space<vmem>>, vector<8x8x1xf32>,
      %cst_247 = arith.constant 0.000000e+00 : f32
      %348 = vector.broadcast %cst_247 : f32 to vector<8x8x1xf32>
      %c0_248 = arith.constant 0 : index
      %c0_249 = arith.constant 0 : index
      %c0_250 = arith.constant 0 : index
      %349 = vector.load %arg13[%c0_248, %c0_249, %c0_250] : memref<8x8x1xf32, #tpu.memory_space<vmem>>, vector<8x8x1xf32>
      tpu.vector_store %arg13[%c0_248, %c0_249, %c0_250], %348 {strides = array<i32>} : memref<8x8x1xf32, #tpu.memory_space<vmem>>, vector<8x8x1xf32>,
      %cst_251 = arith.constant 0.000000e+00 : f32
      %350 = vector.broadcast %cst_251 : f32 to vector<8x8x4xf32>
      %c0_252 = arith.constant 0 : index
      %c0_253 = arith.constant 0 : index
      %c0_254 = arith.constant 0 : index
      %351 = vector.load %arg14[%c0_252, %c0_253, %c0_254] : memref<8x8x4xf32, #tpu.memory_space<vmem>>, vector<8x8x4xf32>
      tpu.vector_store %arg14[%c0_252, %c0_253, %c0_254], %350 {strides = array<i32>} : memref<8x8x4xf32, #tpu.memory_space<vmem>>, vector<8x8x4xf32>,
    } else {
    }
    %c0 = arith.constant 0 : index
    %c0_4 = arith.constant 0 : index
    %c0_5 = arith.constant 0 : index
    %8 = vector.load %arg5[%c0, %c0_4, %c0_5] : memref<1x8x32xf32, #tpu.memory_space<vmem>>, vector<1x8x32xf32>
    %9 = vector.shape_cast %8 : vector<1x8x32xf32> to vector<8x32xf32>
    %c1 = arith.constant 1 : index
    %c0_6 = arith.constant 0 : index
    %c0_7 = arith.constant 0 : index
    %c0_8 = arith.constant 0 : index
    %10 = vector.load %arg6[%c1, %c0_6, %c0_7, %c0_8] : memref<3x1x32x32xf32, #tpu.memory_space<vmem>>, vector<1x1x32x32xf32>
    %11 = vector.shape_cast %10 : vector<1x1x32x32xf32> to vector<32x32xf32>
    %cst = arith.constant dense<0.000000e+00> : vector<32x8xf32>
    %12 = tpu.matmul %11, %9, %cst {dimension_numbers = #tpu.dot_dimension_numbers<[1], [1], [0], [0], [0, 0, 1, 0], [], []>} : vector<32x32xf32>, vector<8x32xf32>, vector<32x8xf32> -> vector<32x8xf32>
    %c2 = arith.constant 2 : index
    %c0_9 = arith.constant 0 : index
    %c0_10 = arith.constant 0 : index
    %c0_11 = arith.constant 0 : index
    %13 = vector.load %arg6[%c2, %c0_9, %c0_10, %c0_11] : memref<3x1x32x32xf32, #tpu.memory_space<vmem>>, vector<1x1x32x32xf32>
    %14 = vector.shape_cast %13 : vector<1x1x32x32xf32> to vector<32x32xf32>
    %cst_12 = arith.constant dense<0.000000e+00> : vector<32x8xf32>
    %15 = tpu.matmul %14, %9, %cst_12 {dimension_numbers = #tpu.dot_dimension_numbers<[1], [1], [0], [0], [0, 0, 1, 0], [], []>} : vector<32x32xf32>, vector<8x32xf32>, vector<32x8xf32> -> vector<32x8xf32>
    %16 = vector.extract_strided_slice %12 {offsets = [0, 0], sizes = [4, 8], strides = [1, 1]} : vector<32x8xf32> to vector<4x8xf32>
    %17 = vector.extract_strided_slice %15 {offsets = [0, 0], sizes = [4, 8], strides = [1, 1]} : vector<32x8xf32> to vector<4x8xf32>
    %c0_13 = arith.constant 0 : index
    %c0_14 = arith.constant 0 : index
    %c0_15 = arith.constant 0 : index
    %18 = vector.load %arg11[%c0_13, %c0_14, %c0_15] : memref<8x8x4xf32, #tpu.memory_space<vmem>>, vector<1x8x4xf32>
    %19 = vector.shape_cast %18 : vector<1x8x4xf32> to vector<8x4xf32>
    %cst_16 = arith.constant dense<0.000000e+00> : vector<8x8xf32>
    %20 = tpu.matmul %19, %16, %cst_16 {dimension_numbers = #tpu.dot_dimension_numbers<[1], [0], [0], [1], [0, 0, 1, 1], [], []>} : vector<8x4xf32>, vector<4x8xf32>, vector<8x8xf32> -> vector<8x8xf32>
    %c0_17 = arith.constant 0 : index
    %c0_18 = arith.constant 0 : index
    %c0_19 = arith.constant 0 : index
    %21 = vector.load %arg12[%c0_17, %c0_18, %c0_19] : memref<8x8x1xf32, #tpu.memory_space<vmem>>, vector<1x8x1xf32>
    %22 = vector.shape_cast %21 : vector<1x8x1xf32> to vector<8x1xf32>
    %cst_20 = arith.constant dense<0xFF800000> : vector<8xf32>
    %23 = vector.multi_reduction <maximumf>, %20, %cst_20 [1] : vector<8x8xf32> to vector<8xf32>
    %24 = vector.shape_cast %23 : vector<8xf32> to vector<8x1xf32>
    %25 = arith.maximumf %22, %24 : vector<8x1xf32>
    %26 = arith.subf %22, %25 : vector<8x1xf32>
    %27 = math.exp %26 : vector<8x1xf32>
    %28 = vector.broadcast %25 : vector<8x1xf32> to vector<8x8xf32>
    %29 = arith.subf %20, %28 : vector<8x8xf32>
    %30 = math.exp %29 : vector<8x8xf32>
    %c0_21 = arith.constant 0 : index
    %c0_22 = arith.constant 0 : index
    %c0_23 = arith.constant 0 : index
    %31 = vector.load %arg13[%c0_21, %c0_22, %c0_23] : memref<8x8x1xf32, #tpu.memory_space<vmem>>, vector<1x8x1xf32>
    %32 = vector.shape_cast %31 : vector<1x8x1xf32> to vector<8x1xf32>
    %33 = arith.mulf %27, %32 : vector<8x1xf32>
    %cst_24 = arith.constant dense<0.000000e+00> : vector<8xf32>
    %34 = vector.multi_reduction <add>, %30, %cst_24 [1] : vector<8x8xf32> to vector<8xf32>
    %35 = vector.shape_cast %34 : vector<8xf32> to vector<8x1xf32>
    %36 = arith.addf %33, %35 : vector<8x1xf32>
    %c0_25 = arith.constant 0 : index
    %c0_26 = arith.constant 0 : index
    %c0_27 = arith.constant 0 : index
    %37 = vector.load %arg13[%c0_25, %c0_26, %c0_27] : memref<8x8x1xf32, #tpu.memory_space<vmem>>, vector<1x8x1xf32>
    %38 = vector.shape_cast %37 : vector<1x8x1xf32> to vector<8x1xf32>
    %39 = vector.shape_cast %36 : vector<8x1xf32> to vector<1x8x1xf32>
    tpu.vector_store %arg13[%c0_25, %c0_26, %c0_27], %39 {strides = array<i32>} : memref<8x8x1xf32, #tpu.memory_space<vmem>>, vector<1x8x1xf32>,
    %c0_28 = arith.constant 0 : index
    %c0_29 = arith.constant 0 : index
    %c0_30 = arith.constant 0 : index
    %40 = vector.load %arg14[%c0_28, %c0_29, %c0_30] : memref<8x8x4xf32, #tpu.memory_space<vmem>>, vector<1x8x4xf32>
    %41 = vector.shape_cast %40 : vector<1x8x4xf32> to vector<8x4xf32>
    %42 = vector.broadcast %27 : vector<8x1xf32> to vector<8x4xf32>
    %43 = arith.mulf %42, %41 : vector<8x4xf32>
    %cst_31 = arith.constant dense<0.000000e+00> : vector<8x4xf32>
    %44 = tpu.matmul %30, %17, %cst_31 {dimension_numbers = #tpu.dot_dimension_numbers<[1], [1], [0], [0], [0, 0, 1, 0], [], []>} : vector<8x8xf32>, vector<4x8xf32>, vector<8x4xf32> -> vector<8x4xf32>
    %45 = arith.addf %43, %44 : vector<8x4xf32>
    %c0_32 = arith.constant 0 : index
    %c0_33 = arith.constant 0 : index
    %c0_34 = arith.constant 0 : index
    %46 = vector.load %arg14[%c0_32, %c0_33, %c0_34] : memref<8x8x4xf32, #tpu.memory_space<vmem>>, vector<1x8x4xf32>
    %47 = vector.shape_cast %46 : vector<1x8x4xf32> to vector<8x4xf32>
    %48 = vector.shape_cast %45 : vector<8x4xf32> to vector<1x8x4xf32>
    tpu.vector_store %arg14[%c0_32, %c0_33, %c0_34], %48 {strides = array<i32>} : memref<8x8x4xf32, #tpu.memory_space<vmem>>, vector<1x8x4xf32>,
    %c0_35 = arith.constant 0 : index
    %c0_36 = arith.constant 0 : index
    %c0_37 = arith.constant 0 : index
    %49 = vector.load %arg12[%c0_35, %c0_36, %c0_37] : memref<8x8x1xf32, #tpu.memory_space<vmem>>, vector<1x8x1xf32>
    %50 = vector.shape_cast %49 : vector<1x8x1xf32> to vector<8x1xf32>
    %51 = vector.shape_cast %25 : vector<8x1xf32> to vector<1x8x1xf32>
    tpu.vector_store %arg12[%c0_35, %c0_36, %c0_37], %51 {strides = array<i32>} : memref<8x8x1xf32, #tpu.memory_space<vmem>>, vector<1x8x1xf32>,
    %52 = vector.extract_strided_slice %12 {offsets = [4, 0], sizes = [4, 8], strides = [1, 1]} : vector<32x8xf32> to vector<4x8xf32>
    %53 = vector.extract_strided_slice %15 {offsets = [4, 0], sizes = [4, 8], strides = [1, 1]} : vector<32x8xf32> to vector<4x8xf32>
    %c1_38 = arith.constant 1 : index
    %c0_39 = arith.constant 0 : index
    %c0_40 = arith.constant 0 : index
    %54 = vector.load %arg11[%c1_38, %c0_39, %c0_40] : memref<8x8x4xf32, #tpu.memory_space<vmem>>, vector<1x8x4xf32>
    %55 = vector.shape_cast %54 : vector<1x8x4xf32> to vector<8x4xf32>
    %cst_41 = arith.constant dense<0.000000e+00> : vector<8x8xf32>
    %56 = tpu.matmul %55, %52, %cst_41 {dimension_numbers = #tpu.dot_dimension_numbers<[1], [0], [0], [1], [0, 0, 1, 1], [], []>} : vector<8x4xf32>, vector<4x8xf32>, vector<8x8xf32> -> vector<8x8xf32>
    %c1_42 = arith.constant 1 : index
    %c0_43 = arith.constant 0 : index
    %c0_44 = arith.constant 0 : index
    %57 = vector.load %arg12[%c1_42, %c0_43, %c0_44] : memref<8x8x1xf32, #tpu.memory_space<vmem>>, vector<1x8x1xf32>
    %58 = vector.shape_cast %57 : vector<1x8x1xf32> to vector<8x1xf32>
    %cst_45 = arith.constant dense<0xFF800000> : vector<8xf32>
    %59 = vector.multi_reduction <maximumf>, %56, %cst_45 [1] : vector<8x8xf32> to vector<8xf32>
    %60 = vector.shape_cast %59 : vector<8xf32> to vector<8x1xf32>
    %61 = arith.maximumf %58, %60 : vector<8x1xf32>
    %62 = arith.subf %58, %61 : vector<8x1xf32>
    %63 = math.exp %62 : vector<8x1xf32>
    %64 = vector.broadcast %61 : vector<8x1xf32> to vector<8x8xf32>
    %65 = arith.subf %56, %64 : vector<8x8xf32>
    %66 = math.exp %65 : vector<8x8xf32>
    %c1_46 = arith.constant 1 : index
    %c0_47 = arith.constant 0 : index
    %c0_48 = arith.constant 0 : index
    %67 = vector.load %arg13[%c1_46, %c0_47, %c0_48] : memref<8x8x1xf32, #tpu.memory_space<vmem>>, vector<1x8x1xf32>
    %68 = vector.shape_cast %67 : vector<1x8x1xf32> to vector<8x1xf32>
    %69 = arith.mulf %63, %68 : vector<8x1xf32>
    %cst_49 = arith.constant dense<0.000000e+00> : vector<8xf32>
    %70 = vector.multi_reduction <add>, %66, %cst_49 [1] : vector<8x8xf32> to vector<8xf32>
    %71 = vector.shape_cast %70 : vector<8xf32> to vector<8x1xf32>
    %72 = arith.addf %69, %71 : vector<8x1xf32>
    %c1_50 = arith.constant 1 : index
    %c0_51 = arith.constant 0 : index
    %c0_52 = arith.constant 0 : index
    %73 = vector.load %arg13[%c1_50, %c0_51, %c0_52] : memref<8x8x1xf32, #tpu.memory_space<vmem>>, vector<1x8x1xf32>
    %74 = vector.shape_cast %73 : vector<1x8x1xf32> to vector<8x1xf32>
    %75 = vector.shape_cast %72 : vector<8x1xf32> to vector<1x8x1xf32>
    tpu.vector_store %arg13[%c1_50, %c0_51, %c0_52], %75 {strides = array<i32>} : memref<8x8x1xf32, #tpu.memory_space<vmem>>, vector<1x8x1xf32>,
    %c1_53 = arith.constant 1 : index
    %c0_54 = arith.constant 0 : index
    %c0_55 = arith.constant 0 : index
    %76 = vector.load %arg14[%c1_53, %c0_54, %c0_55] : memref<8x8x4xf32, #tpu.memory_space<vmem>>, vector<1x8x4xf32>
    %77 = vector.shape_cast %76 : vector<1x8x4xf32> to vector<8x4xf32>
    %78 = vector.broadcast %63 : vector<8x1xf32> to vector<8x4xf32>
    %79 = arith.mulf %78, %77 : vector<8x4xf32>
    %cst_56 = arith.constant dense<0.000000e+00> : vector<8x4xf32>
    %80 = tpu.matmul %66, %53, %cst_56 {dimension_numbers = #tpu.dot_dimension_numbers<[1], [1], [0], [0], [0, 0, 1, 0], [], []>} : vector<8x8xf32>, vector<4x8xf32>, vector<8x4xf32> -> vector<8x4xf32>
    %81 = arith.addf %79, %80 : vector<8x4xf32>
    %c1_57 = arith.constant 1 : index
    %c0_58 = arith.constant 0 : index
    %c0_59 = arith.constant 0 : index
    %82 = vector.load %arg14[%c1_57, %c0_58, %c0_59] : memref<8x8x4xf32, #tpu.memory_space<vmem>>, vector<1x8x4xf32>
    %83 = vector.shape_cast %82 : vector<1x8x4xf32> to vector<8x4xf32>
    %84 = vector.shape_cast %81 : vector<8x4xf32> to vector<1x8x4xf32>
    tpu.vector_store %arg14[%c1_57, %c0_58, %c0_59], %84 {strides = array<i32>} : memref<8x8x4xf32, #tpu.memory_space<vmem>>, vector<1x8x4xf32>,
    %c1_60 = arith.constant 1 : index
    %c0_61 = arith.constant 0 : index
    %c0_62 = arith.constant 0 : index
    %85 = vector.load %arg12[%c1_60, %c0_61, %c0_62] : memref<8x8x1xf32, #tpu.memory_space<vmem>>, vector<1x8x1xf32>
    %86 = vector.shape_cast %85 : vector<1x8x1xf32> to vector<8x1xf32>
    %87 = vector.shape_cast %61 : vector<8x1xf32> to vector<1x8x1xf32>
    tpu.vector_store %arg12[%c1_60, %c0_61, %c0_62], %87 {strides = array<i32>} : memref<8x8x1xf32, #tpu.memory_space<vmem>>, vector<1x8x1xf32>,
    %88 = vector.extract_strided_slice %12 {offsets = [8, 0], sizes = [4, 8], strides = [1, 1]} : vector<32x8xf32> to vector<4x8xf32>
    %89 = vector.extract_strided_slice %15 {offsets = [8, 0], sizes = [4, 8], strides = [1, 1]} : vector<32x8xf32> to vector<4x8xf32>
    %c2_63 = arith.constant 2 : index
    %c0_64 = arith.constant 0 : index
    %c0_65 = arith.constant 0 : index
    %90 = vector.load %arg11[%c2_63, %c0_64, %c0_65] : memref<8x8x4xf32, #tpu.memory_space<vmem>>, vector<1x8x4xf32>
    %91 = vector.shape_cast %90 : vector<1x8x4xf32> to vector<8x4xf32>
    %cst_66 = arith.constant dense<0.000000e+00> : vector<8x8xf32>
    %92 = tpu.matmul %91, %88, %cst_66 {dimension_numbers = #tpu.dot_dimension_numbers<[1], [0], [0], [1], [0, 0, 1, 1], [], []>} : vector<8x4xf32>, vector<4x8xf32>, vector<8x8xf32> -> vector<8x8xf32>
    %c2_67 = arith.constant 2 : index
    %c0_68 = arith.constant 0 : index
    %c0_69 = arith.constant 0 : index
    %93 = vector.load %arg12[%c2_67, %c0_68, %c0_69] : memref<8x8x1xf32, #tpu.memory_space<vmem>>, vector<1x8x1xf32>
    %94 = vector.shape_cast %93 : vector<1x8x1xf32> to vector<8x1xf32>
    %cst_70 = arith.constant dense<0xFF800000> : vector<8xf32>
    %95 = vector.multi_reduction <maximumf>, %92, %cst_70 [1] : vector<8x8xf32> to vector<8xf32>
    %96 = vector.shape_cast %95 : vector<8xf32> to vector<8x1xf32>
    %97 = arith.maximumf %94, %96 : vector<8x1xf32>
    %98 = arith.subf %94, %97 : vector<8x1xf32>
    %99 = math.exp %98 : vector<8x1xf32>
    %100 = vector.broadcast %97 : vector<8x1xf32> to vector<8x8xf32>
    %101 = arith.subf %92, %100 : vector<8x8xf32>
    %102 = math.exp %101 : vector<8x8xf32>
    %c2_71 = arith.constant 2 : index
    %c0_72 = arith.constant 0 : index
    %c0_73 = arith.constant 0 : index
    %103 = vector.load %arg13[%c2_71, %c0_72, %c0_73] : memref<8x8x1xf32, #tpu.memory_space<vmem>>, vector<1x8x1xf32>
    %104 = vector.shape_cast %103 : vector<1x8x1xf32> to vector<8x1xf32>
    %105 = arith.mulf %99, %104 : vector<8x1xf32>
    %cst_74 = arith.constant dense<0.000000e+00> : vector<8xf32>
    %106 = vector.multi_reduction <add>, %102, %cst_74 [1] : vector<8x8xf32> to vector<8xf32>
    %107 = vector.shape_cast %106 : vector<8xf32> to vector<8x1xf32>
    %108 = arith.addf %105, %107 : vector<8x1xf32>
    %c2_75 = arith.constant 2 : index
    %c0_76 = arith.constant 0 : index
    %c0_77 = arith.constant 0 : index
    %109 = vector.load %arg13[%c2_75, %c0_76, %c0_77] : memref<8x8x1xf32, #tpu.memory_space<vmem>>, vector<1x8x1xf32>
    %110 = vector.shape_cast %109 : vector<1x8x1xf32> to vector<8x1xf32>
    %111 = vector.shape_cast %108 : vector<8x1xf32> to vector<1x8x1xf32>
    tpu.vector_store %arg13[%c2_75, %c0_76, %c0_77], %111 {strides = array<i32>} : memref<8x8x1xf32, #tpu.memory_space<vmem>>, vector<1x8x1xf32>,
    %c2_78 = arith.constant 2 : index
    %c0_79 = arith.constant 0 : index
    %c0_80 = arith.constant 0 : index
    %112 = vector.load %arg14[%c2_78, %c0_79, %c0_80] : memref<8x8x4xf32, #tpu.memory_space<vmem>>, vector<1x8x4xf32>
    %113 = vector.shape_cast %112 : vector<1x8x4xf32> to vector<8x4xf32>
    %114 = vector.broadcast %99 : vector<8x1xf32> to vector<8x4xf32>
    %115 = arith.mulf %114, %113 : vector<8x4xf32>
    %cst_81 = arith.constant dense<0.000000e+00> : vector<8x4xf32>
    %116 = tpu.matmul %102, %89, %cst_81 {dimension_numbers = #tpu.dot_dimension_numbers<[1], [1], [0], [0], [0, 0, 1, 0], [], []>} : vector<8x8xf32>, vector<4x8xf32>, vector<8x4xf32> -> vector<8x4xf32>
    %117 = arith.addf %115, %116 : vector<8x4xf32>
    %c2_82 = arith.constant 2 : index
    %c0_83 = arith.constant 0 : index
    %c0_84 = arith.constant 0 : index
    %118 = vector.load %arg14[%c2_82, %c0_83, %c0_84] : memref<8x8x4xf32, #tpu.memory_space<vmem>>, vector<1x8x4xf32>
    %119 = vector.shape_cast %118 : vector<1x8x4xf32> to vector<8x4xf32>
    %120 = vector.shape_cast %117 : vector<8x4xf32> to vector<1x8x4xf32>
    tpu.vector_store %arg14[%c2_82, %c0_83, %c0_84], %120 {strides = array<i32>} : memref<8x8x4xf32, #tpu.memory_space<vmem>>, vector<1x8x4xf32>,
    %c2_85 = arith.constant 2 : index
    %c0_86 = arith.constant 0 : index
    %c0_87 = arith.constant 0 : index
    %121 = vector.load %arg12[%c2_85, %c0_86, %c0_87] : memref<8x8x1xf32, #tpu.memory_space<vmem>>, vector<1x8x1xf32>
    %122 = vector.shape_cast %121 : vector<1x8x1xf32> to vector<8x1xf32>
    %123 = vector.shape_cast %97 : vector<8x1xf32> to vector<1x8x1xf32>
    tpu.vector_store %arg12[%c2_85, %c0_86, %c0_87], %123 {strides = array<i32>} : memref<8x8x1xf32, #tpu.memory_space<vmem>>, vector<1x8x1xf32>,
    %124 = vector.extract_strided_slice %12 {offsets = [12, 0], sizes = [4, 8], strides = [1, 1]} : vector<32x8xf32> to vector<4x8xf32>
    %125 = vector.extract_strided_slice %15 {offsets = [12, 0], sizes = [4, 8], strides = [1, 1]} : vector<32x8xf32> to vector<4x8xf32>
    %c3 = arith.constant 3 : index
    %c0_88 = arith.constant 0 : index
    %c0_89 = arith.constant 0 : index
    %126 = vector.load %arg11[%c3, %c0_88, %c0_89] : memref<8x8x4xf32, #tpu.memory_space<vmem>>, vector<1x8x4xf32>
    %127 = vector.shape_cast %126 : vector<1x8x4xf32> to vector<8x4xf32>
    %cst_90 = arith.constant dense<0.000000e+00> : vector<8x8xf32>
    %128 = tpu.matmul %127, %124, %cst_90 {dimension_numbers = #tpu.dot_dimension_numbers<[1], [0], [0], [1], [0, 0, 1, 1], [], []>} : vector<8x4xf32>, vector<4x8xf32>, vector<8x8xf32> -> vector<8x8xf32>
    %c3_91 = arith.constant 3 : index
    %c0_92 = arith.constant 0 : index
    %c0_93 = arith.constant 0 : index
    %129 = vector.load %arg12[%c3_91, %c0_92, %c0_93] : memref<8x8x1xf32, #tpu.memory_space<vmem>>, vector<1x8x1xf32>
    %130 = vector.shape_cast %129 : vector<1x8x1xf32> to vector<8x1xf32>
    %cst_94 = arith.constant dense<0xFF800000> : vector<8xf32>
    %131 = vector.multi_reduction <maximumf>, %128, %cst_94 [1] : vector<8x8xf32> to vector<8xf32>
    %132 = vector.shape_cast %131 : vector<8xf32> to vector<8x1xf32>
    %133 = arith.maximumf %130, %132 : vector<8x1xf32>
    %134 = arith.subf %130, %133 : vector<8x1xf32>
    %135 = math.exp %134 : vector<8x1xf32>
    %136 = vector.broadcast %133 : vector<8x1xf32> to vector<8x8xf32>
    %137 = arith.subf %128, %136 : vector<8x8xf32>
    %138 = math.exp %137 : vector<8x8xf32>
    %c3_95 = arith.constant 3 : index
    %c0_96 = arith.constant 0 : index
    %c0_97 = arith.constant 0 : index
    %139 = vector.load %arg13[%c3_95, %c0_96, %c0_97] : memref<8x8x1xf32, #tpu.memory_space<vmem>>, vector<1x8x1xf32>
    %140 = vector.shape_cast %139 : vector<1x8x1xf32> to vector<8x1xf32>
    %141 = arith.mulf %135, %140 : vector<8x1xf32>
    %cst_98 = arith.constant dense<0.000000e+00> : vector<8xf32>
    %142 = vector.multi_reduction <add>, %138, %cst_98 [1] : vector<8x8xf32> to vector<8xf32>
    %143 = vector.shape_cast %142 : vector<8xf32> to vector<8x1xf32>
    %144 = arith.addf %141, %143 : vector<8x1xf32>
    %c3_99 = arith.constant 3 : index
    %c0_100 = arith.constant 0 : index
    %c0_101 = arith.constant 0 : index
    %145 = vector.load %arg13[%c3_99, %c0_100, %c0_101] : memref<8x8x1xf32, #tpu.memory_space<vmem>>, vector<1x8x1xf32>
    %146 = vector.shape_cast %145 : vector<1x8x1xf32> to vector<8x1xf32>
    %147 = vector.shape_cast %144 : vector<8x1xf32> to vector<1x8x1xf32>
    tpu.vector_store %arg13[%c3_99, %c0_100, %c0_101], %147 {strides = array<i32>} : memref<8x8x1xf32, #tpu.memory_space<vmem>>, vector<1x8x1xf32>,
    %c3_102 = arith.constant 3 : index
    %c0_103 = arith.constant 0 : index
    %c0_104 = arith.constant 0 : index
    %148 = vector.load %arg14[%c3_102, %c0_103, %c0_104] : memref<8x8x4xf32, #tpu.memory_space<vmem>>, vector<1x8x4xf32>
    %149 = vector.shape_cast %148 : vector<1x8x4xf32> to vector<8x4xf32>
    %150 = vector.broadcast %135 : vector<8x1xf32> to vector<8x4xf32>
    %151 = arith.mulf %150, %149 : vector<8x4xf32>
    %cst_105 = arith.constant dense<0.000000e+00> : vector<8x4xf32>
    %152 = tpu.matmul %138, %125, %cst_105 {dimension_numbers = #tpu.dot_dimension_numbers<[1], [1], [0], [0], [0, 0, 1, 0], [], []>} : vector<8x8xf32>, vector<4x8xf32>, vector<8x4xf32> -> vector<8x4xf32>
    %153 = arith.addf %151, %152 : vector<8x4xf32>
    %c3_106 = arith.constant 3 : index
    %c0_107 = arith.constant 0 : index
    %c0_108 = arith.constant 0 : index
    %154 = vector.load %arg14[%c3_106, %c0_107, %c0_108] : memref<8x8x4xf32, #tpu.memory_space<vmem>>, vector<1x8x4xf32>
    %155 = vector.shape_cast %154 : vector<1x8x4xf32> to vector<8x4xf32>
    %156 = vector.shape_cast %153 : vector<8x4xf32> to vector<1x8x4xf32>
    tpu.vector_store %arg14[%c3_106, %c0_107, %c0_108], %156 {strides = array<i32>} : memref<8x8x4xf32, #tpu.memory_space<vmem>>, vector<1x8x4xf32>,
    %c3_109 = arith.constant 3 : index
    %c0_110 = arith.constant 0 : index
    %c0_111 = arith.constant 0 : index
    %157 = vector.load %arg12[%c3_109, %c0_110, %c0_111] : memref<8x8x1xf32, #tpu.memory_space<vmem>>, vector<1x8x1xf32>
    %158 = vector.shape_cast %157 : vector<1x8x1xf32> to vector<8x1xf32>
    %159 = vector.shape_cast %133 : vector<8x1xf32> to vector<1x8x1xf32>
    tpu.vector_store %arg12[%c3_109, %c0_110, %c0_111], %159 {strides = array<i32>} : memref<8x8x1xf32, #tpu.memory_space<vmem>>, vector<1x8x1xf32>,
    %160 = vector.extract_strided_slice %12 {offsets = [16, 0], sizes = [4, 8], strides = [1, 1]} : vector<32x8xf32> to vector<4x8xf32>
    %161 = vector.extract_strided_slice %15 {offsets = [16, 0], sizes = [4, 8], strides = [1, 1]} : vector<32x8xf32> to vector<4x8xf32>
    %c4 = arith.constant 4 : index
    %c0_112 = arith.constant 0 : index
    %c0_113 = arith.constant 0 : index
    %162 = vector.load %arg11[%c4, %c0_112, %c0_113] : memref<8x8x4xf32, #tpu.memory_space<vmem>>, vector<1x8x4xf32>
    %163 = vector.shape_cast %162 : vector<1x8x4xf32> to vector<8x4xf32>
    %cst_114 = arith.constant dense<0.000000e+00> : vector<8x8xf32>
    %164 = tpu.matmul %163, %160, %cst_114 {dimension_numbers = #tpu.dot_dimension_numbers<[1], [0], [0], [1], [0, 0, 1, 1], [], []>} : vector<8x4xf32>, vector<4x8xf32>, vector<8x8xf32> -> vector<8x8xf32>
    %c4_115 = arith.constant 4 : index
    %c0_116 = arith.constant 0 : index
    %c0_117 = arith.constant 0 : index
    %165 = vector.load %arg12[%c4_115, %c0_116, %c0_117] : memref<8x8x1xf32, #tpu.memory_space<vmem>>, vector<1x8x1xf32>
    %166 = vector.shape_cast %165 : vector<1x8x1xf32> to vector<8x1xf32>
    %cst_118 = arith.constant dense<0xFF800000> : vector<8xf32>
    %167 = vector.multi_reduction <maximumf>, %164, %cst_118 [1] : vector<8x8xf32> to vector<8xf32>
    %168 = vector.shape_cast %167 : vector<8xf32> to vector<8x1xf32>
    %169 = arith.maximumf %166, %168 : vector<8x1xf32>
    %170 = arith.subf %166, %169 : vector<8x1xf32>
    %171 = math.exp %170 : vector<8x1xf32>
    %172 = vector.broadcast %169 : vector<8x1xf32> to vector<8x8xf32>
    %173 = arith.subf %164, %172 : vector<8x8xf32>
    %174 = math.exp %173 : vector<8x8xf32>
    %c4_119 = arith.constant 4 : index
    %c0_120 = arith.constant 0 : index
    %c0_121 = arith.constant 0 : index
    %175 = vector.load %arg13[%c4_119, %c0_120, %c0_121] : memref<8x8x1xf32, #tpu.memory_space<vmem>>, vector<1x8x1xf32>
    %176 = vector.shape_cast %175 : vector<1x8x1xf32> to vector<8x1xf32>
    %177 = arith.mulf %171, %176 : vector<8x1xf32>
    %cst_122 = arith.constant dense<0.000000e+00> : vector<8xf32>
    %178 = vector.multi_reduction <add>, %174, %cst_122 [1] : vector<8x8xf32> to vector<8xf32>
    %179 = vector.shape_cast %178 : vector<8xf32> to vector<8x1xf32>
    %180 = arith.addf %177, %179 : vector<8x1xf32>
    %c4_123 = arith.constant 4 : index
    %c0_124 = arith.constant 0 : index
    %c0_125 = arith.constant 0 : index
    %181 = vector.load %arg13[%c4_123, %c0_124, %c0_125] : memref<8x8x1xf32, #tpu.memory_space<vmem>>, vector<1x8x1xf32>
    %182 = vector.shape_cast %181 : vector<1x8x1xf32> to vector<8x1xf32>
    %183 = vector.shape_cast %180 : vector<8x1xf32> to vector<1x8x1xf32>
    tpu.vector_store %arg13[%c4_123, %c0_124, %c0_125], %183 {strides = array<i32>} : memref<8x8x1xf32, #tpu.memory_space<vmem>>, vector<1x8x1xf32>,
    %c4_126 = arith.constant 4 : index
    %c0_127 = arith.constant 0 : index
    %c0_128 = arith.constant 0 : index
    %184 = vector.load %arg14[%c4_126, %c0_127, %c0_128] : memref<8x8x4xf32, #tpu.memory_space<vmem>>, vector<1x8x4xf32>
    %185 = vector.shape_cast %184 : vector<1x8x4xf32> to vector<8x4xf32>
    %186 = vector.broadcast %171 : vector<8x1xf32> to vector<8x4xf32>
    %187 = arith.mulf %186, %185 : vector<8x4xf32>
    %cst_129 = arith.constant dense<0.000000e+00> : vector<8x4xf32>
    %188 = tpu.matmul %174, %161, %cst_129 {dimension_numbers = #tpu.dot_dimension_numbers<[1], [1], [0], [0], [0, 0, 1, 0], [], []>} : vector<8x8xf32>, vector<4x8xf32>, vector<8x4xf32> -> vector<8x4xf32>
    %189 = arith.addf %187, %188 : vector<8x4xf32>
    %c4_130 = arith.constant 4 : index
    %c0_131 = arith.constant 0 : index
    %c0_132 = arith.constant 0 : index
    %190 = vector.load %arg14[%c4_130, %c0_131, %c0_132] : memref<8x8x4xf32, #tpu.memory_space<vmem>>, vector<1x8x4xf32>
    %191 = vector.shape_cast %190 : vector<1x8x4xf32> to vector<8x4xf32>
    %192 = vector.shape_cast %189 : vector<8x4xf32> to vector<1x8x4xf32>
    tpu.vector_store %arg14[%c4_130, %c0_131, %c0_132], %192 {strides = array<i32>} : memref<8x8x4xf32, #tpu.memory_space<vmem>>, vector<1x8x4xf32>,
    %c4_133 = arith.constant 4 : index
    %c0_134 = arith.constant 0 : index
    %c0_135 = arith.constant 0 : index
    %193 = vector.load %arg12[%c4_133, %c0_134, %c0_135] : memref<8x8x1xf32, #tpu.memory_space<vmem>>, vector<1x8x1xf32>
    %194 = vector.shape_cast %193 : vector<1x8x1xf32> to vector<8x1xf32>
    %195 = vector.shape_cast %169 : vector<8x1xf32> to vector<1x8x1xf32>
    tpu.vector_store %arg12[%c4_133, %c0_134, %c0_135], %195 {strides = array<i32>} : memref<8x8x1xf32, #tpu.memory_space<vmem>>, vector<1x8x1xf32>,
    %196 = vector.extract_strided_slice %12 {offsets = [20, 0], sizes = [4, 8], strides = [1, 1]} : vector<32x8xf32> to vector<4x8xf32>
    %197 = vector.extract_strided_slice %15 {offsets = [20, 0], sizes = [4, 8], strides = [1, 1]} : vector<32x8xf32> to vector<4x8xf32>
    %c5 = arith.constant 5 : index
    %c0_136 = arith.constant 0 : index
    %c0_137 = arith.constant 0 : index
    %198 = vector.load %arg11[%c5, %c0_136, %c0_137] : memref<8x8x4xf32, #tpu.memory_space<vmem>>, vector<1x8x4xf32>
    %199 = vector.shape_cast %198 : vector<1x8x4xf32> to vector<8x4xf32>
    %cst_138 = arith.constant dense<0.000000e+00> : vector<8x8xf32>
    %200 = tpu.matmul %199, %196, %cst_138 {dimension_numbers = #tpu.dot_dimension_numbers<[1], [0], [0], [1], [0, 0, 1, 1], [], []>} : vector<8x4xf32>, vector<4x8xf32>, vector<8x8xf32> -> vector<8x8xf32>
    %c5_139 = arith.constant 5 : index
    %c0_140 = arith.constant 0 : index
    %c0_141 = arith.constant 0 : index
    %201 = vector.load %arg12[%c5_139, %c0_140, %c0_141] : memref<8x8x1xf32, #tpu.memory_space<vmem>>, vector<1x8x1xf32>
    %202 = vector.shape_cast %201 : vector<1x8x1xf32> to vector<8x1xf32>
    %cst_142 = arith.constant dense<0xFF800000> : vector<8xf32>
    %203 = vector.multi_reduction <maximumf>, %200, %cst_142 [1] : vector<8x8xf32> to vector<8xf32>
    %204 = vector.shape_cast %203 : vector<8xf32> to vector<8x1xf32>
    %205 = arith.maximumf %202, %204 : vector<8x1xf32>
    %206 = arith.subf %202, %205 : vector<8x1xf32>
    %207 = math.exp %206 : vector<8x1xf32>
    %208 = vector.broadcast %205 : vector<8x1xf32> to vector<8x8xf32>
    %209 = arith.subf %200, %208 : vector<8x8xf32>
    %210 = math.exp %209 : vector<8x8xf32>
    %c5_143 = arith.constant 5 : index
    %c0_144 = arith.constant 0 : index
    %c0_145 = arith.constant 0 : index
    %211 = vector.load %arg13[%c5_143, %c0_144, %c0_145] : memref<8x8x1xf32, #tpu.memory_space<vmem>>, vector<1x8x1xf32>
    %212 = vector.shape_cast %211 : vector<1x8x1xf32> to vector<8x1xf32>
    %213 = arith.mulf %207, %212 : vector<8x1xf32>
    %cst_146 = arith.constant dense<0.000000e+00> : vector<8xf32>
    %214 = vector.multi_reduction <add>, %210, %cst_146 [1] : vector<8x8xf32> to vector<8xf32>
    %215 = vector.shape_cast %214 : vector<8xf32> to vector<8x1xf32>
    %216 = arith.addf %213, %215 : vector<8x1xf32>
    %c5_147 = arith.constant 5 : index
    %c0_148 = arith.constant 0 : index
    %c0_149 = arith.constant 0 : index
    %217 = vector.load %arg13[%c5_147, %c0_148, %c0_149] : memref<8x8x1xf32, #tpu.memory_space<vmem>>, vector<1x8x1xf32>
    %218 = vector.shape_cast %217 : vector<1x8x1xf32> to vector<8x1xf32>
    %219 = vector.shape_cast %216 : vector<8x1xf32> to vector<1x8x1xf32>
    tpu.vector_store %arg13[%c5_147, %c0_148, %c0_149], %219 {strides = array<i32>} : memref<8x8x1xf32, #tpu.memory_space<vmem>>, vector<1x8x1xf32>,
    %c5_150 = arith.constant 5 : index
    %c0_151 = arith.constant 0 : index
    %c0_152 = arith.constant 0 : index
    %220 = vector.load %arg14[%c5_150, %c0_151, %c0_152] : memref<8x8x4xf32, #tpu.memory_space<vmem>>, vector<1x8x4xf32>
    %221 = vector.shape_cast %220 : vector<1x8x4xf32> to vector<8x4xf32>
    %222 = vector.broadcast %207 : vector<8x1xf32> to vector<8x4xf32>
    %223 = arith.mulf %222, %221 : vector<8x4xf32>
    %cst_153 = arith.constant dense<0.000000e+00> : vector<8x4xf32>
    %224 = tpu.matmul %210, %197, %cst_153 {dimension_numbers = #tpu.dot_dimension_numbers<[1], [1], [0], [0], [0, 0, 1, 0], [], []>} : vector<8x8xf32>, vector<4x8xf32>, vector<8x4xf32> -> vector<8x4xf32>
    %225 = arith.addf %223, %224 : vector<8x4xf32>
    %c5_154 = arith.constant 5 : index
    %c0_155 = arith.constant 0 : index
    %c0_156 = arith.constant 0 : index
    %226 = vector.load %arg14[%c5_154, %c0_155, %c0_156] : memref<8x8x4xf32, #tpu.memory_space<vmem>>, vector<1x8x4xf32>
    %227 = vector.shape_cast %226 : vector<1x8x4xf32> to vector<8x4xf32>
    %228 = vector.shape_cast %225 : vector<8x4xf32> to vector<1x8x4xf32>
    tpu.vector_store %arg14[%c5_154, %c0_155, %c0_156], %228 {strides = array<i32>} : memref<8x8x4xf32, #tpu.memory_space<vmem>>, vector<1x8x4xf32>,
    %c5_157 = arith.constant 5 : index
    %c0_158 = arith.constant 0 : index
    %c0_159 = arith.constant 0 : index
    %229 = vector.load %arg12[%c5_157, %c0_158, %c0_159] : memref<8x8x1xf32, #tpu.memory_space<vmem>>, vector<1x8x1xf32>
    %230 = vector.shape_cast %229 : vector<1x8x1xf32> to vector<8x1xf32>
    %231 = vector.shape_cast %205 : vector<8x1xf32> to vector<1x8x1xf32>
    tpu.vector_store %arg12[%c5_157, %c0_158, %c0_159], %231 {strides = array<i32>} : memref<8x8x1xf32, #tpu.memory_space<vmem>>, vector<1x8x1xf32>,
    %232 = vector.extract_strided_slice %12 {offsets = [24, 0], sizes = [4, 8], strides = [1, 1]} : vector<32x8xf32> to vector<4x8xf32>
    %233 = vector.extract_strided_slice %15 {offsets = [24, 0], sizes = [4, 8], strides = [1, 1]} : vector<32x8xf32> to vector<4x8xf32>
    %c6 = arith.constant 6 : index
    %c0_160 = arith.constant 0 : index
    %c0_161 = arith.constant 0 : index
    %234 = vector.load %arg11[%c6, %c0_160, %c0_161] : memref<8x8x4xf32, #tpu.memory_space<vmem>>, vector<1x8x4xf32>
    %235 = vector.shape_cast %234 : vector<1x8x4xf32> to vector<8x4xf32>
    %cst_162 = arith.constant dense<0.000000e+00> : vector<8x8xf32>
    %236 = tpu.matmul %235, %232, %cst_162 {dimension_numbers = #tpu.dot_dimension_numbers<[1], [0], [0], [1], [0, 0, 1, 1], [], []>} : vector<8x4xf32>, vector<4x8xf32>, vector<8x8xf32> -> vector<8x8xf32>
    %c6_163 = arith.constant 6 : index
    %c0_164 = arith.constant 0 : index
    %c0_165 = arith.constant 0 : index
    %237 = vector.load %arg12[%c6_163, %c0_164, %c0_165] : memref<8x8x1xf32, #tpu.memory_space<vmem>>, vector<1x8x1xf32>
    %238 = vector.shape_cast %237 : vector<1x8x1xf32> to vector<8x1xf32>
    %cst_166 = arith.constant dense<0xFF800000> : vector<8xf32>
    %239 = vector.multi_reduction <maximumf>, %236, %cst_166 [1] : vector<8x8xf32> to vector<8xf32>
    %240 = vector.shape_cast %239 : vector<8xf32> to vector<8x1xf32>
    %241 = arith.maximumf %238, %240 : vector<8x1xf32>
    %242 = arith.subf %238, %241 : vector<8x1xf32>
    %243 = math.exp %242 : vector<8x1xf32>
    %244 = vector.broadcast %241 : vector<8x1xf32> to vector<8x8xf32>
    %245 = arith.subf %236, %244 : vector<8x8xf32>
    %246 = math.exp %245 : vector<8x8xf32>
    %c6_167 = arith.constant 6 : index
    %c0_168 = arith.constant 0 : index
    %c0_169 = arith.constant 0 : index
    %247 = vector.load %arg13[%c6_167, %c0_168, %c0_169] : memref<8x8x1xf32, #tpu.memory_space<vmem>>, vector<1x8x1xf32>
    %248 = vector.shape_cast %247 : vector<1x8x1xf32> to vector<8x1xf32>
    %249 = arith.mulf %243, %248 : vector<8x1xf32>
    %cst_170 = arith.constant dense<0.000000e+00> : vector<8xf32>
    %250 = vector.multi_reduction <add>, %246, %cst_170 [1] : vector<8x8xf32> to vector<8xf32>
    %251 = vector.shape_cast %250 : vector<8xf32> to vector<8x1xf32>
    %252 = arith.addf %249, %251 : vector<8x1xf32>
    %c6_171 = arith.constant 6 : index
    %c0_172 = arith.constant 0 : index
    %c0_173 = arith.constant 0 : index
    %253 = vector.load %arg13[%c6_171, %c0_172, %c0_173] : memref<8x8x1xf32, #tpu.memory_space<vmem>>, vector<1x8x1xf32>
    %254 = vector.shape_cast %253 : vector<1x8x1xf32> to vector<8x1xf32>
    %255 = vector.shape_cast %252 : vector<8x1xf32> to vector<1x8x1xf32>
    tpu.vector_store %arg13[%c6_171, %c0_172, %c0_173], %255 {strides = array<i32>} : memref<8x8x1xf32, #tpu.memory_space<vmem>>, vector<1x8x1xf32>,
    %c6_174 = arith.constant 6 : index
    %c0_175 = arith.constant 0 : index
    %c0_176 = arith.constant 0 : index
    %256 = vector.load %arg14[%c6_174, %c0_175, %c0_176] : memref<8x8x4xf32, #tpu.memory_space<vmem>>, vector<1x8x4xf32>
    %257 = vector.shape_cast %256 : vector<1x8x4xf32> to vector<8x4xf32>
    %258 = vector.broadcast %243 : vector<8x1xf32> to vector<8x4xf32>
    %259 = arith.mulf %258, %257 : vector<8x4xf32>
    %cst_177 = arith.constant dense<0.000000e+00> : vector<8x4xf32>
    %260 = tpu.matmul %246, %233, %cst_177 {dimension_numbers = #tpu.dot_dimension_numbers<[1], [1], [0], [0], [0, 0, 1, 0], [], []>} : vector<8x8xf32>, vector<4x8xf32>, vector<8x4xf32> -> vector<8x4xf32>
    %261 = arith.addf %259, %260 : vector<8x4xf32>
    %c6_178 = arith.constant 6 : index
    %c0_179 = arith.constant 0 : index
    %c0_180 = arith.constant 0 : index
    %262 = vector.load %arg14[%c6_178, %c0_179, %c0_180] : memref<8x8x4xf32, #tpu.memory_space<vmem>>, vector<1x8x4xf32>
    %263 = vector.shape_cast %262 : vector<1x8x4xf32> to vector<8x4xf32>
    %264 = vector.shape_cast %261 : vector<8x4xf32> to vector<1x8x4xf32>
    tpu.vector_store %arg14[%c6_178, %c0_179, %c0_180], %264 {strides = array<i32>} : memref<8x8x4xf32, #tpu.memory_space<vmem>>, vector<1x8x4xf32>,
    %c6_181 = arith.constant 6 : index
    %c0_182 = arith.constant 0 : index
    %c0_183 = arith.constant 0 : index
    %265 = vector.load %arg12[%c6_181, %c0_182, %c0_183] : memref<8x8x1xf32, #tpu.memory_space<vmem>>, vector<1x8x1xf32>
    %266 = vector.shape_cast %265 : vector<1x8x1xf32> to vector<8x1xf32>
    %267 = vector.shape_cast %241 : vector<8x1xf32> to vector<1x8x1xf32>
    tpu.vector_store %arg12[%c6_181, %c0_182, %c0_183], %267 {strides = array<i32>} : memref<8x8x1xf32, #tpu.memory_space<vmem>>, vector<1x8x1xf32>,
    %268 = vector.extract_strided_slice %12 {offsets = [28, 0], sizes = [4, 8], strides = [1, 1]} : vector<32x8xf32> to vector<4x8xf32>
    %269 = vector.extract_strided_slice %15 {offsets = [28, 0], sizes = [4, 8], strides = [1, 1]} : vector<32x8xf32> to vector<4x8xf32>
    %c7 = arith.constant 7 : index
    %c0_184 = arith.constant 0 : index
    %c0_185 = arith.constant 0 : index
    %270 = vector.load %arg11[%c7, %c0_184, %c0_185] : memref<8x8x4xf32, #tpu.memory_space<vmem>>, vector<1x8x4xf32>
    %271 = vector.shape_cast %270 : vector<1x8x4xf32> to vector<8x4xf32>
    %cst_186 = arith.constant dense<0.000000e+00> : vector<8x8xf32>
    %272 = tpu.matmul %271, %268, %cst_186 {dimension_numbers = #tpu.dot_dimension_numbers<[1], [0], [0], [1], [0, 0, 1, 1], [], []>} : vector<8x4xf32>, vector<4x8xf32>, vector<8x8xf32> -> vector<8x8xf32>
    %c7_187 = arith.constant 7 : index
    %c0_188 = arith.constant 0 : index
    %c0_189 = arith.constant 0 : index
    %273 = vector.load %arg12[%c7_187, %c0_188, %c0_189] : memref<8x8x1xf32, #tpu.memory_space<vmem>>, vector<1x8x1xf32>
    %274 = vector.shape_cast %273 : vector<1x8x1xf32> to vector<8x1xf32>
    %cst_190 = arith.constant dense<0xFF800000> : vector<8xf32>
    %275 = vector.multi_reduction <maximumf>, %272, %cst_190 [1] : vector<8x8xf32> to vector<8xf32>
    %276 = vector.shape_cast %275 : vector<8xf32> to vector<8x1xf32>
    %277 = arith.maximumf %274, %276 : vector<8x1xf32>
    %278 = arith.subf %274, %277 : vector<8x1xf32>
    %279 = math.exp %278 : vector<8x1xf32>
    %280 = vector.broadcast %277 : vector<8x1xf32> to vector<8x8xf32>
    %281 = arith.subf %272, %280 : vector<8x8xf32>
    %282 = math.exp %281 : vector<8x8xf32>
    %c7_191 = arith.constant 7 : index
    %c0_192 = arith.constant 0 : index
    %c0_193 = arith.constant 0 : index
    %283 = vector.load %arg13[%c7_191, %c0_192, %c0_193] : memref<8x8x1xf32, #tpu.memory_space<vmem>>, vector<1x8x1xf32>
    %284 = vector.shape_cast %283 : vector<1x8x1xf32> to vector<8x1xf32>
    %285 = arith.mulf %279, %284 : vector<8x1xf32>
    %cst_194 = arith.constant dense<0.000000e+00> : vector<8xf32>
    %286 = vector.multi_reduction <add>, %282, %cst_194 [1] : vector<8x8xf32> to vector<8xf32>
    %287 = vector.shape_cast %286 : vector<8xf32> to vector<8x1xf32>
    %288 = arith.addf %285, %287 : vector<8x1xf32>
    %c7_195 = arith.constant 7 : index
    %c0_196 = arith.constant 0 : index
    %c0_197 = arith.constant 0 : index
    %289 = vector.load %arg13[%c7_195, %c0_196, %c0_197] : memref<8x8x1xf32, #tpu.memory_space<vmem>>, vector<1x8x1xf32>
    %290 = vector.shape_cast %289 : vector<1x8x1xf32> to vector<8x1xf32>
    %291 = vector.shape_cast %288 : vector<8x1xf32> to vector<1x8x1xf32>
    tpu.vector_store %arg13[%c7_195, %c0_196, %c0_197], %291 {strides = array<i32>} : memref<8x8x1xf32, #tpu.memory_space<vmem>>, vector<1x8x1xf32>,
    %c7_198 = arith.constant 7 : index
    %c0_199 = arith.constant 0 : index
    %c0_200 = arith.constant 0 : index
    %292 = vector.load %arg14[%c7_198, %c0_199, %c0_200] : memref<8x8x4xf32, #tpu.memory_space<vmem>>, vector<1x8x4xf32>
    %293 = vector.shape_cast %292 : vector<1x8x4xf32> to vector<8x4xf32>
    %294 = vector.broadcast %279 : vector<8x1xf32> to vector<8x4xf32>
    %295 = arith.mulf %294, %293 : vector<8x4xf32>
    %cst_201 = arith.constant dense<0.000000e+00> : vector<8x4xf32>
    %296 = tpu.matmul %282, %269, %cst_201 {dimension_numbers = #tpu.dot_dimension_numbers<[1], [1], [0], [0], [0, 0, 1, 0], [], []>} : vector<8x8xf32>, vector<4x8xf32>, vector<8x4xf32> -> vector<8x4xf32>
    %297 = arith.addf %295, %296 : vector<8x4xf32>
    %c7_202 = arith.constant 7 : index
    %c0_203 = arith.constant 0 : index
    %c0_204 = arith.constant 0 : index
    %298 = vector.load %arg14[%c7_202, %c0_203, %c0_204] : memref<8x8x4xf32, #tpu.memory_space<vmem>>, vector<1x8x4xf32>
    %299 = vector.shape_cast %298 : vector<1x8x4xf32> to vector<8x4xf32>
    %300 = vector.shape_cast %297 : vector<8x4xf32> to vector<1x8x4xf32>
    tpu.vector_store %arg14[%c7_202, %c0_203, %c0_204], %300 {strides = array<i32>} : memref<8x8x4xf32, #tpu.memory_space<vmem>>, vector<1x8x4xf32>,
    %c7_205 = arith.constant 7 : index
    %c0_206 = arith.constant 0 : index
    %c0_207 = arith.constant 0 : index
    %301 = vector.load %arg12[%c7_205, %c0_206, %c0_207] : memref<8x8x1xf32, #tpu.memory_space<vmem>>, vector<1x8x1xf32>
    %302 = vector.shape_cast %301 : vector<1x8x1xf32> to vector<8x1xf32>
    %303 = vector.shape_cast %277 : vector<8x1xf32> to vector<1x8x1xf32>
    tpu.vector_store %arg12[%c7_205, %c0_206, %c0_207], %303 {strides = array<i32>} : memref<8x8x1xf32, #tpu.memory_space<vmem>>, vector<1x8x1xf32>,
    %c0_i32_208 = arith.constant 0 : i32
    %304 = arith.cmpi eq, %arg3, %c0_i32_208 : i32
    %305 = arith.extui %304 : i1 to i32
    %c0_i32_209 = arith.constant 0 : i32
    %306 = arith.cmpi ne, %305, %c0_i32_209 : i32
    scf.if %306 {
      %c0_210 = arith.constant 0 : index
      %c0_211 = arith.constant 0 : index
      %c0_212 = arith.constant 0 : index
      %307 = vector.load %arg14[%c0_210, %c0_211, %c0_212] : memref<8x8x4xf32, #tpu.memory_space<vmem>>, vector<1x8x4xf32>
      %308 = vector.shape_cast %307 : vector<1x8x4xf32> to vector<8x4xf32>
      %c0_213 = arith.constant 0 : index
      %c0_214 = arith.constant 0 : index
      %c0_215 = arith.constant 0 : index
      %309 = vector.load %arg13[%c0_213, %c0_214, %c0_215] : memref<8x8x1xf32, #tpu.memory_space<vmem>>, vector<1x8x1xf32>
      %310 = vector.shape_cast %309 : vector<1x8x1xf32> to vector<8x1xf32>
      %cst_216 = arith.constant 1.000000e+00 : f32
      %311 = vector.broadcast %cst_216 : f32 to vector<8x1xf32>
      %312 = arith.divf %311, %310 : vector<8x1xf32>
      %313 = vector.broadcast %312 : vector<8x1xf32> to vector<8x4xf32>
      %314 = arith.mulf %308, %313 : vector<8x4xf32>
      %c1_217 = arith.constant 1 : index
      %c0_218 = arith.constant 0 : index
      %c0_219 = arith.constant 0 : index
      %315 = vector.load %arg14[%c1_217, %c0_218, %c0_219] : memref<8x8x4xf32, #tpu.memory_space<vmem>>, vector<1x8x4xf32>
      %316 = vector.shape_cast %315 : vector<1x8x4xf32> to vector<8x4xf32>
      %c1_220 = arith.constant 1 : index
      %c0_221 = arith.constant 0 : index
      %c0_222 = arith.constant 0 : index
      %317 = vector.load %arg13[%c1_220, %c0_221, %c0_222] : memref<8x8x1xf32, #tpu.memory_space<vmem>>, vector<1x8x1xf32>
      %318 = vector.shape_cast %317 : vector<1x8x1xf32> to vector<8x1xf32>
      %cst_223 = arith.constant 1.000000e+00 : f32
      %319 = vector.broadcast %cst_223 : f32 to vector<8x1xf32>
      %320 = arith.divf %319, %318 : vector<8x1xf32>
      %321 = vector.broadcast %320 : vector<8x1xf32> to vector<8x4xf32>
      %322 = arith.mulf %316, %321 : vector<8x4xf32>
      %c2_224 = arith.constant 2 : index
      %c0_225 = arith.constant 0 : index
      %c0_226 = arith.constant 0 : index
      %323 = vector.load %arg14[%c2_224, %c0_225, %c0_226] : memref<8x8x4xf32, #tpu.memory_space<vmem>>, vector<1x8x4xf32>
      %324 = vector.shape_cast %323 : vector<1x8x4xf32> to vector<8x4xf32>
      %c2_227 = arith.constant 2 : index
      %c0_228 = arith.constant 0 : index
      %c0_229 = arith.constant 0 : index
      %325 = vector.load %arg13[%c2_227, %c0_228, %c0_229] : memref<8x8x1xf32, #tpu.memory_space<vmem>>, vector<1x8x1xf32>
      %326 = vector.shape_cast %325 : vector<1x8x1xf32> to vector<8x1xf32>
      %cst_230 = arith.constant 1.000000e+00 : f32
      %327 = vector.broadcast %cst_230 : f32 to vector<8x1xf32>
      %328 = arith.divf %327, %326 : vector<8x1xf32>
      %329 = vector.broadcast %328 : vector<8x1xf32> to vector<8x4xf32>
      %330 = arith.mulf %324, %329 : vector<8x4xf32>
      %c3_231 = arith.constant 3 : index
      %c0_232 = arith.constant 0 : index
      %c0_233 = arith.constant 0 : index
      %331 = vector.load %arg14[%c3_231, %c0_232, %c0_233] : memref<8x8x4xf32, #tpu.memory_space<vmem>>, vector<1x8x4xf32>
      %332 = vector.shape_cast %331 : vector<1x8x4xf32> to vector<8x4xf32>
      %c3_234 = arith.constant 3 : index
      %c0_235 = arith.constant 0 : index
      %c0_236 = arith.constant 0 : index
      %333 = vector.load %arg13[%c3_234, %c0_235, %c0_236] : memref<8x8x1xf32, #tpu.memory_space<vmem>>, vector<1x8x1xf32>
      %334 = vector.shape_cast %333 : vector<1x8x1xf32> to vector<8x1xf32>
      %cst_237 = arith.constant 1.000000e+00 : f32
      %335 = vector.broadcast %cst_237 : f32 to vector<8x1xf32>
      %336 = arith.divf %335, %334 : vector<8x1xf32>
      %337 = vector.broadcast %336 : vector<8x1xf32> to vector<8x4xf32>
      %338 = arith.mulf %332, %337 : vector<8x4xf32>
      %c4_238 = arith.constant 4 : index
      %c0_239 = arith.constant 0 : index
      %c0_240 = arith.constant 0 : index
      %339 = vector.load %arg14[%c4_238, %c0_239, %c0_240] : memref<8x8x4xf32, #tpu.memory_space<vmem>>, vector<1x8x4xf32>
      %340 = vector.shape_cast %339 : vector<1x8x4xf32> to vector<8x4xf32>
      %c4_241 = arith.constant 4 : index
      %c0_242 = arith.constant 0 : index
      %c0_243 = arith.constant 0 : index
      %341 = vector.load %arg13[%c4_241, %c0_242, %c0_243] : memref<8x8x1xf32, #tpu.memory_space<vmem>>, vector<1x8x1xf32>
      %342 = vector.shape_cast %341 : vector<1x8x1xf32> to vector<8x1xf32>
      %cst_244 = arith.constant 1.000000e+00 : f32
      %343 = vector.broadcast %cst_244 : f32 to vector<8x1xf32>
      %344 = arith.divf %343, %342 : vector<8x1xf32>
      %345 = vector.broadcast %344 : vector<8x1xf32> to vector<8x4xf32>
      %346 = arith.mulf %340, %345 : vector<8x4xf32>
      %c5_245 = arith.constant 5 : index
      %c0_246 = arith.constant 0 : index
      %c0_247 = arith.constant 0 : index
      %347 = vector.load %arg14[%c5_245, %c0_246, %c0_247] : memref<8x8x4xf32, #tpu.memory_space<vmem>>, vector<1x8x4xf32>
      %348 = vector.shape_cast %347 : vector<1x8x4xf32> to vector<8x4xf32>
      %c5_248 = arith.constant 5 : index
      %c0_249 = arith.constant 0 : index
      %c0_250 = arith.constant 0 : index
      %349 = vector.load %arg13[%c5_248, %c0_249, %c0_250] : memref<8x8x1xf32, #tpu.memory_space<vmem>>, vector<1x8x1xf32>
      %350 = vector.shape_cast %349 : vector<1x8x1xf32> to vector<8x1xf32>
      %cst_251 = arith.constant 1.000000e+00 : f32
      %351 = vector.broadcast %cst_251 : f32 to vector<8x1xf32>
      %352 = arith.divf %351, %350 : vector<8x1xf32>
      %353 = vector.broadcast %352 : vector<8x1xf32> to vector<8x4xf32>
      %354 = arith.mulf %348, %353 : vector<8x4xf32>
      %c6_252 = arith.constant 6 : index
      %c0_253 = arith.constant 0 : index
      %c0_254 = arith.constant 0 : index
      %355 = vector.load %arg14[%c6_252, %c0_253, %c0_254] : memref<8x8x4xf32, #tpu.memory_space<vmem>>, vector<1x8x4xf32>
      %356 = vector.shape_cast %355 : vector<1x8x4xf32> to vector<8x4xf32>
      %c6_255 = arith.constant 6 : index
      %c0_256 = arith.constant 0 : index
      %c0_257 = arith.constant 0 : index
      %357 = vector.load %arg13[%c6_255, %c0_256, %c0_257] : memref<8x8x1xf32, #tpu.memory_space<vmem>>, vector<1x8x1xf32>
      %358 = vector.shape_cast %357 : vector<1x8x1xf32> to vector<8x1xf32>
      %cst_258 = arith.constant 1.000000e+00 : f32
      %359 = vector.broadcast %cst_258 : f32 to vector<8x1xf32>
      %360 = arith.divf %359, %358 : vector<8x1xf32>
      %361 = vector.broadcast %360 : vector<8x1xf32> to vector<8x4xf32>
      %362 = arith.mulf %356, %361 : vector<8x4xf32>
      %c7_259 = arith.constant 7 : index
      %c0_260 = arith.constant 0 : index
      %c0_261 = arith.constant 0 : index
      %363 = vector.load %arg14[%c7_259, %c0_260, %c0_261] : memref<8x8x4xf32, #tpu.memory_space<vmem>>, vector<1x8x4xf32>
      %364 = vector.shape_cast %363 : vector<1x8x4xf32> to vector<8x4xf32>
      %c7_262 = arith.constant 7 : index
      %c0_263 = arith.constant 0 : index
      %c0_264 = arith.constant 0 : index
      %365 = vector.load %arg13[%c7_262, %c0_263, %c0_264] : memref<8x8x1xf32, #tpu.memory_space<vmem>>, vector<1x8x1xf32>
      %366 = vector.shape_cast %365 : vector<1x8x1xf32> to vector<8x1xf32>
      %cst_265 = arith.constant 1.000000e+00 : f32
      %367 = vector.broadcast %cst_265 : f32 to vector<8x1xf32>
      %368 = arith.divf %367, %366 : vector<8x1xf32>
      %369 = vector.broadcast %368 : vector<8x1xf32> to vector<8x4xf32>
      %370 = arith.mulf %364, %369 : vector<8x4xf32>
      %371 = tpu.concatenate %314, %322, %330, %338, %346, %354, %362, %370 in 1 : vector<8x4xf32>, vector<8x4xf32>, vector<8x4xf32>, vector<8x4xf32>, vector<8x4xf32>, vector<8x4xf32>, vector<8x4xf32>, vector<8x4xf32> -> vector<8x32xf32>
      %c0_266 = arith.constant 0 : index
      %c0_267 = arith.constant 0 : index
      %372 = vector.load %arg10[%c0_266, %c0_267] : memref<8x32xf32, #tpu.memory_space<vmem>>, vector<8x32xf32>
      %c0_268 = arith.constant 0 : index
      %c0_269 = arith.constant 0 : index
      %c0_270 = arith.constant 0 : index
      %373 = vector.load %arg7[%c0_268, %c0_269, %c0_270] : memref<1x32x32xf32, #tpu.memory_space<vmem>>, vector<1x32x32xf32>
      %374 = vector.shape_cast %373 : vector<1x32x32xf32> to vector<32x32xf32>
      %cst_271 = arith.constant dense<0.000000e+00> : vector<8x32xf32>
      %375 = tpu.matmul %371, %374, %cst_271 {dimension_numbers = #tpu.dot_dimension_numbers<[1], [0], [0], [1], [0, 0, 1, 1], [], []>} : vector<8x32xf32>, vector<32x32xf32>, vector<8x32xf32> -> vector<8x32xf32>
      %376 = arith.addf %372, %375 : vector<8x32xf32>
      %c0_272 = arith.constant 0 : index
      %c0_273 = arith.constant 0 : index
      %377 = vector.load %arg10[%c0_272, %c0_273] : memref<8x32xf32, #tpu.memory_space<vmem>>, vector<8x32xf32>
      tpu.vector_store %arg10[%c0_272, %c0_273], %376 {strides = array<i32>} : memref<8x32xf32, #tpu.memory_space<vmem>>, vector<8x32xf32>,
      %c0_i32_274 = arith.constant 0 : i32
      %378 = arith.cmpi eq, %arg2, %c0_i32_274 : i32
      %379 = arith.extui %378 : i1 to i32
      %c0_i32_275 = arith.constant 0 : i32
      %380 = arith.cmpi ne, %379, %c0_i32_275 : i32
      scf.if %380 {
        %c0_276 = arith.constant 0 : index
        %c0_277 = arith.constant 0 : index
        %381 = vector.load %arg10[%c0_276, %c0_277] : memref<8x32xf32, #tpu.memory_space<vmem>>, vector<8x32xf32>
        %c0_278 = arith.constant 0 : index
        %c0_279 = arith.constant 0 : index
        %382 = vector.load %arg8[%c0_278, %c0_279] : memref<1x32xf32, #tpu.memory_space<vmem>>, vector<1x32xf32>
        %383 = vector.broadcast %382 : vector<1x32xf32> to vector<8x32xf32>
        %384 = arith.addf %381, %383 : vector<8x32xf32>
        %c0_280 = arith.constant 0 : index
        %c0_281 = arith.constant 0 : index
        %c0_282 = arith.constant 0 : index
        %385 = vector.load %arg9[%c0_280, %c0_281, %c0_282] : memref<1x8x32xf32, #tpu.memory_space<vmem>>, vector<1x8x32xf32>
        %386 = vector.shape_cast %385 : vector<1x8x32xf32> to vector<8x32xf32>
        %387 = vector.shape_cast %384 : vector<8x32xf32> to vector<1x8x32xf32>
        tpu.vector_store %arg9[%c0_280, %c0_281, %c0_282], %387 {strides = array<i32>} : memref<1x8x32xf32, #tpu.memory_space<vmem>>, vector<1x8x32xf32>,
      } else {
      }
    } else {
    }
    return
  }
  func.func @transform_0(%arg0: i32, %arg1: i32, %arg2: i32, %arg3: i32) -> (i32, i32, i32) {
    %c0_i32 = arith.constant 0 : i32
    %c0_i32_0 = arith.constant 0 : i32
    return %arg0, %arg1, %c0_i32 : i32, i32, i32
  }
  func.func @transform_1(%arg0: i32, %arg1: i32, %arg2: i32, %arg3: i32) -> (i32, i32, i32) {
    %c0_i32 = arith.constant 0 : i32
    %c0_i32_0 = arith.constant 0 : i32
    return %arg0, %arg3, %c0_i32 : i32, i32, i32
  }
  func.func @transform_2(%arg0: i32, %arg1: i32, %arg2: i32, %arg3: i32) -> (i32, i32, i32, i32) {
    %c0_i32 = arith.constant 0 : i32
    %c0_i32_0 = arith.constant 0 : i32
    %c0_i32_1 = arith.constant 0 : i32
    %c0_i32_2 = arith.constant 0 : i32
    return %c0_i32, %arg2, %c0_i32_0, %c0_i32_1 : i32, i32, i32, i32
  }
  func.func @transform_3(%arg0: i32, %arg1: i32, %arg2: i32, %arg3: i32) -> (i32, i32, i32) {
    %c0_i32 = arith.constant 0 : i32
    %c0_i32_0 = arith.constant 0 : i32
    %c0_i32_1 = arith.constant 0 : i32
    return %arg2, %c0_i32, %c0_i32_0 : i32, i32, i32
  }
  func.func @transform_4(%arg0: i32, %arg1: i32, %arg2: i32, %arg3: i32) -> (i32, i32) {
    %c0_i32 = arith.constant 0 : i32
    %c0_i32_0 = arith.constant 0 : i32
    %c0_i32_1 = arith.constant 0 : i32
    return %c0_i32, %c0_i32_0 : i32, i32
  }
  func.func @transform_5(%arg0: i32, %arg1: i32, %arg2: i32, %arg3: i32) -> (i32, i32, i32) {
    %c0_i32 = arith.constant 0 : i32
    %c0_i32_0 = arith.constant 0 : i32
    return %arg0, %arg1, %c0_i32 : i32, i32, i32
  }
}

</mosaic_0001>

<llo_original>
// kernel: tpu_custom_call.1
$region0: #{tpu_custom_call.1}
  #allocation0 [shape = 'u32[]', space=smem, size = 0x4, offset = 0x4, fixed_abs, tag = 'smem constant byte address 0x4 - core index']
  #allocation1 [shape = 'u32[144,128]{1,0:T(1,128)}', space=vmem, size = 0x12000, scoped, tag = 'internal scratch']
  #allocation2 [shape = 'f32[8,32]{1,0:T(8,128)}', space=vmem, size = 0x1000, scoped, tag = 'scratch operand']
  #allocation3 [shape = 'f32[8,8,4]{2,1,0:T(8,128)}', space=vmem, size = 0x8000, scoped, tag = 'scratch operand']
  #allocation4 [shape = 'f32[8,8,1]{2,1,0:T(8,128)}', space=vmem, size = 0x8000, scoped, tag = 'scratch operand']
  #allocation5 [shape = 'f32[8,8,1]{2,1,0:T(8,128)}', space=vmem, size = 0x8000, scoped, tag = 'scratch operand']
  #allocation6 [shape = 'f32[8,8,4]{2,1,0:T(8,128)}', space=vmem, size = 0x8000, scoped, tag = 'scratch operand']
  %s0 = inlined_call_operand.hbm [shape: f32[2,8,32], index: 0, kind: input, shape index: {}]
  %s1 = inlined_call_operand.hbm [shape: f32[2,8,32], index: 1, kind: input, shape index: {}]
  %s2 = inlined_call_operand.hbm [shape: f32[3,1,32,32], index: 2, kind: input, shape index: {}]
  %s3 = inlined_call_operand.hbm [shape: f32[1,32,32], index: 3, kind: input, shape index: {}]
  %s4 = inlined_call_operand.hbm [shape: f32[1,32], index: 4, kind: input, shape index: {}]
  %s5 = inlined_call_operand.hbm [shape: f32[2,8,32], index: 5, kind: output, shape index: {}]
  %s6 = sld [smem:[#allocation0]]
  $region89: #{tpu_custom_call.1} parent=0
    _
  %s8 = ssub.s32 1, %s6
  %s9 = scalar_select 0, %s8, %s6
  $region1: #{tpu_custom_call.1} parent=0
    #allocation7 [shape = 'u8[4096]{0}', space=vmem, size = 0x1000, scoped, tag = 'input window, operand 0, single buffered']
    #allocation8 [shape = 's32[2]{0}', space=sflag, size = 0x8, scoped, tag = 'scoped memory for tpu_custom_call.1']
    #allocation9 [shape = 's32[2]{0}', space=sflag, size = 0x8, scoped, tag = 'scoped memory for tpu_custom_call.1']
    #allocation10 [shape = 'u8[8192]{0}', space=vmem, size = 0x2000, scoped, tag = 'input window, operand 1']
    #allocation11 [shape = 's32[2]{0}', space=sflag, size = 0x8, scoped, tag = 'scoped memory for tpu_custom_call.1']
    #allocation12 [shape = 'u8[49152]{0}', space=vmem, size = 0xc000, scoped, tag = 'input window, operand 2, single buffered']
    #allocation13 [shape = 'u8[16384]{0}', space=vmem, size = 0x4000, scoped, tag = 'input window, operand 3, single buffered']
    #allocation14 [shape = 's32[1]{0}', space=sflag, size = 0x4, scoped, tag = 'scoped memory for tpu_custom_call.1']
    #allocation15 [shape = 'u8[512]{0}', space=vmem, size = 0x400, scoped, tag = 'input window, operand 4, single buffered']
    #allocation16 [shape = 'u8[4096]{0}', space=vmem, size = 0x1000, scoped, tag = 'output window, operand 0, single buffered']
    %10 = vsyncpa [#allocation8], 0
    %11 = vsyncpa [#allocation11], 0
    %s12 = scalar_lea.sflag [#allocation11], 1
    %13 = vsyncpa %s12, 0
    %14 = vsyncpa [#allocation14], 0
    %15 = vsyncpa [#allocation9], 0
    loop: start=0, step=1, limit=4
    $region2: #{tpu_custom_call.1} parent=1 // loop_pre_header
      _
    $region3: #{tpu_custom_call.1} parent=1 // loop_header
      %s17 = sphi 0, %s21
      %p18 = scmp.ge.s32.totalorder %s17, 4
      %s24 = sphi 0, %s50
      %s25 = sphi 0, %s46
      %s26 = sphi 0, %s42
      %s27 = sphi 0, %s38
      %s28 = sphi 0, %s24
      %s29 = sphi 0, %s25
      %s30 = sphi 0, %s26
      %s31 = sphi 0, %s27
      %s32 = sphi 0, %s28
      %s33 = sphi 0, %s29
      %s34 = sphi 0, %s30
      %s35 = sphi 0, %s31
      %s55 = sphi 0, %s57
      %s58 = sphi 0, %s55
      %s59 = sphi 0, %s58
      %s75 = sphi 0, %s59
      %s83 = sphi 0, %s85
      %s86 = sphi 0, %s83
      %s87 = sphi 0, %s86
      %s103 = sphi 0, %s87
      %s109 = sphi 0, %s111
      %s112 = sphi 0, %s109
      %s113 = sphi 0, %s112
      %s129 = sphi 0, %s113
      %s135 = sphi 0, %s137
      %s138 = sphi 0, %s135
      %s139 = sphi 0, %s138
      %s155 = sphi 0, %s139
      %s159 = sphi 0, %s159
      %s161 = sphi 0, %s159
      %s162 = sphi 0, %s161
      %s176 = sphi 0, %s162
      %s184 = sphi 0, %s186
      %s187 = sphi 0, %s184
      %s188 = sphi 0, %s187
      %s204 = sphi 0, %s188
    $region4: #{tpu_custom_call.1} parent=1 // loop_header_branch
      %20 = sbr.rel (%p18) target = $region8
    $region5: #{tpu_custom_call.1} parent=1 // loop_body
      %s22 = ssub.s32 %s17, 1
      %s23 = ssub.s32 %s17, 2
      %s36 = sadd.s32 1, %s27
      %p37 = scmp.ge.s32.totalorder %s36, 1
      %s38 = scalar_select %p37, 0, %s36
      %s39 = sadd.s32 1, %s26
      %s40 = scalar_select %p37, %s39, %s26
      %p41 = scmp.ge.s32.totalorder %s40, 1
      %s42 = scalar_select %p41, 0, %s40
      %s43 = sadd.s32 1, %s25
      %s44 = scalar_select %p41, %s43, %s25
      %p45 = scmp.ge.s32.totalorder %s44, 1
      %s46 = scalar_select %p45, 0, %s44
      %s47 = sadd.s32 1, %s24
      %s48 = scalar_select %p45, %s47, %s24
      %p49 = scmp.ge.s32.totalorder %s48, 2
      %s50 = scalar_select %p49, 0, %s48
      %s51 = ssub.s32 %s24, %s50
      %s52 = ssub.s32 %s25, %s46
      %s53 = sor.u32 %s51, %s52
      %p54 = scmp.eq.s32.totalorder %s53, 0
      %s56 = sadd.s32 %s55, 1
      %s57 = scalar_select %p54, %s55, %s56
      %p60 = pneg %p54
      %p61 = scmp.eq.s32.totalorder %s17, 1
      %p62 = por %p60, %p61
      %p63 = scmp.ne.s32.totalorder %s55, %s58
      %p64 = scmp.eq.s32.totalorder %s17, 0
      %p65 = por %p63, %p64
      %p66 = scmp.ne.s32.totalorder %s55, %s58
      %p67 = scmp.eq.s32.totalorder %s22, 1
      %p68 = por %p66, %p67
      %p69 = scmp.ne.s32.totalorder %s58, %s59
      %p70 = scmp.eq.s32.totalorder %s22, 0
      %p71 = por %p69, %p70
      %p72 = scmp.ne.s32.totalorder %s58, %s59
      %p73 = scmp.eq.s32.totalorder %s23, 1
      %p74 = por %p72, %p73
      %p76 = scmp.ne.s32.totalorder %s59, %s75
      %p77 = scmp.eq.s32.totalorder %s23, 0
      %p78 = por %p76, %p77
      %s79 = ssub.s32 %s24, %s50
      %s80 = ssub.s32 %s27, %s38
      %s81 = sor.u32 %s79, %s80
      %p82 = scmp.eq.s32.totalorder %s81, 0
      %s84 = sadd.s32 %s83, 1
      %s85 = scalar_select %p82, %s83, %s84
      %p88 = pneg %p82
      %p89 = scmp.eq.s32.totalorder %s17, 1
      %p90 = por %p88, %p89
      %p91 = scmp.ne.s32.totalorder %s83, %s86
      %p92 = scmp.eq.s32.totalorder %s17, 0
      %p93 = por %p91, %p92
      %p94 = scmp.ne.s32.totalorder %s83, %s86
      %p95 = scmp.eq.s32.totalorder %s22, 1
      %p96 = por %p94, %p95
      %p97 = scmp.ne.s32.totalorder %s86, %s87
      %p98 = scmp.eq.s32.totalorder %s22, 0
      %p99 = por %p97, %p98
      %p100 = scmp.ne.s32.totalorder %s86, %s87
      %p101 = scmp.eq.s32.totalorder %s23, 1
      %p102 = por %p100, %p101
      %p104 = scmp.ne.s32.totalorder %s87, %s103
      %p105 = scmp.eq.s32.totalorder %s23, 0
      %p106 = por %p104, %p105
      %s107 = ssub.s32 %s26, %s42
      %p108 = scmp.eq.s32.totalorder %s107, 0
      %s110 = sadd.s32 %s109, 1
      %s111 = scalar_select %p108, %s109, %s110
      %p114 = pneg %p108
      %p115 = scmp.eq.s32.totalorder %s17, 1
      %p116 = por %p114, %p115
      %p117 = scmp.ne.s32.totalorder %s109, %s112
      %p118 = scmp.eq.s32.totalorder %s17, 0
      %p119 = por %p117, %p118
      %p120 = scmp.ne.s32.totalorder %s109, %s112
      %p121 = scmp.eq.s32.totalorder %s22, 1
      %p122 = por %p120, %p121
      %p123 = scmp.ne.s32.totalorder %s112, %s113
      %p124 = scmp.eq.s32.totalorder %s22, 0
      %p125 = por %p123, %p124
      %p126 = scmp.ne.s32.totalorder %s112, %s113
      %p127 = scmp.eq.s32.totalorder %s23, 1
      %p128 = por %p126, %p127
      %p130 = scmp.ne.s32.totalorder %s113, %s129
      %p131 = scmp.eq.s32.totalorder %s23, 0
      %p132 = por %p130, %p131
      %s133 = ssub.s32 %s26, %s42
      %p134 = scmp.eq.s32.totalorder %s133, 0
      %s136 = sadd.s32 %s135, 1
      %s137 = scalar_select %p134, %s135, %s136
      %p140 = pneg %p134
      %p141 = scmp.eq.s32.totalorder %s17, 1
      %p142 = por %p140, %p141
      %p143 = scmp.ne.s32.totalorder %s135, %s138
      %p144 = scmp.eq.s32.totalorder %s17, 0
      %p145 = por %p143, %p144
      %p146 = scmp.ne.s32.totalorder %s135, %s138
      %p147 = scmp.eq.s32.totalorder %s22, 1
      %p148 = por %p146, %p147
      %p149 = scmp.ne.s32.totalorder %s138, %s139
      %p150 = scmp.eq.s32.totalorder %s22, 0
      %p151 = por %p149, %p150
      %p152 = scmp.ne.s32.totalorder %s138, %s139
      %p153 = scmp.eq.s32.totalorder %s23, 1
      %p154 = por %p152, %p153
      %p156 = scmp.ne.s32.totalorder %s139, %s155
      %p157 = scmp.eq.s32.totalorder %s23, 0
      %p158 = por %p156, %p157
      %s160 = sadd.s32 %s159, 1
      %p163 = scmp.eq.s32.totalorder %s17, 1
      %p164 = scmp.ne.s32.totalorder %s159, %s161
      %p165 = scmp.eq.s32.totalorder %s17, 0
      %p166 = por %p164, %p165
      %p167 = scmp.ne.s32.totalorder %s159, %s161
      %p168 = scmp.eq.s32.totalorder %s22, 1
      %p169 = por %p167, %p168
      %p170 = scmp.ne.s32.totalorder %s161, %s162
      %p171 = scmp.eq.s32.totalorder %s22, 0
      %p172 = por %p170, %p171
      %p173 = scmp.ne.s32.totalorder %s161, %s162
      %p174 = scmp.eq.s32.totalorder %s23, 1
      %p175 = por %p173, %p174
      %p177 = scmp.ne.s32.totalorder %s162, %s176
      %p178 = scmp.eq.s32.totalorder %s23, 0
      %p179 = por %p177, %p178
      %s180 = ssub.s32 %s24, %s50
      %s181 = ssub.s32 %s25, %s46
      %s182 = sor.u32 %s180, %s181
      %p183 = scmp.eq.s32.totalorder %s182, 0
      %s185 = sadd.s32 %s184, 1
      %s186 = scalar_select %p183, %s184, %s185
      %p189 = pneg %p183
      %p190 = scmp.eq.s32.totalorder %s17, 1
      %p191 = por %p189, %p190
      %p192 = scmp.ne.s32.totalorder %s184, %s187
      %p193 = scmp.eq.s32.totalorder %s17, 0
      %p194 = por %p192, %p193
      %p195 = scmp.ne.s32.totalorder %s184, %s187
      %p196 = scmp.eq.s32.totalorder %s22, 1
      %p197 = por %p195, %p196
      %p198 = scmp.ne.s32.totalorder %s187, %s188
      %p199 = scmp.eq.s32.totalorder %s22, 0
      %p200 = por %p198, %p199
      %p201 = scmp.ne.s32.totalorder %s187, %s188
      %p202 = scmp.eq.s32.totalorder %s23, 1
      %p203 = por %p201, %p202
      %p205 = scmp.ne.s32.totalorder %s188, %s204
      %p206 = scmp.eq.s32.totalorder %s23, 0
      %p207 = por %p205, %p206
      %p208 = scmp.le.s32.totalorder 1, %s17
      %p209 = scmp.lt.s32.totalorder %s17, 3
      %p210 = pnand %p208, %p209
      %p211 = pneg %p210
      // Predicated region
      $region9: #{tpu_custom_call.1} parent=5 // pred_check
        _
      $region10: #{tpu_custom_call.1} parent=5 // pred_check_branch
        %213 = sbr.rel (%p210) target = $region12
      $region11: #{tpu_custom_call.1} parent=5 // pred_region
        %s214 = ssub.s32 %s17, 1
        // Predicated region
        $region13: #{tpu_custom_call.1} parent=11 // pred_check
          %p215 = pneg %p71
        $region14: #{tpu_custom_call.1} parent=11 // pred_check_branch
          %217 = sbr.rel (%p215) target = $region16
        $region15: #{tpu_custom_call.1} parent=11 // pred_region
          %s219 = ssub.s32 128, 128
          %220 = vsyncadd [#allocation8], %s219
          %s221 = sadd.s32 %s29, %s28
          %s222 = smul.addr %s221, 128
          %s223 = scalar_lea.hbm %s0, %s222
          %s225 = sshll.u32 [#allocation7], 4
          %s226 = int_to_ptr.vmem [resolvable:$true] %s225
          %228 = dma.hbm_to_vmem [thread:$0]  %s223, 128, %s226, [#allocation8]
        $region16: #{tpu_custom_call.1} parent=11 // pred_fallthru
          _
        // Predicated region
        $region17: #{tpu_custom_call.1} parent=11 // pred_check
          %p229 = pneg %p125
        $region18: #{tpu_custom_call.1} parent=11 // pred_check_branch
          %231 = sbr.rel (%p229) target = $region20
        $region19: #{tpu_custom_call.1} parent=11 // pred_region
          %s233 = ssub.s32 1536, 1536
          %234 = vsyncadd [#allocation11], %s233
          %s235 = smul.addr %s30, 4
          %s236 = smul.addr %s235, 128
          %s237 = scalar_lea.hbm %s2, %s236
          %s238 = sshll.u32 [#allocation12], 4
          %s239 = int_to_ptr.vmem [resolvable:$true] %s238
          %244 = dma.hbm_to_vmem [thread:$0]  %s237, 1536, %s239, [#allocation11], 128, 128, 8
        $region20: #{tpu_custom_call.1} parent=11 // pred_fallthru
          _
        // Predicated region
        $region21: #{tpu_custom_call.1} parent=11 // pred_check
          %p245 = pneg %p151
        $region22: #{tpu_custom_call.1} parent=11 // pred_check_branch
          %247 = sbr.rel (%p245) target = $region24
        $region23: #{tpu_custom_call.1} parent=11 // pred_region
          %s249 = ssub.s32 512, 512
          %250 = vsyncadd [#allocation14], %s249
          %s251 = smul.addr %s30, 4
          %s252 = smul.addr %s251, 128
          %s253 = scalar_lea.hbm %s3, %s252
          %s254 = sshll.u32 [#allocation13], 4
          %s255 = int_to_ptr.vmem [resolvable:$true] %s254
          %260 = dma.hbm_to_vmem [thread:$0]  %s253, 512, %s255, [#allocation14], 128, 128, 8
        $region24: #{tpu_custom_call.1} parent=11 // pred_fallthru
          _
        // Predicated region
        $region25: #{tpu_custom_call.1} parent=11 // pred_check
          %p261 = pneg %p172
        $region26: #{tpu_custom_call.1} parent=11 // pred_check_branch
          %263 = sbr.rel (%p261) target = $region28
        $region27: #{tpu_custom_call.1} parent=11 // pred_region
          %s265 = ssub.s32 16, 16
          %266 = vsyncadd [#allocation14], %s265
          %s268 = sshll.u32 [#allocation15], 4
          %s269 = int_to_ptr.vmem [resolvable:$true] %s268
          %271 = dma.hbm_to_vmem [thread:$0]  %s4, 16, %s269, [#allocation14]
        $region28: #{tpu_custom_call.1} parent=11 // pred_fallthru
          _
      $region12: #{tpu_custom_call.1} parent=5 // pred_fallthru
        _
      %p272 = scmp.lt.s32.totalorder %s17, 2
      // Predicated region
      $region29: #{tpu_custom_call.1} parent=5 // pred_check
        %p273 = pneg %p272
      $region30: #{tpu_custom_call.1} parent=5 // pred_check_branch
        %275 = sbr.rel (%p273) target = $region32
      $region31: #{tpu_custom_call.1} parent=5 // pred_region
        // Predicated region
        $region33: #{tpu_custom_call.1} parent=31 // pred_check
          %p276 = pneg %p93
        $region34: #{tpu_custom_call.1} parent=31 // pred_check_branch
          %278 = sbr.rel (%p276) target = $region36
        $region35: #{tpu_custom_call.1} parent=31 // pred_region
          %s279 = sand.u32 %s17, 1
          %s280 = scalar_lea.sflag [#allocation11], %s279
          %s281 = sand.u32 %s83, 1
          %s282 = smul.addr %s281, 8
          %s283 = scalar_lea.vmem [#allocation10], %s282
          %s285 = ssub.s32 128, 128
          %286 = vsyncadd %s280, %s285
          %s287 = sadd.s32 %s27, %s24
          %s288 = smul.addr %s287, 128
          %s289 = scalar_lea.hbm %s1, %s288
          %s291 = sshll.u32 %s283, 4
          %s292 = int_to_ptr.vmem [resolvable:$true] %s291
          %294 = dma.hbm_to_vmem [thread:$0]  %s289, 128, %s292, %s280
        $region36: #{tpu_custom_call.1} parent=31 // pred_fallthru
          _
      $region32: #{tpu_custom_call.1} parent=5 // pred_fallthru
        _
      %p295 = scmp.le.s32.totalorder 1, %s17
      %p296 = scmp.lt.s32.totalorder %s17, 3
      %p297 = pnand %p295, %p296
      %p298 = pneg %p297
      // Predicated region
      $region37: #{tpu_custom_call.1} parent=5 // pred_check
        _
      $region38: #{tpu_custom_call.1} parent=5 // pred_check_branch
        %300 = sbr.rel (%p297) target = $region40
      $region39: #{tpu_custom_call.1} parent=5 // pred_region
        %s301 = ssub.s32 %s17, 1
        // Predicated region
        $region41: #{tpu_custom_call.1} parent=39 // pred_check
          %p302 = pneg %p71
        $region42: #{tpu_custom_call.1} parent=39 // pred_check_branch
          %304 = sbr.rel (%p302) target = $region44
        $region43: #{tpu_custom_call.1} parent=39 // pred_region
          %305 = dma.done [#allocation8], 128
        $region44: #{tpu_custom_call.1} parent=39 // pred_fallthru
          _
        %s306 = sand.u32 %s22, 1
        %s307 = scalar_lea.sflag [#allocation11], %s306
        %s308 = sand.u32 %s86, 1
        %s309 = smul.addr %s308, 8
        %s310 = scalar_lea.vmem [#allocation10], %s309
        // Predicated region
        $region45: #{tpu_custom_call.1} parent=39 // pred_check
          %p311 = pneg %p99
        $region46: #{tpu_custom_call.1} parent=39 // pred_check_branch
          %313 = sbr.rel (%p311) target = $region48
        $region47: #{tpu_custom_call.1} parent=39 // pred_region
          %314 = dma.done %s307, 128
        $region48: #{tpu_custom_call.1} parent=39 // pred_fallthru
          _
        // Predicated region
        $region49: #{tpu_custom_call.1} parent=39 // pred_check
          %p315 = pneg %p125
        $region50: #{tpu_custom_call.1} parent=39 // pred_check_branch
          %317 = sbr.rel (%p315) target = $region52
        $region51: #{tpu_custom_call.1} parent=39 // pred_region
          %318 = dma.done [#allocation11], 1536
        $region52: #{tpu_custom_call.1} parent=39 // pred_fallthru
          _
        // Predicated region
        $region53: #{tpu_custom_call.1} parent=39 // pred_check
          %p319 = pneg %p151
        $region54: #{tpu_custom_call.1} parent=39 // pred_check_branch
          %321 = sbr.rel (%p319) target = $region56
        $region55: #{tpu_custom_call.1} parent=39 // pred_region
          %322 = dma.done [#allocation14], 512
        $region56: #{tpu_custom_call.1} parent=39 // pred_fallthru
          _
        // Predicated region
        $region57: #{tpu_custom_call.1} parent=39 // pred_check
          %p323 = pneg %p172
        $region58: #{tpu_custom_call.1} parent=39 // pred_check_branch
          %325 = sbr.rel (%p323) target = $region60
        $region59: #{tpu_custom_call.1} parent=39 // pred_region
          %326 = dma.done [#allocation14], 16
        $region60: #{tpu_custom_call.1} parent=39 // pred_fallthru
          _
        %p327 = pneg %p71
        %p328 = pneg %p68
        %s329 = sand.u32 %s22, 1
        %s330 = scalar_lea.sflag [#allocation11], %s329
        %s331 = sand.u32 %s86, 1
        %s332 = smul.addr %s331, 8
        %s333 = scalar_lea.vmem [#allocation10], %s332
        %p334 = pneg %p99
        %p335 = pneg %p96
        %p336 = pneg %p125
        %p337 = pneg %p122
        %p338 = pneg %p151
        %p339 = pneg %p148
        %p340 = pneg %p172
        %p341 = pneg %p169
        %p342 = pneg %p200
        %p343 = pneg %p197
        %p344 = scmp.eq.s32.totalorder %s30, 0
        %p345 = scmp.eq.s32.totalorder %s31, 0
        %p346 = pnand %p344, %p345
        %p347 = pneg %p346
        // Predicated region
        $region61: #{tpu_custom_call.1} parent=39 // pred_check
          _
        $region62: #{tpu_custom_call.1} parent=39 // pred_check_branch
          %349 = sbr.rel (%p346) target = $region64
        $region63: #{tpu_custom_call.1} parent=39 // pred_region
          %vm350 = vcmask 261120
          %351 = vst.msk [vmem:[#allocation2] sm:$0xff] %vm350, 0.0
        $region64: #{tpu_custom_call.1} parent=39 // pred_fallthru
          _
        // Predicated region
        $region65: #{tpu_custom_call.1} parent=39 // pred_check
          %p352 = pneg %p345
        $region66: #{tpu_custom_call.1} parent=39 // pred_check_branch
          %354 = sbr.rel (%p352) target = $region68
        $region67: #{tpu_custom_call.1} parent=39 // pred_region
          %v355 = vld [vmem:[#allocation7] sm:$0xff]
          %v356 = vld [vmem:[#allocation12] sm:$0xff]
          %v357 = vld [vmem:[#allocation12 + $0x8] sm:$0xff]
          %v358 = vld [vmem:[#allocation12 + $0x10] sm:$0xff]
          %v359 = vld [vmem:[#allocation12 + $0x18] sm:$0xff]
          %vm360 = vcmask 261120
          %v362 = vsel %vm360, %v355, 0
          %v365 = vsel %vm360, %v356, 0
          %v368 = vsel %vm360, %v357, 0
          %v371 = vsel %vm360, %v358, 0
          %v374 = vsel %vm360, %v359, 0
          %376 = vmatprep.subr.mxu0 0.0
          %377 = vmatpush1.xpose.msra.mxu0 %v365
          %378 = vmatprep.subr.mxu0 0.0
          %379 = vmatpush1.xpose.msra.mxu0 %v368
          %380 = vmatprep.subr.mxu0 0.0
          %381 = vmatpush1.xpose.msra.mxu0 %v371
          %382 = vmatprep.subr.mxu0 0.0
          %383 = vmatpush1.xpose.msra.mxu0 %v374
          %384 = vmatprep.subr.mxu0 0.0
          %385 = vmatpush1.xpose.msra.mxu0 0.0
          %386 = vmatprep.subr.mxu0 0.0
          %387 = vmatpush1.xpose.msra.mxu0 0.0
          %388 = vmatprep.subr.mxu0 0.0
          %389 = vmatpush1.xpose.msra.mxu0 0.0
          %390 = vmatprep.subr.mxu0 0.0
          %391 = vmatpush1.xpose.msra.mxu0 0.0
          %392 = vmatprep.subr.mxu0 0.0
          %393 = vmatpush1.xpose.msra.mxu0 0.0
          %394 = vmatprep.subr.mxu0 0.0
          %395 = vmatpush1.xpose.msra.mxu0 0.0
          %396 = vmatprep.subr.mxu0 0.0
          %397 = vmatpush1.xpose.msra.mxu0 0.0
          %398 = vmatprep.subr.mxu0 0.0
          %399 = vmatpush1.xpose.msra.mxu0 0.0
          %400 = vmatprep.subr.mxu0 0.0
          %401 = vmatpush1.xpose.msra.mxu0 0.0
          %402 = vmatprep.subr.mxu0 0.0
          %403 = vmatpush1.xpose.msra.mxu0 0.0
          %404 = vmatprep.subr.mxu0 0.0
          %405 = vmatpush1.xpose.msra.mxu0 0.0
          %406 = vmatprep.subr.mxu0 0.0
          %407 = vmatpush1.xpose.msra.mxu0 0.0
          %408 = vmatprep.subr.mxu0 0.0
          %409 = vmatpush1.xpose.msra.mxu0 0.0
          %410 = vmatprep.subr.mxu0 0.0
          %411 = vmatpush1.xpose.msra.mxu0 0.0
          %412 = vmatprep.subr.mxu0 0.0
          %413 = vmatpush1.xpose.msra.mxu0 0.0
          %414 = vmatprep.subr.mxu0 0.0
          %415 = vmatpush1.xpose.msra.mxu0 0.0
          %416 = vmatprep.subr.mxu0 0.0
          %417 = vmatpush1.xpose.msra.mxu0 0.0
          %418 = vmatprep.subr.mxu0 0.0
          %419 = vmatpush1.xpose.msra.mxu0 0.0
          %420 = vmatprep.subr.mxu0 0.0
          %421 = vmatpush1.xpose.msra.mxu0 0.0
          %422 = vmatprep.subr.mxu0 0.0
          %423 = vmatpush1.xpose.msra.mxu0 0.0
          %424 = vmatprep.subr.mxu0 0.0
          %425 = vmatpush1.xpose.msra.mxu0 0.0
          %426 = vmatprep.subr.mxu0 0.0
          %427 = vmatpush1.xpose.msra.mxu0 0.0
          %428 = vmatprep.subr.mxu0 0.0
          %429 = vmatpush1.xpose.msra.mxu0 0.0
          %430 = vmatprep.subr.mxu0 0.0
          %431 = vmatpush1.xpose.msra.mxu0 0.0
          %432 = vmatprep.subr.mxu0 0.0
          %433 = vmatpush1.xpose.msra.mxu0 0.0
          %434 = vmatprep.subr.mxu0 0.0
          %435 = vmatpush1.xpose.msra.mxu0 0.0
          %436 = vmatprep.subr.mxu0 0.0
          %437 = vmatpush1.xpose.msra.mxu0 0.0
          %438 = vmatprep.subr.mxu0 0.0
          %439 = vmatpush1.xpose.msra.mxu0 0.0
          %440 = vmatprep.mubr.f32.mxu0 0.0
          %441 = vmatmul.mubr.f32.gmra.mrb[0].mxu0 %v362
          %v442 = vpop.f32.mrb[0].mxu0
          %v443 = vadd.f32 0.0, %v442
          %v444 = vpop.f32.mrb[0].mxu0
          %445 = vdwg.mxu0
          %v446 = vmul.f32 %v443, 0.5
          %vm447 = vcmask 31744
          %448 = vst.msk [vmem:[#allocation3] sm:$0xff] %vm447, %v446
          %450 = vrot.lane.b32.xlu0 %v446, 124
          %v451 = vpop.permute.xlu0 %450
          %s453 = scalar_lea.vmem [#allocation3], 8
          %454 = vst.msk [vmem:[%s453] sm:$0xff] %vm447, %v451
          %455 = vrot.lane.b32.xlu0 %v446, 120
          %v456 = vpop.permute.xlu0 %455
          %s458 = scalar_lea.vmem [#allocation3], 16
          %459 = vst.msk [vmem:[%s458] sm:$0xff] %vm447, %v456
          %460 = vrot.lane.b32.xlu0 %v446, 116
          %v461 = vpop.permute.xlu0 %460
          %s463 = scalar_lea.vmem [#allocation3], 24
          %464 = vst.msk [vmem:[%s463] sm:$0xff] %vm447, %v461
          %465 = vrot.lane.b32.xlu0 %v446, 112
          %v466 = vpop.permute.xlu0 %465
          %s468 = scalar_lea.vmem [#allocation3], 32
          %469 = vst.msk [vmem:[%s468] sm:$0xff] %vm447, %v466
          %470 = vrot.lane.b32.xlu0 %v446, 108
          %v471 = vpop.permute.xlu0 %470
          %s473 = scalar_lea.vmem [#allocation3], 40
          %474 = vst.msk [vmem:[%s473] sm:$0xff] %vm447, %v471
          %475 = vrot.lane.b32.xlu0 %v446, 104
          %v476 = vpop.permute.xlu0 %475
          %s478 = scalar_lea.vmem [#allocation3], 48
          %479 = vst.msk [vmem:[%s478] sm:$0xff] %vm447, %v476
          %480 = vrot.lane.b32.xlu0 %v446, 100
          %v481 = vpop.permute.xlu0 %480
          %s483 = scalar_lea.vmem [#allocation3], 56
          %484 = vst.msk [vmem:[%s483] sm:$0xff] %vm447, %v481
          %vm485 = vcmask 7168
          %486 = vst.msk [vmem:[#allocation4] sm:$0xff] %vm485, -inf
          %487 = vst.msk [vmem:[#allocation4 + $0x8] sm:$0xff] %vm485, -inf
          %488 = vst.msk [vmem:[#allocation4 + $0x10] sm:$0xff] %vm485, -inf
          %489 = vst.msk [vmem:[#allocation4 + $0x18] sm:$0xff] %vm485, -inf
          %490 = vst.msk [vmem:[#allocation4 + $0x20] sm:$0xff] %vm485, -inf
          %491 = vst.msk [vmem:[#allocation4 + $0x28] sm:$0xff] %vm485, -inf
          %492 = vst.msk [vmem:[#allocation4 + $0x30] sm:$0xff] %vm485, -inf
          %493 = vst.msk [vmem:[#allocation4 + $0x38] sm:$0xff] %vm485, -inf
          %494 = vst.msk [vmem:[#allocation5] sm:$0xff] %vm485, 0.0
          %495 = vst.msk [vmem:[#allocation5 + $0x8] sm:$0xff] %vm485, 0.0
          %496 = vst.msk [vmem:[#allocation5 + $0x10] sm:$0xff] %vm485, 0.0
          %497 = vst.msk [vmem:[#allocation5 + $0x18] sm:$0xff] %vm485, 0.0
          %498 = vst.msk [vmem:[#allocation5 + $0x20] sm:$0xff] %vm485, 0.0
          %499 = vst.msk [vmem:[#allocation5 + $0x28] sm:$0xff] %vm485, 0.0
          %500 = vst.msk [vmem:[#allocation5 + $0x30] sm:$0xff] %vm485, 0.0
          %501 = vst.msk [vmem:[#allocation5 + $0x38] sm:$0xff] %vm485, 0.0
          %502 = vst.msk [vmem:[#allocation6] sm:$0xff] %vm447, 0.0
          %503 = vst.msk [vmem:[#allocation6 + $0x8] sm:$0xff] %vm447, 0.0
          %504 = vst.msk [vmem:[#allocation6 + $0x10] sm:$0xff] %vm447, 0.0
          %505 = vst.msk [vmem:[#allocation6 + $0x18] sm:$0xff] %vm447, 0.0
          %506 = vst.msk [vmem:[#allocation6 + $0x20] sm:$0xff] %vm447, 0.0
          %507 = vst.msk [vmem:[#allocation6 + $0x28] sm:$0xff] %vm447, 0.0
          %508 = vst.msk [vmem:[#allocation6 + $0x30] sm:$0xff] %vm447, 0.0
          %509 = vst.msk [vmem:[#allocation6 + $0x38] sm:$0xff] %vm447, 0.0
        $region68: #{tpu_custom_call.1} parent=39 // pred_fallthru
          _
        %v510 = vld [vmem:[%s310] sm:$0xff]
        %s511 = scalar_lea.vmem [#allocation12], 32
        %v512 = vld [vmem:[%s511] sm:$0xff]
        %v513 = vld [vmem:[%s511 + $0x8] sm:$0xff]
        %v514 = vld [vmem:[%s511 + $0x10] sm:$0xff]
        %v515 = vld [vmem:[%s511 + $0x18] sm:$0xff]
        %vm516 = vcmask 261120
        %v518 = vsel %vm516, %v512, 0
        %v521 = vsel %vm516, %v513, 0
        %v524 = vsel %vm516, %v514, 0
        %v527 = vsel %vm516, %v515, 0
        %v530 = vsel %vm516, %v510, 0
        %532 = vmatprep.subr.mxu0 0.0
        %533 = vmatpush1.xpose.msra.mxu0 %v530
        %534 = vmatprep.subr.mxu0 0.0
        %535 = vmatpush1.xpose.msra.mxu0 0.0
        %536 = vmatprep.subr.mxu0 0.0
        %537 = vmatpush1.xpose.msra.mxu0 0.0
        %538 = vmatprep.subr.mxu0 0.0
        %539 = vmatpush1.xpose.msra.mxu0 0.0
        %540 = vmatprep.subr.mxu0 0.0
        %541 = vmatpush1.xpose.msra.mxu0 0.0
        %542 = vmatprep.subr.mxu0 0.0
        %543 = vmatpush1.xpose.msra.mxu0 0.0
        %544 = vmatprep.subr.mxu0 0.0
        %545 = vmatpush1.xpose.msra.mxu0 0.0
        %546 = vmatprep.subr.mxu0 0.0
        %547 = vmatpush1.xpose.msra.mxu0 0.0
        %548 = vmatprep.subr.mxu0 0.0
        %549 = vmatpush1.xpose.msra.mxu0 0.0
        %550 = vmatprep.subr.mxu0 0.0
        %551 = vmatpush1.xpose.msra.mxu0 0.0
        %552 = vmatprep.subr.mxu0 0.0
        %553 = vmatpush1.xpose.msra.mxu0 0.0
        %554 = vmatprep.subr.mxu0 0.0
        %555 = vmatpush1.xpose.msra.mxu0 0.0
        %556 = vmatprep.subr.mxu0 0.0
        %557 = vmatpush1.xpose.msra.mxu0 0.0
        %558 = vmatprep.subr.mxu0 0.0
        %559 = vmatpush1.xpose.msra.mxu0 0.0
        %560 = vmatprep.subr.mxu0 0.0
        %561 = vmatpush1.xpose.msra.mxu0 0.0
        %562 = vmatprep.subr.mxu0 0.0
        %563 = vmatpush1.xpose.msra.mxu0 0.0
        %564 = vmatprep.subr.mxu0 0.0
        %565 = vmatpush1.xpose.msra.mxu0 0.0
        %566 = vmatprep.subr.mxu0 0.0
        %567 = vmatpush1.xpose.msra.mxu0 0.0
        %568 = vmatprep.subr.mxu0 0.0
        %569 = vmatpush1.xpose.msra.mxu0 0.0
        %570 = vmatprep.subr.mxu0 0.0
        %571 = vmatpush1.xpose.msra.mxu0 0.0
        %572 = vmatprep.subr.mxu0 0.0
        %573 = vmatpush1.xpose.msra.mxu0 0.0
        %574 = vmatprep.subr.mxu0 0.0
        %575 = vmatpush1.xpose.msra.mxu0 0.0
        %576 = vmatprep.subr.mxu0 0.0
        %577 = vmatpush1.xpose.msra.mxu0 0.0
        %578 = vmatprep.subr.mxu0 0.0
        %579 = vmatpush1.xpose.msra.mxu0 0.0
        %580 = vmatprep.subr.mxu0 0.0
        %581 = vmatpush1.xpose.msra.mxu0 0.0
        %582 = vmatprep.subr.mxu0 0.0
        %583 = vmatpush1.xpose.msra.mxu0 0.0
        %584 = vmatprep.subr.mxu0 0.0
        %585 = vmatpush1.xpose.msra.mxu0 0.0
        %586 = vmatprep.subr.mxu0 0.0
        %587 = vmatpush1.xpose.msra.mxu0 0.0
        %588 = vmatprep.subr.mxu0 0.0
        %589 = vmatpush1.xpose.msra.mxu0 0.0
        %590 = vmatprep.subr.mxu0 0.0
        %591 = vmatpush1.xpose.msra.mxu0 0.0
        %592 = vmatprep.subr.mxu0 0.0
        %593 = vmatpush1.xpose.msra.mxu0 0.0
        %594 = vmatprep.subr.mxu0 0.0
        %595 = vmatpush1.xpose.msra.mxu0 0.0
        %596 = vmatprep.mubr.f32.mxu0 0.0
        %597 = vmatmul.mubr.f32.gmra.mrb[0].mxu0 %v518
        %v598 = vpop.f32.mrb[0].mxu0
        %v599 = vadd.f32 0.0, %v598
        %v600 = vpop.f32.mrb[0].mxu0
        %601 = vmatprep.mubr.f32.mxu0 0.0
        %602 = vmatmul.mubr.f32.gmra.mrb[0].mxu0 %v521
        %v603 = vpop.f32.mrb[0].mxu0
        %v604 = vadd.f32 0.0, %v603
        %v605 = vpop.f32.mrb[0].mxu0
        %606 = vmatprep.mubr.f32.mxu0 0.0
        %607 = vmatmul.mubr.f32.gmra.mrb[0].mxu0 %v524
        %v608 = vpop.f32.mrb[0].mxu0
        %v609 = vadd.f32 0.0, %v608
        %v610 = vpop.f32.mrb[0].mxu0
        %611 = vmatprep.mubr.f32.mxu0 0.0
        %612 = vmatmul.mubr.f32.gmra.mrb[0].mxu0 %v527
        %v613 = vpop.f32.mrb[0].mxu0
        %v614 = vadd.f32 0.0, %v613
        %v615 = vpop.f32.mrb[0].mxu0
        %616 = vdwg.mxu0
        %s617 = scalar_lea.vmem [#allocation12], 64
        %v618 = vld [vmem:[%s617] sm:$0xff]
        %v619 = vld [vmem:[%s617 + $0x8] sm:$0xff]
        %v620 = vld [vmem:[%s617 + $0x10] sm:$0xff]
        %v621 = vld [vmem:[%s617 + $0x18] sm:$0xff]
        %v623 = vsel %vm516, %v618, 0
        %v626 = vsel %vm516, %v619, 0
        %v629 = vsel %vm516, %v620, 0
        %v632 = vsel %vm516, %v621, 0
        %634 = vmatprep.subr.mxu0 0.0
        %635 = vmatpush1.xpose.msra.mxu0 %v530
        %636 = vmatprep.subr.mxu0 0.0
        %637 = vmatpush1.xpose.msra.mxu0 0.0
        %638 = vmatprep.subr.mxu0 0.0
        %639 = vmatpush1.xpose.msra.mxu0 0.0
        %640 = vmatprep.subr.mxu0 0.0
        %641 = vmatpush1.xpose.msra.mxu0 0.0
        %642 = vmatprep.subr.mxu0 0.0
        %643 = vmatpush1.xpose.msra.mxu0 0.0
        %644 = vmatprep.subr.mxu0 0.0
        %645 = vmatpush1.xpose.msra.mxu0 0.0
        %646 = vmatprep.subr.mxu0 0.0
        %647 = vmatpush1.xpose.msra.mxu0 0.0
        %648 = vmatprep.subr.mxu0 0.0
        %649 = vmatpush1.xpose.msra.mxu0 0.0
        %650 = vmatprep.subr.mxu0 0.0
        %651 = vmatpush1.xpose.msra.mxu0 0.0
        %652 = vmatprep.subr.mxu0 0.0
        %653 = vmatpush1.xpose.msra.mxu0 0.0
        %654 = vmatprep.subr.mxu0 0.0
        %655 = vmatpush1.xpose.msra.mxu0 0.0
        %656 = vmatprep.subr.mxu0 0.0
        %657 = vmatpush1.xpose.msra.mxu0 0.0
        %658 = vmatprep.subr.mxu0 0.0
        %659 = vmatpush1.xpose.msra.mxu0 0.0
        %660 = vmatprep.subr.mxu0 0.0
        %661 = vmatpush1.xpose.msra.mxu0 0.0
        %662 = vmatprep.subr.mxu0 0.0
        %663 = vmatpush1.xpose.msra.mxu0 0.0
        %664 = vmatprep.subr.mxu0 0.0
        %665 = vmatpush1.xpose.msra.mxu0 0.0
        %666 = vmatprep.subr.mxu0 0.0
        %667 = vmatpush1.xpose.msra.mxu0 0.0
        %668 = vmatprep.subr.mxu0 0.0
        %669 = vmatpush1.xpose.msra.mxu0 0.0
        %670 = vmatprep.subr.mxu0 0.0
        %671 = vmatpush1.xpose.msra.mxu0 0.0
        %672 = vmatprep.subr.mxu0 0.0
        %673 = vmatpush1.xpose.msra.mxu0 0.0
        %674 = vmatprep.subr.mxu0 0.0
        %675 = vmatpush1.xpose.msra.mxu0 0.0
        %676 = vmatprep.subr.mxu0 0.0
        %677 = vmatpush1.xpose.msra.mxu0 0.0
        %678 = vmatprep.subr.mxu0 0.0
        %679 = vmatpush1.xpose.msra.mxu0 0.0
        %680 = vmatprep.subr.mxu0 0.0
        %681 = vmatpush1.xpose.msra.mxu0 0.0
        %682 = vmatprep.subr.mxu0 0.0
        %683 = vmatpush1.xpose.msra.mxu0 0.0
        %684 = vmatprep.subr.mxu0 0.0
        %685 = vmatpush1.xpose.msra.mxu0 0.0
        %686 = vmatprep.subr.mxu0 0.0
        %687 = vmatpush1.xpose.msra.mxu0 0.0
        %688 = vmatprep.subr.mxu0 0.0
        %689 = vmatpush1.xpose.msra.mxu0 0.0
        %690 = vmatprep.subr.mxu0 0.0
        %691 = vmatpush1.xpose.msra.mxu0 0.0
        %692 = vmatprep.subr.mxu0 0.0
        %693 = vmatpush1.xpose.msra.mxu0 0.0
        %694 = vmatprep.subr.mxu0 0.0
        %695 = vmatpush1.xpose.msra.mxu0 0.0
        %696 = vmatprep.subr.mxu0 0.0
        %697 = vmatpush1.xpose.msra.mxu0 0.0
        %698 = vmatprep.mubr.f32.mxu0 0.0
        %699 = vmatmul.mubr.f32.gmra.mrb[0].mxu0 %v623
        %v700 = vpop.f32.mrb[0].mxu0
        %v701 = vadd.f32 0.0, %v700
        %v702 = vpop.f32.mrb[0].mxu0
        %703 = vmatprep.mubr.f32.mxu0 0.0
        %704 = vmatmul.mubr.f32.gmra.mrb[0].mxu0 %v626
        %v705 = vpop.f32.mrb[0].mxu0
        %v706 = vadd.f32 0.0, %v705
        %v707 = vpop.f32.mrb[0].mxu0
        %708 = vmatprep.mubr.f32.mxu0 0.0
        %709 = vmatmul.mubr.f32.gmra.mrb[0].mxu0 %v629
        %v710 = vpop.f32.mrb[0].mxu0
        %v711 = vadd.f32 0.0, %v710
        %v712 = vpop.f32.mrb[0].mxu0
        %713 = vmatprep.mubr.f32.mxu0 0.0
        %714 = vmatmul.mubr.f32.gmra.mrb[0].mxu0 %v632
        %v715 = vpop.f32.mrb[0].mxu0
        %v716 = vadd.f32 0.0, %v715
        %v717 = vpop.f32.mrb[0].mxu0
        %718 = vdwg.mxu0
        %v719 = vld [vmem:[#allocation3] sm:$0xff]
        %vm720 = vcmask 31744
        %v722 = vsel %vm720, %v719, 0
        %vm724 = vcmask 1043456
        %v726 = vsel %vm724, %v599, 0
        %728 = vmatprep.subr.mxu0 0.0
        %729 = vmatpush1.msra.mxu0 %v726
        %730 = vmatprep.subr.mxu0 0.0
        %731 = vmatpush1.msra.mxu0 0.0
        %732 = vmatprep.subr.mxu0 0.0
        %733 = vmatpush1.msra.mxu0 0.0
        %734 = vmatprep.subr.mxu0 0.0
        %735 = vmatpush1.msra.mxu0 0.0
        %736 = vmatprep.subr.mxu0 0.0
        %737 = vmatpush1.msra.mxu0 0.0
        %738 = vmatprep.subr.mxu0 0.0
        %739 = vmatpush1.msra.mxu0 0.0
        %740 = vmatprep.subr.mxu0 0.0
        %741 = vmatpush1.msra.mxu0 0.0
        %742 = vmatprep.subr.mxu0 0.0
        %743 = vmatpush1.msra.mxu0 0.0
        %744 = vmatprep.subr.mxu0 0.0
        %745 = vmatpush1.msra.mxu0 0.0
        %746 = vmatprep.subr.mxu0 0.0
        %747 = vmatpush1.msra.mxu0 0.0
        %748 = vmatprep.subr.mxu0 0.0
        %749 = vmatpush1.msra.mxu0 0.0
        %750 = vmatprep.subr.mxu0 0.0
        %751 = vmatpush1.msra.mxu0 0.0
        %752 = vmatprep.subr.mxu0 0.0
        %753 = vmatpush1.msra.mxu0 0.0
        %754 = vmatprep.subr.mxu0 0.0
        %755 = vmatpush1.msra.mxu0 0.0
        %756 = vmatprep.subr.mxu0 0.0
        %757 = vmatpush1.msra.mxu0 0.0
        %758 = vmatprep.subr.mxu0 0.0
        %759 = vmatpush1.msra.mxu0 0.0
        %760 = vmatprep.subr.mxu0 0.0
        %761 = vmatpush1.msra.mxu0 0.0
        %762 = vmatprep.subr.mxu0 0.0
        %763 = vmatpush1.msra.mxu0 0.0
        %764 = vmatprep.subr.mxu0 0.0
        %765 = vmatpush1.msra.mxu0 0.0
        %766 = vmatprep.subr.mxu0 0.0
        %767 = vmatpush1.msra.mxu0 0.0
        %768 = vmatprep.subr.mxu0 0.0
        %769 = vmatpush1.msra.mxu0 0.0
        %770 = vmatprep.subr.mxu0 0.0
        %771 = vmatpush1.msra.mxu0 0.0
        %772 = vmatprep.subr.mxu0 0.0
        %773 = vmatpush1.msra.mxu0 0.0
        %774 = vmatprep.subr.mxu0 0.0
        %775 = vmatpush1.msra.mxu0 0.0
        %776 = vmatprep.subr.mxu0 0.0
        %777 = vmatpush1.msra.mxu0 0.0
        %778 = vmatprep.subr.mxu0 0.0
        %779 = vmatpush1.msra.mxu0 0.0
        %780 = vmatprep.subr.mxu0 0.0
        %781 = vmatpush1.msra.mxu0 0.0
        %782 = vmatprep.subr.mxu0 0.0
        %783 = vmatpush1.msra.mxu0 0.0
        %784 = vmatprep.subr.mxu0 0.0
        %785 = vmatpush1.msra.mxu0 0.0
        %786 = vmatprep.subr.mxu0 0.0
        %787 = vmatpush1.msra.mxu0 0.0
        %788 = vmatprep.subr.mxu0 0.0
        %789 = vmatpush1.msra.mxu0 0.0
        %790 = vmatprep.subr.mxu0 0.0
        %791 = vmatpush1.msra.mxu0 0.0
        %792 = vmatprep.mubr.f32.mxu0 0.0
        %793 = vmatmul.mubr.f32.gmra.mrb[0].mxu0 %v722
        %v794 = vpop.f32.mrb[0].mxu0
        %v795 = vadd.f32 0.0, %v794
        %v796 = vpop.f32.mrb[0].mxu0
        %797 = vdwg.mxu0
        %v798 = vld [vmem:[#allocation4] sm:$0xff]
        %vm799 = vcmask 64512
        %v800 = vsel %vm799, %v795, -inf
        %801 = vmax.xlane.f32.xlu0 %v800
        %v802 = vpop.xlane.xlu0 %801
        %v803 = vmax.f32 %v798, %v802
        %v804 = vsub.f32 %v798, %v803
        %v805 = vmul.f32 %v804, 1.442695
        %v806 = vpow.pop %v805
        %808 = vset.pattern.permute.xlu0 0
        %809 = vperm.xlu0 %808, %v803
        %v810 = vpop.permute.xlu0 %809
        %v812 = vsub.f32 %v795, %v810
        %v813 = vmul.f32 %v812, 1.442695
        %v814 = vpow.pop %v813
        %v815 = vld [vmem:[#allocation5] sm:$0xff]
        %v816 = vmul.f32 %v806, %v815
        %v817 = vsel %vm799, %v814, 0.0
        %818 = vadd.xlane.f32.xlu0 %v817
        %v819 = vpop.xlane.xlu0 %818
        %v820 = vadd.f32 %v816, %v819
        %vm821 = vcmask 7168
        %822 = vst.msk [vmem:[#allocation5] sm:$0xff] %vm821, %v820
        %v823 = vld [vmem:[#allocation6] sm:$0xff]
        %825 = vset.pattern.permute.xlu0 0
        %826 = vperm.xlu0 %825, %v806
        %v827 = vpop.permute.xlu0 %826
        %v829 = vmul.f32 %v827, %v823
        %v831 = vsel %vm799, %v814, 0
        %v834 = vsel %vm799, %v701, 0
        %836 = vmatprep.subr.mxu0 0.0
        %837 = vmatpush1.xpose.msra.mxu0 %v834
        %838 = vmatprep.subr.mxu0 0.0
        %839 = vmatpush1.xpose.msra.mxu0 0.0
        %840 = vmatprep.subr.mxu0 0.0
        %841 = vmatpush1.xpose.msra.mxu0 0.0
        %842 = vmatprep.subr.mxu0 0.0
        %843 = vmatpush1.xpose.msra.mxu0 0.0
        %844 = vmatprep.subr.mxu0 0.0
        %845 = vmatpush1.xpose.msra.mxu0 0.0
        %846 = vmatprep.subr.mxu0 0.0
        %847 = vmatpush1.xpose.msra.mxu0 0.0
        %848 = vmatprep.subr.mxu0 0.0
        %849 = vmatpush1.xpose.msra.mxu0 0.0
        %850 = vmatprep.subr.mxu0 0.0
        %851 = vmatpush1.xpose.msra.mxu0 0.0
        %852 = vmatprep.subr.mxu0 0.0
        %853 = vmatpush1.xpose.msra.mxu0 0.0
        %854 = vmatprep.subr.mxu0 0.0
        %855 = vmatpush1.xpose.msra.mxu0 0.0
        %856 = vmatprep.subr.mxu0 0.0
        %857 = vmatpush1.xpose.msra.mxu0 0.0
        %858 = vmatprep.subr.mxu0 0.0
        %859 = vmatpush1.xpose.msra.mxu0 0.0
        %860 = vmatprep.subr.mxu0 0.0
        %861 = vmatpush1.xpose.msra.mxu0 0.0
        %862 = vmatprep.subr.mxu0 0.0
        %863 = vmatpush1.xpose.msra.mxu0 0.0
        %864 = vmatprep.subr.mxu0 0.0
        %865 = vmatpush1.xpose.msra.mxu0 0.0
        %866 = vmatprep.subr.mxu0 0.0
        %867 = vmatpush1.xpose.msra.mxu0 0.0
        %868 = vmatprep.subr.mxu0 0.0
        %869 = vmatpush1.xpose.msra.mxu0 0.0
        %870 = vmatprep.subr.mxu0 0.0
        %871 = vmatpush1.xpose.msra.mxu0 0.0
        %872 = vmatprep.subr.mxu0 0.0
        %873 = vmatpush1.xpose.msra.mxu0 0.0
        %874 = vmatprep.subr.mxu0 0.0
        %875 = vmatpush1.xpose.msra.mxu0 0.0
        %876 = vmatprep.subr.mxu0 0.0
        %877 = vmatpush1.xpose.msra.mxu0 0.0
        %878 = vmatprep.subr.mxu0 0.0
        %879 = vmatpush1.xpose.msra.mxu0 0.0
        %880 = vmatprep.subr.mxu0 0.0
        %881 = vmatpush1.xpose.msra.mxu0 0.0
        %882 = vmatprep.subr.mxu0 0.0
        %883 = vmatpush1.xpose.msra.mxu0 0.0
        %884 = vmatprep.subr.mxu0 0.0
        %885 = vmatpush1.xpose.msra.mxu0 0.0
        %886 = vmatprep.subr.mxu0 0.0
        %887 = vmatpush1.xpose.msra.mxu0 0.0
        %888 = vmatprep.subr.mxu0 0.0
        %889 = vmatpush1.xpose.msra.mxu0 0.0
        %890 = vmatprep.subr.mxu0 0.0
        %891 = vmatpush1.xpose.msra.mxu0 0.0
        %892 = vmatprep.subr.mxu0 0.0
        %893 = vmatpush1.xpose.msra.mxu0 0.0
        %894 = vmatprep.subr.mxu0 0.0
        %895 = vmatpush1.xpose.msra.mxu0 0.0
        %896 = vmatprep.subr.mxu0 0.0
        %897 = vmatpush1.xpose.msra.mxu0 0.0
        %898 = vmatprep.subr.mxu0 0.0
        %899 = vmatpush1.xpose.msra.mxu0 0.0
        %900 = vmatprep.mubr.f32.mxu0 0.0
        %901 = vmatmul.mubr.f32.gmra.mrb[0].mxu0 %v831
        %v902 = vpop.f32.mrb[0].mxu0
        %v903 = vadd.f32 0.0, %v902
        %v904 = vpop.f32.mrb[0].mxu0
        %905 = vdwg.mxu0
        %v906 = vadd.f32 %v829, %v903
        %907 = vst.msk [vmem:[#allocation6] sm:$0xff] %vm720, %v906
        %908 = vst.msk [vmem:[#allocation4] sm:$0xff] %vm821, %v803
        %s909 = scalar_lea.vmem [#allocation3], 8
        %v910 = vld [vmem:[%s909] sm:$0xff]
        %v911 = vrot.slane %v599, 4
        %v913 = vsel %vm720, %v910, 0
        %v915 = vsel %vm724, %v911, 0
        %917 = vmatprep.subr.mxu0 0.0
        %918 = vmatpush1.msra.mxu0 %v915
        %919 = vmatprep.subr.mxu0 0.0
        %920 = vmatpush1.msra.mxu0 0.0
        %921 = vmatprep.subr.mxu0 0.0
        %922 = vmatpush1.msra.mxu0 0.0
        %923 = vmatprep.subr.mxu0 0.0
        %924 = vmatpush1.msra.mxu0 0.0
        %925 = vmatprep.subr.mxu0 0.0
        %926 = vmatpush1.msra.mxu0 0.0
        %927 = vmatprep.subr.mxu0 0.0
        %928 = vmatpush1.msra.mxu0 0.0
        %929 = vmatprep.subr.mxu0 0.0
        %930 = vmatpush1.msra.mxu0 0.0
        %931 = vmatprep.subr.mxu0 0.0
        %932 = vmatpush1.msra.mxu0 0.0
        %933 = vmatprep.subr.mxu0 0.0
        %934 = vmatpush1.msra.mxu0 0.0
        %935 = vmatprep.subr.mxu0 0.0
        %936 = vmatpush1.msra.mxu0 0.0
        %937 = vmatprep.subr.mxu0 0.0
        %938 = vmatpush1.msra.mxu0 0.0
        %939 = vmatprep.subr.mxu0 0.0
        %940 = vmatpush1.msra.mxu0 0.0
        %941 = vmatprep.subr.mxu0 0.0
        %942 = vmatpush1.msra.mxu0 0.0
        %943 = vmatprep.subr.mxu0 0.0
        %944 = vmatpush1.msra.mxu0 0.0
        %945 = vmatprep.subr.mxu0 0.0
        %946 = vmatpush1.msra.mxu0 0.0
        %947 = vmatprep.subr.mxu0 0.0
        %948 = vmatpush1.msra.mxu0 0.0
        %949 = vmatprep.subr.mxu0 0.0
        %950 = vmatpush1.msra.mxu0 0.0
        %951 = vmatprep.subr.mxu0 0.0
        %952 = vmatpush1.msra.mxu0 0.0
        %953 = vmatprep.subr.mxu0 0.0
        %954 = vmatpush1.msra.mxu0 0.0
        %955 = vmatprep.subr.mxu0 0.0
        %956 = vmatpush1.msra.mxu0 0.0
        %957 = vmatprep.subr.mxu0 0.0
        %958 = vmatpush1.msra.mxu0 0.0
        %959 = vmatprep.subr.mxu0 0.0
        %960 = vmatpush1.msra.mxu0 0.0
        %961 = vmatprep.subr.mxu0 0.0
        %962 = vmatpush1.msra.mxu0 0.0
        %963 = vmatprep.subr.mxu0 0.0
        %964 = vmatpush1.msra.mxu0 0.0
        %965 = vmatprep.subr.mxu0 0.0
        %966 = vmatpush1.msra.mxu0 0.0
        %967 = vmatprep.subr.mxu0 0.0
        %968 = vmatpush1.msra.mxu0 0.0
        %969 = vmatprep.subr.mxu0 0.0
        %970 = vmatpush1.msra.mxu0 0.0
        %971 = vmatprep.subr.mxu0 0.0
        %972 = vmatpush1.msra.mxu0 0.0
        %973 = vmatprep.subr.mxu0 0.0
        %974 = vmatpush1.msra.mxu0 0.0
        %975 = vmatprep.subr.mxu0 0.0
        %976 = vmatpush1.msra.mxu0 0.0
        %977 = vmatprep.subr.mxu0 0.0
        %978 = vmatpush1.msra.mxu0 0.0
        %979 = vmatprep.subr.mxu0 0.0
        %980 = vmatpush1.msra.mxu0 0.0
        %981 = vmatprep.mubr.f32.mxu0 0.0
        %982 = vmatmul.mubr.f32.gmra.mrb[0].mxu0 %v913
        %v983 = vpop.f32.mrb[0].mxu0
        %v984 = vadd.f32 0.0, %v983
        %v985 = vpop.f32.mrb[0].mxu0
        %986 = vdwg.mxu0
        %s987 = scalar_lea.vmem [#allocation4], 8
        %v988 = vld [vmem:[%s987] sm:$0xff]
        %v989 = vsel %vm799, %v984, -inf
        %990 = vmax.xlane.f32.xlu0 %v989
        %v991 = vpop.xlane.xlu0 %990
        %v992 = vmax.f32 %v988, %v991
        %v993 = vsub.f32 %v988, %v992
        %v994 = vmul.f32 %v993, 1.442695
        %v995 = vpow.pop %v994
        %997 = vset.pattern.permute.xlu0 0
        %998 = vperm.xlu0 %997, %v992
        %v999 = vpop.permute.xlu0 %998
        %v1001 = vsub.f32 %v984, %v999
        %v1002 = vmul.f32 %v1001, 1.442695
        %v1003 = vpow.pop %v1002
        %s1004 = scalar_lea.vmem [#allocation5], 8
        %v1005 = vld [vmem:[%s1004] sm:$0xff]
        %v1006 = vmul.f32 %v995, %v1005
        %v1007 = vsel %vm799, %v1003, 0.0
        %1008 = vadd.xlane.f32.xlu0 %v1007
        %v1009 = vpop.xlane.xlu0 %1008
        %v1010 = vadd.f32 %v1006, %v1009
        %1011 = vst.msk [vmem:[%s1004] sm:$0xff] %vm821, %v1010
        %s1012 = scalar_lea.vmem [#allocation6], 8
        %v1013 = vld [vmem:[%s1012] sm:$0xff]
        %1015 = vset.pattern.permute.xlu0 0
        %1016 = vperm.xlu0 %1015, %v995
        %v1017 = vpop.permute.xlu0 %1016
        %v1019 = vmul.f32 %v1017, %v1013
        %v1020 = vrot.slane %v701, 4
        %v1022 = vsel %vm799, %v1003, 0
        %v1024 = vsel %vm799, %v1020, 0
        %1026 = vmatprep.subr.mxu0 0.0
        %1027 = vmatpush1.xpose.msra.mxu0 %v1024
        %1028 = vmatprep.subr.mxu0 0.0
        %1029 = vmatpush1.xpose.msra.mxu0 0.0
        %1030 = vmatprep.subr.mxu0 0.0
        %1031 = vmatpush1.xpose.msra.mxu0 0.0
        %1032 = vmatprep.subr.mxu0 0.0
        %1033 = vmatpush1.xpose.msra.mxu0 0.0
        %1034 = vmatprep.subr.mxu0 0.0
        %1035 = vmatpush1.xpose.msra.mxu0 0.0
        %1036 = vmatprep.subr.mxu0 0.0
        %1037 = vmatpush1.xpose.msra.mxu0 0.0
        %1038 = vmatprep.subr.mxu0 0.0
        %1039 = vmatpush1.xpose.msra.mxu0 0.0
        %1040 = vmatprep.subr.mxu0 0.0
        %1041 = vmatpush1.xpose.msra.mxu0 0.0
        %1042 = vmatprep.subr.mxu0 0.0
        %1043 = vmatpush1.xpose.msra.mxu0 0.0
        %1044 = vmatprep.subr.mxu0 0.0
        %1045 = vmatpush1.xpose.msra.mxu0 0.0
        %1046 = vmatprep.subr.mxu0 0.0
        %1047 = vmatpush1.xpose.msra.mxu0 0.0
        %1048 = vmatprep.subr.mxu0 0.0
        %1049 = vmatpush1.xpose.msra.mxu0 0.0
        %1050 = vmatprep.subr.mxu0 0.0
        %1051 = vmatpush1.xpose.msra.mxu0 0.0
        %1052 = vmatprep.subr.mxu0 0.0
        %1053 = vmatpush1.xpose.msra.mxu0 0.0
        %1054 = vmatprep.subr.mxu0 0.0
        %1055 = vmatpush1.xpose.msra.mxu0 0.0
        %1056 = vmatprep.subr.mxu0 0.0
        %1057 = vmatpush1.xpose.msra.mxu0 0.0
        %1058 = vmatprep.subr.mxu0 0.0
        %1059 = vmatpush1.xpose.msra.mxu0 0.0
        %1060 = vmatprep.subr.mxu0 0.0
        %1061 = vmatpush1.xpose.msra.mxu0 0.0
        %1062 = vmatprep.subr.mxu0 0.0
        %1063 = vmatpush1.xpose.msra.mxu0 0.0
        %1064 = vmatprep.subr.mxu0 0.0
        %1065 = vmatpush1.xpose.msra.mxu0 0.0
        %1066 = vmatprep.subr.mxu0 0.0
        %1067 = vmatpush1.xpose.msra.mxu0 0.0
        %1068 = vmatprep.subr.mxu0 0.0
        %1069 = vmatpush1.xpose.msra.mxu0 0.0
        %1070 = vmatprep.subr.mxu0 0.0
        %1071 = vmatpush1.xpose.msra.mxu0 0.0
        %1072 = vmatprep.subr.mxu0 0.0
        %1073 = vmatpush1.xpose.msra.mxu0 0.0
        %1074 = vmatprep.subr.mxu0 0.0
        %1075 = vmatpush1.xpose.msra.mxu0 0.0
        %1076 = vmatprep.subr.mxu0 0.0
        %1077 = vmatpush1.xpose.msra.mxu0 0.0
        %1078 = vmatprep.subr.mxu0 0.0
        %1079 = vmatpush1.xpose.msra.mxu0 0.0
        %1080 = vmatprep.subr.mxu0 0.0
        %1081 = vmatpush1.xpose.msra.mxu0 0.0
        %1082 = vmatprep.subr.mxu0 0.0
        %1083 = vmatpush1.xpose.msra.mxu0 0.0
        %1084 = vmatprep.subr.mxu0 0.0
        %1085 = vmatpush1.xpose.msra.mxu0 0.0
        %1086 = vmatprep.subr.mxu0 0.0
        %1087 = vmatpush1.xpose.msra.mxu0 0.0
        %1088 = vmatprep.subr.mxu0 0.0
        %1089 = vmatpush1.xpose.msra.mxu0 0.0
        %1090 = vmatprep.mubr.f32.mxu0 0.0
        %1091 = vmatmul.mubr.f32.gmra.mrb[0].mxu0 %v1022
        %v1092 = vpop.f32.mrb[0].mxu0
        %v1093 = vadd.f32 0.0, %v1092
        %v1094 = vpop.f32.mrb[0].mxu0
        %1095 = vdwg.mxu0
        %v1096 = vadd.f32 %v1019, %v1093
        %1097 = vst.msk [vmem:[%s1012] sm:$0xff] %vm720, %v1096
        %1098 = vst.msk [vmem:[%s987] sm:$0xff] %vm821, %v992
        %s1099 = scalar_lea.vmem [#allocation3], 16
        %v1100 = vld [vmem:[%s1099] sm:$0xff]
        %v1102 = vsel %vm720, %v1100, 0
        %v1105 = vsel %vm724, %v604, 0
        %1107 = vmatprep.subr.mxu0 0.0
        %1108 = vmatpush1.msra.mxu0 %v1105
        %1109 = vmatprep.subr.mxu0 0.0
        %1110 = vmatpush1.msra.mxu0 0.0
        %1111 = vmatprep.subr.mxu0 0.0
        %1112 = vmatpush1.msra.mxu0 0.0
        %1113 = vmatprep.subr.mxu0 0.0
        %1114 = vmatpush1.msra.mxu0 0.0
        %1115 = vmatprep.subr.mxu0 0.0
        %1116 = vmatpush1.msra.mxu0 0.0
        %1117 = vmatprep.subr.mxu0 0.0
        %1118 = vmatpush1.msra.mxu0 0.0
        %1119 = vmatprep.subr.mxu0 0.0
        %1120 = vmatpush1.msra.mxu0 0.0
        %1121 = vmatprep.subr.mxu0 0.0
        %1122 = vmatpush1.msra.mxu0 0.0
        %1123 = vmatprep.subr.mxu0 0.0
        %1124 = vmatpush1.msra.mxu0 0.0
        %1125 = vmatprep.subr.mxu0 0.0
        %1126 = vmatpush1.msra.mxu0 0.0
        %1127 = vmatprep.subr.mxu0 0.0
        %1128 = vmatpush1.msra.mxu0 0.0
        %1129 = vmatprep.subr.mxu0 0.0
        %1130 = vmatpush1.msra.mxu0 0.0
        %1131 = vmatprep.subr.mxu0 0.0
        %1132 = vmatpush1.msra.mxu0 0.0
        %1133 = vmatprep.subr.mxu0 0.0
        %1134 = vmatpush1.msra.mxu0 0.0
        %1135 = vmatprep.subr.mxu0 0.0
        %1136 = vmatpush1.msra.mxu0 0.0
        %1137 = vmatprep.subr.mxu0 0.0
        %1138 = vmatpush1.msra.mxu0 0.0
        %1139 = vmatprep.subr.mxu0 0.0
        %1140 = vmatpush1.msra.mxu0 0.0
        %1141 = vmatprep.subr.mxu0 0.0
        %1142 = vmatpush1.msra.mxu0 0.0
        %1143 = vmatprep.subr.mxu0 0.0
        %1144 = vmatpush1.msra.mxu0 0.0
        %1145 = vmatprep.subr.mxu0 0.0
        %1146 = vmatpush1.msra.mxu0 0.0
        %1147 = vmatprep.subr.mxu0 0.0
        %1148 = vmatpush1.msra.mxu0 0.0
        %1149 = vmatprep.subr.mxu0 0.0
        %1150 = vmatpush1.msra.mxu0 0.0
        %1151 = vmatprep.subr.mxu0 0.0
        %1152 = vmatpush1.msra.mxu0 0.0
        %1153 = vmatprep.subr.mxu0 0.0
        %1154 = vmatpush1.msra.mxu0 0.0
        %1155 = vmatprep.subr.mxu0 0.0
        %1156 = vmatpush1.msra.mxu0 0.0
        %1157 = vmatprep.subr.mxu0 0.0
        %1158 = vmatpush1.msra.mxu0 0.0
        %1159 = vmatprep.subr.mxu0 0.0
        %1160 = vmatpush1.msra.mxu0 0.0
        %1161 = vmatprep.subr.mxu0 0.0
        %1162 = vmatpush1.msra.mxu0 0.0
        %1163 = vmatprep.subr.mxu0 0.0
        %1164 = vmatpush1.msra.mxu0 0.0
        %1165 = vmatprep.subr.mxu0 0.0
        %1166 = vmatpush1.msra.mxu0 0.0
        %1167 = vmatprep.subr.mxu0 0.0
        %1168 = vmatpush1.msra.mxu0 0.0
        %1169 = vmatprep.subr.mxu0 0.0
        %1170 = vmatpush1.msra.mxu0 0.0
        %1171 = vmatprep.mubr.f32.mxu0 0.0
        %1172 = vmatmul.mubr.f32.gmra.mrb[0].mxu0 %v1102
        %v1173 = vpop.f32.mrb[0].mxu0
        %v1174 = vadd.f32 0.0, %v1173
        %v1175 = vpop.f32.mrb[0].mxu0
        %1176 = vdwg.mxu0
        %s1177 = scalar_lea.vmem [#allocation4], 16
        %v1178 = vld [vmem:[%s1177] sm:$0xff]
        %v1179 = vsel %vm799, %v1174, -inf
        %1180 = vmax.xlane.f32.xlu0 %v1179
        %v1181 = vpop.xlane.xlu0 %1180
        %v1182 = vmax.f32 %v1178, %v1181
        %v1183 = vsub.f32 %v1178, %v1182
        %v1184 = vmul.f32 %v1183, 1.442695
        %v1185 = vpow.pop %v1184
        %1187 = vset.pattern.permute.xlu0 0
        %1188 = vperm.xlu0 %1187, %v1182
        %v1189 = vpop.permute.xlu0 %1188
        %v1191 = vsub.f32 %v1174, %v1189
        %v1192 = vmul.f32 %v1191, 1.442695
        %v1193 = vpow.pop %v1192
        %s1194 = scalar_lea.vmem [#allocation5], 16
        %v1195 = vld [vmem:[%s1194] sm:$0xff]
        %v1196 = vmul.f32 %v1185, %v1195
        %v1197 = vsel %vm799, %v1193, 0.0
        %1198 = vadd.xlane.f32.xlu0 %v1197
        %v1199 = vpop.xlane.xlu0 %1198
        %v1200 = vadd.f32 %v1196, %v1199
        %1201 = vst.msk [vmem:[%s1194] sm:$0xff] %vm821, %v1200
        %s1202 = scalar_lea.vmem [#allocation6], 16
        %v1203 = vld [vmem:[%s1202] sm:$0xff]
        %1205 = vset.pattern.permute.xlu0 0
        %1206 = vperm.xlu0 %1205, %v1185
        %v1207 = vpop.permute.xlu0 %1206
        %v1209 = vmul.f32 %v1207, %v1203
        %v1211 = vsel %vm799, %v1193, 0
        %v1214 = vsel %vm799, %v706, 0
        %1216 = vmatprep.subr.mxu0 0.0
        %1217 = vmatpush1.xpose.msra.mxu0 %v1214
        %1218 = vmatprep.subr.mxu0 0.0
        %1219 = vmatpush1.xpose.msra.mxu0 0.0
        %1220 = vmatprep.subr.mxu0 0.0
        %1221 = vmatpush1.xpose.msra.mxu0 0.0
        %1222 = vmatprep.subr.mxu0 0.0
        %1223 = vmatpush1.xpose.msra.mxu0 0.0
        %1224 = vmatprep.subr.mxu0 0.0
        %1225 = vmatpush1.xpose.msra.mxu0 0.0
        %1226 = vmatprep.subr.mxu0 0.0
        %1227 = vmatpush1.xpose.msra.mxu0 0.0
        %1228 = vmatprep.subr.mxu0 0.0
        %1229 = vmatpush1.xpose.msra.mxu0 0.0
        %1230 = vmatprep.subr.mxu0 0.0
        %1231 = vmatpush1.xpose.msra.mxu0 0.0
        %1232 = vmatprep.subr.mxu0 0.0
        %1233 = vmatpush1.xpose.msra.mxu0 0.0
        %1234 = vmatprep.subr.mxu0 0.0
        %1235 = vmatpush1.xpose.msra.mxu0 0.0
        %1236 = vmatprep.subr.mxu0 0.0
        %1237 = vmatpush1.xpose.msra.mxu0 0.0
        %1238 = vmatprep.subr.mxu0 0.0
        %1239 = vmatpush1.xpose.msra.mxu0 0.0
        %1240 = vmatprep.subr.mxu0 0.0
        %1241 = vmatpush1.xpose.msra.mxu0 0.0
        %1242 = vmatprep.subr.mxu0 0.0
        %1243 = vmatpush1.xpose.msra.mxu0 0.0
        %1244 = vmatprep.subr.mxu0 0.0
        %1245 = vmatpush1.xpose.msra.mxu0 0.0
        %1246 = vmatprep.subr.mxu0 0.0
        %1247 = vmatpush1.xpose.msra.mxu0 0.0
        %1248 = vmatprep.subr.mxu0 0.0
        %1249 = vmatpush1.xpose.msra.mxu0 0.0
        %1250 = vmatprep.subr.mxu0 0.0
        %1251 = vmatpush1.xpose.msra.mxu0 0.0
        %1252 = vmatprep.subr.mxu0 0.0
        %1253 = vmatpush1.xpose.msra.mxu0 0.0
        %1254 = vmatprep.subr.mxu0 0.0
        %1255 = vmatpush1.xpose.msra.mxu0 0.0
        %1256 = vmatprep.subr.mxu0 0.0
        %1257 = vmatpush1.xpose.msra.mxu0 0.0
        %1258 = vmatprep.subr.mxu0 0.0
        %1259 = vmatpush1.xpose.msra.mxu0 0.0
        %1260 = vmatprep.subr.mxu0 0.0
        %1261 = vmatpush1.xpose.msra.mxu0 0.0
        %1262 = vmatprep.subr.mxu0 0.0
        %1263 = vmatpush1.xpose.msra.mxu0 0.0
        %1264 = vmatprep.subr.mxu0 0.0
        %1265 = vmatpush1.xpose.msra.mxu0 0.0
        %1266 = vmatprep.subr.mxu0 0.0
        %1267 = vmatpush1.xpose.msra.mxu0 0.0
        %1268 = vmatprep.subr.mxu0 0.0
        %1269 = vmatpush1.xpose.msra.mxu0 0.0
        %1270 = vmatprep.subr.mxu0 0.0
        %1271 = vmatpush1.xpose.msra.mxu0 0.0
        %1272 = vmatprep.subr.mxu0 0.0
        %1273 = vmatpush1.xpose.msra.mxu0 0.0
        %1274 = vmatprep.subr.mxu0 0.0
        %1275 = vmatpush1.xpose.msra.mxu0 0.0
        %1276 = vmatprep.subr.mxu0 0.0
        %1277 = vmatpush1.xpose.msra.mxu0 0.0
        %1278 = vmatprep.subr.mxu0 0.0
        %1279 = vmatpush1.xpose.msra.mxu0 0.0
        %1280 = vmatprep.mubr.f32.mxu0 0.0
        %1281 = vmatmul.mubr.f32.gmra.mrb[0].mxu0 %v1211
        %v1282 = vpop.f32.mrb[0].mxu0
        %v1283 = vadd.f32 0.0, %v1282
        %v1284 = vpop.f32.mrb[0].mxu0
        %1285 = vdwg.mxu0
        %v1286 = vadd.f32 %v1209, %v1283
        %1287 = vst.msk [vmem:[%s1202] sm:$0xff] %vm720, %v1286
        %1288 = vst.msk [vmem:[%s1177] sm:$0xff] %vm821, %v1182
        %s1289 = scalar_lea.vmem [#allocation3], 24
        %v1290 = vld [vmem:[%s1289] sm:$0xff]
        %v1291 = vrot.slane %v604, 4
        %v1293 = vsel %vm720, %v1290, 0
        %v1295 = vsel %vm724, %v1291, 0
        %1297 = vmatprep.subr.mxu0 0.0
        %1298 = vmatpush1.msra.mxu0 %v1295
        %1299 = vmatprep.subr.mxu0 0.0
        %1300 = vmatpush1.msra.mxu0 0.0
        %1301 = vmatprep.subr.mxu0 0.0
        %1302 = vmatpush1.msra.mxu0 0.0
        %1303 = vmatprep.subr.mxu0 0.0
        %1304 = vmatpush1.msra.mxu0 0.0
        %1305 = vmatprep.subr.mxu0 0.0
        %1306 = vmatpush1.msra.mxu0 0.0
        %1307 = vmatprep.subr.mxu0 0.0
        %1308 = vmatpush1.msra.mxu0 0.0
        %1309 = vmatprep.subr.mxu0 0.0
        %1310 = vmatpush1.msra.mxu0 0.0
        %1311 = vmatprep.subr.mxu0 0.0
        %1312 = vmatpush1.msra.mxu0 0.0
        %1313 = vmatprep.subr.mxu0 0.0
        %1314 = vmatpush1.msra.mxu0 0.0
        %1315 = vmatprep.subr.mxu0 0.0
        %1316 = vmatpush1.msra.mxu0 0.0
        %1317 = vmatprep.subr.mxu0 0.0
        %1318 = vmatpush1.msra.mxu0 0.0
        %1319 = vmatprep.subr.mxu0 0.0
        %1320 = vmatpush1.msra.mxu0 0.0
        %1321 = vmatprep.subr.mxu0 0.0
        %1322 = vmatpush1.msra.mxu0 0.0
        %1323 = vmatprep.subr.mxu0 0.0
        %1324 = vmatpush1.msra.mxu0 0.0
        %1325 = vmatprep.subr.mxu0 0.0
        %1326 = vmatpush1.msra.mxu0 0.0
        %1327 = vmatprep.subr.mxu0 0.0
        %1328 = vmatpush1.msra.mxu0 0.0
        %1329 = vmatprep.subr.mxu0 0.0
        %1330 = vmatpush1.msra.mxu0 0.0
        %1331 = vmatprep.subr.mxu0 0.0
        %1332 = vmatpush1.msra.mxu0 0.0
        %1333 = vmatprep.subr.mxu0 0.0
        %1334 = vmatpush1.msra.mxu0 0.0
        %1335 = vmatprep.subr.mxu0 0.0
        %1336 = vmatpush1.msra.mxu0 0.0
        %1337 = vmatprep.subr.mxu0 0.0
        %1338 = vmatpush1.msra.mxu0 0.0
        %1339 = vmatprep.subr.mxu0 0.0
        %1340 = vmatpush1.msra.mxu0 0.0
        %1341 = vmatprep.subr.mxu0 0.0
        %1342 = vmatpush1.msra.mxu0 0.0
        %1343 = vmatprep.subr.mxu0 0.0
        %1344 = vmatpush1.msra.mxu0 0.0
        %1345 = vmatprep.subr.mxu0 0.0
        %1346 = vmatpush1.msra.mxu0 0.0
        %1347 = vmatprep.subr.mxu0 0.0
        %1348 = vmatpush1.msra.mxu0 0.0
        %1349 = vmatprep.subr.mxu0 0.0
        %1350 = vmatpush1.msra.mxu0 0.0
        %1351 = vmatprep.subr.mxu0 0.0
        %1352 = vmatpush1.msra.mxu0 0.0
        %1353 = vmatprep.subr.mxu0 0.0
        %1354 = vmatpush1.msra.mxu0 0.0
        %1355 = vmatprep.subr.mxu0 0.0
        %1356 = vmatpush1.msra.mxu0 0.0
        %1357 = vmatprep.subr.mxu0 0.0
        %1358 = vmatpush1.msra.mxu0 0.0
        %1359 = vmatprep.subr.mxu0 0.0
        %1360 = vmatpush1.msra.mxu0 0.0
        %1361 = vmatprep.mubr.f32.mxu0 0.0
        %1362 = vmatmul.mubr.f32.gmra.mrb[0].mxu0 %v1293
        %v1363 = vpop.f32.mrb[0].mxu0
        %v1364 = vadd.f32 0.0, %v1363
        %v1365 = vpop.f32.mrb[0].mxu0
        %1366 = vdwg.mxu0
        %s1367 = scalar_lea.vmem [#allocation4], 24
        %v1368 = vld [vmem:[%s1367] sm:$0xff]
        %v1369 = vsel %vm799, %v1364, -inf
        %1370 = vmax.xlane.f32.xlu0 %v1369
        %v1371 = vpop.xlane.xlu0 %1370
        %v1372 = vmax.f32 %v1368, %v1371
        %v1373 = vsub.f32 %v1368, %v1372
        %v1374 = vmul.f32 %v1373, 1.442695
        %v1375 = vpow.pop %v1374
        %1377 = vset.pattern.permute.xlu0 0
        %1378 = vperm.xlu0 %1377, %v1372
        %v1379 = vpop.permute.xlu0 %1378
        %v1381 = vsub.f32 %v1364, %v1379
        %v1382 = vmul.f32 %v1381, 1.442695
        %v1383 = vpow.pop %v1382
        %s1384 = scalar_lea.vmem [#allocation5], 24
        %v1385 = vld [vmem:[%s1384] sm:$0xff]
        %v1386 = vmul.f32 %v1375, %v1385
        %v1387 = vsel %vm799, %v1383, 0.0
        %1388 = vadd.xlane.f32.xlu0 %v1387
        %v1389 = vpop.xlane.xlu0 %1388
        %v1390 = vadd.f32 %v1386, %v1389
        %1391 = vst.msk [vmem:[%s1384] sm:$0xff] %vm821, %v1390
        %s1392 = scalar_lea.vmem [#allocation6], 24
        %v1393 = vld [vmem:[%s1392] sm:$0xff]
        %1395 = vset.pattern.permute.xlu0 0
        %1396 = vperm.xlu0 %1395, %v1375
        %v1397 = vpop.permute.xlu0 %1396
        %v1399 = vmul.f32 %v1397, %v1393
        %v1400 = vrot.slane %v706, 4
        %v1402 = vsel %vm799, %v1383, 0
        %v1404 = vsel %vm799, %v1400, 0
        %1406 = vmatprep.subr.mxu0 0.0
        %1407 = vmatpush1.xpose.msra.mxu0 %v1404
        %1408 = vmatprep.subr.mxu0 0.0
        %1409 = vmatpush1.xpose.msra.mxu0 0.0
        %1410 = vmatprep.subr.mxu0 0.0
        %1411 = vmatpush1.xpose.msra.mxu0 0.0
        %1412 = vmatprep.subr.mxu0 0.0
        %1413 = vmatpush1.xpose.msra.mxu0 0.0
        %1414 = vmatprep.subr.mxu0 0.0
        %1415 = vmatpush1.xpose.msra.mxu0 0.0
        %1416 = vmatprep.subr.mxu0 0.0
        %1417 = vmatpush1.xpose.msra.mxu0 0.0
        %1418 = vmatprep.subr.mxu0 0.0
        %1419 = vmatpush1.xpose.msra.mxu0 0.0
        %1420 = vmatprep.subr.mxu0 0.0
        %1421 = vmatpush1.xpose.msra.mxu0 0.0
        %1422 = vmatprep.subr.mxu0 0.0
        %1423 = vmatpush1.xpose.msra.mxu0 0.0
        %1424 = vmatprep.subr.mxu0 0.0
        %1425 = vmatpush1.xpose.msra.mxu0 0.0
        %1426 = vmatprep.subr.mxu0 0.0
        %1427 = vmatpush1.xpose.msra.mxu0 0.0
        %1428 = vmatprep.subr.mxu0 0.0
        %1429 = vmatpush1.xpose.msra.mxu0 0.0
        %1430 = vmatprep.subr.mxu0 0.0
        %1431 = vmatpush1.xpose.msra.mxu0 0.0
        %1432 = vmatprep.subr.mxu0 0.0
        %1433 = vmatpush1.xpose.msra.mxu0 0.0
        %1434 = vmatprep.subr.mxu0 0.0
        %1435 = vmatpush1.xpose.msra.mxu0 0.0
        %1436 = vmatprep.subr.mxu0 0.0
        %1437 = vmatpush1.xpose.msra.mxu0 0.0
        %1438 = vmatprep.subr.mxu0 0.0
        %1439 = vmatpush1.xpose.msra.mxu0 0.0
        %1440 = vmatprep.subr.mxu0 0.0
        %1441 = vmatpush1.xpose.msra.mxu0 0.0
        %1442 = vmatprep.subr.mxu0 0.0
        %1443 = vmatpush1.xpose.msra.mxu0 0.0
        %1444 = vmatprep.subr.mxu0 0.0
        %1445 = vmatpush1.xpose.msra.mxu0 0.0
        %1446 = vmatprep.subr.mxu0 0.0
        %1447 = vmatpush1.xpose.msra.mxu0 0.0
        %1448 = vmatprep.subr.mxu0 0.0
        %1449 = vmatpush1.xpose.msra.mxu0 0.0
        %1450 = vmatprep.subr.mxu0 0.0
        %1451 = vmatpush1.xpose.msra.mxu0 0.0
        %1452 = vmatprep.subr.mxu0 0.0
        %1453 = vmatpush1.xpose.msra.mxu0 0.0
        %1454 = vmatprep.subr.mxu0 0.0
        %1455 = vmatpush1.xpose.msra.mxu0 0.0
        %1456 = vmatprep.subr.mxu0 0.0
        %1457 = vmatpush1.xpose.msra.mxu0 0.0
        %1458 = vmatprep.subr.mxu0 0.0
        %1459 = vmatpush1.xpose.msra.mxu0 0.0
        %1460 = vmatprep.subr.mxu0 0.0
        %1461 = vmatpush1.xpose.msra.mxu0 0.0
        %1462 = vmatprep.subr.mxu0 0.0
        %1463 = vmatpush1.xpose.msra.mxu0 0.0
        %1464 = vmatprep.subr.mxu0 0.0
        %1465 = vmatpush1.xpose.msra.mxu0 0.0
        %1466 = vmatprep.subr.mxu0 0.0
        %1467 = vmatpush1.xpose.msra.mxu0 0.0
        %1468 = vmatprep.subr.mxu0 0.0
        %1469 = vmatpush1.xpose.msra.mxu0 0.0
        %1470 = vmatprep.mubr.f32.mxu0 0.0
        %1471 = vmatmul.mubr.f32.gmra.mrb[0].mxu0 %v1402
        %v1472 = vpop.f32.mrb[0].mxu0
        %v1473 = vadd.f32 0.0, %v1472
        %v1474 = vpop.f32.mrb[0].mxu0
        %1475 = vdwg.mxu0
        %v1476 = vadd.f32 %v1399, %v1473
        %1477 = vst.msk [vmem:[%s1392] sm:$0xff] %vm720, %v1476
        %1478 = vst.msk [vmem:[%s1367] sm:$0xff] %vm821, %v1372
        %s1479 = scalar_lea.vmem [#allocation3], 32
        %v1480 = vld [vmem:[%s1479] sm:$0xff]
        %v1482 = vsel %vm720, %v1480, 0
        %v1485 = vsel %vm724, %v609, 0
        %1487 = vmatprep.subr.mxu0 0.0
        %1488 = vmatpush1.msra.mxu0 %v1485
        %1489 = vmatprep.subr.mxu0 0.0
        %1490 = vmatpush1.msra.mxu0 0.0
        %1491 = vmatprep.subr.mxu0 0.0
        %1492 = vmatpush1.msra.mxu0 0.0
        %1493 = vmatprep.subr.mxu0 0.0
        %1494 = vmatpush1.msra.mxu0 0.0
        %1495 = vmatprep.subr.mxu0 0.0
        %1496 = vmatpush1.msra.mxu0 0.0
        %1497 = vmatprep.subr.mxu0 0.0
        %1498 = vmatpush1.msra.mxu0 0.0
        %1499 = vmatprep.subr.mxu0 0.0
        %1500 = vmatpush1.msra.mxu0 0.0
        %1501 = vmatprep.subr.mxu0 0.0
        %1502 = vmatpush1.msra.mxu0 0.0
        %1503 = vmatprep.subr.mxu0 0.0
        %1504 = vmatpush1.msra.mxu0 0.0
        %1505 = vmatprep.subr.mxu0 0.0
        %1506 = vmatpush1.msra.mxu0 0.0
        %1507 = vmatprep.subr.mxu0 0.0
        %1508 = vmatpush1.msra.mxu0 0.0
        %1509 = vmatprep.subr.mxu0 0.0
        %1510 = vmatpush1.msra.mxu0 0.0
        %1511 = vmatprep.subr.mxu0 0.0
        %1512 = vmatpush1.msra.mxu0 0.0
        %1513 = vmatprep.subr.mxu0 0.0
        %1514 = vmatpush1.msra.mxu0 0.0
        %1515 = vmatprep.subr.mxu0 0.0
        %1516 = vmatpush1.msra.mxu0 0.0
        %1517 = vmatprep.subr.mxu0 0.0
        %1518 = vmatpush1.msra.mxu0 0.0
        %1519 = vmatprep.subr.mxu0 0.0
        %1520 = vmatpush1.msra.mxu0 0.0
        %1521 = vmatprep.subr.mxu0 0.0
        %1522 = vmatpush1.msra.mxu0 0.0
        %1523 = vmatprep.subr.mxu0 0.0
        %1524 = vmatpush1.msra.mxu0 0.0
        %1525 = vmatprep.subr.mxu0 0.0
        %1526 = vmatpush1.msra.mxu0 0.0
        %1527 = vmatprep.subr.mxu0 0.0
        %1528 = vmatpush1.msra.mxu0 0.0
        %1529 = vmatprep.subr.mxu0 0.0
        %1530 = vmatpush1.msra.mxu0 0.0
        %1531 = vmatprep.subr.mxu0 0.0
        %1532 = vmatpush1.msra.mxu0 0.0
        %1533 = vmatprep.subr.mxu0 0.0
        %1534 = vmatpush1.msra.mxu0 0.0
        %1535 = vmatprep.subr.mxu0 0.0
        %1536 = vmatpush1.msra.mxu0 0.0
        %1537 = vmatprep.subr.mxu0 0.0
        %1538 = vmatpush1.msra.mxu0 0.0
        %1539 = vmatprep.subr.mxu0 0.0
        %1540 = vmatpush1.msra.mxu0 0.0
        %1541 = vmatprep.subr.mxu0 0.0
        %1542 = vmatpush1.msra.mxu0 0.0
        %1543 = vmatprep.subr.mxu0 0.0
        %1544 = vmatpush1.msra.mxu0 0.0
        %1545 = vmatprep.subr.mxu0 0.0
        %1546 = vmatpush1.msra.mxu0 0.0
        %1547 = vmatprep.subr.mxu0 0.0
        %1548 = vmatpush1.msra.mxu0 0.0
        %1549 = vmatprep.subr.mxu0 0.0
        %1550 = vmatpush1.msra.mxu0 0.0
        %1551 = vmatprep.mubr.f32.mxu0 0.0
        %1552 = vmatmul.mubr.f32.gmra.mrb[0].mxu0 %v1482
        %v1553 = vpop.f32.mrb[0].mxu0
        %v1554 = vadd.f32 0.0, %v1553
        %v1555 = vpop.f32.mrb[0].mxu0
        %1556 = vdwg.mxu0
        %s1557 = scalar_lea.vmem [#allocation4], 32
        %v1558 = vld [vmem:[%s1557] sm:$0xff]
        %v1559 = vsel %vm799, %v1554, -inf
        %1560 = vmax.xlane.f32.xlu0 %v1559
        %v1561 = vpop.xlane.xlu0 %1560
        %v1562 = vmax.f32 %v1558, %v1561
        %v1563 = vsub.f32 %v1558, %v1562
        %v1564 = vmul.f32 %v1563, 1.442695
        %v1565 = vpow.pop %v1564
        %1567 = vset.pattern.permute.xlu0 0
        %1568 = vperm.xlu0 %1567, %v1562
        %v1569 = vpop.permute.xlu0 %1568
        %v1571 = vsub.f32 %v1554, %v1569
        %v1572 = vmul.f32 %v1571, 1.442695
        %v1573 = vpow.pop %v1572
        %s1574 = scalar_lea.vmem [#allocation5], 32
        %v1575 = vld [vmem:[%s1574] sm:$0xff]
        %v1576 = vmul.f32 %v1565, %v1575
        %v1577 = vsel %vm799, %v1573, 0.0
        %1578 = vadd.xlane.f32.xlu0 %v1577
        %v1579 = vpop.xlane.xlu0 %1578
        %v1580 = vadd.f32 %v1576, %v1579
        %1581 = vst.msk [vmem:[%s1574] sm:$0xff] %vm821, %v1580
        %s1582 = scalar_lea.vmem [#allocation6], 32
        %v1583 = vld [vmem:[%s1582] sm:$0xff]
        %1585 = vset.pattern.permute.xlu0 0
        %1586 = vperm.xlu0 %1585, %v1565
        %v1587 = vpop.permute.xlu0 %1586
        %v1589 = vmul.f32 %v1587, %v1583
        %v1591 = vsel %vm799, %v1573, 0
        %v1594 = vsel %vm799, %v711, 0
        %1596 = vmatprep.subr.mxu0 0.0
        %1597 = vmatpush1.xpose.msra.mxu0 %v1594
        %1598 = vmatprep.subr.mxu0 0.0
        %1599 = vmatpush1.xpose.msra.mxu0 0.0
        %1600 = vmatprep.subr.mxu0 0.0
        %1601 = vmatpush1.xpose.msra.mxu0 0.0
        %1602 = vmatprep.subr.mxu0 0.0
        %1603 = vmatpush1.xpose.msra.mxu0 0.0
        %1604 = vmatprep.subr.mxu0 0.0
        %1605 = vmatpush1.xpose.msra.mxu0 0.0
        %1606 = vmatprep.subr.mxu0 0.0
        %1607 = vmatpush1.xpose.msra.mxu0 0.0
        %1608 = vmatprep.subr.mxu0 0.0
        %1609 = vmatpush1.xpose.msra.mxu0 0.0
        %1610 = vmatprep.subr.mxu0 0.0
        %1611 = vmatpush1.xpose.msra.mxu0 0.0
        %1612 = vmatprep.subr.mxu0 0.0
        %1613 = vmatpush1.xpose.msra.mxu0 0.0
        %1614 = vmatprep.subr.mxu0 0.0
        %1615 = vmatpush1.xpose.msra.mxu0 0.0
        %1616 = vmatprep.subr.mxu0 0.0
        %1617 = vmatpush1.xpose.msra.mxu0 0.0
        %1618 = vmatprep.subr.mxu0 0.0
        %1619 = vmatpush1.xpose.msra.mxu0 0.0
        %1620 = vmatprep.subr.mxu0 0.0
        %1621 = vmatpush1.xpose.msra.mxu0 0.0
        %1622 = vmatprep.subr.mxu0 0.0
        %1623 = vmatpush1.xpose.msra.mxu0 0.0
        %1624 = vmatprep.subr.mxu0 0.0
        %1625 = vmatpush1.xpose.msra.mxu0 0.0
        %1626 = vmatprep.subr.mxu0 0.0
        %1627 = vmatpush1.xpose.msra.mxu0 0.0
        %1628 = vmatprep.subr.mxu0 0.0
        %1629 = vmatpush1.xpose.msra.mxu0 0.0
        %1630 = vmatprep.subr.mxu0 0.0
        %1631 = vmatpush1.xpose.msra.mxu0 0.0
        %1632 = vmatprep.subr.mxu0 0.0
        %1633 = vmatpush1.xpose.msra.mxu0 0.0
        %1634 = vmatprep.subr.mxu0 0.0
        %1635 = vmatpush1.xpose.msra.mxu0 0.0
        %1636 = vmatprep.subr.mxu0 0.0
        %1637 = vmatpush1.xpose.msra.mxu0 0.0
        %1638 = vmatprep.subr.mxu0 0.0
        %1639 = vmatpush1.xpose.msra.mxu0 0.0
        %1640 = vmatprep.subr.mxu0 0.0
        %1641 = vmatpush1.xpose.msra.mxu0 0.0
        %1642 = vmatprep.subr.mxu0 0.0
        %1643 = vmatpush1.xpose.msra.mxu0 0.0
        %1644 = vmatprep.subr.mxu0 0.0
        %1645 = vmatpush1.xpose.msra.mxu0 0.0
        %1646 = vmatprep.subr.mxu0 0.0
        %1647 = vmatpush1.xpose.msra.mxu0 0.0
        %1648 = vmatprep.subr.mxu0 0.0
        %1649 = vmatpush1.xpose.msra.mxu0 0.0
        %1650 = vmatprep.subr.mxu0 0.0
        %1651 = vmatpush1.xpose.msra.mxu0 0.0
        %1652 = vmatprep.subr.mxu0 0.0
        %1653 = vmatpush1.xpose.msra.mxu0 0.0
        %1654 = vmatprep.subr.mxu0 0.0
        %1655 = vmatpush1.xpose.msra.mxu0 0.0
        %1656 = vmatprep.subr.mxu0 0.0
        %1657 = vmatpush1.xpose.msra.mxu0 0.0
        %1658 = vmatprep.subr.mxu0 0.0
        %1659 = vmatpush1.xpose.msra.mxu0 0.0
        %1660 = vmatprep.mubr.f32.mxu0 0.0
        %1661 = vmatmul.mubr.f32.gmra.mrb[0].mxu0 %v1591
        %v1662 = vpop.f32.mrb[0].mxu0
        %v1663 = vadd.f32 0.0, %v1662
        %v1664 = vpop.f32.mrb[0].mxu0
        %1665 = vdwg.mxu0
        %v1666 = vadd.f32 %v1589, %v1663
        %1667 = vst.msk [vmem:[%s1582] sm:$0xff] %vm720, %v1666
        %1668 = vst.msk [vmem:[%s1557] sm:$0xff] %vm821, %v1562
        %s1669 = scalar_lea.vmem [#allocation3], 40
        %v1670 = vld [vmem:[%s1669] sm:$0xff]
        %v1671 = vrot.slane %v609, 4
        %v1673 = vsel %vm720, %v1670, 0
        %v1675 = vsel %vm724, %v1671, 0
        %1677 = vmatprep.subr.mxu0 0.0
        %1678 = vmatpush1.msra.mxu0 %v1675
        %1679 = vmatprep.subr.mxu0 0.0
        %1680 = vmatpush1.msra.mxu0 0.0
        %1681 = vmatprep.subr.mxu0 0.0
        %1682 = vmatpush1.msra.mxu0 0.0
        %1683 = vmatprep.subr.mxu0 0.0
        %1684 = vmatpush1.msra.mxu0 0.0
        %1685 = vmatprep.subr.mxu0 0.0
        %1686 = vmatpush1.msra.mxu0 0.0
        %1687 = vmatprep.subr.mxu0 0.0
        %1688 = vmatpush1.msra.mxu0 0.0
        %1689 = vmatprep.subr.mxu0 0.0
        %1690 = vmatpush1.msra.mxu0 0.0
        %1691 = vmatprep.subr.mxu0 0.0
        %1692 = vmatpush1.msra.mxu0 0.0
        %1693 = vmatprep.subr.mxu0 0.0
        %1694 = vmatpush1.msra.mxu0 0.0
        %1695 = vmatprep.subr.mxu0 0.0
        %1696 = vmatpush1.msra.mxu0 0.0
        %1697 = vmatprep.subr.mxu0 0.0
        %1698 = vmatpush1.msra.mxu0 0.0
        %1699 = vmatprep.subr.mxu0 0.0
        %1700 = vmatpush1.msra.mxu0 0.0
        %1701 = vmatprep.subr.mxu0 0.0
        %1702 = vmatpush1.msra.mxu0 0.0
        %1703 = vmatprep.subr.mxu0 0.0
        %1704 = vmatpush1.msra.mxu0 0.0
        %1705 = vmatprep.subr.mxu0 0.0
        %1706 = vmatpush1.msra.mxu0 0.0
        %1707 = vmatprep.subr.mxu0 0.0
        %1708 = vmatpush1.msra.mxu0 0.0
        %1709 = vmatprep.subr.mxu0 0.0
        %1710 = vmatpush1.msra.mxu0 0.0
        %1711 = vmatprep.subr.mxu0 0.0
        %1712 = vmatpush1.msra.mxu0 0.0
        %1713 = vmatprep.subr.mxu0 0.0
        %1714 = vmatpush1.msra.mxu0 0.0
        %1715 = vmatprep.subr.mxu0 0.0
        %1716 = vmatpush1.msra.mxu0 0.0
        %1717 = vmatprep.subr.mxu0 0.0
        %1718 = vmatpush1.msra.mxu0 0.0
        %1719 = vmatprep.subr.mxu0 0.0
        %1720 = vmatpush1.msra.mxu0 0.0
        %1721 = vmatprep.subr.mxu0 0.0
        %1722 = vmatpush1.msra.mxu0 0.0
        %1723 = vmatprep.subr.mxu0 0.0
        %1724 = vmatpush1.msra.mxu0 0.0
        %1725 = vmatprep.subr.mxu0 0.0
        %1726 = vmatpush1.msra.mxu0 0.0
        %1727 = vmatprep.subr.mxu0 0.0
        %1728 = vmatpush1.msra.mxu0 0.0
        %1729 = vmatprep.subr.mxu0 0.0
        %1730 = vmatpush1.msra.mxu0 0.0
        %1731 = vmatprep.subr.mxu0 0.0
        %1732 = vmatpush1.msra.mxu0 0.0
        %1733 = vmatprep.subr.mxu0 0.0
        %1734 = vmatpush1.msra.mxu0 0.0
        %1735 = vmatprep.subr.mxu0 0.0
        %1736 = vmatpush1.msra.mxu0 0.0
        %1737 = vmatprep.subr.mxu0 0.0
        %1738 = vmatpush1.msra.mxu0 0.0
        %1739 = vmatprep.subr.mxu0 0.0
        %1740 = vmatpush1.msra.mxu0 0.0
        %1741 = vmatprep.mubr.f32.mxu0 0.0
        %1742 = vmatmul.mubr.f32.gmra.mrb[0].mxu0 %v1673
        %v1743 = vpop.f32.mrb[0].mxu0
        %v1744 = vadd.f32 0.0, %v1743
        %v1745 = vpop.f32.mrb[0].mxu0
        %1746 = vdwg.mxu0
        %s1747 = scalar_lea.vmem [#allocation4], 40
        %v1748 = vld [vmem:[%s1747] sm:$0xff]
        %v1749 = vsel %vm799, %v1744, -inf
        %1750 = vmax.xlane.f32.xlu0 %v1749
        %v1751 = vpop.xlane.xlu0 %1750
        %v1752 = vmax.f32 %v1748, %v1751
        %v1753 = vsub.f32 %v1748, %v1752
        %v1754 = vmul.f32 %v1753, 1.442695
        %v1755 = vpow.pop %v1754
        %1757 = vset.pattern.permute.xlu0 0
        %1758 = vperm.xlu0 %1757, %v1752
        %v1759 = vpop.permute.xlu0 %1758
        %v1761 = vsub.f32 %v1744, %v1759
        %v1762 = vmul.f32 %v1761, 1.442695
        %v1763 = vpow.pop %v1762
        %s1764 = scalar_lea.vmem [#allocation5], 40
        %v1765 = vld [vmem:[%s1764] sm:$0xff]
        %v1766 = vmul.f32 %v1755, %v1765
        %v1767 = vsel %vm799, %v1763, 0.0
        %1768 = vadd.xlane.f32.xlu0 %v1767
        %v1769 = vpop.xlane.xlu0 %1768
        %v1770 = vadd.f32 %v1766, %v1769
        %1771 = vst.msk [vmem:[%s1764] sm:$0xff] %vm821, %v1770
        %s1772 = scalar_lea.vmem [#allocation6], 40
        %v1773 = vld [vmem:[%s1772] sm:$0xff]
        %1775 = vset.pattern.permute.xlu0 0
        %1776 = vperm.xlu0 %1775, %v1755
        %v1777 = vpop.permute.xlu0 %1776
        %v1779 = vmul.f32 %v1777, %v1773
        %v1780 = vrot.slane %v711, 4
        %v1782 = vsel %vm799, %v1763, 0
        %v1784 = vsel %vm799, %v1780, 0
        %1786 = vmatprep.subr.mxu0 0.0
        %1787 = vmatpush1.xpose.msra.mxu0 %v1784
        %1788 = vmatprep.subr.mxu0 0.0
        %1789 = vmatpush1.xpose.msra.mxu0 0.0
        %1790 = vmatprep.subr.mxu0 0.0
        %1791 = vmatpush1.xpose.msra.mxu0 0.0
        %1792 = vmatprep.subr.mxu0 0.0
        %1793 = vmatpush1.xpose.msra.mxu0 0.0
        %1794 = vmatprep.subr.mxu0 0.0
        %1795 = vmatpush1.xpose.msra.mxu0 0.0
        %1796 = vmatprep.subr.mxu0 0.0
        %1797 = vmatpush1.xpose.msra.mxu0 0.0
        %1798 = vmatprep.subr.mxu0 0.0
        %1799 = vmatpush1.xpose.msra.mxu0 0.0
        %1800 = vmatprep.subr.mxu0 0.0
        %1801 = vmatpush1.xpose.msra.mxu0 0.0
        %1802 = vmatprep.subr.mxu0 0.0
        %1803 = vmatpush1.xpose.msra.mxu0 0.0
        %1804 = vmatprep.subr.mxu0 0.0
        %1805 = vmatpush1.xpose.msra.mxu0 0.0
        %1806 = vmatprep.subr.mxu0 0.0
        %1807 = vmatpush1.xpose.msra.mxu0 0.0
        %1808 = vmatprep.subr.mxu0 0.0
        %1809 = vmatpush1.xpose.msra.mxu0 0.0
        %1810 = vmatprep.subr.mxu0 0.0
        %1811 = vmatpush1.xpose.msra.mxu0 0.0
        %1812 = vmatprep.subr.mxu0 0.0
        %1813 = vmatpush1.xpose.msra.mxu0 0.0
        %1814 = vmatprep.subr.mxu0 0.0
        %1815 = vmatpush1.xpose.msra.mxu0 0.0
        %1816 = vmatprep.subr.mxu0 0.0
        %1817 = vmatpush1.xpose.msra.mxu0 0.0
        %1818 = vmatprep.subr.mxu0 0.0
        %1819 = vmatpush1.xpose.msra.mxu0 0.0
        %1820 = vmatprep.subr.mxu0 0.0
        %1821 = vmatpush1.xpose.msra.mxu0 0.0
        %1822 = vmatprep.subr.mxu0 0.0
        %1823 = vmatpush1.xpose.msra.mxu0 0.0
        %1824 = vmatprep.subr.mxu0 0.0
        %1825 = vmatpush1.xpose.msra.mxu0 0.0
        %1826 = vmatprep.subr.mxu0 0.0
        %1827 = vmatpush1.xpose.msra.mxu0 0.0
        %1828 = vmatprep.subr.mxu0 0.0
        %1829 = vmatpush1.xpose.msra.mxu0 0.0
        %1830 = vmatprep.subr.mxu0 0.0
        %1831 = vmatpush1.xpose.msra.mxu0 0.0
        %1832 = vmatprep.subr.mxu0 0.0
        %1833 = vmatpush1.xpose.msra.mxu0 0.0
        %1834 = vmatprep.subr.mxu0 0.0
        %1835 = vmatpush1.xpose.msra.mxu0 0.0
        %1836 = vmatprep.subr.mxu0 0.0
        %1837 = vmatpush1.xpose.msra.mxu0 0.0
        %1838 = vmatprep.subr.mxu0 0.0
        %1839 = vmatpush1.xpose.msra.mxu0 0.0
        %1840 = vmatprep.subr.mxu0 0.0
        %1841 = vmatpush1.xpose.msra.mxu0 0.0
        %1842 = vmatprep.subr.mxu0 0.0
        %1843 = vmatpush1.xpose.msra.mxu0 0.0
        %1844 = vmatprep.subr.mxu0 0.0
        %1845 = vmatpush1.xpose.msra.mxu0 0.0
        %1846 = vmatprep.subr.mxu0 0.0
        %1847 = vmatpush1.xpose.msra.mxu0 0.0
        %1848 = vmatprep.subr.mxu0 0.0
        %1849 = vmatpush1.xpose.msra.mxu0 0.0
        %1850 = vmatprep.mubr.f32.mxu0 0.0
        %1851 = vmatmul.mubr.f32.gmra.mrb[0].mxu0 %v1782
        %v1852 = vpop.f32.mrb[0].mxu0
        %v1853 = vadd.f32 0.0, %v1852
        %v1854 = vpop.f32.mrb[0].mxu0
        %1855 = vdwg.mxu0
        %v1856 = vadd.f32 %v1779, %v1853
        %1857 = vst.msk [vmem:[%s1772] sm:$0xff] %vm720, %v1856
        %1858 = vst.msk [vmem:[%s1747] sm:$0xff] %vm821, %v1752
        %s1859 = scalar_lea.vmem [#allocation3], 48
        %v1860 = vld [vmem:[%s1859] sm:$0xff]
        %v1862 = vsel %vm720, %v1860, 0
        %v1865 = vsel %vm724, %v614, 0
        %1867 = vmatprep.subr.mxu0 0.0
        %1868 = vmatpush1.msra.mxu0 %v1865
        %1869 = vmatprep.subr.mxu0 0.0
        %1870 = vmatpush1.msra.mxu0 0.0
        %1871 = vmatprep.subr.mxu0 0.0
        %1872 = vmatpush1.msra.mxu0 0.0
        %1873 = vmatprep.subr.mxu0 0.0
        %1874 = vmatpush1.msra.mxu0 0.0
        %1875 = vmatprep.subr.mxu0 0.0
        %1876 = vmatpush1.msra.mxu0 0.0
        %1877 = vmatprep.subr.mxu0 0.0
        %1878 = vmatpush1.msra.mxu0 0.0
        %1879 = vmatprep.subr.mxu0 0.0
        %1880 = vmatpush1.msra.mxu0 0.0
        %1881 = vmatprep.subr.mxu0 0.0
        %1882 = vmatpush1.msra.mxu0 0.0
        %1883 = vmatprep.subr.mxu0 0.0
        %1884 = vmatpush1.msra.mxu0 0.0
        %1885 = vmatprep.subr.mxu0 0.0
        %1886 = vmatpush1.msra.mxu0 0.0
        %1887 = vmatprep.subr.mxu0 0.0
        %1888 = vmatpush1.msra.mxu0 0.0
        %1889 = vmatprep.subr.mxu0 0.0
        %1890 = vmatpush1.msra.mxu0 0.0
        %1891 = vmatprep.subr.mxu0 0.0
        %1892 = vmatpush1.msra.mxu0 0.0
        %1893 = vmatprep.subr.mxu0 0.0
        %1894 = vmatpush1.msra.mxu0 0.0
        %1895 = vmatprep.subr.mxu0 0.0
        %1896 = vmatpush1.msra.mxu0 0.0
        %1897 = vmatprep.subr.mxu0 0.0
        %1898 = vmatpush1.msra.mxu0 0.0
        %1899 = vmatprep.subr.mxu0 0.0
        %1900 = vmatpush1.msra.mxu0 0.0
        %1901 = vmatprep.subr.mxu0 0.0
        %1902 = vmatpush1.msra.mxu0 0.0
        %1903 = vmatprep.subr.mxu0 0.0
        %1904 = vmatpush1.msra.mxu0 0.0
        %1905 = vmatprep.subr.mxu0 0.0
        %1906 = vmatpush1.msra.mxu0 0.0
        %1907 = vmatprep.subr.mxu0 0.0
        %1908 = vmatpush1.msra.mxu0 0.0
        %1909 = vmatprep.subr.mxu0 0.0
        %1910 = vmatpush1.msra.mxu0 0.0
        %1911 = vmatprep.subr.mxu0 0.0
        %1912 = vmatpush1.msra.mxu0 0.0
        %1913 = vmatprep.subr.mxu0 0.0
        %1914 = vmatpush1.msra.mxu0 0.0
        %1915 = vmatprep.subr.mxu0 0.0
        %1916 = vmatpush1.msra.mxu0 0.0
        %1917 = vmatprep.subr.mxu0 0.0
        %1918 = vmatpush1.msra.mxu0 0.0
        %1919 = vmatprep.subr.mxu0 0.0
        %1920 = vmatpush1.msra.mxu0 0.0
        %1921 = vmatprep.subr.mxu0 0.0
        %1922 = vmatpush1.msra.mxu0 0.0
        %1923 = vmatprep.subr.mxu0 0.0
        %1924 = vmatpush1.msra.mxu0 0.0
        %1925 = vmatprep.subr.mxu0 0.0
        %1926 = vmatpush1.msra.mxu0 0.0
        %1927 = vmatprep.subr.mxu0 0.0
        %1928 = vmatpush1.msra.mxu0 0.0
        %1929 = vmatprep.subr.mxu0 0.0
        %1930 = vmatpush1.msra.mxu0 0.0
        %1931 = vmatprep.mubr.f32.mxu0 0.0
        %1932 = vmatmul.mubr.f32.gmra.mrb[0].mxu0 %v1862
        %v1933 = vpop.f32.mrb[0].mxu0
        %v1934 = vadd.f32 0.0, %v1933
        %v1935 = vpop.f32.mrb[0].mxu0
        %1936 = vdwg.mxu0
        %s1937 = scalar_lea.vmem [#allocation4], 48
        %v1938 = vld [vmem:[%s1937] sm:$0xff]
        %v1939 = vsel %vm799, %v1934, -inf
        %1940 = vmax.xlane.f32.xlu0 %v1939
        %v1941 = vpop.xlane.xlu0 %1940
        %v1942 = vmax.f32 %v1938, %v1941
        %v1943 = vsub.f32 %v1938, %v1942
        %v1944 = vmul.f32 %v1943, 1.442695
        %v1945 = vpow.pop %v1944
        %1947 = vset.pattern.permute.xlu0 0
        %1948 = vperm.xlu0 %1947, %v1942
        %v1949 = vpop.permute.xlu0 %1948
        %v1951 = vsub.f32 %v1934, %v1949
        %v1952 = vmul.f32 %v1951, 1.442695
        %v1953 = vpow.pop %v1952
        %s1954 = scalar_lea.vmem [#allocation5], 48
        %v1955 = vld [vmem:[%s1954] sm:$0xff]
        %v1956 = vmul.f32 %v1945, %v1955
        %v1957 = vsel %vm799, %v1953, 0.0
        %1958 = vadd.xlane.f32.xlu0 %v1957
        %v1959 = vpop.xlane.xlu0 %1958
        %v1960 = vadd.f32 %v1956, %v1959
        %1961 = vst.msk [vmem:[%s1954] sm:$0xff] %vm821, %v1960
        %s1962 = scalar_lea.vmem [#allocation6], 48
        %v1963 = vld [vmem:[%s1962] sm:$0xff]
        %1965 = vset.pattern.permute.xlu0 0
        %1966 = vperm.xlu0 %1965, %v1945
        %v1967 = vpop.permute.xlu0 %1966
        %v1969 = vmul.f32 %v1967, %v1963
        %v1971 = vsel %vm799, %v1953, 0
        %v1974 = vsel %vm799, %v716, 0
        %1976 = vmatprep.subr.mxu0 0.0
        %1977 = vmatpush1.xpose.msra.mxu0 %v1974
        %1978 = vmatprep.subr.mxu0 0.0
        %1979 = vmatpush1.xpose.msra.mxu0 0.0
        %1980 = vmatprep.subr.mxu0 0.0
        %1981 = vmatpush1.xpose.msra.mxu0 0.0
        %1982 = vmatprep.subr.mxu0 0.0
        %1983 = vmatpush1.xpose.msra.mxu0 0.0
        %1984 = vmatprep.subr.mxu0 0.0
        %1985 = vmatpush1.xpose.msra.mxu0 0.0
        %1986 = vmatprep.subr.mxu0 0.0
        %1987 = vmatpush1.xpose.msra.mxu0 0.0
        %1988 = vmatprep.subr.mxu0 0.0
        %1989 = vmatpush1.xpose.msra.mxu0 0.0
        %1990 = vmatprep.subr.mxu0 0.0
        %1991 = vmatpush1.xpose.msra.mxu0 0.0
        %1992 = vmatprep.subr.mxu0 0.0
        %1993 = vmatpush1.xpose.msra.mxu0 0.0
        %1994 = vmatprep.subr.mxu0 0.0
        %1995 = vmatpush1.xpose.msra.mxu0 0.0
        %1996 = vmatprep.subr.mxu0 0.0
        %1997 = vmatpush1.xpose.msra.mxu0 0.0
        %1998 = vmatprep.subr.mxu0 0.0
        %1999 = vmatpush1.xpose.msra.mxu0 0.0
        %2000 = vmatprep.subr.mxu0 0.0
        %2001 = vmatpush1.xpose.msra.mxu0 0.0
        %2002 = vmatprep.subr.mxu0 0.0
        %2003 = vmatpush1.xpose.msra.mxu0 0.0
        %2004 = vmatprep.subr.mxu0 0.0
        %2005 = vmatpush1.xpose.msra.mxu0 0.0
        %2006 = vmatprep.subr.mxu0 0.0
        %2007 = vmatpush1.xpose.msra.mxu0 0.0
        %2008 = vmatprep.subr.mxu0 0.0
        %2009 = vmatpush1.xpose.msra.mxu0 0.0
        %2010 = vmatprep.subr.mxu0 0.0
        %2011 = vmatpush1.xpose.msra.mxu0 0.0
        %2012 = vmatprep.subr.mxu0 0.0
        %2013 = vmatpush1.xpose.msra.mxu0 0.0
        %2014 = vmatprep.subr.mxu0 0.0
        %2015 = vmatpush1.xpose.msra.mxu0 0.0
        %2016 = vmatprep.subr.mxu0 0.0
        %2017 = vmatpush1.xpose.msra.mxu0 0.0
        %2018 = vmatprep.subr.mxu0 0.0
        %2019 = vmatpush1.xpose.msra.mxu0 0.0
        %2020 = vmatprep.subr.mxu0 0.0
        %2021 = vmatpush1.xpose.msra.mxu0 0.0
        %2022 = vmatprep.subr.mxu0 0.0
        %2023 = vmatpush1.xpose.msra.mxu0 0.0
        %2024 = vmatprep.subr.mxu0 0.0
        %2025 = vmatpush1.xpose.msra.mxu0 0.0
        %2026 = vmatprep.subr.mxu0 0.0
        %2027 = vmatpush1.xpose.msra.mxu0 0.0
        %2028 = vmatprep.subr.mxu0 0.0
        %2029 = vmatpush1.xpose.msra.mxu0 0.0
        %2030 = vmatprep.subr.mxu0 0.0
        %2031 = vmatpush1.xpose.msra.mxu0 0.0
        %2032 = vmatprep.subr.mxu0 0.0
        %2033 = vmatpush1.xpose.msra.mxu0 0.0
        %2034 = vmatprep.subr.mxu0 0.0
        %2035 = vmatpush1.xpose.msra.mxu0 0.0
        %2036 = vmatprep.subr.mxu0 0.0
        %2037 = vmatpush1.xpose.msra.mxu0 0.0
        %2038 = vmatprep.subr.mxu0 0.0
        %2039 = vmatpush1.xpose.msra.mxu0 0.0
        %2040 = vmatprep.mubr.f32.mxu0 0.0
        %2041 = vmatmul.mubr.f32.gmra.mrb[0].mxu0 %v1971
        %v2042 = vpop.f32.mrb[0].mxu0
        %v2043 = vadd.f32 0.0, %v2042
        %v2044 = vpop.f32.mrb[0].mxu0
        %2045 = vdwg.mxu0
        %v2046 = vadd.f32 %v1969, %v2043
        %2047 = vst.msk [vmem:[%s1962] sm:$0xff] %vm720, %v2046
        %2048 = vst.msk [vmem:[%s1937] sm:$0xff] %vm821, %v1942
        %s2049 = scalar_lea.vmem [#allocation3], 56
        %v2050 = vld [vmem:[%s2049] sm:$0xff]
        %v2051 = vrot.slane %v614, 4
        %v2053 = vsel %vm720, %v2050, 0
        %v2055 = vsel %vm724, %v2051, 0
        %2057 = vmatprep.subr.mxu0 0.0
        %2058 = vmatpush1.msra.mxu0 %v2055
        %2059 = vmatprep.subr.mxu0 0.0
        %2060 = vmatpush1.msra.mxu0 0.0
        %2061 = vmatprep.subr.mxu0 0.0
        %2062 = vmatpush1.msra.mxu0 0.0
        %2063 = vmatprep.subr.mxu0 0.0
        %2064 = vmatpush1.msra.mxu0 0.0
        %2065 = vmatprep.subr.mxu0 0.0
        %2066 = vmatpush1.msra.mxu0 0.0
        %2067 = vmatprep.subr.mxu0 0.0
        %2068 = vmatpush1.msra.mxu0 0.0
        %2069 = vmatprep.subr.mxu0 0.0
        %2070 = vmatpush1.msra.mxu0 0.0
        %2071 = vmatprep.subr.mxu0 0.0
        %2072 = vmatpush1.msra.mxu0 0.0
        %2073 = vmatprep.subr.mxu0 0.0
        %2074 = vmatpush1.msra.mxu0 0.0
        %2075 = vmatprep.subr.mxu0 0.0
        %2076 = vmatpush1.msra.mxu0 0.0
        %2077 = vmatprep.subr.mxu0 0.0
        %2078 = vmatpush1.msra.mxu0 0.0
        %2079 = vmatprep.subr.mxu0 0.0
        %2080 = vmatpush1.msra.mxu0 0.0
        %2081 = vmatprep.subr.mxu0 0.0
        %2082 = vmatpush1.msra.mxu0 0.0
        %2083 = vmatprep.subr.mxu0 0.0
        %2084 = vmatpush1.msra.mxu0 0.0
        %2085 = vmatprep.subr.mxu0 0.0
        %2086 = vmatpush1.msra.mxu0 0.0
        %2087 = vmatprep.subr.mxu0 0.0
        %2088 = vmatpush1.msra.mxu0 0.0
        %2089 = vmatprep.subr.mxu0 0.0
        %2090 = vmatpush1.msra.mxu0 0.0
        %2091 = vmatprep.subr.mxu0 0.0
        %2092 = vmatpush1.msra.mxu0 0.0
        %2093 = vmatprep.subr.mxu0 0.0
        %2094 = vmatpush1.msra.mxu0 0.0
        %2095 = vmatprep.subr.mxu0 0.0
        %2096 = vmatpush1.msra.mxu0 0.0
        %2097 = vmatprep.subr.mxu0 0.0
        %2098 = vmatpush1.msra.mxu0 0.0
        %2099 = vmatprep.subr.mxu0 0.0
        %2100 = vmatpush1.msra.mxu0 0.0
        %2101 = vmatprep.subr.mxu0 0.0
        %2102 = vmatpush1.msra.mxu0 0.0
        %2103 = vmatprep.subr.mxu0 0.0
        %2104 = vmatpush1.msra.mxu0 0.0
        %2105 = vmatprep.subr.mxu0 0.0
        %2106 = vmatpush1.msra.mxu0 0.0
        %2107 = vmatprep.subr.mxu0 0.0
        %2108 = vmatpush1.msra.mxu0 0.0
        %2109 = vmatprep.subr.mxu0 0.0
        %2110 = vmatpush1.msra.mxu0 0.0
        %2111 = vmatprep.subr.mxu0 0.0
        %2112 = vmatpush1.msra.mxu0 0.0
        %2113 = vmatprep.subr.mxu0 0.0
        %2114 = vmatpush1.msra.mxu0 0.0
        %2115 = vmatprep.subr.mxu0 0.0
        %2116 = vmatpush1.msra.mxu0 0.0
        %2117 = vmatprep.subr.mxu0 0.0
        %2118 = vmatpush1.msra.mxu0 0.0
        %2119 = vmatprep.subr.mxu0 0.0
        %2120 = vmatpush1.msra.mxu0 0.0
        %2121 = vmatprep.mubr.f32.mxu0 0.0
        %2122 = vmatmul.mubr.f32.gmra.mrb[0].mxu0 %v2053
        %v2123 = vpop.f32.mrb[0].mxu0
        %v2124 = vadd.f32 0.0, %v2123
        %v2125 = vpop.f32.mrb[0].mxu0
        %2126 = vdwg.mxu0
        %s2127 = scalar_lea.vmem [#allocation4], 56
        %v2128 = vld [vmem:[%s2127] sm:$0xff]
        %v2129 = vsel %vm799, %v2124, -inf
        %2130 = vmax.xlane.f32.xlu0 %v2129
        %v2131 = vpop.xlane.xlu0 %2130
        %v2132 = vmax.f32 %v2128, %v2131
        %v2133 = vsub.f32 %v2128, %v2132
        %v2134 = vmul.f32 %v2133, 1.442695
        %v2135 = vpow.pop %v2134
        %2137 = vset.pattern.permute.xlu0 0
        %2138 = vperm.xlu0 %2137, %v2132
        %v2139 = vpop.permute.xlu0 %2138
        %v2141 = vsub.f32 %v2124, %v2139
        %v2142 = vmul.f32 %v2141, 1.442695
        %v2143 = vpow.pop %v2142
        %s2144 = scalar_lea.vmem [#allocation5], 56
        %v2145 = vld [vmem:[%s2144] sm:$0xff]
        %v2146 = vmul.f32 %v2135, %v2145
        %v2147 = vsel %vm799, %v2143, 0.0
        %2148 = vadd.xlane.f32.xlu0 %v2147
        %v2149 = vpop.xlane.xlu0 %2148
        %v2150 = vadd.f32 %v2146, %v2149
        %2151 = vst.msk [vmem:[%s2144] sm:$0xff] %vm821, %v2150
        %s2152 = scalar_lea.vmem [#allocation6], 56
        %v2153 = vld [vmem:[%s2152] sm:$0xff]
        %2155 = vset.pattern.permute.xlu0 0
        %2156 = vperm.xlu0 %2155, %v2135
        %v2157 = vpop.permute.xlu0 %2156
        %v2159 = vmul.f32 %v2157, %v2153
        %v2160 = vrot.slane %v716, 4
        %v2162 = vsel %vm799, %v2143, 0
        %v2164 = vsel %vm799, %v2160, 0
        %2166 = vmatprep.subr.mxu0 0.0
        %2167 = vmatpush1.xpose.msra.mxu0 %v2164
        %2168 = vmatprep.subr.mxu0 0.0
        %2169 = vmatpush1.xpose.msra.mxu0 0.0
        %2170 = vmatprep.subr.mxu0 0.0
        %2171 = vmatpush1.xpose.msra.mxu0 0.0
        %2172 = vmatprep.subr.mxu0 0.0
        %2173 = vmatpush1.xpose.msra.mxu0 0.0
        %2174 = vmatprep.subr.mxu0 0.0
        %2175 = vmatpush1.xpose.msra.mxu0 0.0
        %2176 = vmatprep.subr.mxu0 0.0
        %2177 = vmatpush1.xpose.msra.mxu0 0.0
        %2178 = vmatprep.subr.mxu0 0.0
        %2179 = vmatpush1.xpose.msra.mxu0 0.0
        %2180 = vmatprep.subr.mxu0 0.0
        %2181 = vmatpush1.xpose.msra.mxu0 0.0
        %2182 = vmatprep.subr.mxu0 0.0
        %2183 = vmatpush1.xpose.msra.mxu0 0.0
        %2184 = vmatprep.subr.mxu0 0.0
        %2185 = vmatpush1.xpose.msra.mxu0 0.0
        %2186 = vmatprep.subr.mxu0 0.0
        %2187 = vmatpush1.xpose.msra.mxu0 0.0
        %2188 = vmatprep.subr.mxu0 0.0
        %2189 = vmatpush1.xpose.msra.mxu0 0.0
        %2190 = vmatprep.subr.mxu0 0.0
        %2191 = vmatpush1.xpose.msra.mxu0 0.0
        %2192 = vmatprep.subr.mxu0 0.0
        %2193 = vmatpush1.xpose.msra.mxu0 0.0
        %2194 = vmatprep.subr.mxu0 0.0
        %2195 = vmatpush1.xpose.msra.mxu0 0.0
        %2196 = vmatprep.subr.mxu0 0.0
        %2197 = vmatpush1.xpose.msra.mxu0 0.0
        %2198 = vmatprep.subr.mxu0 0.0
        %2199 = vmatpush1.xpose.msra.mxu0 0.0
        %2200 = vmatprep.subr.mxu0 0.0
        %2201 = vmatpush1.xpose.msra.mxu0 0.0
        %2202 = vmatprep.subr.mxu0 0.0
        %2203 = vmatpush1.xpose.msra.mxu0 0.0
        %2204 = vmatprep.subr.mxu0 0.0
        %2205 = vmatpush1.xpose.msra.mxu0 0.0
        %2206 = vmatprep.subr.mxu0 0.0
        %2207 = vmatpush1.xpose.msra.mxu0 0.0
        %2208 = vmatprep.subr.mxu0 0.0
        %2209 = vmatpush1.xpose.msra.mxu0 0.0
        %2210 = vmatprep.subr.mxu0 0.0
        %2211 = vmatpush1.xpose.msra.mxu0 0.0
        %2212 = vmatprep.subr.mxu0 0.0
        %2213 = vmatpush1.xpose.msra.mxu0 0.0
        %2214 = vmatprep.subr.mxu0 0.0
        %2215 = vmatpush1.xpose.msra.mxu0 0.0
        %2216 = vmatprep.subr.mxu0 0.0
        %2217 = vmatpush1.xpose.msra.mxu0 0.0
        %2218 = vmatprep.subr.mxu0 0.0
        %2219 = vmatpush1.xpose.msra.mxu0 0.0
        %2220 = vmatprep.subr.mxu0 0.0
        %2221 = vmatpush1.xpose.msra.mxu0 0.0
        %2222 = vmatprep.subr.mxu0 0.0
        %2223 = vmatpush1.xpose.msra.mxu0 0.0
        %2224 = vmatprep.subr.mxu0 0.0
        %2225 = vmatpush1.xpose.msra.mxu0 0.0
        %2226 = vmatprep.subr.mxu0 0.0
        %2227 = vmatpush1.xpose.msra.mxu0 0.0
        %2228 = vmatprep.subr.mxu0 0.0
        %2229 = vmatpush1.xpose.msra.mxu0 0.0
        %2230 = vmatprep.mubr.f32.mxu0 0.0
        %2231 = vmatmul.mubr.f32.gmra.mrb[0].mxu0 %v2162
        %v2232 = vpop.f32.mrb[0].mxu0
        %v2233 = vadd.f32 0.0, %v2232
        %v2234 = vpop.f32.mrb[0].mxu0
        %2235 = vdwg.mxu0
        %v2236 = vadd.f32 %v2159, %v2233
        %2237 = vst.msk [vmem:[%s2152] sm:$0xff] %vm720, %v2236
        %2238 = vst.msk [vmem:[%s2127] sm:$0xff] %vm821, %v2132
        // Predicated region
        $region69: #{tpu_custom_call.1} parent=39 // pred_check
          %p2239 = pneg %p345
        $region70: #{tpu_custom_call.1} parent=39 // pred_check_branch
          %2241 = sbr.rel (%p2239) target = $region72
        $region71: #{tpu_custom_call.1} parent=39 // pred_region
          %v2242 = vld [vmem:[#allocation6] sm:$0xff]
          %v2243 = vld [vmem:[#allocation5] sm:$0xff]
          %v2244 = vrcp.pop %v2243
          %v2245 = vmul.f32 1.0, %v2244
          %2247 = vset.pattern.permute.xlu0 0
          %2248 = vperm.xlu0 %2247, %v2245
          %v2249 = vpop.permute.xlu0 %2248
          %v2251 = vmul.f32 %v2242, %v2249
          %v2252 = vld [vmem:[%s1012] sm:$0xff]
          %v2253 = vld [vmem:[%s1004] sm:$0xff]
          %v2254 = vrcp.pop %v2253
          %v2255 = vmul.f32 1.0, %v2254
          %2257 = vset.pattern.permute.xlu0 0
          %2258 = vperm.xlu0 %2257, %v2255
          %v2259 = vpop.permute.xlu0 %2258
          %v2261 = vmul.f32 %v2252, %v2259
          %v2262 = vld [vmem:[%s1202] sm:$0xff]
          %v2263 = vld [vmem:[%s1194] sm:$0xff]
          %v2264 = vrcp.pop %v2263
          %v2265 = vmul.f32 1.0, %v2264
          %2267 = vset.pattern.permute.xlu0 0
          %2268 = vperm.xlu0 %2267, %v2265
          %v2269 = vpop.permute.xlu0 %2268
          %v2271 = vmul.f32 %v2262, %v2269
          %v2272 = vld [vmem:[%s1392] sm:$0xff]
          %v2273 = vld [vmem:[%s1384] sm:$0xff]
          %v2274 = vrcp.pop %v2273
          %v2275 = vmul.f32 1.0, %v2274
          %2277 = vset.pattern.permute.xlu0 0
          %2278 = vperm.xlu0 %2277, %v2275
          %v2279 = vpop.permute.xlu0 %2278
          %v2281 = vmul.f32 %v2272, %v2279
          %v2282 = vld [vmem:[%s1582] sm:$0xff]
          %v2283 = vld [vmem:[%s1574] sm:$0xff]
          %v2284 = vrcp.pop %v2283
          %v2285 = vmul.f32 1.0, %v2284
          %2287 = vset.pattern.permute.xlu0 0
          %2288 = vperm.xlu0 %2287, %v2285
          %v2289 = vpop.permute.xlu0 %2288
          %v2291 = vmul.f32 %v2282, %v2289
          %v2292 = vld [vmem:[%s1772] sm:$0xff]
          %v2293 = vld [vmem:[%s1764] sm:$0xff]
          %v2294 = vrcp.pop %v2293
          %v2295 = vmul.f32 1.0, %v2294
          %2297 = vset.pattern.permute.xlu0 0
          %2298 = vperm.xlu0 %2297, %v2295
          %v2299 = vpop.permute.xlu0 %2298
          %v2301 = vmul.f32 %v2292, %v2299
          %v2302 = vld [vmem:[%s1962] sm:$0xff]
          %v2303 = vld [vmem:[%s1954] sm:$0xff]
          %v2304 = vrcp.pop %v2303
          %v2305 = vmul.f32 1.0, %v2304
          %2307 = vset.pattern.permute.xlu0 0
          %2308 = vperm.xlu0 %2307, %v2305
          %v2309 = vpop.permute.xlu0 %2308
          %v2311 = vmul.f32 %v2302, %v2309
          %v2312 = vld [vmem:[%s2152] sm:$0xff]
          %v2313 = vld [vmem:[%s2144] sm:$0xff]
          %v2314 = vrcp.pop %v2313
          %v2315 = vmul.f32 1.0, %v2314
          %2317 = vset.pattern.permute.xlu0 0
          %2318 = vperm.xlu0 %2317, %v2315
          %v2319 = vpop.permute.xlu0 %2318
          %v2321 = vmul.f32 %v2312, %v2319
          %2323 = vrot.lane.b32.xlu0 %v2261, 4
          %v2324 = vpop.permute.xlu0 %2323
          %2327 = vrot.lane.b32.xlu0 %v2271, 8
          %v2328 = vpop.permute.xlu0 %2327
          %2331 = vrot.lane.b32.xlu0 %v2281, 12
          %v2332 = vpop.permute.xlu0 %2331
          %2335 = vrot.lane.b32.xlu0 %v2291, 16
          %v2336 = vpop.permute.xlu0 %2335
          %2339 = vrot.lane.b32.xlu0 %v2301, 20
          %v2340 = vpop.permute.xlu0 %2339
          %2343 = vrot.lane.b32.xlu0 %v2311, 24
          %v2344 = vpop.permute.xlu0 %2343
          %2347 = vrot.lane.b32.xlu0 %v2321, 28
          %v2348 = vpop.permute.xlu0 %2347
          %v2350 = vsel %vm720, %v2251, %v2324
          %v2351 = vsel %vm799, %v2350, %v2328
          %vm2352 = vcmask 97280
          %v2353 = vsel %vm2352, %v2351, %v2332
          %vm2354 = vcmask 130048
          %v2355 = vsel %vm2354, %v2353, %v2336
          %vm2356 = vcmask 162816
          %v2357 = vsel %vm2356, %v2355, %v2340
          %vm2358 = vcmask 195584
          %v2359 = vsel %vm2358, %v2357, %v2344
          %vm2360 = vcmask 228352
          %v2361 = vsel %vm2360, %v2359, %v2348
          %v2362 = vld [vmem:[#allocation2] sm:$0xff]
          %v2363 = vld [vmem:[#allocation13] sm:$0xff]
          %v2364 = vld [vmem:[#allocation13 + $0x8] sm:$0xff]
          %v2365 = vld [vmem:[#allocation13 + $0x10] sm:$0xff]
          %v2366 = vld [vmem:[#allocation13 + $0x18] sm:$0xff]
          %v2368 = vsel %vm516, %v2361, 0
          %2370 = vmatprep.subr.mxu0 0.0
          %2371 = vmatpush1.msra.mxu0 %v2363
          %2372 = vmatprep.subr.mxu0 0.0
          %2373 = vmatpush1.msra.mxu0 %v2364
          %2374 = vmatprep.subr.mxu0 0.0
          %2375 = vmatpush1.msra.mxu0 %v2365
          %2376 = vmatprep.subr.mxu0 0.0
          %2377 = vmatpush1.msra.mxu0 %v2366
          %2378 = vmatprep.subr.mxu0 0.0
          %2379 = vmatpush1.msra.mxu0 0.0
          %2380 = vmatprep.subr.mxu0 0.0
          %2381 = vmatpush1.msra.mxu0 0.0
          %2382 = vmatprep.subr.mxu0 0.0
          %2383 = vmatpush1.msra.mxu0 0.0
          %2384 = vmatprep.subr.mxu0 0.0
          %2385 = vmatpush1.msra.mxu0 0.0
          %2386 = vmatprep.subr.mxu0 0.0
          %2387 = vmatpush1.msra.mxu0 0.0
          %2388 = vmatprep.subr.mxu0 0.0
          %2389 = vmatpush1.msra.mxu0 0.0
          %2390 = vmatprep.subr.mxu0 0.0
          %2391 = vmatpush1.msra.mxu0 0.0
          %2392 = vmatprep.subr.mxu0 0.0
          %2393 = vmatpush1.msra.mxu0 0.0
          %2394 = vmatprep.subr.mxu0 0.0
          %2395 = vmatpush1.msra.mxu0 0.0
          %2396 = vmatprep.subr.mxu0 0.0
          %2397 = vmatpush1.msra.mxu0 0.0
          %2398 = vmatprep.subr.mxu0 0.0
          %2399 = vmatpush1.msra.mxu0 0.0
          %2400 = vmatprep.subr.mxu0 0.0
          %2401 = vmatpush1.msra.mxu0 0.0
          %2402 = vmatprep.subr.mxu0 0.0
          %2403 = vmatpush1.msra.mxu0 0.0
          %2404 = vmatprep.subr.mxu0 0.0
          %2405 = vmatpush1.msra.mxu0 0.0
          %2406 = vmatprep.subr.mxu0 0.0
          %2407 = vmatpush1.msra.mxu0 0.0
          %2408 = vmatprep.subr.mxu0 0.0
          %2409 = vmatpush1.msra.mxu0 0.0
          %2410 = vmatprep.subr.mxu0 0.0
          %2411 = vmatpush1.msra.mxu0 0.0
          %2412 = vmatprep.subr.mxu0 0.0
          %2413 = vmatpush1.msra.mxu0 0.0
          %2414 = vmatprep.subr.mxu0 0.0
          %2415 = vmatpush1.msra.mxu0 0.0
          %2416 = vmatprep.subr.mxu0 0.0
          %2417 = vmatpush1.msra.mxu0 0.0
          %2418 = vmatprep.subr.mxu0 0.0
          %2419 = vmatpush1.msra.mxu0 0.0
          %2420 = vmatprep.subr.mxu0 0.0
          %2421 = vmatpush1.msra.mxu0 0.0
          %2422 = vmatprep.subr.mxu0 0.0
          %2423 = vmatpush1.msra.mxu0 0.0
          %2424 = vmatprep.subr.mxu0 0.0
          %2425 = vmatpush1.msra.mxu0 0.0
          %2426 = vmatprep.subr.mxu0 0.0
          %2427 = vmatpush1.msra.mxu0 0.0
          %2428 = vmatprep.subr.mxu0 0.0
          %2429 = vmatpush1.msra.mxu0 0.0
          %2430 = vmatprep.subr.mxu0 0.0
          %2431 = vmatpush1.msra.mxu0 0.0
          %2432 = vmatprep.subr.mxu0 0.0
          %2433 = vmatpush1.msra.mxu0 0.0
          %2434 = vmatprep.mubr.f32.mxu0 0.0
          %2435 = vmatmul.mubr.f32.gmra.mrb[0].mxu0 %v2368
          %v2436 = vpop.f32.mrb[0].mxu0
          %v2437 = vadd.f32 0.0, %v2436
          %v2438 = vpop.f32.mrb[0].mxu0
          %2439 = vdwg.mxu0
          %v2440 = vadd.f32 %v2362, %v2437
          %2441 = vst.msk [vmem:[#allocation2] sm:$0xff] %vm516, %v2440
          // Predicated region
          $region73: #{tpu_custom_call.1} parent=71 // pred_check
            %p2442 = pneg %p344
          $region74: #{tpu_custom_call.1} parent=71 // pred_check_branch
            %2444 = sbr.rel (%p2442) target = $region76
          $region75: #{tpu_custom_call.1} parent=71 // pred_region
            %v2445 = vld [vmem:[#allocation2] sm:$0xff]
            %v2446 = vld [vmem:[#allocation15] sm:$0x1]
            %v2448 = vlaneseq
            %v2449 = vshrl.u32 %v2448, 7
            %v2450 = vsub.s32 0, %v2449
            %v2451 = vrot.slane %v2446, %v2450
            %v2453 = vadd.f32 %v2445, %v2451
            %2454 = vst.msk [vmem:[#allocation16] sm:$0xff] %vm516, %v2453
          $region76: #{tpu_custom_call.1} parent=71 // pred_fallthru
            _
        $region72: #{tpu_custom_call.1} parent=39 // pred_fallthru
          _
        // Predicated region
        $region77: #{tpu_custom_call.1} parent=39 // pred_check
          %p2455 = pneg %p197
        $region78: #{tpu_custom_call.1} parent=39 // pred_check_branch
          %2457 = sbr.rel (%p2455) target = $region80
        $region79: #{tpu_custom_call.1} parent=39 // pred_region
          %s2459 = ssub.s32 128, 128
          %2460 = vsyncadd [#allocation9], %s2459
          %s2461 = sadd.s32 %s29, %s28
          %s2462 = smul.addr %s2461, 128
          %s2463 = scalar_lea.hbm %s5, %s2462
          %s2465 = sshll.u32 [#allocation16], 4
          %s2466 = int_to_ptr.vmem [resolvable:$true] %s2465
          %2468 = dma.vmem_to_hbm [thread:$0]  %s2466, 128, %s2463, [#allocation9]
        $region80: #{tpu_custom_call.1} parent=39 // pred_fallthru
          _
        // Predicated region
        $region81: #{tpu_custom_call.1} parent=39 // pred_check
          %p2469 = pneg %p197
        $region82: #{tpu_custom_call.1} parent=39 // pred_check_branch
          %2471 = sbr.rel (%p2469) target = $region84
        $region83: #{tpu_custom_call.1} parent=39 // pred_region
          %2472 = dma.done [#allocation9], 128
        $region84: #{tpu_custom_call.1} parent=39 // pred_fallthru
          _
      $region40: #{tpu_custom_call.1} parent=5 // pred_fallthru
        _
      %p2473 = scmp.le.s32.totalorder 2, %s17
      // Predicated region
      $region85: #{tpu_custom_call.1} parent=5 // pred_check
        %p2474 = pneg %p2473
      $region86: #{tpu_custom_call.1} parent=5 // pred_check_branch
        %2476 = sbr.rel (%p2474) target = $region88
      $region87: #{tpu_custom_call.1} parent=5 // pred_region
        %s2477 = ssub.s32 %s17, 2
      $region88: #{tpu_custom_call.1} parent=5 // pred_fallthru
        _
    $region6: #{tpu_custom_call.1} parent=1 // loop_footer
      %s21 = sadd.s32 1, %s17
    $region7: #{tpu_custom_call.1} parent=1 // loop_footer_branch
      %16 = sbr.rel target = $region3
    $region8: #{tpu_custom_call.1} parent=1 // loop_exit
      _
    %2478 = vsyncpa [#allocation8], 1
    %s2479 = scalar_lea.sflag [#allocation8], 1
    %2480 = vsyncpa %s2479, 1
    %2481 = vsyncpa [#allocation11], 1
    %s2482 = scalar_lea.sflag [#allocation11], 1
    %2483 = vsyncpa %s2482, 1
    %2484 = vsyncpa [#allocation14], 1
    %2485 = vsyncpa [#allocation9], 1
    %s2486 = scalar_lea.sflag [#allocation9], 1
    %2487 = vsyncpa %s2486, 1

// kernel: tpu_custom_call.1
$region0: #{tpu_custom_call.1}
  #allocation0 [shape = 'u32[]', space=smem, size = 0x4, offset = 0x4, fixed_abs, tag = 'smem constant byte address 0x4 - core index']
  #allocation1 [shape = 'u32[144,128]{1,0:T(1,128)}', space=vmem, size = 0x12000, scoped, tag = 'internal scratch']
  #allocation2 [shape = 'f32[8,32]{1,0:T(8,128)}', space=vmem, size = 0x1000, scoped, tag = 'scratch operand']
  #allocation3 [shape = 'f32[8,8,4]{2,1,0:T(8,128)}', space=vmem, size = 0x8000, scoped, tag = 'scratch operand']
  #allocation4 [shape = 'f32[8,8,1]{2,1,0:T(8,128)}', space=vmem, size = 0x8000, scoped, tag = 'scratch operand']
  #allocation5 [shape = 'f32[8,8,1]{2,1,0:T(8,128)}', space=vmem, size = 0x8000, scoped, tag = 'scratch operand']
  #allocation6 [shape = 'f32[8,8,4]{2,1,0:T(8,128)}', space=vmem, size = 0x8000, scoped, tag = 'scratch operand']
  %s0 = inlined_call_operand.hbm [shape: f32[2,8,32], index: 0, kind: input, shape index: {}]
  %s1 = inlined_call_operand.hbm [shape: f32[2,8,32], index: 1, kind: input, shape index: {}]
  %s2 = inlined_call_operand.hbm [shape: f32[3,1,32,32], index: 2, kind: input, shape index: {}]
  %s3 = inlined_call_operand.hbm [shape: f32[1,32,32], index: 3, kind: input, shape index: {}]
  %s4 = inlined_call_operand.hbm [shape: f32[1,32], index: 4, kind: input, shape index: {}]
  %s5 = inlined_call_operand.hbm [shape: f32[2,8,32], index: 5, kind: output, shape index: {}]
  %s6 = sld [smem:[#allocation0]]
  $region89: #{tpu_custom_call.1} parent=0
    _
  %s8 = ssub.s32 1, %s6
  %s9 = scalar_select 0, %s8, %s6
  $region1: #{tpu_custom_call.1} parent=0
    #allocation7 [shape = 'u8[8192]{0}', space=vmem, size = 0x2000, scoped, tag = 'input window, operand 0']
    #allocation8 [shape = 's32[2]{0}', space=sflag, size = 0x8, scoped, tag = 'scoped memory for tpu_custom_call.1']
    #allocation9 [shape = 's32[2]{0}', space=sflag, size = 0x8, scoped, tag = 'scoped memory for tpu_custom_call.1']
    #allocation10 [shape = 'u8[8192]{0}', space=vmem, size = 0x2000, scoped, tag = 'input window, operand 1']
    #allocation11 [shape = 's32[2]{0}', space=sflag, size = 0x8, scoped, tag = 'scoped memory for tpu_custom_call.1']
    #allocation12 [shape = 'u8[49152]{0}', space=vmem, size = 0xc000, scoped, tag = 'input window, operand 2, single buffered']
    #allocation13 [shape = 'u8[16384]{0}', space=vmem, size = 0x4000, scoped, tag = 'input window, operand 3, single buffered']
    #allocation14 [shape = 's32[1]{0}', space=sflag, size = 0x4, scoped, tag = 'scoped memory for tpu_custom_call.1']
    #allocation15 [shape = 'u8[512]{0}', space=vmem, size = 0x400, scoped, tag = 'input window, operand 4, single buffered']
    #allocation16 [shape = 'u8[8192]{0}', space=vmem, size = 0x2000, scoped, tag = 'output window, operand 0']
    %10 = vsyncpa [#allocation8], 0
    %s11 = scalar_lea.sflag [#allocation8], 1
    %12 = vsyncpa %s11, 0
    %13 = vsyncpa [#allocation11], 0
    %s14 = scalar_lea.sflag [#allocation11], 1
    %15 = vsyncpa %s14, 0
    %16 = vsyncpa [#allocation14], 0
    %17 = vsyncpa [#allocation9], 0
    %s18 = scalar_lea.sflag [#allocation9], 1
    %19 = vsyncpa %s18, 0
    loop: start=0, step=1, limit=4
    $region2: #{tpu_custom_call.1} parent=1 // loop_pre_header
      _
    $region3: #{tpu_custom_call.1} parent=1 // loop_header
      %s21 = sphi 0, %s25
      %p22 = scmp.ge.s32.totalorder %s21, 4
      %s28 = sphi 0, %s54
      %s29 = sphi 0, %s50
      %s30 = sphi 0, %s46
      %s31 = sphi 0, %s42
      %s32 = sphi 0, %s28
      %s33 = sphi 0, %s29
      %s34 = sphi 0, %s30
      %s35 = sphi 0, %s31
      %s36 = sphi 0, %s32
      %s37 = sphi 0, %s33
      %s38 = sphi 0, %s34
      %s39 = sphi 0, %s35
      %s59 = sphi 0, %s61
      %s62 = sphi 0, %s59
      %s63 = sphi 0, %s62
      %s79 = sphi 0, %s63
      %s87 = sphi 0, %s89
      %s90 = sphi 0, %s87
      %s91 = sphi 0, %s90
      %s107 = sphi 0, %s91
      %s113 = sphi 0, %s115
      %s116 = sphi 0, %s113
      %s117 = sphi 0, %s116
      %s133 = sphi 0, %s117
      %s139 = sphi 0, %s141
      %s142 = sphi 0, %s139
      %s143 = sphi 0, %s142
      %s159 = sphi 0, %s143
      %s163 = sphi 0, %s163
      %s165 = sphi 0, %s163
      %s166 = sphi 0, %s165
      %s180 = sphi 0, %s166
      %s188 = sphi 0, %s190
      %s191 = sphi 0, %s188
      %s192 = sphi 0, %s191
      %s208 = sphi 0, %s192
    $region4: #{tpu_custom_call.1} parent=1 // loop_header_branch
      %24 = sbr.rel (%p22) target = $region8
    $region5: #{tpu_custom_call.1} parent=1 // loop_body
      %s26 = ssub.s32 %s21, 1
      %s27 = ssub.s32 %s21, 2
      %s40 = sadd.s32 1, %s31
      %p41 = scmp.ge.s32.totalorder %s40, 1
      %s42 = scalar_select %p41, 0, %s40
      %s43 = sadd.s32 1, %s30
      %s44 = scalar_select %p41, %s43, %s30
      %p45 = scmp.ge.s32.totalorder %s44, 1
      %s46 = scalar_select %p45, 0, %s44
      %s47 = sadd.s32 1, %s29
      %s48 = scalar_select %p45, %s47, %s29
      %p49 = scmp.ge.s32.totalorder %s48, 1
      %s50 = scalar_select %p49, 0, %s48
      %s51 = sadd.s32 1, %s28
      %s52 = scalar_select %p49, %s51, %s28
      %p53 = scmp.ge.s32.totalorder %s52, 2
      %s54 = scalar_select %p53, 0, %s52
      %s55 = ssub.s32 %s28, %s54
      %s56 = ssub.s32 %s29, %s50
      %s57 = sor.u32 %s55, %s56
      %p58 = scmp.eq.s32.totalorder %s57, 0
      %s60 = sadd.s32 %s59, 1
      %s61 = scalar_select %p58, %s59, %s60
      %p64 = pneg %p58
      %p65 = scmp.eq.s32.totalorder %s21, 1
      %p66 = por %p64, %p65
      %p67 = scmp.ne.s32.totalorder %s59, %s62
      %p68 = scmp.eq.s32.totalorder %s21, 0
      %p69 = por %p67, %p68
      %p70 = scmp.ne.s32.totalorder %s59, %s62
      %p71 = scmp.eq.s32.totalorder %s26, 1
      %p72 = por %p70, %p71
      %p73 = scmp.ne.s32.totalorder %s62, %s63
      %p74 = scmp.eq.s32.totalorder %s26, 0
      %p75 = por %p73, %p74
      %p76 = scmp.ne.s32.totalorder %s62, %s63
      %p77 = scmp.eq.s32.totalorder %s27, 1
      %p78 = por %p76, %p77
      %p80 = scmp.ne.s32.totalorder %s63, %s79
      %p81 = scmp.eq.s32.totalorder %s27, 0
      %p82 = por %p80, %p81
      %s83 = ssub.s32 %s28, %s54
      %s84 = ssub.s32 %s31, %s42
      %s85 = sor.u32 %s83, %s84
      %p86 = scmp.eq.s32.totalorder %s85, 0
      %s88 = sadd.s32 %s87, 1
      %s89 = scalar_select %p86, %s87, %s88
      %p92 = pneg %p86
      %p93 = scmp.eq.s32.totalorder %s21, 1
      %p94 = por %p92, %p93
      %p95 = scmp.ne.s32.totalorder %s87, %s90
      %p96 = scmp.eq.s32.totalorder %s21, 0
      %p97 = por %p95, %p96
      %p98 = scmp.ne.s32.totalorder %s87, %s90
      %p99 = scmp.eq.s32.totalorder %s26, 1
      %p100 = por %p98, %p99
      %p101 = scmp.ne.s32.totalorder %s90, %s91
      %p102 = scmp.eq.s32.totalorder %s26, 0
      %p103 = por %p101, %p102
      %p104 = scmp.ne.s32.totalorder %s90, %s91
      %p105 = scmp.eq.s32.totalorder %s27, 1
      %p106 = por %p104, %p105
      %p108 = scmp.ne.s32.totalorder %s91, %s107
      %p109 = scmp.eq.s32.totalorder %s27, 0
      %p110 = por %p108, %p109
      %s111 = ssub.s32 %s30, %s46
      %p112 = scmp.eq.s32.totalorder %s111, 0
      %s114 = sadd.s32 %s113, 1
      %s115 = scalar_select %p112, %s113, %s114
      %p118 = pneg %p112
      %p119 = scmp.eq.s32.totalorder %s21, 1
      %p120 = por %p118, %p119
      %p121 = scmp.ne.s32.totalorder %s113, %s116
      %p122 = scmp.eq.s32.totalorder %s21, 0
      %p123 = por %p121, %p122
      %p124 = scmp.ne.s32.totalorder %s113, %s116
      %p125 = scmp.eq.s32.totalorder %s26, 1
      %p126 = por %p124, %p125
      %p127 = scmp.ne.s32.totalorder %s116, %s117
      %p128 = scmp.eq.s32.totalorder %s26, 0
      %p129 = por %p127, %p128
      %p130 = scmp.ne.s32.totalorder %s116, %s117
      %p131 = scmp.eq.s32.totalorder %s27, 1
      %p132 = por %p130, %p131
      %p134 = scmp.ne.s32.totalorder %s117, %s133
      %p135 = scmp.eq.s32.totalorder %s27, 0
      %p136 = por %p134, %p135
      %s137 = ssub.s32 %s30, %s46
      %p138 = scmp.eq.s32.totalorder %s137, 0
      %s140 = sadd.s32 %s139, 1
      %s141 = scalar_select %p138, %s139, %s140
      %p144 = pneg %p138
      %p145 = scmp.eq.s32.totalorder %s21, 1
      %p146 = por %p144, %p145
      %p147 = scmp.ne.s32.totalorder %s139, %s142
      %p148 = scmp.eq.s32.totalorder %s21, 0
      %p149 = por %p147, %p148
      %p150 = scmp.ne.s32.totalorder %s139, %s142
      %p151 = scmp.eq.s32.totalorder %s26, 1
      %p152 = por %p150, %p151
      %p153 = scmp.ne.s32.totalorder %s142, %s143
      %p154 = scmp.eq.s32.totalorder %s26, 0
      %p155 = por %p153, %p154
      %p156 = scmp.ne.s32.totalorder %s142, %s143
      %p157 = scmp.eq.s32.totalorder %s27, 1
      %p158 = por %p156, %p157
      %p160 = scmp.ne.s32.totalorder %s143, %s159
      %p161 = scmp.eq.s32.totalorder %s27, 0
      %p162 = por %p160, %p161
      %s164 = sadd.s32 %s163, 1
      %p167 = scmp.eq.s32.totalorder %s21, 1
      %p168 = scmp.ne.s32.totalorder %s163, %s165
      %p169 = scmp.eq.s32.totalorder %s21, 0
      %p170 = por %p168, %p169
      %p171 = scmp.ne.s32.totalorder %s163, %s165
      %p172 = scmp.eq.s32.totalorder %s26, 1
      %p173 = por %p171, %p172
      %p174 = scmp.ne.s32.totalorder %s165, %s166
      %p175 = scmp.eq.s32.totalorder %s26, 0
      %p176 = por %p174, %p175
      %p177 = scmp.ne.s32.totalorder %s165, %s166
      %p178 = scmp.eq.s32.totalorder %s27, 1
      %p179 = por %p177, %p178
      %p181 = scmp.ne.s32.totalorder %s166, %s180
      %p182 = scmp.eq.s32.totalorder %s27, 0
      %p183 = por %p181, %p182
      %s184 = ssub.s32 %s28, %s54
      %s185 = ssub.s32 %s29, %s50
      %s186 = sor.u32 %s184, %s185
      %p187 = scmp.eq.s32.totalorder %s186, 0
      %s189 = sadd.s32 %s188, 1
      %s190 = scalar_select %p187, %s188, %s189
      %p193 = pneg %p187
      %p194 = scmp.eq.s32.totalorder %s21, 1
      %p195 = por %p193, %p194
      %p196 = scmp.ne.s32.totalorder %s188, %s191
      %p197 = scmp.eq.s32.totalorder %s21, 0
      %p198 = por %p196, %p197
      %p199 = scmp.ne.s32.totalorder %s188, %s191
      %p200 = scmp.eq.s32.totalorder %s26, 1
      %p201 = por %p199, %p200
      %p202 = scmp.ne.s32.totalorder %s191, %s192
      %p203 = scmp.eq.s32.totalorder %s26, 0
      %p204 = por %p202, %p203
      %p205 = scmp.ne.s32.totalorder %s191, %s192
      %p206 = scmp.eq.s32.totalorder %s27, 1
      %p207 = por %p205, %p206
      %p209 = scmp.ne.s32.totalorder %s192, %s208
      %p210 = scmp.eq.s32.totalorder %s27, 0
      %p211 = por %p209, %p210
      %p212 = scmp.le.s32.totalorder 1, %s21
      %p213 = scmp.lt.s32.totalorder %s21, 3
      %p214 = pnand %p212, %p213
      %p215 = pneg %p214
      // Predicated region
      $region9: #{tpu_custom_call.1} parent=5 // pred_check
        _
      $region10: #{tpu_custom_call.1} parent=5 // pred_check_branch
        %217 = sbr.rel (%p214) target = $region12
      $region11: #{tpu_custom_call.1} parent=5 // pred_region
        %s218 = ssub.s32 %s21, 1
        // Predicated region
        $region13: #{tpu_custom_call.1} parent=11 // pred_check
          %p219 = pneg %p129
        $region14: #{tpu_custom_call.1} parent=11 // pred_check_branch
          %221 = sbr.rel (%p219) target = $region16
        $region15: #{tpu_custom_call.1} parent=11 // pred_region
          %s223 = ssub.s32 1536, 1536
          %224 = vsyncadd [#allocation11], %s223
          %s225 = smul.addr %s34, 4
          %s226 = smul.addr %s225, 128
          %s227 = scalar_lea.hbm %s2, %s226
          %s228 = sshll.u32 [#allocation12], 4
          %s229 = int_to_ptr.vmem [resolvable:$true] %s228
          %234 = dma.hbm_to_vmem [thread:$0]  %s227, 1536, %s229, [#allocation11], 128, 128, 8
        $region16: #{tpu_custom_call.1} parent=11 // pred_fallthru
          _
        // Predicated region
        $region17: #{tpu_custom_call.1} parent=11 // pred_check
          %p235 = pneg %p155
        $region18: #{tpu_custom_call.1} parent=11 // pred_check_branch
          %237 = sbr.rel (%p235) target = $region20
        $region19: #{tpu_custom_call.1} parent=11 // pred_region
          %s239 = ssub.s32 512, 512
          %240 = vsyncadd [#allocation14], %s239
          %s241 = smul.addr %s34, 4
          %s242 = smul.addr %s241, 128
          %s243 = scalar_lea.hbm %s3, %s242
          %s244 = sshll.u32 [#allocation13], 4
          %s245 = int_to_ptr.vmem [resolvable:$true] %s244
          %250 = dma.hbm_to_vmem [thread:$0]  %s243, 512, %s245, [#allocation14], 128, 128, 8
        $region20: #{tpu_custom_call.1} parent=11 // pred_fallthru
          _
        // Predicated region
        $region21: #{tpu_custom_call.1} parent=11 // pred_check
          %p251 = pneg %p176
        $region22: #{tpu_custom_call.1} parent=11 // pred_check_branch
          %253 = sbr.rel (%p251) target = $region24
        $region23: #{tpu_custom_call.1} parent=11 // pred_region
          %s255 = ssub.s32 16, 16
          %256 = vsyncadd [#allocation14], %s255
          %s258 = sshll.u32 [#allocation15], 4
          %s259 = int_to_ptr.vmem [resolvable:$true] %s258
          %261 = dma.hbm_to_vmem [thread:$0]  %s4, 16, %s259, [#allocation14]
        $region24: #{tpu_custom_call.1} parent=11 // pred_fallthru
          _
      $region12: #{tpu_custom_call.1} parent=5 // pred_fallthru
        _
      %p262 = scmp.lt.s32.totalorder %s21, 2
      // Predicated region
      $region25: #{tpu_custom_call.1} parent=5 // pred_check
        %p263 = pneg %p262
      $region26: #{tpu_custom_call.1} parent=5 // pred_check_branch
        %265 = sbr.rel (%p263) target = $region28
      $region27: #{tpu_custom_call.1} parent=5 // pred_region
        // Predicated region
        $region29: #{tpu_custom_call.1} parent=27 // pred_check
          %p266 = pneg %p69
        $region30: #{tpu_custom_call.1} parent=27 // pred_check_branch
          %268 = sbr.rel (%p266) target = $region32
        $region31: #{tpu_custom_call.1} parent=27 // pred_region
          %s269 = sand.u32 %s59, 1
          %s270 = scalar_lea.sflag [#allocation8], %s269
          %s271 = sand.u32 %s59, 1
          %s272 = smul.addr %s271, 8
          %s273 = scalar_lea.vmem [#allocation7], %s272
          %s275 = ssub.s32 128, 128
          %276 = vsyncadd %s270, %s275
          %s277 = sadd.s32 %s29, %s28
          %s278 = smul.addr %s277, 128
          %s279 = scalar_lea.hbm %s0, %s278
          %s281 = sshll.u32 %s273, 4
          %s282 = int_to_ptr.vmem [resolvable:$true] %s281
          %284 = dma.hbm_to_vmem [thread:$0]  %s279, 128, %s282, %s270
        $region32: #{tpu_custom_call.1} parent=27 // pred_fallthru
          _
        // Predicated region
        $region33: #{tpu_custom_call.1} parent=27 // pred_check
          %p285 = pneg %p97
        $region34: #{tpu_custom_call.1} parent=27 // pred_check_branch
          %287 = sbr.rel (%p285) target = $region36
        $region35: #{tpu_custom_call.1} parent=27 // pred_region
          %s288 = sand.u32 %s21, 1
          %s289 = scalar_lea.sflag [#allocation11], %s288
          %s290 = sand.u32 %s87, 1
          %s291 = smul.addr %s290, 8
          %s292 = scalar_lea.vmem [#allocation10], %s291
          %s294 = ssub.s32 128, 128
          %295 = vsyncadd %s289, %s294
          %s296 = sadd.s32 %s31, %s28
          %s297 = smul.addr %s296, 128
          %s298 = scalar_lea.hbm %s1, %s297
          %s300 = sshll.u32 %s292, 4
          %s301 = int_to_ptr.vmem [resolvable:$true] %s300
          %303 = dma.hbm_to_vmem [thread:$0]  %s298, 128, %s301, %s289
        $region36: #{tpu_custom_call.1} parent=27 // pred_fallthru
          _
      $region28: #{tpu_custom_call.1} parent=5 // pred_fallthru
        _
      %p304 = scmp.le.s32.totalorder 1, %s21
      %p305 = scmp.lt.s32.totalorder %s21, 3
      %p306 = pnand %p304, %p305
      %p307 = pneg %p306
      // Predicated region
      $region37: #{tpu_custom_call.1} parent=5 // pred_check
        _
      $region38: #{tpu_custom_call.1} parent=5 // pred_check_branch
        %309 = sbr.rel (%p306) target = $region40
      $region39: #{tpu_custom_call.1} parent=5 // pred_region
        %s310 = ssub.s32 %s21, 1
        %s311 = sand.u32 %s62, 1
        %s312 = scalar_lea.sflag [#allocation8], %s311
        %s313 = sand.u32 %s62, 1
        %s314 = smul.addr %s313, 8
        %s315 = scalar_lea.vmem [#allocation7], %s314
        // Predicated region
        $region41: #{tpu_custom_call.1} parent=39 // pred_check
          %p316 = pneg %p75
        $region42: #{tpu_custom_call.1} parent=39 // pred_check_branch
          %318 = sbr.rel (%p316) target = $region44
        $region43: #{tpu_custom_call.1} parent=39 // pred_region
          %319 = dma.done %s312, 128
        $region44: #{tpu_custom_call.1} parent=39 // pred_fallthru
          _
        %s320 = sand.u32 %s26, 1
        %s321 = scalar_lea.sflag [#allocation11], %s320
        %s322 = sand.u32 %s90, 1
        %s323 = smul.addr %s322, 8
        %s324 = scalar_lea.vmem [#allocation10], %s323
        // Predicated region
        $region45: #{tpu_custom_call.1} parent=39 // pred_check
          %p325 = pneg %p103
        $region46: #{tpu_custom_call.1} parent=39 // pred_check_branch
          %327 = sbr.rel (%p325) target = $region48
        $region47: #{tpu_custom_call.1} parent=39 // pred_region
          %328 = dma.done %s321, 128
        $region48: #{tpu_custom_call.1} parent=39 // pred_fallthru
          _
        // Predicated region
        $region49: #{tpu_custom_call.1} parent=39 // pred_check
          %p329 = pneg %p129
        $region50: #{tpu_custom_call.1} parent=39 // pred_check_branch
          %331 = sbr.rel (%p329) target = $region52
        $region51: #{tpu_custom_call.1} parent=39 // pred_region
          %332 = dma.done [#allocation11], 1536
        $region52: #{tpu_custom_call.1} parent=39 // pred_fallthru
          _
        // Predicated region
        $region53: #{tpu_custom_call.1} parent=39 // pred_check
          %p333 = pneg %p155
        $region54: #{tpu_custom_call.1} parent=39 // pred_check_branch
          %335 = sbr.rel (%p333) target = $region56
        $region55: #{tpu_custom_call.1} parent=39 // pred_region
          %336 = dma.done [#allocation14], 512
        $region56: #{tpu_custom_call.1} parent=39 // pred_fallthru
          _
        // Predicated region
        $region57: #{tpu_custom_call.1} parent=39 // pred_check
          %p337 = pneg %p176
        $region58: #{tpu_custom_call.1} parent=39 // pred_check_branch
          %339 = sbr.rel (%p337) target = $region60
        $region59: #{tpu_custom_call.1} parent=39 // pred_region
          %340 = dma.done [#allocation14], 16
        $region60: #{tpu_custom_call.1} parent=39 // pred_fallthru
          _
        %s341 = sand.u32 %s62, 1
        %s342 = scalar_lea.sflag [#allocation8], %s341
        %s343 = sand.u32 %s62, 1
        %s344 = smul.addr %s343, 8
        %s345 = scalar_lea.vmem [#allocation7], %s344
        %p346 = pneg %p75
        %p347 = pneg %p72
        %s348 = sand.u32 %s26, 1
        %s349 = scalar_lea.sflag [#allocation11], %s348
        %s350 = sand.u32 %s90, 1
        %s351 = smul.addr %s350, 8
        %s352 = scalar_lea.vmem [#allocation10], %s351
        %p353 = pneg %p103
        %p354 = pneg %p100
        %p355 = pneg %p129
        %p356 = pneg %p126
        %p357 = pneg %p155
        %p358 = pneg %p152
        %p359 = pneg %p176
        %p360 = pneg %p173
        %p361 = pneg %p204
        %p362 = pneg %p201
        %s363 = sand.u32 %s191, 1
        %s364 = scalar_lea.sflag [#allocation9], %s363
        %s365 = sand.u32 %s191, 1
        %s366 = smul.addr %s365, 8
        %s367 = scalar_lea.vmem [#allocation16], %s366
        %p368 = scmp.eq.s32.totalorder %s34, 0
        %p369 = scmp.eq.s32.totalorder %s35, 0
        %p370 = pnand %p368, %p369
        %p371 = pneg %p370
        // Predicated region
        $region61: #{tpu_custom_call.1} parent=39 // pred_check
          _
        $region62: #{tpu_custom_call.1} parent=39 // pred_check_branch
          %373 = sbr.rel (%p370) target = $region64
        $region63: #{tpu_custom_call.1} parent=39 // pred_region
          %vm374 = vcmask 261120
          %375 = vst.msk [vmem:[#allocation2] sm:$0xff] %vm374, 0.0
        $region64: #{tpu_custom_call.1} parent=39 // pred_fallthru
          _
        // Predicated region
        $region65: #{tpu_custom_call.1} parent=39 // pred_check
          %p376 = pneg %p369
        $region66: #{tpu_custom_call.1} parent=39 // pred_check_branch
          %378 = sbr.rel (%p376) target = $region68
        $region67: #{tpu_custom_call.1} parent=39 // pred_region
          %v379 = vld [vmem:[%s315] sm:$0xff]
          %v380 = vld [vmem:[#allocation12] sm:$0xff]
          %v381 = vld [vmem:[#allocation12 + $0x8] sm:$0xff]
          %v382 = vld [vmem:[#allocation12 + $0x10] sm:$0xff]
          %v383 = vld [vmem:[#allocation12 + $0x18] sm:$0xff]
          %vm384 = vcmask 261120
          %v386 = vsel %vm384, %v379, 0
          %v389 = vsel %vm384, %v380, 0
          %v392 = vsel %vm384, %v381, 0
          %v395 = vsel %vm384, %v382, 0
          %v398 = vsel %vm384, %v383, 0
          %400 = vmatprep.subr.mxu0 0.0
          %401 = vmatpush1.xpose.msra.mxu0 %v389
          %402 = vmatprep.subr.mxu0 0.0
          %403 = vmatpush1.xpose.msra.mxu0 %v392
          %404 = vmatprep.subr.mxu0 0.0
          %405 = vmatpush1.xpose.msra.mxu0 %v395
          %406 = vmatprep.subr.mxu0 0.0
          %407 = vmatpush1.xpose.msra.mxu0 %v398
          %408 = vmatprep.subr.mxu0 0.0
          %409 = vmatpush1.xpose.msra.mxu0 0.0
          %410 = vmatprep.subr.mxu0 0.0
          %411 = vmatpush1.xpose.msra.mxu0 0.0
          %412 = vmatprep.subr.mxu0 0.0
          %413 = vmatpush1.xpose.msra.mxu0 0.0
          %414 = vmatprep.subr.mxu0 0.0
          %415 = vmatpush1.xpose.msra.mxu0 0.0
          %416 = vmatprep.subr.mxu0 0.0
          %417 = vmatpush1.xpose.msra.mxu0 0.0
          %418 = vmatprep.subr.mxu0 0.0
          %419 = vmatpush1.xpose.msra.mxu0 0.0
          %420 = vmatprep.subr.mxu0 0.0
          %421 = vmatpush1.xpose.msra.mxu0 0.0
          %422 = vmatprep.subr.mxu0 0.0
          %423 = vmatpush1.xpose.msra.mxu0 0.0
          %424 = vmatprep.subr.mxu0 0.0
          %425 = vmatpush1.xpose.msra.mxu0 0.0
          %426 = vmatprep.subr.mxu0 0.0
          %427 = vmatpush1.xpose.msra.mxu0 0.0
          %428 = vmatprep.subr.mxu0 0.0
          %429 = vmatpush1.xpose.msra.mxu0 0.0
          %430 = vmatprep.subr.mxu0 0.0
          %431 = vmatpush1.xpose.msra.mxu0 0.0
          %432 = vmatprep.subr.mxu0 0.0
          %433 = vmatpush1.xpose.msra.mxu0 0.0
          %434 = vmatprep.subr.mxu0 0.0
          %435 = vmatpush1.xpose.msra.mxu0 0.0
          %436 = vmatprep.subr.mxu0 0.0
          %437 = vmatpush1.xpose.msra.mxu0 0.0
          %438 = vmatprep.subr.mxu0 0.0
          %439 = vmatpush1.xpose.msra.mxu0 0.0
          %440 = vmatprep.subr.mxu0 0.0
          %441 = vmatpush1.xpose.msra.mxu0 0.0
          %442 = vmatprep.subr.mxu0 0.0
          %443 = vmatpush1.xpose.msra.mxu0 0.0
          %444 = vmatprep.subr.mxu0 0.0
          %445 = vmatpush1.xpose.msra.mxu0 0.0
          %446 = vmatprep.subr.mxu0 0.0
          %447 = vmatpush1.xpose.msra.mxu0 0.0
          %448 = vmatprep.subr.mxu0 0.0
          %449 = vmatpush1.xpose.msra.mxu0 0.0
          %450 = vmatprep.subr.mxu0 0.0
          %451 = vmatpush1.xpose.msra.mxu0 0.0
          %452 = vmatprep.subr.mxu0 0.0
          %453 = vmatpush1.xpose.msra.mxu0 0.0
          %454 = vmatprep.subr.mxu0 0.0
          %455 = vmatpush1.xpose.msra.mxu0 0.0
          %456 = vmatprep.subr.mxu0 0.0
          %457 = vmatpush1.xpose.msra.mxu0 0.0
          %458 = vmatprep.subr.mxu0 0.0
          %459 = vmatpush1.xpose.msra.mxu0 0.0
          %460 = vmatprep.subr.mxu0 0.0
          %461 = vmatpush1.xpose.msra.mxu0 0.0
          %462 = vmatprep.subr.mxu0 0.0
          %463 = vmatpush1.xpose.msra.mxu0 0.0
          %464 = vmatprep.mubr.f32.mxu0 0.0
          %465 = vmatmul.mubr.f32.gmra.mrb[0].mxu0 %v386
          %v466 = vpop.f32.mrb[0].mxu0
          %v467 = vadd.f32 0.0, %v466
          %v468 = vpop.f32.mrb[0].mxu0
          %469 = vdwg.mxu0
          %v470 = vmul.f32 %v467, 0.5
          %vm471 = vcmask 31744
          %472 = vst.msk [vmem:[#allocation3] sm:$0xff] %vm471, %v470
          %474 = vrot.lane.b32.xlu0 %v470, 124
          %v475 = vpop.permute.xlu0 %474
          %s477 = scalar_lea.vmem [#allocation3], 8
          %478 = vst.msk [vmem:[%s477] sm:$0xff] %vm471, %v475
          %479 = vrot.lane.b32.xlu0 %v470, 120
          %v480 = vpop.permute.xlu0 %479
          %s482 = scalar_lea.vmem [#allocation3], 16
          %483 = vst.msk [vmem:[%s482] sm:$0xff] %vm471, %v480
          %484 = vrot.lane.b32.xlu0 %v470, 116
          %v485 = vpop.permute.xlu0 %484
          %s487 = scalar_lea.vmem [#allocation3], 24
          %488 = vst.msk [vmem:[%s487] sm:$0xff] %vm471, %v485
          %489 = vrot.lane.b32.xlu0 %v470, 112
          %v490 = vpop.permute.xlu0 %489
          %s492 = scalar_lea.vmem [#allocation3], 32
          %493 = vst.msk [vmem:[%s492] sm:$0xff] %vm471, %v490
          %494 = vrot.lane.b32.xlu0 %v470, 108
          %v495 = vpop.permute.xlu0 %494
          %s497 = scalar_lea.vmem [#allocation3], 40
          %498 = vst.msk [vmem:[%s497] sm:$0xff] %vm471, %v495
          %499 = vrot.lane.b32.xlu0 %v470, 104
          %v500 = vpop.permute.xlu0 %499
          %s502 = scalar_lea.vmem [#allocation3], 48
          %503 = vst.msk [vmem:[%s502] sm:$0xff] %vm471, %v500
          %504 = vrot.lane.b32.xlu0 %v470, 100
          %v505 = vpop.permute.xlu0 %504
          %s507 = scalar_lea.vmem [#allocation3], 56
          %508 = vst.msk [vmem:[%s507] sm:$0xff] %vm471, %v505
          %vm509 = vcmask 7168
          %510 = vst.msk [vmem:[#allocation4] sm:$0xff] %vm509, -inf
          %511 = vst.msk [vmem:[#allocation4 + $0x8] sm:$0xff] %vm509, -inf
          %512 = vst.msk [vmem:[#allocation4 + $0x10] sm:$0xff] %vm509, -inf
          %513 = vst.msk [vmem:[#allocation4 + $0x18] sm:$0xff] %vm509, -inf
          %514 = vst.msk [vmem:[#allocation4 + $0x20] sm:$0xff] %vm509, -inf
          %515 = vst.msk [vmem:[#allocation4 + $0x28] sm:$0xff] %vm509, -inf
          %516 = vst.msk [vmem:[#allocation4 + $0x30] sm:$0xff] %vm509, -inf
          %517 = vst.msk [vmem:[#allocation4 + $0x38] sm:$0xff] %vm509, -inf
          %518 = vst.msk [vmem:[#allocation5] sm:$0xff] %vm509, 0.0
          %519 = vst.msk [vmem:[#allocation5 + $0x8] sm:$0xff] %vm509, 0.0
          %520 = vst.msk [vmem:[#allocation5 + $0x10] sm:$0xff] %vm509, 0.0
          %521 = vst.msk [vmem:[#allocation5 + $0x18] sm:$0xff] %vm509, 0.0
          %522 = vst.msk [vmem:[#allocation5 + $0x20] sm:$0xff] %vm509, 0.0
          %523 = vst.msk [vmem:[#allocation5 + $0x28] sm:$0xff] %vm509, 0.0
          %524 = vst.msk [vmem:[#allocation5 + $0x30] sm:$0xff] %vm509, 0.0
          %525 = vst.msk [vmem:[#allocation5 + $0x38] sm:$0xff] %vm509, 0.0
          %526 = vst.msk [vmem:[#allocation6] sm:$0xff] %vm471, 0.0
          %527 = vst.msk [vmem:[#allocation6 + $0x8] sm:$0xff] %vm471, 0.0
          %528 = vst.msk [vmem:[#allocation6 + $0x10] sm:$0xff] %vm471, 0.0
          %529 = vst.msk [vmem:[#allocation6 + $0x18] sm:$0xff] %vm471, 0.0
          %530 = vst.msk [vmem:[#allocation6 + $0x20] sm:$0xff] %vm471, 0.0
          %531 = vst.msk [vmem:[#allocation6 + $0x28] sm:$0xff] %vm471, 0.0
          %532 = vst.msk [vmem:[#allocation6 + $0x30] sm:$0xff] %vm471, 0.0
          %533 = vst.msk [vmem:[#allocation6 + $0x38] sm:$0xff] %vm471, 0.0
        $region68: #{tpu_custom_call.1} parent=39 // pred_fallthru
          _
        %v534 = vld [vmem:[%s324] sm:$0xff]
        %s535 = scalar_lea.vmem [#allocation12], 32
        %v536 = vld [vmem:[%s535] sm:$0xff]
        %v537 = vld [vmem:[%s535 + $0x8] sm:$0xff]
        %v538 = vld [vmem:[%s535 + $0x10] sm:$0xff]
        %v539 = vld [vmem:[%s535 + $0x18] sm:$0xff]
        %vm540 = vcmask 261120
        %v542 = vsel %vm540, %v536, 0
        %v545 = vsel %vm540, %v537, 0
        %v548 = vsel %vm540, %v538, 0
        %v551 = vsel %vm540, %v539, 0
        %v554 = vsel %vm540, %v534, 0
        %556 = vmatprep.subr.mxu0 0.0
        %557 = vmatpush1.xpose.msra.mxu0 %v554
        %558 = vmatprep.subr.mxu0 0.0
        %559 = vmatpush1.xpose.msra.mxu0 0.0
        %560 = vmatprep.subr.mxu0 0.0
        %561 = vmatpush1.xpose.msra.mxu0 0.0
        %562 = vmatprep.subr.mxu0 0.0
        %563 = vmatpush1.xpose.msra.mxu0 0.0
        %564 = vmatprep.subr.mxu0 0.0
        %565 = vmatpush1.xpose.msra.mxu0 0.0
        %566 = vmatprep.subr.mxu0 0.0
        %567 = vmatpush1.xpose.msra.mxu0 0.0
        %568 = vmatprep.subr.mxu0 0.0
        %569 = vmatpush1.xpose.msra.mxu0 0.0
        %570 = vmatprep.subr.mxu0 0.0
        %571 = vmatpush1.xpose.msra.mxu0 0.0
        %572 = vmatprep.subr.mxu0 0.0
        %573 = vmatpush1.xpose.msra.mxu0 0.0
        %574 = vmatprep.subr.mxu0 0.0
        %575 = vmatpush1.xpose.msra.mxu0 0.0
        %576 = vmatprep.subr.mxu0 0.0
        %577 = vmatpush1.xpose.msra.mxu0 0.0
        %578 = vmatprep.subr.mxu0 0.0
        %579 = vmatpush1.xpose.msra.mxu0 0.0
        %580 = vmatprep.subr.mxu0 0.0
        %581 = vmatpush1.xpose.msra.mxu0 0.0
        %582 = vmatprep.subr.mxu0 0.0
        %583 = vmatpush1.xpose.msra.mxu0 0.0
        %584 = vmatprep.subr.mxu0 0.0
        %585 = vmatpush1.xpose.msra.mxu0 0.0
        %586 = vmatprep.subr.mxu0 0.0
        %587 = vmatpush1.xpose.msra.mxu0 0.0
        %588 = vmatprep.subr.mxu0 0.0
        %589 = vmatpush1.xpose.msra.mxu0 0.0
        %590 = vmatprep.subr.mxu0 0.0
        %591 = vmatpush1.xpose.msra.mxu0 0.0
        %592 = vmatprep.subr.mxu0 0.0
        %593 = vmatpush1.xpose.msra.mxu0 0.0
        %594 = vmatprep.subr.mxu0 0.0
        %595 = vmatpush1.xpose.msra.mxu0 0.0
        %596 = vmatprep.subr.mxu0 0.0
        %597 = vmatpush1.xpose.msra.mxu0 0.0
        %598 = vmatprep.subr.mxu0 0.0
        %599 = vmatpush1.xpose.msra.mxu0 0.0
        %600 = vmatprep.subr.mxu0 0.0
        %601 = vmatpush1.xpose.msra.mxu0 0.0
        %602 = vmatprep.subr.mxu0 0.0
        %603 = vmatpush1.xpose.msra.mxu0 0.0
        %604 = vmatprep.subr.mxu0 0.0
        %605 = vmatpush1.xpose.msra.mxu0 0.0
        %606 = vmatprep.subr.mxu0 0.0
        %607 = vmatpush1.xpose.msra.mxu0 0.0
        %608 = vmatprep.subr.mxu0 0.0
        %609 = vmatpush1.xpose.msra.mxu0 0.0
        %610 = vmatprep.subr.mxu0 0.0
        %611 = vmatpush1.xpose.msra.mxu0 0.0
        %612 = vmatprep.subr.mxu0 0.0
        %613 = vmatpush1.xpose.msra.mxu0 0.0
        %614 = vmatprep.subr.mxu0 0.0
        %615 = vmatpush1.xpose.msra.mxu0 0.0
        %616 = vmatprep.subr.mxu0 0.0
        %617 = vmatpush1.xpose.msra.mxu0 0.0
        %618 = vmatprep.subr.mxu0 0.0
        %619 = vmatpush1.xpose.msra.mxu0 0.0
        %620 = vmatprep.mubr.f32.mxu0 0.0
        %621 = vmatmul.mubr.f32.gmra.mrb[0].mxu0 %v542
        %v622 = vpop.f32.mrb[0].mxu0
        %v623 = vadd.f32 0.0, %v622
        %v624 = vpop.f32.mrb[0].mxu0
        %625 = vmatprep.mubr.f32.mxu0 0.0
        %626 = vmatmul.mubr.f32.gmra.mrb[0].mxu0 %v545
        %v627 = vpop.f32.mrb[0].mxu0
        %v628 = vadd.f32 0.0, %v627
        %v629 = vpop.f32.mrb[0].mxu0
        %630 = vmatprep.mubr.f32.mxu0 0.0
        %631 = vmatmul.mubr.f32.gmra.mrb[0].mxu0 %v548
        %v632 = vpop.f32.mrb[0].mxu0
        %v633 = vadd.f32 0.0, %v632
        %v634 = vpop.f32.mrb[0].mxu0
        %635 = vmatprep.mubr.f32.mxu0 0.0
        %636 = vmatmul.mubr.f32.gmra.mrb[0].mxu0 %v551
        %v637 = vpop.f32.mrb[0].mxu0
        %v638 = vadd.f32 0.0, %v637
        %v639 = vpop.f32.mrb[0].mxu0
        %640 = vdwg.mxu0
        %s641 = scalar_lea.vmem [#allocation12], 64
        %v642 = vld [vmem:[%s641] sm:$0xff]
        %v643 = vld [vmem:[%s641 + $0x8] sm:$0xff]
        %v644 = vld [vmem:[%s641 + $0x10] sm:$0xff]
        %v645 = vld [vmem:[%s641 + $0x18] sm:$0xff]
        %v647 = vsel %vm540, %v642, 0
        %v650 = vsel %vm540, %v643, 0
        %v653 = vsel %vm540, %v644, 0
        %v656 = vsel %vm540, %v645, 0
        %658 = vmatprep.subr.mxu0 0.0
        %659 = vmatpush1.xpose.msra.mxu0 %v554
        %660 = vmatprep.subr.mxu0 0.0
        %661 = vmatpush1.xpose.msra.mxu0 0.0
        %662 = vmatprep.subr.mxu0 0.0
        %663 = vmatpush1.xpose.msra.mxu0 0.0
        %664 = vmatprep.subr.mxu0 0.0
        %665 = vmatpush1.xpose.msra.mxu0 0.0
        %666 = vmatprep.subr.mxu0 0.0
        %667 = vmatpush1.xpose.msra.mxu0 0.0
        %668 = vmatprep.subr.mxu0 0.0
        %669 = vmatpush1.xpose.msra.mxu0 0.0
        %670 = vmatprep.subr.mxu0 0.0
        %671 = vmatpush1.xpose.msra.mxu0 0.0
        %672 = vmatprep.subr.mxu0 0.0
        %673 = vmatpush1.xpose.msra.mxu0 0.0
        %674 = vmatprep.subr.mxu0 0.0
        %675 = vmatpush1.xpose.msra.mxu0 0.0
        %676 = vmatprep.subr.mxu0 0.0
        %677 = vmatpush1.xpose.msra.mxu0 0.0
        %678 = vmatprep.subr.mxu0 0.0
        %679 = vmatpush1.xpose.msra.mxu0 0.0
        %680 = vmatprep.subr.mxu0 0.0
        %681 = vmatpush1.xpose.msra.mxu0 0.0
        %682 = vmatprep.subr.mxu0 0.0
        %683 = vmatpush1.xpose.msra.mxu0 0.0
        %684 = vmatprep.subr.mxu0 0.0
        %685 = vmatpush1.xpose.msra.mxu0 0.0
        %686 = vmatprep.subr.mxu0 0.0
        %687 = vmatpush1.xpose.msra.mxu0 0.0
        %688 = vmatprep.subr.mxu0 0.0
        %689 = vmatpush1.xpose.msra.mxu0 0.0
        %690 = vmatprep.subr.mxu0 0.0
        %691 = vmatpush1.xpose.msra.mxu0 0.0
        %692 = vmatprep.subr.mxu0 0.0
        %693 = vmatpush1.xpose.msra.mxu0 0.0
        %694 = vmatprep.subr.mxu0 0.0
        %695 = vmatpush1.xpose.msra.mxu0 0.0
        %696 = vmatprep.subr.mxu0 0.0
        %697 = vmatpush1.xpose.msra.mxu0 0.0
        %698 = vmatprep.subr.mxu0 0.0
        %699 = vmatpush1.xpose.msra.mxu0 0.0
        %700 = vmatprep.subr.mxu0 0.0
        %701 = vmatpush1.xpose.msra.mxu0 0.0
        %702 = vmatprep.subr.mxu0 0.0
        %703 = vmatpush1.xpose.msra.mxu0 0.0
        %704 = vmatprep.subr.mxu0 0.0
        %705 = vmatpush1.xpose.msra.mxu0 0.0
        %706 = vmatprep.subr.mxu0 0.0
        %707 = vmatpush1.xpose.msra.mxu0 0.0
        %708 = vmatprep.subr.mxu0 0.0
        %709 = vmatpush1.xpose.msra.mxu0 0.0
        %710 = vmatprep.subr.mxu0 0.0
        %711 = vmatpush1.xpose.msra.mxu0 0.0
        %712 = vmatprep.subr.mxu0 0.0
        %713 = vmatpush1.xpose.msra.mxu0 0.0
        %714 = vmatprep.subr.mxu0 0.0
        %715 = vmatpush1.xpose.msra.mxu0 0.0
        %716 = vmatprep.subr.mxu0 0.0
        %717 = vmatpush1.xpose.msra.mxu0 0.0
        %718 = vmatprep.subr.mxu0 0.0
        %719 = vmatpush1.xpose.msra.mxu0 0.0
        %720 = vmatprep.subr.mxu0 0.0
        %721 = vmatpush1.xpose.msra.mxu0 0.0
        %722 = vmatprep.mubr.f32.mxu0 0.0
        %723 = vmatmul.mubr.f32.gmra.mrb[0].mxu0 %v647
        %v724 = vpop.f32.mrb[0].mxu0
        %v725 = vadd.f32 0.0, %v724
        %v726 = vpop.f32.mrb[0].mxu0
        %727 = vmatprep.mubr.f32.mxu0 0.0
        %728 = vmatmul.mubr.f32.gmra.mrb[0].mxu0 %v650
        %v729 = vpop.f32.mrb[0].mxu0
        %v730 = vadd.f32 0.0, %v729
        %v731 = vpop.f32.mrb[0].mxu0
        %732 = vmatprep.mubr.f32.mxu0 0.0
        %733 = vmatmul.mubr.f32.gmra.mrb[0].mxu0 %v653
        %v734 = vpop.f32.mrb[0].mxu0
        %v735 = vadd.f32 0.0, %v734
        %v736 = vpop.f32.mrb[0].mxu0
        %737 = vmatprep.mubr.f32.mxu0 0.0
        %738 = vmatmul.mubr.f32.gmra.mrb[0].mxu0 %v656
        %v739 = vpop.f32.mrb[0].mxu0
        %v740 = vadd.f32 0.0, %v739
        %v741 = vpop.f32.mrb[0].mxu0
        %742 = vdwg.mxu0
        %v743 = vld [vmem:[#allocation3] sm:$0xff]
        %vm744 = vcmask 31744
        %v746 = vsel %vm744, %v743, 0
        %vm748 = vcmask 1043456
        %v750 = vsel %vm748, %v623, 0
        %752 = vmatprep.subr.mxu0 0.0
        %753 = vmatpush1.msra.mxu0 %v750
        %754 = vmatprep.subr.mxu0 0.0
        %755 = vmatpush1.msra.mxu0 0.0
        %756 = vmatprep.subr.mxu0 0.0
        %757 = vmatpush1.msra.mxu0 0.0
        %758 = vmatprep.subr.mxu0 0.0
        %759 = vmatpush1.msra.mxu0 0.0
        %760 = vmatprep.subr.mxu0 0.0
        %761 = vmatpush1.msra.mxu0 0.0
        %762 = vmatprep.subr.mxu0 0.0
        %763 = vmatpush1.msra.mxu0 0.0
        %764 = vmatprep.subr.mxu0 0.0
        %765 = vmatpush1.msra.mxu0 0.0
        %766 = vmatprep.subr.mxu0 0.0
        %767 = vmatpush1.msra.mxu0 0.0
        %768 = vmatprep.subr.mxu0 0.0
        %769 = vmatpush1.msra.mxu0 0.0
        %770 = vmatprep.subr.mxu0 0.0
        %771 = vmatpush1.msra.mxu0 0.0
        %772 = vmatprep.subr.mxu0 0.0
        %773 = vmatpush1.msra.mxu0 0.0
        %774 = vmatprep.subr.mxu0 0.0
        %775 = vmatpush1.msra.mxu0 0.0
        %776 = vmatprep.subr.mxu0 0.0
        %777 = vmatpush1.msra.mxu0 0.0
        %778 = vmatprep.subr.mxu0 0.0
        %779 = vmatpush1.msra.mxu0 0.0
        %780 = vmatprep.subr.mxu0 0.0
        %781 = vmatpush1.msra.mxu0 0.0
        %782 = vmatprep.subr.mxu0 0.0
        %783 = vmatpush1.msra.mxu0 0.0
        %784 = vmatprep.subr.mxu0 0.0
        %785 = vmatpush1.msra.mxu0 0.0
        %786 = vmatprep.subr.mxu0 0.0
        %787 = vmatpush1.msra.mxu0 0.0
        %788 = vmatprep.subr.mxu0 0.0
        %789 = vmatpush1.msra.mxu0 0.0
        %790 = vmatprep.subr.mxu0 0.0
        %791 = vmatpush1.msra.mxu0 0.0
        %792 = vmatprep.subr.mxu0 0.0
        %793 = vmatpush1.msra.mxu0 0.0
        %794 = vmatprep.subr.mxu0 0.0
        %795 = vmatpush1.msra.mxu0 0.0
        %796 = vmatprep.subr.mxu0 0.0
        %797 = vmatpush1.msra.mxu0 0.0
        %798 = vmatprep.subr.mxu0 0.0
        %799 = vmatpush1.msra.mxu0 0.0
        %800 = vmatprep.subr.mxu0 0.0
        %801 = vmatpush1.msra.mxu0 0.0
        %802 = vmatprep.subr.mxu0 0.0
        %803 = vmatpush1.msra.mxu0 0.0
        %804 = vmatprep.subr.mxu0 0.0
        %805 = vmatpush1.msra.mxu0 0.0
        %806 = vmatprep.subr.mxu0 0.0
        %807 = vmatpush1.msra.mxu0 0.0
        %808 = vmatprep.subr.mxu0 0.0
        %809 = vmatpush1.msra.mxu0 0.0
        %810 = vmatprep.subr.mxu0 0.0
        %811 = vmatpush1.msra.mxu0 0.0
        %812 = vmatprep.subr.mxu0 0.0
        %813 = vmatpush1.msra.mxu0 0.0
        %814 = vmatprep.subr.mxu0 0.0
        %815 = vmatpush1.msra.mxu0 0.0
        %816 = vmatprep.mubr.f32.mxu0 0.0
        %817 = vmatmul.mubr.f32.gmra.mrb[0].mxu0 %v746
        %v818 = vpop.f32.mrb[0].mxu0
        %v819 = vadd.f32 0.0, %v818
        %v820 = vpop.f32.mrb[0].mxu0
        %821 = vdwg.mxu0
        %v822 = vld [vmem:[#allocation4] sm:$0xff]
        %vm823 = vcmask 64512
        %v824 = vsel %vm823, %v819, -inf
        %825 = vmax.xlane.f32.xlu0 %v824
        %v826 = vpop.xlane.xlu0 %825
        %v827 = vmax.f32 %v822, %v826
        %v828 = vsub.f32 %v822, %v827
        %v829 = vmul.f32 %v828, 1.442695
        %v830 = vpow.pop %v829
        %832 = vset.pattern.permute.xlu0 0
        %833 = vperm.xlu0 %832, %v827
        %v834 = vpop.permute.xlu0 %833
        %v836 = vsub.f32 %v819, %v834
        %v837 = vmul.f32 %v836, 1.442695
        %v838 = vpow.pop %v837
        %v839 = vld [vmem:[#allocation5] sm:$0xff]
        %v840 = vmul.f32 %v830, %v839
        %v841 = vsel %vm823, %v838, 0.0
        %842 = vadd.xlane.f32.xlu0 %v841
        %v843 = vpop.xlane.xlu0 %842
        %v844 = vadd.f32 %v840, %v843
        %vm845 = vcmask 7168
        %846 = vst.msk [vmem:[#allocation5] sm:$0xff] %vm845, %v844
        %v847 = vld [vmem:[#allocation6] sm:$0xff]
        %849 = vset.pattern.permute.xlu0 0
        %850 = vperm.xlu0 %849, %v830
        %v851 = vpop.permute.xlu0 %850
        %v853 = vmul.f32 %v851, %v847
        %v855 = vsel %vm823, %v838, 0
        %v858 = vsel %vm823, %v725, 0
        %860 = vmatprep.subr.mxu0 0.0
        %861 = vmatpush1.xpose.msra.mxu0 %v858
        %862 = vmatprep.subr.mxu0 0.0
        %863 = vmatpush1.xpose.msra.mxu0 0.0
        %864 = vmatprep.subr.mxu0 0.0
        %865 = vmatpush1.xpose.msra.mxu0 0.0
        %866 = vmatprep.subr.mxu0 0.0
        %867 = vmatpush1.xpose.msra.mxu0 0.0
        %868 = vmatprep.subr.mxu0 0.0
        %869 = vmatpush1.xpose.msra.mxu0 0.0
        %870 = vmatprep.subr.mxu0 0.0
        %871 = vmatpush1.xpose.msra.mxu0 0.0
        %872 = vmatprep.subr.mxu0 0.0
        %873 = vmatpush1.xpose.msra.mxu0 0.0
        %874 = vmatprep.subr.mxu0 0.0
        %875 = vmatpush1.xpose.msra.mxu0 0.0
        %876 = vmatprep.subr.mxu0 0.0
        %877 = vmatpush1.xpose.msra.mxu0 0.0
        %878 = vmatprep.subr.mxu0 0.0
        %879 = vmatpush1.xpose.msra.mxu0 0.0
        %880 = vmatprep.subr.mxu0 0.0
        %881 = vmatpush1.xpose.msra.mxu0 0.0
        %882 = vmatprep.subr.mxu0 0.0
        %883 = vmatpush1.xpose.msra.mxu0 0.0
        %884 = vmatprep.subr.mxu0 0.0
        %885 = vmatpush1.xpose.msra.mxu0 0.0
        %886 = vmatprep.subr.mxu0 0.0
        %887 = vmatpush1.xpose.msra.mxu0 0.0
        %888 = vmatprep.subr.mxu0 0.0
        %889 = vmatpush1.xpose.msra.mxu0 0.0
        %890 = vmatprep.subr.mxu0 0.0
        %891 = vmatpush1.xpose.msra.mxu0 0.0
        %892 = vmatprep.subr.mxu0 0.0
        %893 = vmatpush1.xpose.msra.mxu0 0.0
        %894 = vmatprep.subr.mxu0 0.0
        %895 = vmatpush1.xpose.msra.mxu0 0.0
        %896 = vmatprep.subr.mxu0 0.0
        %897 = vmatpush1.xpose.msra.mxu0 0.0
        %898 = vmatprep.subr.mxu0 0.0
        %899 = vmatpush1.xpose.msra.mxu0 0.0
        %900 = vmatprep.subr.mxu0 0.0
        %901 = vmatpush1.xpose.msra.mxu0 0.0
        %902 = vmatprep.subr.mxu0 0.0
        %903 = vmatpush1.xpose.msra.mxu0 0.0
        %904 = vmatprep.subr.mxu0 0.0
        %905 = vmatpush1.xpose.msra.mxu0 0.0
        %906 = vmatprep.subr.mxu0 0.0
        %907 = vmatpush1.xpose.msra.mxu0 0.0
        %908 = vmatprep.subr.mxu0 0.0
        %909 = vmatpush1.xpose.msra.mxu0 0.0
        %910 = vmatprep.subr.mxu0 0.0
        %911 = vmatpush1.xpose.msra.mxu0 0.0
        %912 = vmatprep.subr.mxu0 0.0
        %913 = vmatpush1.xpose.msra.mxu0 0.0
        %914 = vmatprep.subr.mxu0 0.0
        %915 = vmatpush1.xpose.msra.mxu0 0.0
        %916 = vmatprep.subr.mxu0 0.0
        %917 = vmatpush1.xpose.msra.mxu0 0.0
        %918 = vmatprep.subr.mxu0 0.0
        %919 = vmatpush1.xpose.msra.mxu0 0.0
        %920 = vmatprep.subr.mxu0 0.0
        %921 = vmatpush1.xpose.msra.mxu0 0.0
        %922 = vmatprep.subr.mxu0 0.0
        %923 = vmatpush1.xpose.msra.mxu0 0.0
        %924 = vmatprep.mubr.f32.mxu0 0.0
        %925 = vmatmul.mubr.f32.gmra.mrb[0].mxu0 %v855
        %v926 = vpop.f32.mrb[0].mxu0
        %v927 = vadd.f32 0.0, %v926
        %v928 = vpop.f32.mrb[0].mxu0
        %929 = vdwg.mxu0
        %v930 = vadd.f32 %v853, %v927
        %931 = vst.msk [vmem:[#allocation6] sm:$0xff] %vm744, %v930
        %932 = vst.msk [vmem:[#allocation4] sm:$0xff] %vm845, %v827
        %s933 = scalar_lea.vmem [#allocation3], 8
        %v934 = vld [vmem:[%s933] sm:$0xff]
        %v935 = vrot.slane %v623, 4
        %v937 = vsel %vm744, %v934, 0
        %v939 = vsel %vm748, %v935, 0
        %941 = vmatprep.subr.mxu0 0.0
        %942 = vmatpush1.msra.mxu0 %v939
        %943 = vmatprep.subr.mxu0 0.0
        %944 = vmatpush1.msra.mxu0 0.0
        %945 = vmatprep.subr.mxu0 0.0
        %946 = vmatpush1.msra.mxu0 0.0
        %947 = vmatprep.subr.mxu0 0.0
        %948 = vmatpush1.msra.mxu0 0.0
        %949 = vmatprep.subr.mxu0 0.0
        %950 = vmatpush1.msra.mxu0 0.0
        %951 = vmatprep.subr.mxu0 0.0
        %952 = vmatpush1.msra.mxu0 0.0
        %953 = vmatprep.subr.mxu0 0.0
        %954 = vmatpush1.msra.mxu0 0.0
        %955 = vmatprep.subr.mxu0 0.0
        %956 = vmatpush1.msra.mxu0 0.0
        %957 = vmatprep.subr.mxu0 0.0
        %958 = vmatpush1.msra.mxu0 0.0
        %959 = vmatprep.subr.mxu0 0.0
        %960 = vmatpush1.msra.mxu0 0.0
        %961 = vmatprep.subr.mxu0 0.0
        %962 = vmatpush1.msra.mxu0 0.0
        %963 = vmatprep.subr.mxu0 0.0
        %964 = vmatpush1.msra.mxu0 0.0
        %965 = vmatprep.subr.mxu0 0.0
        %966 = vmatpush1.msra.mxu0 0.0
        %967 = vmatprep.subr.mxu0 0.0
        %968 = vmatpush1.msra.mxu0 0.0
        %969 = vmatprep.subr.mxu0 0.0
        %970 = vmatpush1.msra.mxu0 0.0
        %971 = vmatprep.subr.mxu0 0.0
        %972 = vmatpush1.msra.mxu0 0.0
        %973 = vmatprep.subr.mxu0 0.0
        %974 = vmatpush1.msra.mxu0 0.0
        %975 = vmatprep.subr.mxu0 0.0
        %976 = vmatpush1.msra.mxu0 0.0
        %977 = vmatprep.subr.mxu0 0.0
        %978 = vmatpush1.msra.mxu0 0.0
        %979 = vmatprep.subr.mxu0 0.0
        %980 = vmatpush1.msra.mxu0 0.0
        %981 = vmatprep.subr.mxu0 0.0
        %982 = vmatpush1.msra.mxu0 0.0
        %983 = vmatprep.subr.mxu0 0.0
        %984 = vmatpush1.msra.mxu0 0.0
        %985 = vmatprep.subr.mxu0 0.0
        %986 = vmatpush1.msra.mxu0 0.0
        %987 = vmatprep.subr.mxu0 0.0
        %988 = vmatpush1.msra.mxu0 0.0
        %989 = vmatprep.subr.mxu0 0.0
        %990 = vmatpush1.msra.mxu0 0.0
        %991 = vmatprep.subr.mxu0 0.0
        %992 = vmatpush1.msra.mxu0 0.0
        %993 = vmatprep.subr.mxu0 0.0
        %994 = vmatpush1.msra.mxu0 0.0
        %995 = vmatprep.subr.mxu0 0.0
        %996 = vmatpush1.msra.mxu0 0.0
        %997 = vmatprep.subr.mxu0 0.0
        %998 = vmatpush1.msra.mxu0 0.0
        %999 = vmatprep.subr.mxu0 0.0
        %1000 = vmatpush1.msra.mxu0 0.0
        %1001 = vmatprep.subr.mxu0 0.0
        %1002 = vmatpush1.msra.mxu0 0.0
        %1003 = vmatprep.subr.mxu0 0.0
        %1004 = vmatpush1.msra.mxu0 0.0
        %1005 = vmatprep.mubr.f32.mxu0 0.0
        %1006 = vmatmul.mubr.f32.gmra.mrb[0].mxu0 %v937
        %v1007 = vpop.f32.mrb[0].mxu0
        %v1008 = vadd.f32 0.0, %v1007
        %v1009 = vpop.f32.mrb[0].mxu0
        %1010 = vdwg.mxu0
        %s1011 = scalar_lea.vmem [#allocation4], 8
        %v1012 = vld [vmem:[%s1011] sm:$0xff]
        %v1013 = vsel %vm823, %v1008, -inf
        %1014 = vmax.xlane.f32.xlu0 %v1013
        %v1015 = vpop.xlane.xlu0 %1014
        %v1016 = vmax.f32 %v1012, %v1015
        %v1017 = vsub.f32 %v1012, %v1016
        %v1018 = vmul.f32 %v1017, 1.442695
        %v1019 = vpow.pop %v1018
        %1021 = vset.pattern.permute.xlu0 0
        %1022 = vperm.xlu0 %1021, %v1016
        %v1023 = vpop.permute.xlu0 %1022
        %v1025 = vsub.f32 %v1008, %v1023
        %v1026 = vmul.f32 %v1025, 1.442695
        %v1027 = vpow.pop %v1026
        %s1028 = scalar_lea.vmem [#allocation5], 8
        %v1029 = vld [vmem:[%s1028] sm:$0xff]
        %v1030 = vmul.f32 %v1019, %v1029
        %v1031 = vsel %vm823, %v1027, 0.0
        %1032 = vadd.xlane.f32.xlu0 %v1031
        %v1033 = vpop.xlane.xlu0 %1032
        %v1034 = vadd.f32 %v1030, %v1033
        %1035 = vst.msk [vmem:[%s1028] sm:$0xff] %vm845, %v1034
        %s1036 = scalar_lea.vmem [#allocation6], 8
        %v1037 = vld [vmem:[%s1036] sm:$0xff]
        %1039 = vset.pattern.permute.xlu0 0
        %1040 = vperm.xlu0 %1039, %v1019
        %v1041 = vpop.permute.xlu0 %1040
        %v1043 = vmul.f32 %v1041, %v1037
        %v1044 = vrot.slane %v725, 4
        %v1046 = vsel %vm823, %v1027, 0
        %v1048 = vsel %vm823, %v1044, 0
        %1050 = vmatprep.subr.mxu0 0.0
        %1051 = vmatpush1.xpose.msra.mxu0 %v1048
        %1052 = vmatprep.subr.mxu0 0.0
        %1053 = vmatpush1.xpose.msra.mxu0 0.0
        %1054 = vmatprep.subr.mxu0 0.0
        %1055 = vmatpush1.xpose.msra.mxu0 0.0
        %1056 = vmatprep.subr.mxu0 0.0
        %1057 = vmatpush1.xpose.msra.mxu0 0.0
        %1058 = vmatprep.subr.mxu0 0.0
        %1059 = vmatpush1.xpose.msra.mxu0 0.0
        %1060 = vmatprep.subr.mxu0 0.0
        %1061 = vmatpush1.xpose.msra.mxu0 0.0
        %1062 = vmatprep.subr.mxu0 0.0
        %1063 = vmatpush1.xpose.msra.mxu0 0.0
        %1064 = vmatprep.subr.mxu0 0.0
        %1065 = vmatpush1.xpose.msra.mxu0 0.0
        %1066 = vmatprep.subr.mxu0 0.0
        %1067 = vmatpush1.xpose.msra.mxu0 0.0
        %1068 = vmatprep.subr.mxu0 0.0
        %1069 = vmatpush1.xpose.msra.mxu0 0.0
        %1070 = vmatprep.subr.mxu0 0.0
        %1071 = vmatpush1.xpose.msra.mxu0 0.0
        %1072 = vmatprep.subr.mxu0 0.0
        %1073 = vmatpush1.xpose.msra.mxu0 0.0
        %1074 = vmatprep.subr.mxu0 0.0
        %1075 = vmatpush1.xpose.msra.mxu0 0.0
        %1076 = vmatprep.subr.mxu0 0.0
        %1077 = vmatpush1.xpose.msra.mxu0 0.0
        %1078 = vmatprep.subr.mxu0 0.0
        %1079 = vmatpush1.xpose.msra.mxu0 0.0
        %1080 = vmatprep.subr.mxu0 0.0
        %1081 = vmatpush1.xpose.msra.mxu0 0.0
        %1082 = vmatprep.subr.mxu0 0.0
        %1083 = vmatpush1.xpose.msra.mxu0 0.0
        %1084 = vmatprep.subr.mxu0 0.0
        %1085 = vmatpush1.xpose.msra.mxu0 0.0
        %1086 = vmatprep.subr.mxu0 0.0
        %1087 = vmatpush1.xpose.msra.mxu0 0.0
        %1088 = vmatprep.subr.mxu0 0.0
        %1089 = vmatpush1.xpose.msra.mxu0 0.0
        %1090 = vmatprep.subr.mxu0 0.0
        %1091 = vmatpush1.xpose.msra.mxu0 0.0
        %1092 = vmatprep.subr.mxu0 0.0
        %1093 = vmatpush1.xpose.msra.mxu0 0.0
        %1094 = vmatprep.subr.mxu0 0.0
        %1095 = vmatpush1.xpose.msra.mxu0 0.0
        %1096 = vmatprep.subr.mxu0 0.0
        %1097 = vmatpush1.xpose.msra.mxu0 0.0
        %1098 = vmatprep.subr.mxu0 0.0
        %1099 = vmatpush1.xpose.msra.mxu0 0.0
        %1100 = vmatprep.subr.mxu0 0.0
        %1101 = vmatpush1.xpose.msra.mxu0 0.0
        %1102 = vmatprep.subr.mxu0 0.0
        %1103 = vmatpush1.xpose.msra.mxu0 0.0
        %1104 = vmatprep.subr.mxu0 0.0
        %1105 = vmatpush1.xpose.msra.mxu0 0.0
        %1106 = vmatprep.subr.mxu0 0.0
        %1107 = vmatpush1.xpose.msra.mxu0 0.0
        %1108 = vmatprep.subr.mxu0 0.0
        %1109 = vmatpush1.xpose.msra.mxu0 0.0
        %1110 = vmatprep.subr.mxu0 0.0
        %1111 = vmatpush1.xpose.msra.mxu0 0.0
        %1112 = vmatprep.subr.mxu0 0.0
        %1113 = vmatpush1.xpose.msra.mxu0 0.0
        %1114 = vmatprep.mubr.f32.mxu0 0.0
        %1115 = vmatmul.mubr.f32.gmra.mrb[0].mxu0 %v1046
        %v1116 = vpop.f32.mrb[0].mxu0
        %v1117 = vadd.f32 0.0, %v1116
        %v1118 = vpop.f32.mrb[0].mxu0
        %1119 = vdwg.mxu0
        %v1120 = vadd.f32 %v1043, %v1117
        %1121 = vst.msk [vmem:[%s1036] sm:$0xff] %vm744, %v1120
        %1122 = vst.msk [vmem:[%s1011] sm:$0xff] %vm845, %v1016
        %s1123 = scalar_lea.vmem [#allocation3], 16
        %v1124 = vld [vmem:[%s1123] sm:$0xff]
        %v1126 = vsel %vm744, %v1124, 0
        %v1129 = vsel %vm748, %v628, 0
        %1131 = vmatprep.subr.mxu0 0.0
        %1132 = vmatpush1.msra.mxu0 %v1129
        %1133 = vmatprep.subr.mxu0 0.0
        %1134 = vmatpush1.msra.mxu0 0.0
        %1135 = vmatprep.subr.mxu0 0.0
        %1136 = vmatpush1.msra.mxu0 0.0
        %1137 = vmatprep.subr.mxu0 0.0
        %1138 = vmatpush1.msra.mxu0 0.0
        %1139 = vmatprep.subr.mxu0 0.0
        %1140 = vmatpush1.msra.mxu0 0.0
        %1141 = vmatprep.subr.mxu0 0.0
        %1142 = vmatpush1.msra.mxu0 0.0
        %1143 = vmatprep.subr.mxu0 0.0
        %1144 = vmatpush1.msra.mxu0 0.0
        %1145 = vmatprep.subr.mxu0 0.0
        %1146 = vmatpush1.msra.mxu0 0.0
        %1147 = vmatprep.subr.mxu0 0.0
        %1148 = vmatpush1.msra.mxu0 0.0
        %1149 = vmatprep.subr.mxu0 0.0
        %1150 = vmatpush1.msra.mxu0 0.0
        %1151 = vmatprep.subr.mxu0 0.0
        %1152 = vmatpush1.msra.mxu0 0.0
        %1153 = vmatprep.subr.mxu0 0.0
        %1154 = vmatpush1.msra.mxu0 0.0
        %1155 = vmatprep.subr.mxu0 0.0
        %1156 = vmatpush1.msra.mxu0 0.0
        %1157 = vmatprep.subr.mxu0 0.0
        %1158 = vmatpush1.msra.mxu0 0.0
        %1159 = vmatprep.subr.mxu0 0.0
        %1160 = vmatpush1.msra.mxu0 0.0
        %1161 = vmatprep.subr.mxu0 0.0
        %1162 = vmatpush1.msra.mxu0 0.0
        %1163 = vmatprep.subr.mxu0 0.0
        %1164 = vmatpush1.msra.mxu0 0.0
        %1165 = vmatprep.subr.mxu0 0.0
        %1166 = vmatpush1.msra.mxu0 0.0
        %1167 = vmatprep.subr.mxu0 0.0
        %1168 = vmatpush1.msra.mxu0 0.0
        %1169 = vmatprep.subr.mxu0 0.0
        %1170 = vmatpush1.msra.mxu0 0.0
        %1171 = vmatprep.subr.mxu0 0.0
        %1172 = vmatpush1.msra.mxu0 0.0
        %1173 = vmatprep.subr.mxu0 0.0
        %1174 = vmatpush1.msra.mxu0 0.0
        %1175 = vmatprep.subr.mxu0 0.0
        %1176 = vmatpush1.msra.mxu0 0.0
        %1177 = vmatprep.subr.mxu0 0.0
        %1178 = vmatpush1.msra.mxu0 0.0
        %1179 = vmatprep.subr.mxu0 0.0
        %1180 = vmatpush1.msra.mxu0 0.0
        %1181 = vmatprep.subr.mxu0 0.0
        %1182 = vmatpush1.msra.mxu0 0.0
        %1183 = vmatprep.subr.mxu0 0.0
        %1184 = vmatpush1.msra.mxu0 0.0
        %1185 = vmatprep.subr.mxu0 0.0
        %1186 = vmatpush1.msra.mxu0 0.0
        %1187 = vmatprep.subr.mxu0 0.0
        %1188 = vmatpush1.msra.mxu0 0.0
        %1189 = vmatprep.subr.mxu0 0.0
        %1190 = vmatpush1.msra.mxu0 0.0
        %1191 = vmatprep.subr.mxu0 0.0
        %1192 = vmatpush1.msra.mxu0 0.0
        %1193 = vmatprep.subr.mxu0 0.0
        %1194 = vmatpush1.msra.mxu0 0.0
        %1195 = vmatprep.mubr.f32.mxu0 0.0
        %1196 = vmatmul.mubr.f32.gmra.mrb[0].mxu0 %v1126
        %v1197 = vpop.f32.mrb[0].mxu0
        %v1198 = vadd.f32 0.0, %v1197
        %v1199 = vpop.f32.mrb[0].mxu0
        %1200 = vdwg.mxu0
        %s1201 = scalar_lea.vmem [#allocation4], 16
        %v1202 = vld [vmem:[%s1201] sm:$0xff]
        %v1203 = vsel %vm823, %v1198, -inf
        %1204 = vmax.xlane.f32.xlu0 %v1203
        %v1205 = vpop.xlane.xlu0 %1204
        %v1206 = vmax.f32 %v1202, %v1205
        %v1207 = vsub.f32 %v1202, %v1206
        %v1208 = vmul.f32 %v1207, 1.442695
        %v1209 = vpow.pop %v1208
        %1211 = vset.pattern.permute.xlu0 0
        %1212 = vperm.xlu0 %1211, %v1206
        %v1213 = vpop.permute.xlu0 %1212
        %v1215 = vsub.f32 %v1198, %v1213
        %v1216 = vmul.f32 %v1215, 1.442695
        %v1217 = vpow.pop %v1216
        %s1218 = scalar_lea.vmem [#allocation5], 16
        %v1219 = vld [vmem:[%s1218] sm:$0xff]
        %v1220 = vmul.f32 %v1209, %v1219
        %v1221 = vsel %vm823, %v1217, 0.0
        %1222 = vadd.xlane.f32.xlu0 %v1221
        %v1223 = vpop.xlane.xlu0 %1222
        %v1224 = vadd.f32 %v1220, %v1223
        %1225 = vst.msk [vmem:[%s1218] sm:$0xff] %vm845, %v1224
        %s1226 = scalar_lea.vmem [#allocation6], 16
        %v1227 = vld [vmem:[%s1226] sm:$0xff]
        %1229 = vset.pattern.permute.xlu0 0
        %1230 = vperm.xlu0 %1229, %v1209
        %v1231 = vpop.permute.xlu0 %1230
        %v1233 = vmul.f32 %v1231, %v1227
        %v1235 = vsel %vm823, %v1217, 0
        %v1238 = vsel %vm823, %v730, 0
        %1240 = vmatprep.subr.mxu0 0.0
        %1241 = vmatpush1.xpose.msra.mxu0 %v1238
        %1242 = vmatprep.subr.mxu0 0.0
        %1243 = vmatpush1.xpose.msra.mxu0 0.0
        %1244 = vmatprep.subr.mxu0 0.0
        %1245 = vmatpush1.xpose.msra.mxu0 0.0
        %1246 = vmatprep.subr.mxu0 0.0
        %1247 = vmatpush1.xpose.msra.mxu0 0.0
        %1248 = vmatprep.subr.mxu0 0.0
        %1249 = vmatpush1.xpose.msra.mxu0 0.0
        %1250 = vmatprep.subr.mxu0 0.0
        %1251 = vmatpush1.xpose.msra.mxu0 0.0
        %1252 = vmatprep.subr.mxu0 0.0
        %1253 = vmatpush1.xpose.msra.mxu0 0.0
        %1254 = vmatprep.subr.mxu0 0.0
        %1255 = vmatpush1.xpose.msra.mxu0 0.0
        %1256 = vmatprep.subr.mxu0 0.0
        %1257 = vmatpush1.xpose.msra.mxu0 0.0
        %1258 = vmatprep.subr.mxu0 0.0
        %1259 = vmatpush1.xpose.msra.mxu0 0.0
        %1260 = vmatprep.subr.mxu0 0.0
        %1261 = vmatpush1.xpose.msra.mxu0 0.0
        %1262 = vmatprep.subr.mxu0 0.0
        %1263 = vmatpush1.xpose.msra.mxu0 0.0
        %1264 = vmatprep.subr.mxu0 0.0
        %1265 = vmatpush1.xpose.msra.mxu0 0.0
        %1266 = vmatprep.subr.mxu0 0.0
        %1267 = vmatpush1.xpose.msra.mxu0 0.0
        %1268 = vmatprep.subr.mxu0 0.0
        %1269 = vmatpush1.xpose.msra.mxu0 0.0
        %1270 = vmatprep.subr.mxu0 0.0
        %1271 = vmatpush1.xpose.msra.mxu0 0.0
        %1272 = vmatprep.subr.mxu0 0.0
        %1273 = vmatpush1.xpose.msra.mxu0 0.0
        %1274 = vmatprep.subr.mxu0 0.0
        %1275 = vmatpush1.xpose.msra.mxu0 0.0
        %1276 = vmatprep.subr.mxu0 0.0
        %1277 = vmatpush1.xpose.msra.mxu0 0.0
        %1278 = vmatprep.subr.mxu0 0.0
        %1279 = vmatpush1.xpose.msra.mxu0 0.0
        %1280 = vmatprep.subr.mxu0 0.0
        %1281 = vmatpush1.xpose.msra.mxu0 0.0
        %1282 = vmatprep.subr.mxu0 0.0
        %1283 = vmatpush1.xpose.msra.mxu0 0.0
        %1284 = vmatprep.subr.mxu0 0.0
        %1285 = vmatpush1.xpose.msra.mxu0 0.0
        %1286 = vmatprep.subr.mxu0 0.0
        %1287 = vmatpush1.xpose.msra.mxu0 0.0
        %1288 = vmatprep.subr.mxu0 0.0
        %1289 = vmatpush1.xpose.msra.mxu0 0.0
        %1290 = vmatprep.subr.mxu0 0.0
        %1291 = vmatpush1.xpose.msra.mxu0 0.0
        %1292 = vmatprep.subr.mxu0 0.0
        %1293 = vmatpush1.xpose.msra.mxu0 0.0
        %1294 = vmatprep.subr.mxu0 0.0
        %1295 = vmatpush1.xpose.msra.mxu0 0.0
        %1296 = vmatprep.subr.mxu0 0.0
        %1297 = vmatpush1.xpose.msra.mxu0 0.0
        %1298 = vmatprep.subr.mxu0 0.0
        %1299 = vmatpush1.xpose.msra.mxu0 0.0
        %1300 = vmatprep.subr.mxu0 0.0
        %1301 = vmatpush1.xpose.msra.mxu0 0.0
        %1302 = vmatprep.subr.mxu0 0.0
        %1303 = vmatpush1.xpose.msra.mxu0 0.0
        %1304 = vmatprep.mubr.f32.mxu0 0.0
        %1305 = vmatmul.mubr.f32.gmra.mrb[0].mxu0 %v1235
        %v1306 = vpop.f32.mrb[0].mxu0
        %v1307 = vadd.f32 0.0, %v1306
        %v1308 = vpop.f32.mrb[0].mxu0
        %1309 = vdwg.mxu0
        %v1310 = vadd.f32 %v1233, %v1307
        %1311 = vst.msk [vmem:[%s1226] sm:$0xff] %vm744, %v1310
        %1312 = vst.msk [vmem:[%s1201] sm:$0xff] %vm845, %v1206
        %s1313 = scalar_lea.vmem [#allocation3], 24
        %v1314 = vld [vmem:[%s1313] sm:$0xff]
        %v1315 = vrot.slane %v628, 4
        %v1317 = vsel %vm744, %v1314, 0
        %v1319 = vsel %vm748, %v1315, 0
        %1321 = vmatprep.subr.mxu0 0.0
        %1322 = vmatpush1.msra.mxu0 %v1319
        %1323 = vmatprep.subr.mxu0 0.0
        %1324 = vmatpush1.msra.mxu0 0.0
        %1325 = vmatprep.subr.mxu0 0.0
        %1326 = vmatpush1.msra.mxu0 0.0
        %1327 = vmatprep.subr.mxu0 0.0
        %1328 = vmatpush1.msra.mxu0 0.0
        %1329 = vmatprep.subr.mxu0 0.0
        %1330 = vmatpush1.msra.mxu0 0.0
        %1331 = vmatprep.subr.mxu0 0.0
        %1332 = vmatpush1.msra.mxu0 0.0
        %1333 = vmatprep.subr.mxu0 0.0
        %1334 = vmatpush1.msra.mxu0 0.0
        %1335 = vmatprep.subr.mxu0 0.0
        %1336 = vmatpush1.msra.mxu0 0.0
        %1337 = vmatprep.subr.mxu0 0.0
        %1338 = vmatpush1.msra.mxu0 0.0
        %1339 = vmatprep.subr.mxu0 0.0
        %1340 = vmatpush1.msra.mxu0 0.0
        %1341 = vmatprep.subr.mxu0 0.0
        %1342 = vmatpush1.msra.mxu0 0.0
        %1343 = vmatprep.subr.mxu0 0.0
        %1344 = vmatpush1.msra.mxu0 0.0
        %1345 = vmatprep.subr.mxu0 0.0
        %1346 = vmatpush1.msra.mxu0 0.0
        %1347 = vmatprep.subr.mxu0 0.0
        %1348 = vmatpush1.msra.mxu0 0.0
        %1349 = vmatprep.subr.mxu0 0.0
        %1350 = vmatpush1.msra.mxu0 0.0
        %1351 = vmatprep.subr.mxu0 0.0
        %1352 = vmatpush1.msra.mxu0 0.0
        %1353 = vmatprep.subr.mxu0 0.0
        %1354 = vmatpush1.msra.mxu0 0.0
        %1355 = vmatprep.subr.mxu0 0.0
        %1356 = vmatpush1.msra.mxu0 0.0
        %1357 = vmatprep.subr.mxu0 0.0
        %1358 = vmatpush1.msra.mxu0 0.0
        %1359 = vmatprep.subr.mxu0 0.0
        %1360 = vmatpush1.msra.mxu0 0.0
        %1361 = vmatprep.subr.mxu0 0.0
        %1362 = vmatpush1.msra.mxu0 0.0
        %1363 = vmatprep.subr.mxu0 0.0
        %1364 = vmatpush1.msra.mxu0 0.0
        %1365 = vmatprep.subr.mxu0 0.0
        %1366 = vmatpush1.msra.mxu0 0.0
        %1367 = vmatprep.subr.mxu0 0.0
        %1368 = vmatpush1.msra.mxu0 0.0
        %1369 = vmatprep.subr.mxu0 0.0
        %1370 = vmatpush1.msra.mxu0 0.0
        %1371 = vmatprep.subr.mxu0 0.0
        %1372 = vmatpush1.msra.mxu0 0.0
        %1373 = vmatprep.subr.mxu0 0.0
        %1374 = vmatpush1.msra.mxu0 0.0
        %1375 = vmatprep.subr.mxu0 0.0
        %1376 = vmatpush1.msra.mxu0 0.0
        %1377 = vmatprep.subr.mxu0 0.0
        %1378 = vmatpush1.msra.mxu0 0.0
        %1379 = vmatprep.subr.mxu0 0.0
        %1380 = vmatpush1.msra.mxu0 0.0
        %1381 = vmatprep.subr.mxu0 0.0
        %1382 = vmatpush1.msra.mxu0 0.0
        %1383 = vmatprep.subr.mxu0 0.0
        %1384 = vmatpush1.msra.mxu0 0.0
        %1385 = vmatprep.mubr.f32.mxu0 0.0
        %1386 = vmatmul.mubr.f32.gmra.mrb[0].mxu0 %v1317
        %v1387 = vpop.f32.mrb[0].mxu0
        %v1388 = vadd.f32 0.0, %v1387
        %v1389 = vpop.f32.mrb[0].mxu0
        %1390 = vdwg.mxu0
        %s1391 = scalar_lea.vmem [#allocation4], 24
        %v1392 = vld [vmem:[%s1391] sm:$0xff]
        %v1393 = vsel %vm823, %v1388, -inf
        %1394 = vmax.xlane.f32.xlu0 %v1393
        %v1395 = vpop.xlane.xlu0 %1394
        %v1396 = vmax.f32 %v1392, %v1395
        %v1397 = vsub.f32 %v1392, %v1396
        %v1398 = vmul.f32 %v1397, 1.442695
        %v1399 = vpow.pop %v1398
        %1401 = vset.pattern.permute.xlu0 0
        %1402 = vperm.xlu0 %1401, %v1396
        %v1403 = vpop.permute.xlu0 %1402
        %v1405 = vsub.f32 %v1388, %v1403
        %v1406 = vmul.f32 %v1405, 1.442695
        %v1407 = vpow.pop %v1406
        %s1408 = scalar_lea.vmem [#allocation5], 24
        %v1409 = vld [vmem:[%s1408] sm:$0xff]
        %v1410 = vmul.f32 %v1399, %v1409
        %v1411 = vsel %vm823, %v1407, 0.0
        %1412 = vadd.xlane.f32.xlu0 %v1411
        %v1413 = vpop.xlane.xlu0 %1412
        %v1414 = vadd.f32 %v1410, %v1413
        %1415 = vst.msk [vmem:[%s1408] sm:$0xff] %vm845, %v1414
        %s1416 = scalar_lea.vmem [#allocation6], 24
        %v1417 = vld [vmem:[%s1416] sm:$0xff]
        %1419 = vset.pattern.permute.xlu0 0
        %1420 = vperm.xlu0 %1419, %v1399
        %v1421 = vpop.permute.xlu0 %1420
        %v1423 = vmul.f32 %v1421, %v1417
        %v1424 = vrot.slane %v730, 4
        %v1426 = vsel %vm823, %v1407, 0
        %v1428 = vsel %vm823, %v1424, 0
        %1430 = vmatprep.subr.mxu0 0.0
        %1431 = vmatpush1.xpose.msra.mxu0 %v1428
        %1432 = vmatprep.subr.mxu0 0.0
        %1433 = vmatpush1.xpose.msra.mxu0 0.0
        %1434 = vmatprep.subr.mxu0 0.0
        %1435 = vmatpush1.xpose.msra.mxu0 0.0
        %1436 = vmatprep.subr.mxu0 0.0
        %1437 = vmatpush1.xpose.msra.mxu0 0.0
        %1438 = vmatprep.subr.mxu0 0.0
        %1439 = vmatpush1.xpose.msra.mxu0 0.0
        %1440 = vmatprep.subr.mxu0 0.0
        %1441 = vmatpush1.xpose.msra.mxu0 0.0
        %1442 = vmatprep.subr.mxu0 0.0
        %1443 = vmatpush1.xpose.msra.mxu0 0.0
        %1444 = vmatprep.subr.mxu0 0.0
        %1445 = vmatpush1.xpose.msra.mxu0 0.0
        %1446 = vmatprep.subr.mxu0 0.0
        %1447 = vmatpush1.xpose.msra.mxu0 0.0
        %1448 = vmatprep.subr.mxu0 0.0
        %1449 = vmatpush1.xpose.msra.mxu0 0.0
        %1450 = vmatprep.subr.mxu0 0.0
        %1451 = vmatpush1.xpose.msra.mxu0 0.0
        %1452 = vmatprep.subr.mxu0 0.0
        %1453 = vmatpush1.xpose.msra.mxu0 0.0
        %1454 = vmatprep.subr.mxu0 0.0
        %1455 = vmatpush1.xpose.msra.mxu0 0.0
        %1456 = vmatprep.subr.mxu0 0.0
        %1457 = vmatpush1.xpose.msra.mxu0 0.0
        %1458 = vmatprep.subr.mxu0 0.0
        %1459 = vmatpush1.xpose.msra.mxu0 0.0
        %1460 = vmatprep.subr.mxu0 0.0
        %1461 = vmatpush1.xpose.msra.mxu0 0.0
        %1462 = vmatprep.subr.mxu0 0.0
        %1463 = vmatpush1.xpose.msra.mxu0 0.0
        %1464 = vmatprep.subr.mxu0 0.0
        %1465 = vmatpush1.xpose.msra.mxu0 0.0
        %1466 = vmatprep.subr.mxu0 0.0
        %1467 = vmatpush1.xpose.msra.mxu0 0.0
        %1468 = vmatprep.subr.mxu0 0.0
        %1469 = vmatpush1.xpose.msra.mxu0 0.0
        %1470 = vmatprep.subr.mxu0 0.0
        %1471 = vmatpush1.xpose.msra.mxu0 0.0
        %1472 = vmatprep.subr.mxu0 0.0
        %1473 = vmatpush1.xpose.msra.mxu0 0.0
        %1474 = vmatprep.subr.mxu0 0.0
        %1475 = vmatpush1.xpose.msra.mxu0 0.0
        %1476 = vmatprep.subr.mxu0 0.0
        %1477 = vmatpush1.xpose.msra.mxu0 0.0
        %1478 = vmatprep.subr.mxu0 0.0
        %1479 = vmatpush1.xpose.msra.mxu0 0.0
        %1480 = vmatprep.subr.mxu0 0.0
        %1481 = vmatpush1.xpose.msra.mxu0 0.0
        %1482 = vmatprep.subr.mxu0 0.0
        %1483 = vmatpush1.xpose.msra.mxu0 0.0
        %1484 = vmatprep.subr.mxu0 0.0
        %1485 = vmatpush1.xpose.msra.mxu0 0.0
        %1486 = vmatprep.subr.mxu0 0.0
        %1487 = vmatpush1.xpose.msra.mxu0 0.0
        %1488 = vmatprep.subr.mxu0 0.0
        %1489 = vmatpush1.xpose.msra.mxu0 0.0
        %1490 = vmatprep.subr.mxu0 0.0
        %1491 = vmatpush1.xpose.msra.mxu0 0.0
        %1492 = vmatprep.subr.mxu0 0.0
        %1493 = vmatpush1.xpose.msra.mxu0 0.0
        %1494 = vmatprep.mubr.f32.mxu0 0.0
        %1495 = vmatmul.mubr.f32.gmra.mrb[0].mxu0 %v1426
        %v1496 = vpop.f32.mrb[0].mxu0
        %v1497 = vadd.f32 0.0, %v1496
        %v1498 = vpop.f32.mrb[0].mxu0
        %1499 = vdwg.mxu0
        %v1500 = vadd.f32 %v1423, %v1497
        %1501 = vst.msk [vmem:[%s1416] sm:$0xff] %vm744, %v1500
        %1502 = vst.msk [vmem:[%s1391] sm:$0xff] %vm845, %v1396
        %s1503 = scalar_lea.vmem [#allocation3], 32
        %v1504 = vld [vmem:[%s1503] sm:$0xff]
        %v1506 = vsel %vm744, %v1504, 0
        %v1509 = vsel %vm748, %v633, 0
        %1511 = vmatprep.subr.mxu0 0.0
        %1512 = vmatpush1.msra.mxu0 %v1509
        %1513 = vmatprep.subr.mxu0 0.0
        %1514 = vmatpush1.msra.mxu0 0.0
        %1515 = vmatprep.subr.mxu0 0.0
        %1516 = vmatpush1.msra.mxu0 0.0
        %1517 = vmatprep.subr.mxu0 0.0
        %1518 = vmatpush1.msra.mxu0 0.0
        %1519 = vmatprep.subr.mxu0 0.0
        %1520 = vmatpush1.msra.mxu0 0.0
        %1521 = vmatprep.subr.mxu0 0.0
        %1522 = vmatpush1.msra.mxu0 0.0
        %1523 = vmatprep.subr.mxu0 0.0
        %1524 = vmatpush1.msra.mxu0 0.0
        %1525 = vmatprep.subr.mxu0 0.0
        %1526 = vmatpush1.msra.mxu0 0.0
        %1527 = vmatprep.subr.mxu0 0.0
        %1528 = vmatpush1.msra.mxu0 0.0
        %1529 = vmatprep.subr.mxu0 0.0
        %1530 = vmatpush1.msra.mxu0 0.0
        %1531 = vmatprep.subr.mxu0 0.0
        %1532 = vmatpush1.msra.mxu0 0.0
        %1533 = vmatprep.subr.mxu0 0.0
        %1534 = vmatpush1.msra.mxu0 0.0
        %1535 = vmatprep.subr.mxu0 0.0
        %1536 = vmatpush1.msra.mxu0 0.0
        %1537 = vmatprep.subr.mxu0 0.0
        %1538 = vmatpush1.msra.mxu0 0.0
        %1539 = vmatprep.subr.mxu0 0.0
        %1540 = vmatpush1.msra.mxu0 0.0
        %1541 = vmatprep.subr.mxu0 0.0
        %1542 = vmatpush1.msra.mxu0 0.0
        %1543 = vmatprep.subr.mxu0 0.0
        %1544 = vmatpush1.msra.mxu0 0.0
        %1545 = vmatprep.subr.mxu0 0.0
        %1546 = vmatpush1.msra.mxu0 0.0
        %1547 = vmatprep.subr.mxu0 0.0
        %1548 = vmatpush1.msra.mxu0 0.0
        %1549 = vmatprep.subr.mxu0 0.0
        %1550 = vmatpush1.msra.mxu0 0.0
        %1551 = vmatprep.subr.mxu0 0.0
        %1552 = vmatpush1.msra.mxu0 0.0
        %1553 = vmatprep.subr.mxu0 0.0
        %1554 = vmatpush1.msra.mxu0 0.0
        %1555 = vmatprep.subr.mxu0 0.0
        %1556 = vmatpush1.msra.mxu0 0.0
        %1557 = vmatprep.subr.mxu0 0.0
        %1558 = vmatpush1.msra.mxu0 0.0
        %1559 = vmatprep.subr.mxu0 0.0
        %1560 = vmatpush1.msra.mxu0 0.0
        %1561 = vmatprep.subr.mxu0 0.0
        %1562 = vmatpush1.msra.mxu0 0.0
        %1563 = vmatprep.subr.mxu0 0.0
        %1564 = vmatpush1.msra.mxu0 0.0
        %1565 = vmatprep.subr.mxu0 0.0
        %1566 = vmatpush1.msra.mxu0 0.0
        %1567 = vmatprep.subr.mxu0 0.0
        %1568 = vmatpush1.msra.mxu0 0.0
        %1569 = vmatprep.subr.mxu0 0.0
        %1570 = vmatpush1.msra.mxu0 0.0
        %1571 = vmatprep.subr.mxu0 0.0
        %1572 = vmatpush1.msra.mxu0 0.0
        %1573 = vmatprep.subr.mxu0 0.0
        %1574 = vmatpush1.msra.mxu0 0.0
        %1575 = vmatprep.mubr.f32.mxu0 0.0
        %1576 = vmatmul.mubr.f32.gmra.mrb[0].mxu0 %v1506
        %v1577 = vpop.f32.mrb[0].mxu0
        %v1578 = vadd.f32 0.0, %v1577
        %v1579 = vpop.f32.mrb[0].mxu0
        %1580 = vdwg.mxu0
        %s1581 = scalar_lea.vmem [#allocation4], 32
        %v1582 = vld [vmem:[%s1581] sm:$0xff]
        %v1583 = vsel %vm823, %v1578, -inf
        %1584 = vmax.xlane.f32.xlu0 %v1583
        %v1585 = vpop.xlane.xlu0 %1584
        %v1586 = vmax.f32 %v1582, %v1585
        %v1587 = vsub.f32 %v1582, %v1586
        %v1588 = vmul.f32 %v1587, 1.442695
        %v1589 = vpow.pop %v1588
        %1591 = vset.pattern.permute.xlu0 0
        %1592 = vperm.xlu0 %1591, %v1586
        %v1593 = vpop.permute.xlu0 %1592
        %v1595 = vsub.f32 %v1578, %v1593
        %v1596 = vmul.f32 %v1595, 1.442695
        %v1597 = vpow.pop %v1596
        %s1598 = scalar_lea.vmem [#allocation5], 32
        %v1599 = vld [vmem:[%s1598] sm:$0xff]
        %v1600 = vmul.f32 %v1589, %v1599
        %v1601 = vsel %vm823, %v1597, 0.0
        %1602 = vadd.xlane.f32.xlu0 %v1601
        %v1603 = vpop.xlane.xlu0 %1602
        %v1604 = vadd.f32 %v1600, %v1603
        %1605 = vst.msk [vmem:[%s1598] sm:$0xff] %vm845, %v1604
        %s1606 = scalar_lea.vmem [#allocation6], 32
        %v1607 = vld [vmem:[%s1606] sm:$0xff]
        %1609 = vset.pattern.permute.xlu0 0
        %1610 = vperm.xlu0 %1609, %v1589
        %v1611 = vpop.permute.xlu0 %1610
        %v1613 = vmul.f32 %v1611, %v1607
        %v1615 = vsel %vm823, %v1597, 0
        %v1618 = vsel %vm823, %v735, 0
        %1620 = vmatprep.subr.mxu0 0.0
        %1621 = vmatpush1.xpose.msra.mxu0 %v1618
        %1622 = vmatprep.subr.mxu0 0.0
        %1623 = vmatpush1.xpose.msra.mxu0 0.0
        %1624 = vmatprep.subr.mxu0 0.0
        %1625 = vmatpush1.xpose.msra.mxu0 0.0
        %1626 = vmatprep.subr.mxu0 0.0
        %1627 = vmatpush1.xpose.msra.mxu0 0.0
        %1628 = vmatprep.subr.mxu0 0.0
        %1629 = vmatpush1.xpose.msra.mxu0 0.0
        %1630 = vmatprep.subr.mxu0 0.0
        %1631 = vmatpush1.xpose.msra.mxu0 0.0
        %1632 = vmatprep.subr.mxu0 0.0
        %1633 = vmatpush1.xpose.msra.mxu0 0.0
        %1634 = vmatprep.subr.mxu0 0.0
        %1635 = vmatpush1.xpose.msra.mxu0 0.0
        %1636 = vmatprep.subr.mxu0 0.0
        %1637 = vmatpush1.xpose.msra.mxu0 0.0
        %1638 = vmatprep.subr.mxu0 0.0
        %1639 = vmatpush1.xpose.msra.mxu0 0.0
        %1640 = vmatprep.subr.mxu0 0.0
        %1641 = vmatpush1.xpose.msra.mxu0 0.0
        %1642 = vmatprep.subr.mxu0 0.0
        %1643 = vmatpush1.xpose.msra.mxu0 0.0
        %1644 = vmatprep.subr.mxu0 0.0
        %1645 = vmatpush1.xpose.msra.mxu0 0.0
        %1646 = vmatprep.subr.mxu0 0.0
        %1647 = vmatpush1.xpose.msra.mxu0 0.0
        %1648 = vmatprep.subr.mxu0 0.0
        %1649 = vmatpush1.xpose.msra.mxu0 0.0
        %1650 = vmatprep.subr.mxu0 0.0
        %1651 = vmatpush1.xpose.msra.mxu0 0.0
        %1652 = vmatprep.subr.mxu0 0.0
        %1653 = vmatpush1.xpose.msra.mxu0 0.0
        %1654 = vmatprep.subr.mxu0 0.0
        %1655 = vmatpush1.xpose.msra.mxu0 0.0
        %1656 = vmatprep.subr.mxu0 0.0
        %1657 = vmatpush1.xpose.msra.mxu0 0.0
        %1658 = vmatprep.subr.mxu0 0.0
        %1659 = vmatpush1.xpose.msra.mxu0 0.0
        %1660 = vmatprep.subr.mxu0 0.0
        %1661 = vmatpush1.xpose.msra.mxu0 0.0
        %1662 = vmatprep.subr.mxu0 0.0
        %1663 = vmatpush1.xpose.msra.mxu0 0.0
        %1664 = vmatprep.subr.mxu0 0.0
        %1665 = vmatpush1.xpose.msra.mxu0 0.0
        %1666 = vmatprep.subr.mxu0 0.0
        %1667 = vmatpush1.xpose.msra.mxu0 0.0
        %1668 = vmatprep.subr.mxu0 0.0
        %1669 = vmatpush1.xpose.msra.mxu0 0.0
        %1670 = vmatprep.subr.mxu0 0.0
        %1671 = vmatpush1.xpose.msra.mxu0 0.0
        %1672 = vmatprep.subr.mxu0 0.0
        %1673 = vmatpush1.xpose.msra.mxu0 0.0
        %1674 = vmatprep.subr.mxu0 0.0
        %1675 = vmatpush1.xpose.msra.mxu0 0.0
        %1676 = vmatprep.subr.mxu0 0.0
        %1677 = vmatpush1.xpose.msra.mxu0 0.0
        %1678 = vmatprep.subr.mxu0 0.0
        %1679 = vmatpush1.xpose.msra.mxu0 0.0
        %1680 = vmatprep.subr.mxu0 0.0
        %1681 = vmatpush1.xpose.msra.mxu0 0.0
        %1682 = vmatprep.subr.mxu0 0.0
        %1683 = vmatpush1.xpose.msra.mxu0 0.0
        %1684 = vmatprep.mubr.f32.mxu0 0.0
        %1685 = vmatmul.mubr.f32.gmra.mrb[0].mxu0 %v1615
        %v1686 = vpop.f32.mrb[0].mxu0
        %v1687 = vadd.f32 0.0, %v1686
        %v1688 = vpop.f32.mrb[0].mxu0
        %1689 = vdwg.mxu0
        %v1690 = vadd.f32 %v1613, %v1687
        %1691 = vst.msk [vmem:[%s1606] sm:$0xff] %vm744, %v1690
        %1692 = vst.msk [vmem:[%s1581] sm:$0xff] %vm845, %v1586
        %s1693 = scalar_lea.vmem [#allocation3], 40
        %v1694 = vld [vmem:[%s1693] sm:$0xff]
        %v1695 = vrot.slane %v633, 4
        %v1697 = vsel %vm744, %v1694, 0
        %v1699 = vsel %vm748, %v1695, 0
        %1701 = vmatprep.subr.mxu0 0.0
        %1702 = vmatpush1.msra.mxu0 %v1699
        %1703 = vmatprep.subr.mxu0 0.0
        %1704 = vmatpush1.msra.mxu0 0.0
        %1705 = vmatprep.subr.mxu0 0.0
        %1706 = vmatpush1.msra.mxu0 0.0
        %1707 = vmatprep.subr.mxu0 0.0
        %1708 = vmatpush1.msra.mxu0 0.0
        %1709 = vmatprep.subr.mxu0 0.0
        %1710 = vmatpush1.msra.mxu0 0.0
        %1711 = vmatprep.subr.mxu0 0.0
        %1712 = vmatpush1.msra.mxu0 0.0
        %1713 = vmatprep.subr.mxu0 0.0
        %1714 = vmatpush1.msra.mxu0 0.0
        %1715 = vmatprep.subr.mxu0 0.0
        %1716 = vmatpush1.msra.mxu0 0.0
        %1717 = vmatprep.subr.mxu0 0.0
        %1718 = vmatpush1.msra.mxu0 0.0
        %1719 = vmatprep.subr.mxu0 0.0
        %1720 = vmatpush1.msra.mxu0 0.0
        %1721 = vmatprep.subr.mxu0 0.0
        %1722 = vmatpush1.msra.mxu0 0.0
        %1723 = vmatprep.subr.mxu0 0.0
        %1724 = vmatpush1.msra.mxu0 0.0
        %1725 = vmatprep.subr.mxu0 0.0
        %1726 = vmatpush1.msra.mxu0 0.0
        %1727 = vmatprep.subr.mxu0 0.0
        %1728 = vmatpush1.msra.mxu0 0.0
        %1729 = vmatprep.subr.mxu0 0.0
        %1730 = vmatpush1.msra.mxu0 0.0
        %1731 = vmatprep.subr.mxu0 0.0
        %1732 = vmatpush1.msra.mxu0 0.0
        %1733 = vmatprep.subr.mxu0 0.0
        %1734 = vmatpush1.msra.mxu0 0.0
        %1735 = vmatprep.subr.mxu0 0.0
        %1736 = vmatpush1.msra.mxu0 0.0
        %1737 = vmatprep.subr.mxu0 0.0
        %1738 = vmatpush1.msra.mxu0 0.0
        %1739 = vmatprep.subr.mxu0 0.0
        %1740 = vmatpush1.msra.mxu0 0.0
        %1741 = vmatprep.subr.mxu0 0.0
        %1742 = vmatpush1.msra.mxu0 0.0
        %1743 = vmatprep.subr.mxu0 0.0
        %1744 = vmatpush1.msra.mxu0 0.0
        %1745 = vmatprep.subr.mxu0 0.0
        %1746 = vmatpush1.msra.mxu0 0.0
        %1747 = vmatprep.subr.mxu0 0.0
        %1748 = vmatpush1.msra.mxu0 0.0
        %1749 = vmatprep.subr.mxu0 0.0
        %1750 = vmatpush1.msra.mxu0 0.0
        %1751 = vmatprep.subr.mxu0 0.0
        %1752 = vmatpush1.msra.mxu0 0.0
        %1753 = vmatprep.subr.mxu0 0.0
        %1754 = vmatpush1.msra.mxu0 0.0
        %1755 = vmatprep.subr.mxu0 0.0
        %1756 = vmatpush1.msra.mxu0 0.0
        %1757 = vmatprep.subr.mxu0 0.0
        %1758 = vmatpush1.msra.mxu0 0.0
        %1759 = vmatprep.subr.mxu0 0.0
        %1760 = vmatpush1.msra.mxu0 0.0
        %1761 = vmatprep.subr.mxu0 0.0
        %1762 = vmatpush1.msra.mxu0 0.0
        %1763 = vmatprep.subr.mxu0 0.0
        %1764 = vmatpush1.msra.mxu0 0.0
        %1765 = vmatprep.mubr.f32.mxu0 0.0
        %1766 = vmatmul.mubr.f32.gmra.mrb[0].mxu0 %v1697
        %v1767 = vpop.f32.mrb[0].mxu0
        %v1768 = vadd.f32 0.0, %v1767
        %v1769 = vpop.f32.mrb[0].mxu0
        %1770 = vdwg.mxu0
        %s1771 = scalar_lea.vmem [#allocation4], 40
        %v1772 = vld [vmem:[%s1771] sm:$0xff]
        %v1773 = vsel %vm823, %v1768, -inf
        %1774 = vmax.xlane.f32.xlu0 %v1773
        %v1775 = vpop.xlane.xlu0 %1774
        %v1776 = vmax.f32 %v1772, %v1775
        %v1777 = vsub.f32 %v1772, %v1776
        %v1778 = vmul.f32 %v1777, 1.442695
        %v1779 = vpow.pop %v1778
        %1781 = vset.pattern.permute.xlu0 0
        %1782 = vperm.xlu0 %1781, %v1776
        %v1783 = vpop.permute.xlu0 %1782
        %v1785 = vsub.f32 %v1768, %v1783
        %v1786 = vmul.f32 %v1785, 1.442695
        %v1787 = vpow.pop %v1786
        %s1788 = scalar_lea.vmem [#allocation5], 40
        %v1789 = vld [vmem:[%s1788] sm:$0xff]
        %v1790 = vmul.f32 %v1779, %v1789
        %v1791 = vsel %vm823, %v1787, 0.0
        %1792 = vadd.xlane.f32.xlu0 %v1791
        %v1793 = vpop.xlane.xlu0 %1792
        %v1794 = vadd.f32 %v1790, %v1793
        %1795 = vst.msk [vmem:[%s1788] sm:$0xff] %vm845, %v1794
        %s1796 = scalar_lea.vmem [#allocation6], 40
        %v1797 = vld [vmem:[%s1796] sm:$0xff]
        %1799 = vset.pattern.permute.xlu0 0
        %1800 = vperm.xlu0 %1799, %v1779
        %v1801 = vpop.permute.xlu0 %1800
        %v1803 = vmul.f32 %v1801, %v1797
        %v1804 = vrot.slane %v735, 4
        %v1806 = vsel %vm823, %v1787, 0
        %v1808 = vsel %vm823, %v1804, 0
        %1810 = vmatprep.subr.mxu0 0.0
        %1811 = vmatpush1.xpose.msra.mxu0 %v1808
        %1812 = vmatprep.subr.mxu0 0.0
        %1813 = vmatpush1.xpose.msra.mxu0 0.0
        %1814 = vmatprep.subr.mxu0 0.0
        %1815 = vmatpush1.xpose.msra.mxu0 0.0
        %1816 = vmatprep.subr.mxu0 0.0
        %1817 = vmatpush1.xpose.msra.mxu0 0.0
        %1818 = vmatprep.subr.mxu0 0.0
        %1819 = vmatpush1.xpose.msra.mxu0 0.0
        %1820 = vmatprep.subr.mxu0 0.0
        %1821 = vmatpush1.xpose.msra.mxu0 0.0
        %1822 = vmatprep.subr.mxu0 0.0
        %1823 = vmatpush1.xpose.msra.mxu0 0.0
        %1824 = vmatprep.subr.mxu0 0.0
        %1825 = vmatpush1.xpose.msra.mxu0 0.0
        %1826 = vmatprep.subr.mxu0 0.0
        %1827 = vmatpush1.xpose.msra.mxu0 0.0
        %1828 = vmatprep.subr.mxu0 0.0
        %1829 = vmatpush1.xpose.msra.mxu0 0.0
        %1830 = vmatprep.subr.mxu0 0.0
        %1831 = vmatpush1.xpose.msra.mxu0 0.0
        %1832 = vmatprep.subr.mxu0 0.0
        %1833 = vmatpush1.xpose.msra.mxu0 0.0
        %1834 = vmatprep.subr.mxu0 0.0
        %1835 = vmatpush1.xpose.msra.mxu0 0.0
        %1836 = vmatprep.subr.mxu0 0.0
        %1837 = vmatpush1.xpose.msra.mxu0 0.0
        %1838 = vmatprep.subr.mxu0 0.0
        %1839 = vmatpush1.xpose.msra.mxu0 0.0
        %1840 = vmatprep.subr.mxu0 0.0
        %1841 = vmatpush1.xpose.msra.mxu0 0.0
        %1842 = vmatprep.subr.mxu0 0.0
        %1843 = vmatpush1.xpose.msra.mxu0 0.0
        %1844 = vmatprep.subr.mxu0 0.0
        %1845 = vmatpush1.xpose.msra.mxu0 0.0
        %1846 = vmatprep.subr.mxu0 0.0
        %1847 = vmatpush1.xpose.msra.mxu0 0.0
        %1848 = vmatprep.subr.mxu0 0.0
        %1849 = vmatpush1.xpose.msra.mxu0 0.0
        %1850 = vmatprep.subr.mxu0 0.0
        %1851 = vmatpush1.xpose.msra.mxu0 0.0
        %1852 = vmatprep.subr.mxu0 0.0
        %1853 = vmatpush1.xpose.msra.mxu0 0.0
        %1854 = vmatprep.subr.mxu0 0.0
        %1855 = vmatpush1.xpose.msra.mxu0 0.0
        %1856 = vmatprep.subr.mxu0 0.0
        %1857 = vmatpush1.xpose.msra.mxu0 0.0
        %1858 = vmatprep.subr.mxu0 0.0
        %1859 = vmatpush1.xpose.msra.mxu0 0.0
        %1860 = vmatprep.subr.mxu0 0.0
        %1861 = vmatpush1.xpose.msra.mxu0 0.0
        %1862 = vmatprep.subr.mxu0 0.0
        %1863 = vmatpush1.xpose.msra.mxu0 0.0
        %1864 = vmatprep.subr.mxu0 0.0
        %1865 = vmatpush1.xpose.msra.mxu0 0.0
        %1866 = vmatprep.subr.mxu0 0.0
        %1867 = vmatpush1.xpose.msra.mxu0 0.0
        %1868 = vmatprep.subr.mxu0 0.0
        %1869 = vmatpush1.xpose.msra.mxu0 0.0
        %1870 = vmatprep.subr.mxu0 0.0
        %1871 = vmatpush1.xpose.msra.mxu0 0.0
        %1872 = vmatprep.subr.mxu0 0.0
        %1873 = vmatpush1.xpose.msra.mxu0 0.0
        %1874 = vmatprep.mubr.f32.mxu0 0.0
        %1875 = vmatmul.mubr.f32.gmra.mrb[0].mxu0 %v1806
        %v1876 = vpop.f32.mrb[0].mxu0
        %v1877 = vadd.f32 0.0, %v1876
        %v1878 = vpop.f32.mrb[0].mxu0
        %1879 = vdwg.mxu0
        %v1880 = vadd.f32 %v1803, %v1877
        %1881 = vst.msk [vmem:[%s1796] sm:$0xff] %vm744, %v1880
        %1882 = vst.msk [vmem:[%s1771] sm:$0xff] %vm845, %v1776
        %s1883 = scalar_lea.vmem [#allocation3], 48
        %v1884 = vld [vmem:[%s1883] sm:$0xff]
        %v1886 = vsel %vm744, %v1884, 0
        %v1889 = vsel %vm748, %v638, 0
        %1891 = vmatprep.subr.mxu0 0.0
        %1892 = vmatpush1.msra.mxu0 %v1889
        %1893 = vmatprep.subr.mxu0 0.0
        %1894 = vmatpush1.msra.mxu0 0.0
        %1895 = vmatprep.subr.mxu0 0.0
        %1896 = vmatpush1.msra.mxu0 0.0
        %1897 = vmatprep.subr.mxu0 0.0
        %1898 = vmatpush1.msra.mxu0 0.0
        %1899 = vmatprep.subr.mxu0 0.0
        %1900 = vmatpush1.msra.mxu0 0.0
        %1901 = vmatprep.subr.mxu0 0.0
        %1902 = vmatpush1.msra.mxu0 0.0
        %1903 = vmatprep.subr.mxu0 0.0
        %1904 = vmatpush1.msra.mxu0 0.0
        %1905 = vmatprep.subr.mxu0 0.0
        %1906 = vmatpush1.msra.mxu0 0.0
        %1907 = vmatprep.subr.mxu0 0.0
        %1908 = vmatpush1.msra.mxu0 0.0
        %1909 = vmatprep.subr.mxu0 0.0
        %1910 = vmatpush1.msra.mxu0 0.0
        %1911 = vmatprep.subr.mxu0 0.0
        %1912 = vmatpush1.msra.mxu0 0.0
        %1913 = vmatprep.subr.mxu0 0.0
        %1914 = vmatpush1.msra.mxu0 0.0
        %1915 = vmatprep.subr.mxu0 0.0
        %1916 = vmatpush1.msra.mxu0 0.0
        %1917 = vmatprep.subr.mxu0 0.0
        %1918 = vmatpush1.msra.mxu0 0.0
        %1919 = vmatprep.subr.mxu0 0.0
        %1920 = vmatpush1.msra.mxu0 0.0
        %1921 = vmatprep.subr.mxu0 0.0
        %1922 = vmatpush1.msra.mxu0 0.0
        %1923 = vmatprep.subr.mxu0 0.0
        %1924 = vmatpush1.msra.mxu0 0.0
        %1925 = vmatprep.subr.mxu0 0.0
        %1926 = vmatpush1.msra.mxu0 0.0
        %1927 = vmatprep.subr.mxu0 0.0
        %1928 = vmatpush1.msra.mxu0 0.0
        %1929 = vmatprep.subr.mxu0 0.0
        %1930 = vmatpush1.msra.mxu0 0.0
        %1931 = vmatprep.subr.mxu0 0.0
        %1932 = vmatpush1.msra.mxu0 0.0
        %1933 = vmatprep.subr.mxu0 0.0
        %1934 = vmatpush1.msra.mxu0 0.0
        %1935 = vmatprep.subr.mxu0 0.0
        %1936 = vmatpush1.msra.mxu0 0.0
        %1937 = vmatprep.subr.mxu0 0.0
        %1938 = vmatpush1.msra.mxu0 0.0
        %1939 = vmatprep.subr.mxu0 0.0
        %1940 = vmatpush1.msra.mxu0 0.0
        %1941 = vmatprep.subr.mxu0 0.0
        %1942 = vmatpush1.msra.mxu0 0.0
        %1943 = vmatprep.subr.mxu0 0.0
        %1944 = vmatpush1.msra.mxu0 0.0
        %1945 = vmatprep.subr.mxu0 0.0
        %1946 = vmatpush1.msra.mxu0 0.0
        %1947 = vmatprep.subr.mxu0 0.0
        %1948 = vmatpush1.msra.mxu0 0.0
        %1949 = vmatprep.subr.mxu0 0.0
        %1950 = vmatpush1.msra.mxu0 0.0
        %1951 = vmatprep.subr.mxu0 0.0
        %1952 = vmatpush1.msra.mxu0 0.0
        %1953 = vmatprep.subr.mxu0 0.0
        %1954 = vmatpush1.msra.mxu0 0.0
        %1955 = vmatprep.mubr.f32.mxu0 0.0
        %1956 = vmatmul.mubr.f32.gmra.mrb[0].mxu0 %v1886
        %v1957 = vpop.f32.mrb[0].mxu0
        %v1958 = vadd.f32 0.0, %v1957
        %v1959 = vpop.f32.mrb[0].mxu0
        %1960 = vdwg.mxu0
        %s1961 = scalar_lea.vmem [#allocation4], 48
        %v1962 = vld [vmem:[%s1961] sm:$0xff]
        %v1963 = vsel %vm823, %v1958, -inf
        %1964 = vmax.xlane.f32.xlu0 %v1963
        %v1965 = vpop.xlane.xlu0 %1964
        %v1966 = vmax.f32 %v1962, %v1965
        %v1967 = vsub.f32 %v1962, %v1966
        %v1968 = vmul.f32 %v1967, 1.442695
        %v1969 = vpow.pop %v1968
        %1971 = vset.pattern.permute.xlu0 0
        %1972 = vperm.xlu0 %1971, %v1966
        %v1973 = vpop.permute.xlu0 %1972
        %v1975 = vsub.f32 %v1958, %v1973
        %v1976 = vmul.f32 %v1975, 1.442695
        %v1977 = vpow.pop %v1976
        %s1978 = scalar_lea.vmem [#allocation5], 48
        %v1979 = vld [vmem:[%s1978] sm:$0xff]
        %v1980 = vmul.f32 %v1969, %v1979
        %v1981 = vsel %vm823, %v1977, 0.0
        %1982 = vadd.xlane.f32.xlu0 %v1981
        %v1983 = vpop.xlane.xlu0 %1982
        %v1984 = vadd.f32 %v1980, %v1983
        %1985 = vst.msk [vmem:[%s1978] sm:$0xff] %vm845, %v1984
        %s1986 = scalar_lea.vmem [#allocation6], 48
        %v1987 = vld [vmem:[%s1986] sm:$0xff]
        %1989 = vset.pattern.permute.xlu0 0
        %1990 = vperm.xlu0 %1989, %v1969
        %v1991 = vpop.permute.xlu0 %1990
        %v1993 = vmul.f32 %v1991, %v1987
        %v1995 = vsel %vm823, %v1977, 0
        %v1998 = vsel %vm823, %v740, 0
        %2000 = vmatprep.subr.mxu0 0.0
        %2001 = vmatpush1.xpose.msra.mxu0 %v1998
        %2002 = vmatprep.subr.mxu0 0.0
        %2003 = vmatpush1.xpose.msra.mxu0 0.0
        %2004 = vmatprep.subr.mxu0 0.0
        %2005 = vmatpush1.xpose.msra.mxu0 0.0
        %2006 = vmatprep.subr.mxu0 0.0
        %2007 = vmatpush1.xpose.msra.mxu0 0.0
        %2008 = vmatprep.subr.mxu0 0.0
        %2009 = vmatpush1.xpose.msra.mxu0 0.0
        %2010 = vmatprep.subr.mxu0 0.0
        %2011 = vmatpush1.xpose.msra.mxu0 0.0
        %2012 = vmatprep.subr.mxu0 0.0
        %2013 = vmatpush1.xpose.msra.mxu0 0.0
        %2014 = vmatprep.subr.mxu0 0.0
        %2015 = vmatpush1.xpose.msra.mxu0 0.0
        %2016 = vmatprep.subr.mxu0 0.0
        %2017 = vmatpush1.xpose.msra.mxu0 0.0
        %2018 = vmatprep.subr.mxu0 0.0
        %2019 = vmatpush1.xpose.msra.mxu0 0.0
        %2020 = vmatprep.subr.mxu0 0.0
        %2021 = vmatpush1.xpose.msra.mxu0 0.0
        %2022 = vmatprep.subr.mxu0 0.0
        %2023 = vmatpush1.xpose.msra.mxu0 0.0
        %2024 = vmatprep.subr.mxu0 0.0
        %2025 = vmatpush1.xpose.msra.mxu0 0.0
        %2026 = vmatprep.subr.mxu0 0.0
        %2027 = vmatpush1.xpose.msra.mxu0 0.0
        %2028 = vmatprep.subr.mxu0 0.0
        %2029 = vmatpush1.xpose.msra.mxu0 0.0
        %2030 = vmatprep.subr.mxu0 0.0
        %2031 = vmatpush1.xpose.msra.mxu0 0.0
        %2032 = vmatprep.subr.mxu0 0.0
        %2033 = vmatpush1.xpose.msra.mxu0 0.0
        %2034 = vmatprep.subr.mxu0 0.0
        %2035 = vmatpush1.xpose.msra.mxu0 0.0
        %2036 = vmatprep.subr.mxu0 0.0
        %2037 = vmatpush1.xpose.msra.mxu0 0.0
        %2038 = vmatprep.subr.mxu0 0.0
        %2039 = vmatpush1.xpose.msra.mxu0 0.0
        %2040 = vmatprep.subr.mxu0 0.0
        %2041 = vmatpush1.xpose.msra.mxu0 0.0
        %2042 = vmatprep.subr.mxu0 0.0
        %2043 = vmatpush1.xpose.msra.mxu0 0.0
        %2044 = vmatprep.subr.mxu0 0.0
        %2045 = vmatpush1.xpose.msra.mxu0 0.0
        %2046 = vmatprep.subr.mxu0 0.0
        %2047 = vmatpush1.xpose.msra.mxu0 0.0
        %2048 = vmatprep.subr.mxu0 0.0
        %2049 = vmatpush1.xpose.msra.mxu0 0.0
        %2050 = vmatprep.subr.mxu0 0.0
        %2051 = vmatpush1.xpose.msra.mxu0 0.0
        %2052 = vmatprep.subr.mxu0 0.0
        %2053 = vmatpush1.xpose.msra.mxu0 0.0
        %2054 = vmatprep.subr.mxu0 0.0
        %2055 = vmatpush1.xpose.msra.mxu0 0.0
        %2056 = vmatprep.subr.mxu0 0.0
        %2057 = vmatpush1.xpose.msra.mxu0 0.0
        %2058 = vmatprep.subr.mxu0 0.0
        %2059 = vmatpush1.xpose.msra.mxu0 0.0
        %2060 = vmatprep.subr.mxu0 0.0
        %2061 = vmatpush1.xpose.msra.mxu0 0.0
        %2062 = vmatprep.subr.mxu0 0.0
        %2063 = vmatpush1.xpose.msra.mxu0 0.0
        %2064 = vmatprep.mubr.f32.mxu0 0.0
        %2065 = vmatmul.mubr.f32.gmra.mrb[0].mxu0 %v1995
        %v2066 = vpop.f32.mrb[0].mxu0
        %v2067 = vadd.f32 0.0, %v2066
        %v2068 = vpop.f32.mrb[0].mxu0
        %2069 = vdwg.mxu0
        %v2070 = vadd.f32 %v1993, %v2067
        %2071 = vst.msk [vmem:[%s1986] sm:$0xff] %vm744, %v2070
        %2072 = vst.msk [vmem:[%s1961] sm:$0xff] %vm845, %v1966
        %s2073 = scalar_lea.vmem [#allocation3], 56
        %v2074 = vld [vmem:[%s2073] sm:$0xff]
        %v2075 = vrot.slane %v638, 4
        %v2077 = vsel %vm744, %v2074, 0
        %v2079 = vsel %vm748, %v2075, 0
        %2081 = vmatprep.subr.mxu0 0.0
        %2082 = vmatpush1.msra.mxu0 %v2079
        %2083 = vmatprep.subr.mxu0 0.0
        %2084 = vmatpush1.msra.mxu0 0.0
        %2085 = vmatprep.subr.mxu0 0.0
        %2086 = vmatpush1.msra.mxu0 0.0
        %2087 = vmatprep.subr.mxu0 0.0
        %2088 = vmatpush1.msra.mxu0 0.0
        %2089 = vmatprep.subr.mxu0 0.0
        %2090 = vmatpush1.msra.mxu0 0.0
        %2091 = vmatprep.subr.mxu0 0.0
        %2092 = vmatpush1.msra.mxu0 0.0
        %2093 = vmatprep.subr.mxu0 0.0
        %2094 = vmatpush1.msra.mxu0 0.0
        %2095 = vmatprep.subr.mxu0 0.0
        %2096 = vmatpush1.msra.mxu0 0.0
        %2097 = vmatprep.subr.mxu0 0.0
        %2098 = vmatpush1.msra.mxu0 0.0
        %2099 = vmatprep.subr.mxu0 0.0
        %2100 = vmatpush1.msra.mxu0 0.0
        %2101 = vmatprep.subr.mxu0 0.0
        %2102 = vmatpush1.msra.mxu0 0.0
        %2103 = vmatprep.subr.mxu0 0.0
        %2104 = vmatpush1.msra.mxu0 0.0
        %2105 = vmatprep.subr.mxu0 0.0
        %2106 = vmatpush1.msra.mxu0 0.0
        %2107 = vmatprep.subr.mxu0 0.0
        %2108 = vmatpush1.msra.mxu0 0.0
        %2109 = vmatprep.subr.mxu0 0.0
        %2110 = vmatpush1.msra.mxu0 0.0
        %2111 = vmatprep.subr.mxu0 0.0
        %2112 = vmatpush1.msra.mxu0 0.0
        %2113 = vmatprep.subr.mxu0 0.0
        %2114 = vmatpush1.msra.mxu0 0.0
        %2115 = vmatprep.subr.mxu0 0.0
        %2116 = vmatpush1.msra.mxu0 0.0
        %2117 = vmatprep.subr.mxu0 0.0
        %2118 = vmatpush1.msra.mxu0 0.0
        %2119 = vmatprep.subr.mxu0 0.0
        %2120 = vmatpush1.msra.mxu0 0.0
        %2121 = vmatprep.subr.mxu0 0.0
        %2122 = vmatpush1.msra.mxu0 0.0
        %2123 = vmatprep.subr.mxu0 0.0
        %2124 = vmatpush1.msra.mxu0 0.0
        %2125 = vmatprep.subr.mxu0 0.0
        %2126 = vmatpush1.msra.mxu0 0.0
        %2127 = vmatprep.subr.mxu0 0.0
        %2128 = vmatpush1.msra.mxu0 0.0
        %2129 = vmatprep.subr.mxu0 0.0
        %2130 = vmatpush1.msra.mxu0 0.0
        %2131 = vmatprep.subr.mxu0 0.0
        %2132 = vmatpush1.msra.mxu0 0.0
        %2133 = vmatprep.subr.mxu0 0.0
        %2134 = vmatpush1.msra.mxu0 0.0
        %2135 = vmatprep.subr.mxu0 0.0
        %2136 = vmatpush1.msra.mxu0 0.0
        %2137 = vmatprep.subr.mxu0 0.0
        %2138 = vmatpush1.msra.mxu0 0.0
        %2139 = vmatprep.subr.mxu0 0.0
        %2140 = vmatpush1.msra.mxu0 0.0
        %2141 = vmatprep.subr.mxu0 0.0
        %2142 = vmatpush1.msra.mxu0 0.0
        %2143 = vmatprep.subr.mxu0 0.0
        %2144 = vmatpush1.msra.mxu0 0.0
        %2145 = vmatprep.mubr.f32.mxu0 0.0
        %2146 = vmatmul.mubr.f32.gmra.mrb[0].mxu0 %v2077
        %v2147 = vpop.f32.mrb[0].mxu0
        %v2148 = vadd.f32 0.0, %v2147
        %v2149 = vpop.f32.mrb[0].mxu0
        %2150 = vdwg.mxu0
        %s2151 = scalar_lea.vmem [#allocation4], 56
        %v2152 = vld [vmem:[%s2151] sm:$0xff]
        %v2153 = vsel %vm823, %v2148, -inf
        %2154 = vmax.xlane.f32.xlu0 %v2153
        %v2155 = vpop.xlane.xlu0 %2154
        %v2156 = vmax.f32 %v2152, %v2155
        %v2157 = vsub.f32 %v2152, %v2156
        %v2158 = vmul.f32 %v2157, 1.442695
        %v2159 = vpow.pop %v2158
        %2161 = vset.pattern.permute.xlu0 0
        %2162 = vperm.xlu0 %2161, %v2156
        %v2163 = vpop.permute.xlu0 %2162
        %v2165 = vsub.f32 %v2148, %v2163
        %v2166 = vmul.f32 %v2165, 1.442695
        %v2167 = vpow.pop %v2166
        %s2168 = scalar_lea.vmem [#allocation5], 56
        %v2169 = vld [vmem:[%s2168] sm:$0xff]
        %v2170 = vmul.f32 %v2159, %v2169
        %v2171 = vsel %vm823, %v2167, 0.0
        %2172 = vadd.xlane.f32.xlu0 %v2171
        %v2173 = vpop.xlane.xlu0 %2172
        %v2174 = vadd.f32 %v2170, %v2173
        %2175 = vst.msk [vmem:[%s2168] sm:$0xff] %vm845, %v2174
        %s2176 = scalar_lea.vmem [#allocation6], 56
        %v2177 = vld [vmem:[%s2176] sm:$0xff]
        %2179 = vset.pattern.permute.xlu0 0
        %2180 = vperm.xlu0 %2179, %v2159
        %v2181 = vpop.permute.xlu0 %2180
        %v2183 = vmul.f32 %v2181, %v2177
        %v2184 = vrot.slane %v740, 4
        %v2186 = vsel %vm823, %v2167, 0
        %v2188 = vsel %vm823, %v2184, 0
        %2190 = vmatprep.subr.mxu0 0.0
        %2191 = vmatpush1.xpose.msra.mxu0 %v2188
        %2192 = vmatprep.subr.mxu0 0.0
        %2193 = vmatpush1.xpose.msra.mxu0 0.0
        %2194 = vmatprep.subr.mxu0 0.0
        %2195 = vmatpush1.xpose.msra.mxu0 0.0
        %2196 = vmatprep.subr.mxu0 0.0
        %2197 = vmatpush1.xpose.msra.mxu0 0.0
        %2198 = vmatprep.subr.mxu0 0.0
        %2199 = vmatpush1.xpose.msra.mxu0 0.0
        %2200 = vmatprep.subr.mxu0 0.0
        %2201 = vmatpush1.xpose.msra.mxu0 0.0
        %2202 = vmatprep.subr.mxu0 0.0
        %2203 = vmatpush1.xpose.msra.mxu0 0.0
        %2204 = vmatprep.subr.mxu0 0.0
        %2205 = vmatpush1.xpose.msra.mxu0 0.0
        %2206 = vmatprep.subr.mxu0 0.0
        %2207 = vmatpush1.xpose.msra.mxu0 0.0
        %2208 = vmatprep.subr.mxu0 0.0
        %2209 = vmatpush1.xpose.msra.mxu0 0.0
        %2210 = vmatprep.subr.mxu0 0.0
        %2211 = vmatpush1.xpose.msra.mxu0 0.0
        %2212 = vmatprep.subr.mxu0 0.0
        %2213 = vmatpush1.xpose.msra.mxu0 0.0
        %2214 = vmatprep.subr.mxu0 0.0
        %2215 = vmatpush1.xpose.msra.mxu0 0.0
        %2216 = vmatprep.subr.mxu0 0.0
        %2217 = vmatpush1.xpose.msra.mxu0 0.0
        %2218 = vmatprep.subr.mxu0 0.0
        %2219 = vmatpush1.xpose.msra.mxu0 0.0
        %2220 = vmatprep.subr.mxu0 0.0
        %2221 = vmatpush1.xpose.msra.mxu0 0.0
        %2222 = vmatprep.subr.mxu0 0.0
        %2223 = vmatpush1.xpose.msra.mxu0 0.0
        %2224 = vmatprep.subr.mxu0 0.0
        %2225 = vmatpush1.xpose.msra.mxu0 0.0
        %2226 = vmatprep.subr.mxu0 0.0
        %2227 = vmatpush1.xpose.msra.mxu0 0.0
        %2228 = vmatprep.subr.mxu0 0.0
        %2229 = vmatpush1.xpose.msra.mxu0 0.0
        %2230 = vmatprep.subr.mxu0 0.0
        %2231 = vmatpush1.xpose.msra.mxu0 0.0
        %2232 = vmatprep.subr.mxu0 0.0
        %2233 = vmatpush1.xpose.msra.mxu0 0.0
        %2234 = vmatprep.subr.mxu0 0.0
        %2235 = vmatpush1.xpose.msra.mxu0 0.0
        %2236 = vmatprep.subr.mxu0 0.0
        %2237 = vmatpush1.xpose.msra.mxu0 0.0
        %2238 = vmatprep.subr.mxu0 0.0
        %2239 = vmatpush1.xpose.msra.mxu0 0.0
        %2240 = vmatprep.subr.mxu0 0.0
        %2241 = vmatpush1.xpose.msra.mxu0 0.0
        %2242 = vmatprep.subr.mxu0 0.0
        %2243 = vmatpush1.xpose.msra.mxu0 0.0
        %2244 = vmatprep.subr.mxu0 0.0
        %2245 = vmatpush1.xpose.msra.mxu0 0.0
        %2246 = vmatprep.subr.mxu0 0.0
        %2247 = vmatpush1.xpose.msra.mxu0 0.0
        %2248 = vmatprep.subr.mxu0 0.0
        %2249 = vmatpush1.xpose.msra.mxu0 0.0
        %2250 = vmatprep.subr.mxu0 0.0
        %2251 = vmatpush1.xpose.msra.mxu0 0.0
        %2252 = vmatprep.subr.mxu0 0.0
        %2253 = vmatpush1.xpose.msra.mxu0 0.0
        %2254 = vmatprep.mubr.f32.mxu0 0.0
        %2255 = vmatmul.mubr.f32.gmra.mrb[0].mxu0 %v2186
        %v2256 = vpop.f32.mrb[0].mxu0
        %v2257 = vadd.f32 0.0, %v2256
        %v2258 = vpop.f32.mrb[0].mxu0
        %2259 = vdwg.mxu0
        %v2260 = vadd.f32 %v2183, %v2257
        %2261 = vst.msk [vmem:[%s2176] sm:$0xff] %vm744, %v2260
        %2262 = vst.msk [vmem:[%s2151] sm:$0xff] %vm845, %v2156
        // Predicated region
        $region69: #{tpu_custom_call.1} parent=39 // pred_check
          %p2263 = pneg %p369
        $region70: #{tpu_custom_call.1} parent=39 // pred_check_branch
          %2265 = sbr.rel (%p2263) target = $region72
        $region71: #{tpu_custom_call.1} parent=39 // pred_region
          %v2266 = vld [vmem:[#allocation6] sm:$0xff]
          %v2267 = vld [vmem:[#allocation5] sm:$0xff]
          %v2268 = vrcp.pop %v2267
          %v2269 = vmul.f32 1.0, %v2268
          %2271 = vset.pattern.permute.xlu0 0
          %2272 = vperm.xlu0 %2271, %v2269
          %v2273 = vpop.permute.xlu0 %2272
          %v2275 = vmul.f32 %v2266, %v2273
          %v2276 = vld [vmem:[%s1036] sm:$0xff]
          %v2277 = vld [vmem:[%s1028] sm:$0xff]
          %v2278 = vrcp.pop %v2277
          %v2279 = vmul.f32 1.0, %v2278
          %2281 = vset.pattern.permute.xlu0 0
          %2282 = vperm.xlu0 %2281, %v2279
          %v2283 = vpop.permute.xlu0 %2282
          %v2285 = vmul.f32 %v2276, %v2283
          %v2286 = vld [vmem:[%s1226] sm:$0xff]
          %v2287 = vld [vmem:[%s1218] sm:$0xff]
          %v2288 = vrcp.pop %v2287
          %v2289 = vmul.f32 1.0, %v2288
          %2291 = vset.pattern.permute.xlu0 0
          %2292 = vperm.xlu0 %2291, %v2289
          %v2293 = vpop.permute.xlu0 %2292
          %v2295 = vmul.f32 %v2286, %v2293
          %v2296 = vld [vmem:[%s1416] sm:$0xff]
          %v2297 = vld [vmem:[%s1408] sm:$0xff]
          %v2298 = vrcp.pop %v2297
          %v2299 = vmul.f32 1.0, %v2298
          %2301 = vset.pattern.permute.xlu0 0
          %2302 = vperm.xlu0 %2301, %v2299
          %v2303 = vpop.permute.xlu0 %2302
          %v2305 = vmul.f32 %v2296, %v2303
          %v2306 = vld [vmem:[%s1606] sm:$0xff]
          %v2307 = vld [vmem:[%s1598] sm:$0xff]
          %v2308 = vrcp.pop %v2307
          %v2309 = vmul.f32 1.0, %v2308
          %2311 = vset.pattern.permute.xlu0 0
          %2312 = vperm.xlu0 %2311, %v2309
          %v2313 = vpop.permute.xlu0 %2312
          %v2315 = vmul.f32 %v2306, %v2313
          %v2316 = vld [vmem:[%s1796] sm:$0xff]
          %v2317 = vld [vmem:[%s1788] sm:$0xff]
          %v2318 = vrcp.pop %v2317
          %v2319 = vmul.f32 1.0, %v2318
          %2321 = vset.pattern.permute.xlu0 0
          %2322 = vperm.xlu0 %2321, %v2319
          %v2323 = vpop.permute.xlu0 %2322
          %v2325 = vmul.f32 %v2316, %v2323
          %v2326 = vld [vmem:[%s1986] sm:$0xff]
          %v2327 = vld [vmem:[%s1978] sm:$0xff]
          %v2328 = vrcp.pop %v2327
          %v2329 = vmul.f32 1.0, %v2328
          %2331 = vset.pattern.permute.xlu0 0
          %2332 = vperm.xlu0 %2331, %v2329
          %v2333 = vpop.permute.xlu0 %2332
          %v2335 = vmul.f32 %v2326, %v2333
          %v2336 = vld [vmem:[%s2176] sm:$0xff]
          %v2337 = vld [vmem:[%s2168] sm:$0xff]
          %v2338 = vrcp.pop %v2337
          %v2339 = vmul.f32 1.0, %v2338
          %2341 = vset.pattern.permute.xlu0 0
          %2342 = vperm.xlu0 %2341, %v2339
          %v2343 = vpop.permute.xlu0 %2342
          %v2345 = vmul.f32 %v2336, %v2343
          %2347 = vrot.lane.b32.xlu0 %v2285, 4
          %v2348 = vpop.permute.xlu0 %2347
          %2351 = vrot.lane.b32.xlu0 %v2295, 8
          %v2352 = vpop.permute.xlu0 %2351
          %2355 = vrot.lane.b32.xlu0 %v2305, 12
          %v2356 = vpop.permute.xlu0 %2355
          %2359 = vrot.lane.b32.xlu0 %v2315, 16
          %v2360 = vpop.permute.xlu0 %2359
          %2363 = vrot.lane.b32.xlu0 %v2325, 20
          %v2364 = vpop.permute.xlu0 %2363
          %2367 = vrot.lane.b32.xlu0 %v2335, 24
          %v2368 = vpop.permute.xlu0 %2367
          %2371 = vrot.lane.b32.xlu0 %v2345, 28
          %v2372 = vpop.permute.xlu0 %2371
          %v2374 = vsel %vm744, %v2275, %v2348
          %v2375 = vsel %vm823, %v2374, %v2352
          %vm2376 = vcmask 97280
          %v2377 = vsel %vm2376, %v2375, %v2356
          %vm2378 = vcmask 130048
          %v2379 = vsel %vm2378, %v2377, %v2360
          %vm2380 = vcmask 162816
          %v2381 = vsel %vm2380, %v2379, %v2364
          %vm2382 = vcmask 195584
          %v2383 = vsel %vm2382, %v2381, %v2368
          %vm2384 = vcmask 228352
          %v2385 = vsel %vm2384, %v2383, %v2372
          %v2386 = vld [vmem:[#allocation2] sm:$0xff]
          %v2387 = vld [vmem:[#allocation13] sm:$0xff]
          %v2388 = vld [vmem:[#allocation13 + $0x8] sm:$0xff]
          %v2389 = vld [vmem:[#allocation13 + $0x10] sm:$0xff]
          %v2390 = vld [vmem:[#allocation13 + $0x18] sm:$0xff]
          %v2392 = vsel %vm540, %v2385, 0
          %2394 = vmatprep.subr.mxu0 0.0
          %2395 = vmatpush1.msra.mxu0 %v2387
          %2396 = vmatprep.subr.mxu0 0.0
          %2397 = vmatpush1.msra.mxu0 %v2388
          %2398 = vmatprep.subr.mxu0 0.0
          %2399 = vmatpush1.msra.mxu0 %v2389
          %2400 = vmatprep.subr.mxu0 0.0
          %2401 = vmatpush1.msra.mxu0 %v2390
          %2402 = vmatprep.subr.mxu0 0.0
          %2403 = vmatpush1.msra.mxu0 0.0
          %2404 = vmatprep.subr.mxu0 0.0
          %2405 = vmatpush1.msra.mxu0 0.0
          %2406 = vmatprep.subr.mxu0 0.0
          %2407 = vmatpush1.msra.mxu0 0.0
          %2408 = vmatprep.subr.mxu0 0.0
          %2409 = vmatpush1.msra.mxu0 0.0
          %2410 = vmatprep.subr.mxu0 0.0
          %2411 = vmatpush1.msra.mxu0 0.0
          %2412 = vmatprep.subr.mxu0 0.0
          %2413 = vmatpush1.msra.mxu0 0.0
          %2414 = vmatprep.subr.mxu0 0.0
          %2415 = vmatpush1.msra.mxu0 0.0
          %2416 = vmatprep.subr.mxu0 0.0
          %2417 = vmatpush1.msra.mxu0 0.0
          %2418 = vmatprep.subr.mxu0 0.0
          %2419 = vmatpush1.msra.mxu0 0.0
          %2420 = vmatprep.subr.mxu0 0.0
          %2421 = vmatpush1.msra.mxu0 0.0
          %2422 = vmatprep.subr.mxu0 0.0
          %2423 = vmatpush1.msra.mxu0 0.0
          %2424 = vmatprep.subr.mxu0 0.0
          %2425 = vmatpush1.msra.mxu0 0.0
          %2426 = vmatprep.subr.mxu0 0.0
          %2427 = vmatpush1.msra.mxu0 0.0
          %2428 = vmatprep.subr.mxu0 0.0
          %2429 = vmatpush1.msra.mxu0 0.0
          %2430 = vmatprep.subr.mxu0 0.0
          %2431 = vmatpush1.msra.mxu0 0.0
          %2432 = vmatprep.subr.mxu0 0.0
          %2433 = vmatpush1.msra.mxu0 0.0
          %2434 = vmatprep.subr.mxu0 0.0
          %2435 = vmatpush1.msra.mxu0 0.0
          %2436 = vmatprep.subr.mxu0 0.0
          %2437 = vmatpush1.msra.mxu0 0.0
          %2438 = vmatprep.subr.mxu0 0.0
          %2439 = vmatpush1.msra.mxu0 0.0
          %2440 = vmatprep.subr.mxu0 0.0
          %2441 = vmatpush1.msra.mxu0 0.0
          %2442 = vmatprep.subr.mxu0 0.0
          %2443 = vmatpush1.msra.mxu0 0.0
          %2444 = vmatprep.subr.mxu0 0.0
          %2445 = vmatpush1.msra.mxu0 0.0
          %2446 = vmatprep.subr.mxu0 0.0
          %2447 = vmatpush1.msra.mxu0 0.0
          %2448 = vmatprep.subr.mxu0 0.0
          %2449 = vmatpush1.msra.mxu0 0.0
          %2450 = vmatprep.subr.mxu0 0.0
          %2451 = vmatpush1.msra.mxu0 0.0
          %2452 = vmatprep.subr.mxu0 0.0
          %2453 = vmatpush1.msra.mxu0 0.0
          %2454 = vmatprep.subr.mxu0 0.0
          %2455 = vmatpush1.msra.mxu0 0.0
          %2456 = vmatprep.subr.mxu0 0.0
          %2457 = vmatpush1.msra.mxu0 0.0
          %2458 = vmatprep.mubr.f32.mxu0 0.0
          %2459 = vmatmul.mubr.f32.gmra.mrb[0].mxu0 %v2392
          %v2460 = vpop.f32.mrb[0].mxu0
          %v2461 = vadd.f32 0.0, %v2460
          %v2462 = vpop.f32.mrb[0].mxu0
          %2463 = vdwg.mxu0
          %v2464 = vadd.f32 %v2386, %v2461
          %2465 = vst.msk [vmem:[#allocation2] sm:$0xff] %vm540, %v2464
          // Predicated region
          $region73: #{tpu_custom_call.1} parent=71 // pred_check
            %p2466 = pneg %p368
          $region74: #{tpu_custom_call.1} parent=71 // pred_check_branch
            %2468 = sbr.rel (%p2466) target = $region76
          $region75: #{tpu_custom_call.1} parent=71 // pred_region
            %v2469 = vld [vmem:[#allocation2] sm:$0xff]
            %v2470 = vld [vmem:[#allocation15] sm:$0x1]
            %v2472 = vlaneseq
            %v2473 = vshrl.u32 %v2472, 7
            %v2474 = vsub.s32 0, %v2473
            %v2475 = vrot.slane %v2470, %v2474
            %v2477 = vadd.f32 %v2469, %v2475
            %2478 = vst.msk [vmem:[%s367] sm:$0xff] %vm540, %v2477
          $region76: #{tpu_custom_call.1} parent=71 // pred_fallthru
            _
        $region72: #{tpu_custom_call.1} parent=39 // pred_fallthru
          _
        %s2479 = sand.u32 %s191, 1
        %s2480 = scalar_lea.sflag [#allocation9], %s2479
        %s2481 = sand.u32 %s191, 1
        %s2482 = smul.addr %s2481, 8
        %s2483 = scalar_lea.vmem [#allocation16], %s2482
        // Predicated region
        $region77: #{tpu_custom_call.1} parent=39 // pred_check
          %p2484 = pneg %p201
        $region78: #{tpu_custom_call.1} parent=39 // pred_check_branch
          %2486 = sbr.rel (%p2484) target = $region80
        $region79: #{tpu_custom_call.1} parent=39 // pred_region
          %s2488 = ssub.s32 128, 128
          %2489 = vsyncadd %s2480, %s2488
          %s2490 = sadd.s32 %s33, %s32
          %s2491 = smul.addr %s2490, 128
          %s2492 = scalar_lea.hbm %s5, %s2491
          %s2494 = sshll.u32 %s2483, 4
          %s2495 = int_to_ptr.vmem [resolvable:$true] %s2494
          %2497 = dma.vmem_to_hbm [thread:$0]  %s2495, 128, %s2492, %s2480
        $region80: #{tpu_custom_call.1} parent=39 // pred_fallthru
          _
      $region40: #{tpu_custom_call.1} parent=5 // pred_fallthru
        _
      %p2498 = scmp.le.s32.totalorder 2, %s21
      // Predicated region
      $region81: #{tpu_custom_call.1} parent=5 // pred_check
        %p2499 = pneg %p2498
      $region82: #{tpu_custom_call.1} parent=5 // pred_check_branch
        %2501 = sbr.rel (%p2499) target = $region84
      $region83: #{tpu_custom_call.1} parent=5 // pred_region
        %s2502 = ssub.s32 %s21, 2
        // Predicated region
        $region85: #{tpu_custom_call.1} parent=83 // pred_check
          %p2503 = pneg %p207
        $region86: #{tpu_custom_call.1} parent=83 // pred_check_branch
          %2505 = sbr.rel (%p2503) target = $region88
        $region87: #{tpu_custom_call.1} parent=83 // pred_region
          %s2506 = sand.u32 %s192, 1
          %s2507 = scalar_lea.sflag [#allocation9], %s2506
          %s2508 = sand.u32 %s192, 1
          %s2509 = smul.addr %s2508, 8
          %s2510 = scalar_lea.vmem [#allocation16], %s2509
          %2511 = dma.done %s2507, 128
        $region88: #{tpu_custom_call.1} parent=83 // pred_fallthru
          _
      $region84: #{tpu_custom_call.1} parent=5 // pred_fallthru
        _
    $region6: #{tpu_custom_call.1} parent=1 // loop_footer
      %s25 = sadd.s32 1, %s21
    $region7: #{tpu_custom_call.1} parent=1 // loop_footer_branch
      %20 = sbr.rel target = $region3
    $region8: #{tpu_custom_call.1} parent=1 // loop_exit
      _
    %2512 = vsyncpa [#allocation8], 1
    %s2513 = scalar_lea.sflag [#allocation8], 1
    %2514 = vsyncpa %s2513, 1
    %2515 = vsyncpa [#allocation11], 1
    %s2516 = scalar_lea.sflag [#allocation11], 1
    %2517 = vsyncpa %s2516, 1
    %2518 = vsyncpa [#allocation14], 1
    %2519 = vsyncpa [#allocation9], 1
    %s2520 = scalar_lea.sflag [#allocation9], 1
    %2521 = vsyncpa %s2520, 1

</llo_original>
